<compile_context>
chip_gen: v7x
topology: tpu7x:2x2x1
jax: 0.10.0
libtpu: 0.0.40
codegen_flags: <defaults>
</compile_context>

<pallas_src>
import functools

import jax
import jax.numpy as jnp
from jax import lax
from jax.experimental import pallas as pl
from jax.experimental.pallas import tpu as pltpu


_VMEM_LIMIT = 48 * 1024 * 1024
_PARAMS_1D = pltpu.CompilerParams(
    dimension_semantics=("parallel",), vmem_limit_bytes=_VMEM_LIMIT)


def _round_up(x, m):
    return (x + m - 1) // m * m


# ---------------------------------------------------------------------------
# layer1: Linear(nz -> 7*7*ngf*8) + ReLU, tiled over the F axis
# ---------------------------------------------------------------------------
def _linear_relu_kernel(z_ref, w_ref, b_ref, o_ref):
    y = jnp.dot(z_ref[...], w_ref[...], preferred_element_type=jnp.float32)
    o_ref[...] = jnp.maximum(y + b_ref[...], 0.0)


def linear_relu(z, w, b, *, tile_f=512):
    # z: [B, nz];  w: [F, nz] (PyTorch nn.Linear layout);  b: [F]
    B, nz = z.shape
    F = w.shape[0]
    F_pad = _round_up(F, tile_f)
    wt = jnp.pad(w.T.astype(jnp.bfloat16), ((0, 0), (0, F_pad - F)))
    b2 = jnp.pad(b.astype(jnp.float32), (0, F_pad - F)).reshape(1, F_pad)
    out = pl.pallas_call(
        _linear_relu_kernel,
        out_shape=jax.ShapeDtypeStruct((B, F_pad), jnp.float32),
        grid=(F_pad // tile_f,),
        in_specs=[
            pl.BlockSpec((B, nz), lambda j: (0, 0)),        # z resident
            pl.BlockSpec((nz, tile_f), lambda j: (0, j)),   # weight tiles stream
            pl.BlockSpec((1, tile_f), lambda j: (0, j)),
        ],
        out_specs=pl.BlockSpec((B, tile_f), lambda j: (0, j)),
        compiler_params=_PARAMS_1D,
    )(z.astype(jnp.bfloat16), wt, b2)
    return out[:, :F]


# ---------------------------------------------------------------------------
# ConvTranspose2d (k=3) kernels: 9-tap accumulation over a padded flat slab
# ---------------------------------------------------------------------------
def _make_conv_pass1_bn_kernel(offs, ncol_pad):
    n_taps = len(offs)

    def kernel(x_ref, w_ref, m_ref, y_ref, sum_ref, sq_ref):
        # x_ref: [Cin, LP] bf16   w_ref: [9, Cout_pad, Cin] bf16
        acc = jnp.dot(w_ref[0], x_ref[:, pl.ds(offs[0], ncol_pad)],
                      preferred_element_type=jnp.float32)
        for t in range(1, n_taps):
            acc = acc + jnp.dot(w_ref[t], x_ref[:, pl.ds(offs[t], ncol_pad)],
                                preferred_element_type=jnp.float32)
        mask = m_ref[...]                                   # valid-column mask
        y_ref[...] = acc                                    # pre-BN activations
        sum_ref[...] = jnp.sum(acc * mask, axis=1, keepdims=True)
        sq_ref[...] = jnp.sum(acc * acc * mask, axis=1, keepdims=True)

    return kernel


def _make_conv_pass1_bias_tanh_kernel(offs, ncol_pad):
    n_taps = len(offs)

    def kernel(x_ref, w_ref, b_ref, o_ref):
        acc = jnp.dot(w_ref[0], x_ref[:, pl.ds(offs[0], ncol_pad)],
                      preferred_element_type=jnp.float32)
        for t in range(1, n_taps):
            acc = acc + jnp.dot(w_ref[t], x_ref[:, pl.ds(offs[t], ncol_pad)],
                                preferred_element_type=jnp.float32)
        o_ref[...] = jnp.tanh(acc + b_ref[...])

    return kernel


def _bn_lrelu_kernel(y_ref, scale_ref, shift_ref, o_ref):
    # Folded BatchNorm (one FMA) + LeakyReLU(0.01), f32 math, bf16 store.
    o = y_ref[...] * scale_ref[...] + shift_ref[...]
    o = jnp.where(o >= 0.0, o, 0.01 * o)
    o_ref[...] = o.astype(o_ref.dtype)


# ---------------------------------------------------------------------------
# geometry + cheap XLA glue (layout only, no compute)
# ---------------------------------------------------------------------------
def _convt_geom(H, W, k, stride, padding, output_padding):
    lo = k - 1 - padding
    hi = lo + output_padding
    Ho = (H - 1) * stride - 2 * padding + k + output_padding
    Wo = (W - 1) * stride - 2 * padding + k + output_padding
    Hp = (H - 1) * stride + 1 + lo + hi          # = Ho + k - 1
    Wp = (W - 1) * stride + 1 + lo + hi          # = Wo + k - 1
    ncol_pad = _round_up(Ho * Wp, 128)           # lane-dense output columns
    offs = tuple(dy * Wp + dx for dy in range(k) for dx in range(k))
    LP = _round_up(offs[-1] + ncol_pad, 128)
    return lo, hi, Ho, Wo, Hp, Wp, ncol_pad, offs, LP


def _prep_conv_input(x, stride, lo, hi, LP):
    # x: [B, C, H, W] -> zero-dilated, padded, flattened bf16 slab [B, C, LP]
    zero = jnp.zeros((), jnp.bfloat16)
    xp = lax.pad(x.astype(jnp.bfloat16), zero,
                 [(0, 0, 0), (0, 0, 0),
                  (lo, hi, stride - 1), (lo, hi, stride - 1)])
    B, C, Hp, Wp = xp.shape
    xf = xp.reshape(B, C, Hp * Wp)
    return lax.pad(xf, zero, [(0, 0, 0), (0, 0, 0), (0, LP - Hp * Wp, 0)])


def _prep_conv_weights(wt, cout_pad):
    # wt: [Cin, Cout, 3, 3] (PyTorch ConvTranspose2d) -> taps [9, Cout_pad, Cin]
    Cin, Cout, KH, KW = wt.shape
    w_flip = wt[:, :, ::-1, ::-1]
    w_taps = jnp.transpose(w_flip, (2, 3, 1, 0)).reshape(KH * KW, Cout, Cin)
    w_taps = jnp.pad(w_taps, ((0, 0), (0, cout_pad - Cout), (0, 0)))
    return w_taps.astype(jnp.bfloat16)


# ---------------------------------------------------------------------------
# fused ConvTranspose2d + BatchNorm2d(batch stats) + LeakyReLU
# ---------------------------------------------------------------------------
def conv_transpose_bn_lrelu(x, wt, gamma, beta, *, stride, padding,
                            output_padding, eps=1e-5):
    B, Cin, H, W = x.shape
    _, Cout, KH, _ = wt.shape
    lo, hi, Ho, Wo, Hp, Wp, ncol_pad, offs, LP = _convt_geom(
        H, W, KH, stride, padding, output_padding)
    cout_pad = _round_up(Cout, 8)

    xf = _prep_conv_input(x, stride, lo, hi, LP)       # [B, Cin, LP] bf16
    w_taps = _prep_conv_weights(wt, cout_pad)          # [9, Cout_pad, Cin] bf16
    cols = jnp.arange(ncol_pad, dtype=jnp.int32)
    mask = ((cols < Ho * Wp) & ((cols % Wp) < Wo)).astype(jnp.float32)
    mask = mask.reshape(1, ncol_pad)

    n_taps = len(offs)
    # pass 1: conv matmul + masked per-image sum / sumsq (conv bias dropped:
    # it is exactly cancelled by BN mean subtraction).
    y, ssum, ssq = pl.pallas_call(
        _make_conv_pass1_bn_kernel(offs, ncol_pad),
        out_shape=(jax.ShapeDtypeStruct((B, cout_pad, ncol_pad), jnp.float32),
                   jax.ShapeDtypeStruct((B, cout_pad, 1), jnp.float32),
                   jax.ShapeDtypeStruct((B, cout_pad, 1), jnp.float32)),
        grid=(B,),
        in_specs=[
            pl.BlockSpec((None, Cin, LP), lambda b: (b, 0, 0)),
            pl.BlockSpec((n_taps, cout_pad, Cin), lambda b: (0, 0, 0)),
            pl.BlockSpec((1, ncol_pad), lambda b: (0, 0)),
        ],
        out_specs=(
            pl.BlockSpec((None, cout_pad, ncol_pad), lambda b: (b, 0, 0)),
            pl.BlockSpec((None, cout_pad, 1), lambda b: (b, 0, 0)),
            pl.BlockSpec((None, cout_pad, 1), lambda b: (b, 0, 0)),
        ),
        compiler_params=_PARAMS_1D,
    )(xf, w_taps, mask)

    # pass 2 (tiny per-channel math): global batch stats -> folded scale/shift.
    cnt = jnp.float32(B * Ho * Wo)
    s = jnp.sum(ssum[:, :, 0], axis=0)
    sq = jnp.sum(ssq[:, :, 0], axis=0)
    mean = s / cnt
    var = jnp.maximum(sq / cnt - mean * mean, 0.0)      # biased variance
    gamma_p = jnp.pad(gamma.astype(jnp.float32), (0, cout_pad - Cout),
                      constant_values=1.0)
    beta_p = jnp.pad(beta.astype(jnp.float32), (0, cout_pad - Cout))
    scale_v = gamma_p * lax.rsqrt(var + eps)
    shift_v = beta_p - mean * scale_v

    # pass 3: fused scale/shift + LeakyReLU, bf16 output for the next layer.
    act = pl.pallas_call(
        _bn_lrelu_kernel,
        out_shape=jax.ShapeDtypeStruct((B, cout_pad, ncol_pad), jnp.bfloat16),
        grid=(B,),
        in_specs=[
            pl.BlockSpec((None, cout_pad, ncol_pad), lambda b: (b, 0, 0)),
            pl.BlockSpec((cout_pad, 1), lambda b: (0, 0)),
            pl.BlockSpec((cout_pad, 1), lambda b: (0, 0)),
        ],
        out_specs=pl.BlockSpec((None, cout_pad, ncol_pad), lambda b: (b, 0, 0)),
        compiler_params=_PARAMS_1D,
    )(y, scale_v.reshape(cout_pad, 1), shift_v.reshape(cout_pad, 1))

    # strip channel / column padding -> [B, Cout, Ho, Wo]
    act = act[:, :Cout, :Ho * Wp].reshape(B, Cout, Ho, Wp)[:, :, :, :Wo]
    return act


# ---------------------------------------------------------------------------
# fused ConvTranspose2d + bias + Tanh (final layer, no BN)
# ---------------------------------------------------------------------------
def conv_transpose_bias_tanh(x, wt, bias, *, stride, padding, output_padding):
    B, Cin, H, W = x.shape
    _, Cout, KH, _ = wt.shape
    lo, hi, Ho, Wo, Hp, Wp, ncol_pad, offs, LP = _convt_geom(
        H, W, KH, stride, padding, output_padding)
    cout_pad = _round_up(Cout, 8)

    xf = _prep_conv_input(x, stride, lo, hi, LP)
    w_taps = _prep_conv_weights(wt, cout_pad)
    b2 = jnp.pad(bias.astype(jnp.float32),
                 (0, cout_pad - Cout)).reshape(cout_pad, 1)

    n_taps = len(offs)
    y = pl.pallas_call(
        _make_conv_pass1_bias_tanh_kernel(offs, ncol_pad),
        out_shape=jax.ShapeDtypeStruct((B, cout_pad, ncol_pad), jnp.float32),
        grid=(B,),
        in_specs=[
            pl.BlockSpec((None, Cin, LP), lambda b: (b, 0, 0)),
            pl.BlockSpec((n_taps, cout_pad, Cin), lambda b: (0, 0, 0)),
            pl.BlockSpec((cout_pad, 1), lambda b: (0, 0)),
        ],
        out_specs=pl.BlockSpec((None, cout_pad, ncol_pad), lambda b: (b, 0, 0)),
        compiler_params=_PARAMS_1D,
    )(xf, w_taps, b2)

    return y[:, :Cout, :Ho * Wp].reshape(B, Cout, Ho, Wp)[:, :, :, :Wo]


# ---------------------------------------------------------------------------
# Generator forward (mirrors the PyTorch module)
# ---------------------------------------------------------------------------
def init_params(key, nz, ngf, nc):
    F = 7 * 7 * ngf * 8
    ks = jax.random.split(key, 16)
    rn = lambda k, s, sc=0.05: sc * jax.random.normal(k, s, jnp.float32)
    return {
        "w1": rn(ks[0], (F, nz)), "b1": rn(ks[1], (F,)),
        "wt1": rn(ks[2], (ngf * 8, ngf * 4, 3, 3)), "bc1": rn(ks[3], (ngf * 4,)),
        "g1": 1.0 + rn(ks[4], (ngf * 4,)), "be1": rn(ks[5], (ngf * 4,)),
        "wt2": rn(ks[6], (ngf * 4, ngf * 2, 3, 3)), "bc2": rn(ks[7], (ngf * 2,)),
        "g2": 1.0 + rn(ks[8], (ngf * 2,)), "be2": rn(ks[9], (ngf * 2,)),
        "wt3": rn(ks[10], (ngf * 2, ngf, 3, 3)), "bc3": rn(ks[11], (ngf,)),
        "g3": 1.0 + rn(ks[12], (ngf,)), "be3": rn(ks[13], (ngf,)),
        "wt4": rn(ks[14], (ngf, nc, 3, 3)), "bc4": rn(ks[15], (nc,)),
    }


def generator_forward(params, z, ngf, nc):
    B = z.shape[0]
    out = linear_relu(z, params["w1"], params["b1"])           # [B, F]
    out = out.reshape(B, ngf * 8, 7, 7)                        # NCHW, no transpose
    # bc1..bc3 intentionally unused: a conv bias before BatchNorm is exactly
    # cancelled by the mean subtraction (same output as the reference).
    out = conv_transpose_bn_lrelu(out, params["wt1"], params["g1"], params["be1"],
                                  stride=2, padding=1, output_padding=1)   # 7 -> 14
    out = conv_transpose_bn_lrelu(out, params["wt2"], params["g2"], params["be2"],
                                  stride=1, padding=1, output_padding=0)   # 14 -> 14
    out = conv_transpose_bn_lrelu(out, params["wt3"], params["g3"], params["be3"],
                                  stride=1, padding=1, output_padding=0)   # 14 -> 14
    out = conv_transpose_bias_tanh(out, params["wt4"], params["bc4"],
                                   stride=2, padding=1, output_padding=1)  # 14 -> 28
    return out


# ---------------------------------------------------------------------------
# pure-JAX f32 reference for validation
# ---------------------------------------------------------------------------
def reference_forward(params, z, ngf):
    B = z.shape[0]
    y = jnp.maximum(z @ params["w1"].T + params["b1"], 0.0)
    y = y.reshape(B, ngf * 8, 7, 7)

    def convt(x, wt, b, stride, padding, output_padding):
        Cin, Cout, KH, KW = wt.shape
        w_conv = jnp.transpose(wt[:, :, ::-1, ::-1], (1, 0, 2, 3))   # OIHW
        lo = KH - 1 - padding
        hi = lo + output_padding
        out = lax.conv_general_dilated(
            x, w_conv, window_strides=(1, 1),
            padding=[(lo, hi), (lo, hi)], lhs_dilation=(stride, stride),
            dimension_numbers=("NCHW", "OIHW", "NCHW"))
        return out + b.reshape(1, Cout, 1, 1)

    def bn(x, g, be, eps=1e-5):
        mean = jnp.mean(x, axis=(0, 2, 3), keepdims=True)
        var = jnp.mean(jnp.square(x - mean), axis=(0, 2, 3), keepdims=True)
        return (x - mean) * lax.rsqrt(var + eps) * g.reshape(1, -1, 1, 1) \
            + be.reshape(1, -1, 1, 1)

    lrelu = lambda x: jnp.where(x >= 0, x, 0.01 * x)
    y = lrelu(bn(convt(y, params["wt1"], params["bc1"], 2, 1, 1),
                 params["g1"], params["be1"]))
    y = lrelu(bn(convt(y, params["wt2"], params["bc2"], 1, 1, 0),
                 params["g2"], params["be2"]))
    y = lrelu(bn(convt(y, params["wt3"], params["bc3"], 1, 1, 0),
                 params["g3"], params["be3"]))
    y = jnp.tanh(convt(y, params["wt4"], params["bc4"], 2, 1, 1))
    return y


if __name__ == "__main__":
    nz, ngf, nc, B = 16, 8, 3, 2      # small shapes; module defaults are 100/64/3
    key = jax.random.PRNGKey(0)
    kp, kz = jax.random.split(key)
    params = init_params(kp, nz, ngf, nc)
    z = jax.random.normal(kz, (B, nz), jnp.float32)

    fwd = jax.jit(functools.partial(generator_forward, ngf=ngf, nc=nc))
    out = jax.block_until_ready(fwd(params, z))
    assert out.shape == (B, nc, 28, 28), out.shape

    ref = jax.block_until_ready(reference_forward(params, z, ngf))
    err = float(jnp.max(jnp.abs(out - ref)))
    assert err < 5e-2, f"max abs err too large: {err}"
    print("KERNEL_OK")
</pallas_src>

<mosaic_0001>
module attributes {stable_mosaic.version = 11 : i64} {
  func.func @_linear_relu_kernel(%arg0: i32, %arg1: memref<2x16xbf16, #tpu.memory_space<vmem>>, %arg2: memref<16x512xbf16, #tpu.memory_space<vmem>>, %arg3: memref<1x512xf32, #tpu.memory_space<vmem>>, %arg4: memref<2x512xf32, #tpu.memory_space<vmem>>) attributes {dimension_semantics = [#tpu.dimension_semantics<parallel>], iteration_bounds = array<i64: 7>, scalar_prefetch = 0 : i64, scratch_operands = 0 : i64, tpu.core_type = #tpu.core_type<tc>, window_params = [{pipeline_mode = #tpu.pipeline_mode<synchronous>, transform_indices = @transform_0, window_bounds = array<i64: 2, 16>}, {transform_indices = @transform_1, window_bounds = array<i64: 16, 512>}, {transform_indices = @transform_2, window_bounds = array<i64: 1, 512>}, {transform_indices = @transform_3, window_bounds = array<i64: 2, 512>}]} {
    %c0 = arith.constant 0 : index
    %c0_0 = arith.constant 0 : index
    %0 = vector.load %arg1[%c0, %c0_0] : memref<2x16xbf16, #tpu.memory_space<vmem>>, vector<2x16xbf16>
    %c0_1 = arith.constant 0 : index
    %c0_2 = arith.constant 0 : index
    %1 = vector.load %arg2[%c0_1, %c0_2] : memref<16x512xbf16, #tpu.memory_space<vmem>>, vector<16x512xbf16>
    %cst = arith.constant dense<0.000000e+00> : vector<2x512xf32>
    %2 = tpu.matmul %0, %1, %cst {dimension_numbers = #tpu.dot_dimension_numbers<[1], [0], [0], [1], [0, 0, 1, 1], [], []>} : vector<2x16xbf16>, vector<16x512xbf16>, vector<2x512xf32> -> vector<2x512xf32>
    %c0_3 = arith.constant 0 : index
    %c0_4 = arith.constant 0 : index
    %3 = vector.load %arg3[%c0_3, %c0_4] : memref<1x512xf32, #tpu.memory_space<vmem>>, vector<1x512xf32>
    %4 = vector.broadcast %3 : vector<1x512xf32> to vector<2x512xf32>
    %5 = arith.addf %2, %4 : vector<2x512xf32>
    %cst_5 = arith.constant 0.000000e+00 : f32
    %6 = vector.broadcast %cst_5 : f32 to vector<2x512xf32>
    %7 = arith.maximumf %5, %6 : vector<2x512xf32>
    %c0_6 = arith.constant 0 : index
    %c0_7 = arith.constant 0 : index
    %8 = vector.load %arg4[%c0_6, %c0_7] : memref<2x512xf32, #tpu.memory_space<vmem>>, vector<2x512xf32>
    tpu.vector_store %arg4[%c0_6, %c0_7], %7 {strides = array<i32>} : memref<2x512xf32, #tpu.memory_space<vmem>>, vector<2x512xf32>,
    return
  }
  func.func @transform_0(%arg0: i32) -> (i32, i32) {
    %c0_i32 = arith.constant 0 : i32
    %c0_i32_0 = arith.constant 0 : i32
    %c0_i32_1 = arith.constant 0 : i32
    return %c0_i32, %c0_i32_0 : i32, i32
  }
  func.func @transform_1(%arg0: i32) -> (i32, i32) {
    %c0_i32 = arith.constant 0 : i32
    %c0_i32_0 = arith.constant 0 : i32
    return %c0_i32, %arg0 : i32, i32
  }
  func.func @transform_2(%arg0: i32) -> (i32, i32) {
    %c0_i32 = arith.constant 0 : i32
    %c0_i32_0 = arith.constant 0 : i32
    return %c0_i32, %arg0 : i32, i32
  }
  func.func @transform_3(%arg0: i32) -> (i32, i32) {
    %c0_i32 = arith.constant 0 : i32
    %c0_i32_0 = arith.constant 0 : i32
    return %c0_i32, %arg0 : i32, i32
  }
}

module attributes {stable_mosaic.version = 11 : i64} {
  func.func @kernel(%arg0: i32, %arg1: memref<1x64x384xbf16, #tpu.memory_space<vmem>>, %arg2: memref<9x32x64xbf16, #tpu.memory_space<vmem>>, %arg3: memref<1x256xf32, #tpu.memory_space<vmem>>, %arg4: memref<1x32x256xf32, #tpu.memory_space<vmem>>, %arg5: memref<1x32x1xf32, #tpu.memory_space<vmem>>, %arg6: memref<1x32x1xf32, #tpu.memory_space<vmem>>) attributes {dimension_semantics = [#tpu.dimension_semantics<parallel>], iteration_bounds = array<i64: 2>, scalar_prefetch = 0 : i64, scratch_operands = 0 : i64, tpu.core_type = #tpu.core_type<tc>, window_params = [{transform_indices = @transform_0, window_bounds = array<i64: 1, 64, 384>}, {pipeline_mode = #tpu.pipeline_mode<synchronous>, transform_indices = @transform_1, window_bounds = array<i64: 9, 32, 64>}, {pipeline_mode = #tpu.pipeline_mode<synchronous>, transform_indices = @transform_2, window_bounds = array<i64: 1, 256>}, {transform_indices = @transform_3, window_bounds = array<i64: 1, 32, 256>}, {transform_indices = @transform_4, window_bounds = array<i64: 1, 32, 1>}, {transform_indices = @transform_5, window_bounds = array<i64: 1, 32, 1>}]} {
    %c0 = arith.constant 0 : index
    %c0_0 = arith.constant 0 : index
    %c0_1 = arith.constant 0 : index
    %0 = vector.load %arg2[%c0, %c0_0, %c0_1] : memref<9x32x64xbf16, #tpu.memory_space<vmem>>, vector<1x32x64xbf16>
    %1 = vector.shape_cast %0 : vector<1x32x64xbf16> to vector<32x64xbf16>
    %c0_2 = arith.constant 0 : index
    %c0_3 = arith.constant 0 : index
    %c0_4 = arith.constant 0 : index
    %2 = vector.load %arg1[%c0_2, %c0_3, %c0_4] : memref<1x64x384xbf16, #tpu.memory_space<vmem>>, vector<1x64x256xbf16>
    %3 = vector.shape_cast %2 : vector<1x64x256xbf16> to vector<64x256xbf16>
    %cst = arith.constant dense<0.000000e+00> : vector<32x256xf32>
    %4 = tpu.matmul %1, %3, %cst {dimension_numbers = #tpu.dot_dimension_numbers<[1], [0], [0], [1], [0, 0, 1, 1], [], []>} : vector<32x64xbf16>, vector<64x256xbf16>, vector<32x256xf32> -> vector<32x256xf32>
    %c1 = arith.constant 1 : index
    %c0_5 = arith.constant 0 : index
    %c0_6 = arith.constant 0 : index
    %5 = vector.load %arg2[%c1, %c0_5, %c0_6] : memref<9x32x64xbf16, #tpu.memory_space<vmem>>, vector<1x32x64xbf16>
    %6 = vector.shape_cast %5 : vector<1x32x64xbf16> to vector<32x64xbf16>
    %c0_7 = arith.constant 0 : index
    %c0_8 = arith.constant 0 : index
    %c1_9 = arith.constant 1 : index
    %7 = vector.load %arg1[%c0_7, %c0_8, %c1_9] : memref<1x64x384xbf16, #tpu.memory_space<vmem>>, vector<1x64x256xbf16>
    %8 = vector.shape_cast %7 : vector<1x64x256xbf16> to vector<64x256xbf16>
    %cst_10 = arith.constant dense<0.000000e+00> : vector<32x256xf32>
    %9 = tpu.matmul %6, %8, %cst_10 {dimension_numbers = #tpu.dot_dimension_numbers<[1], [0], [0], [1], [0, 0, 1, 1], [], []>} : vector<32x64xbf16>, vector<64x256xbf16>, vector<32x256xf32> -> vector<32x256xf32>
    %10 = arith.addf %4, %9 : vector<32x256xf32>
    %c2 = arith.constant 2 : index
    %c0_11 = arith.constant 0 : index
    %c0_12 = arith.constant 0 : index
    %11 = vector.load %arg2[%c2, %c0_11, %c0_12] : memref<9x32x64xbf16, #tpu.memory_space<vmem>>, vector<1x32x64xbf16>
    %12 = vector.shape_cast %11 : vector<1x32x64xbf16> to vector<32x64xbf16>
    %c0_13 = arith.constant 0 : index
    %c0_14 = arith.constant 0 : index
    %c2_15 = arith.constant 2 : index
    %13 = vector.load %arg1[%c0_13, %c0_14, %c2_15] : memref<1x64x384xbf16, #tpu.memory_space<vmem>>, vector<1x64x256xbf16>
    %14 = vector.shape_cast %13 : vector<1x64x256xbf16> to vector<64x256xbf16>
    %cst_16 = arith.constant dense<0.000000e+00> : vector<32x256xf32>
    %15 = tpu.matmul %12, %14, %cst_16 {dimension_numbers = #tpu.dot_dimension_numbers<[1], [0], [0], [1], [0, 0, 1, 1], [], []>} : vector<32x64xbf16>, vector<64x256xbf16>, vector<32x256xf32> -> vector<32x256xf32>
    %16 = arith.addf %10, %15 : vector<32x256xf32>
    %c3 = arith.constant 3 : index
    %c0_17 = arith.constant 0 : index
    %c0_18 = arith.constant 0 : index
    %17 = vector.load %arg2[%c3, %c0_17, %c0_18] : memref<9x32x64xbf16, #tpu.memory_space<vmem>>, vector<1x32x64xbf16>
    %18 = vector.shape_cast %17 : vector<1x32x64xbf16> to vector<32x64xbf16>
    %c0_19 = arith.constant 0 : index
    %c0_20 = arith.constant 0 : index
    %c16 = arith.constant 16 : index
    %19 = vector.load %arg1[%c0_19, %c0_20, %c16] : memref<1x64x384xbf16, #tpu.memory_space<vmem>>, vector<1x64x256xbf16>
    %20 = vector.shape_cast %19 : vector<1x64x256xbf16> to vector<64x256xbf16>
    %cst_21 = arith.constant dense<0.000000e+00> : vector<32x256xf32>
    %21 = tpu.matmul %18, %20, %cst_21 {dimension_numbers = #tpu.dot_dimension_numbers<[1], [0], [0], [1], [0, 0, 1, 1], [], []>} : vector<32x64xbf16>, vector<64x256xbf16>, vector<32x256xf32> -> vector<32x256xf32>
    %22 = arith.addf %16, %21 : vector<32x256xf32>
    %c4 = arith.constant 4 : index
    %c0_22 = arith.constant 0 : index
    %c0_23 = arith.constant 0 : index
    %23 = vector.load %arg2[%c4, %c0_22, %c0_23] : memref<9x32x64xbf16, #tpu.memory_space<vmem>>, vector<1x32x64xbf16>
    %24 = vector.shape_cast %23 : vector<1x32x64xbf16> to vector<32x64xbf16>
    %c0_24 = arith.constant 0 : index
    %c0_25 = arith.constant 0 : index
    %c17 = arith.constant 17 : index
    %25 = vector.load %arg1[%c0_24, %c0_25, %c17] : memref<1x64x384xbf16, #tpu.memory_space<vmem>>, vector<1x64x256xbf16>
    %26 = vector.shape_cast %25 : vector<1x64x256xbf16> to vector<64x256xbf16>
    %cst_26 = arith.constant dense<0.000000e+00> : vector<32x256xf32>
    %27 = tpu.matmul %24, %26, %cst_26 {dimension_numbers = #tpu.dot_dimension_numbers<[1], [0], [0], [1], [0, 0, 1, 1], [], []>} : vector<32x64xbf16>, vector<64x256xbf16>, vector<32x256xf32> -> vector<32x256xf32>
    %28 = arith.addf %22, %27 : vector<32x256xf32>
    %c5 = arith.constant 5 : index
    %c0_27 = arith.constant 0 : index
    %c0_28 = arith.constant 0 : index
    %29 = vector.load %arg2[%c5, %c0_27, %c0_28] : memref<9x32x64xbf16, #tpu.memory_space<vmem>>, vector<1x32x64xbf16>
    %30 = vector.shape_cast %29 : vector<1x32x64xbf16> to vector<32x64xbf16>
    %c0_29 = arith.constant 0 : index
    %c0_30 = arith.constant 0 : index
    %c18 = arith.constant 18 : index
    %31 = vector.load %arg1[%c0_29, %c0_30, %c18] : memref<1x64x384xbf16, #tpu.memory_space<vmem>>, vector<1x64x256xbf16>
    %32 = vector.shape_cast %31 : vector<1x64x256xbf16> to vector<64x256xbf16>
    %cst_31 = arith.constant dense<0.000000e+00> : vector<32x256xf32>
    %33 = tpu.matmul %30, %32, %cst_31 {dimension_numbers = #tpu.dot_dimension_numbers<[1], [0], [0], [1], [0, 0, 1, 1], [], []>} : vector<32x64xbf16>, vector<64x256xbf16>, vector<32x256xf32> -> vector<32x256xf32>
    %34 = arith.addf %28, %33 : vector<32x256xf32>
    %c6 = arith.constant 6 : index
    %c0_32 = arith.constant 0 : index
    %c0_33 = arith.constant 0 : index
    %35 = vector.load %arg2[%c6, %c0_32, %c0_33] : memref<9x32x64xbf16, #tpu.memory_space<vmem>>, vector<1x32x64xbf16>
    %36 = vector.shape_cast %35 : vector<1x32x64xbf16> to vector<32x64xbf16>
    %c0_34 = arith.constant 0 : index
    %c0_35 = arith.constant 0 : index
    %c32 = arith.constant 32 : index
    %37 = vector.load %arg1[%c0_34, %c0_35, %c32] : memref<1x64x384xbf16, #tpu.memory_space<vmem>>, vector<1x64x256xbf16>
    %38 = vector.shape_cast %37 : vector<1x64x256xbf16> to vector<64x256xbf16>
    %cst_36 = arith.constant dense<0.000000e+00> : vector<32x256xf32>
    %39 = tpu.matmul %36, %38, %cst_36 {dimension_numbers = #tpu.dot_dimension_numbers<[1], [0], [0], [1], [0, 0, 1, 1], [], []>} : vector<32x64xbf16>, vector<64x256xbf16>, vector<32x256xf32> -> vector<32x256xf32>
    %40 = arith.addf %34, %39 : vector<32x256xf32>
    %c7 = arith.constant 7 : index
    %c0_37 = arith.constant 0 : index
    %c0_38 = arith.constant 0 : index
    %41 = vector.load %arg2[%c7, %c0_37, %c0_38] : memref<9x32x64xbf16, #tpu.memory_space<vmem>>, vector<1x32x64xbf16>
    %42 = vector.shape_cast %41 : vector<1x32x64xbf16> to vector<32x64xbf16>
    %c0_39 = arith.constant 0 : index
    %c0_40 = arith.constant 0 : index
    %c33 = arith.constant 33 : index
    %43 = vector.load %arg1[%c0_39, %c0_40, %c33] : memref<1x64x384xbf16, #tpu.memory_space<vmem>>, vector<1x64x256xbf16>
    %44 = vector.shape_cast %43 : vector<1x64x256xbf16> to vector<64x256xbf16>
    %cst_41 = arith.constant dense<0.000000e+00> : vector<32x256xf32>
    %45 = tpu.matmul %42, %44, %cst_41 {dimension_numbers = #tpu.dot_dimension_numbers<[1], [0], [0], [1], [0, 0, 1, 1], [], []>} : vector<32x64xbf16>, vector<64x256xbf16>, vector<32x256xf32> -> vector<32x256xf32>
    %46 = arith.addf %40, %45 : vector<32x256xf32>
    %c8 = arith.constant 8 : index
    %c0_42 = arith.constant 0 : index
    %c0_43 = arith.constant 0 : index
    %47 = vector.load %arg2[%c8, %c0_42, %c0_43] : memref<9x32x64xbf16, #tpu.memory_space<vmem>>, vector<1x32x64xbf16>
    %48 = vector.shape_cast %47 : vector<1x32x64xbf16> to vector<32x64xbf16>
    %c0_44 = arith.constant 0 : index
    %c0_45 = arith.constant 0 : index
    %c34 = arith.constant 34 : index
    %49 = vector.load %arg1[%c0_44, %c0_45, %c34] : memref<1x64x384xbf16, #tpu.memory_space<vmem>>, vector<1x64x256xbf16>
    %50 = vector.shape_cast %49 : vector<1x64x256xbf16> to vector<64x256xbf16>
    %cst_46 = arith.constant dense<0.000000e+00> : vector<32x256xf32>
    %51 = tpu.matmul %48, %50, %cst_46 {dimension_numbers = #tpu.dot_dimension_numbers<[1], [0], [0], [1], [0, 0, 1, 1], [], []>} : vector<32x64xbf16>, vector<64x256xbf16>, vector<32x256xf32> -> vector<32x256xf32>
    %52 = arith.addf %46, %51 : vector<32x256xf32>
    %c0_47 = arith.constant 0 : index
    %c0_48 = arith.constant 0 : index
    %53 = vector.load %arg3[%c0_47, %c0_48] : memref<1x256xf32, #tpu.memory_space<vmem>>, vector<1x256xf32>
    %c0_49 = arith.constant 0 : index
    %c0_50 = arith.constant 0 : index
    %c0_51 = arith.constant 0 : index
    %54 = vector.load %arg4[%c0_49, %c0_50, %c0_51] : memref<1x32x256xf32, #tpu.memory_space<vmem>>, vector<1x32x256xf32>
    %55 = vector.shape_cast %54 : vector<1x32x256xf32> to vector<32x256xf32>
    %56 = vector.shape_cast %52 : vector<32x256xf32> to vector<1x32x256xf32>
    tpu.vector_store %arg4[%c0_49, %c0_50, %c0_51], %56 {strides = array<i32>} : memref<1x32x256xf32, #tpu.memory_space<vmem>>, vector<1x32x256xf32>,
    %57 = vector.broadcast %53 : vector<1x256xf32> to vector<32x256xf32>
    %58 = arith.mulf %52, %57 : vector<32x256xf32>
    %cst_52 = arith.constant dense<0.000000e+00> : vector<32xf32>
    %59 = vector.multi_reduction <add>, %58, %cst_52 [1] : vector<32x256xf32> to vector<32xf32>
    %60 = vector.shape_cast %59 : vector<32xf32> to vector<32x1xf32>
    %c0_53 = arith.constant 0 : index
    %c0_54 = arith.constant 0 : index
    %c0_55 = arith.constant 0 : index
    %61 = vector.load %arg5[%c0_53, %c0_54, %c0_55] : memref<1x32x1xf32, #tpu.memory_space<vmem>>, vector<1x32x1xf32>
    %62 = vector.shape_cast %61 : vector<1x32x1xf32> to vector<32x1xf32>
    %63 = vector.shape_cast %60 : vector<32x1xf32> to vector<1x32x1xf32>
    tpu.vector_store %arg5[%c0_53, %c0_54, %c0_55], %63 {strides = array<i32>} : memref<1x32x1xf32, #tpu.memory_space<vmem>>, vector<1x32x1xf32>,
    %64 = arith.mulf %52, %52 : vector<32x256xf32>
    %65 = vector.broadcast %53 : vector<1x256xf32> to vector<32x256xf32>
    %66 = arith.mulf %64, %65 : vector<32x256xf32>
    %cst_56 = arith.constant dense<0.000000e+00> : vector<32xf32>
    %67 = vector.multi_reduction <add>, %66, %cst_56 [1] : vector<32x256xf32> to vector<32xf32>
    %68 = vector.shape_cast %67 : vector<32xf32> to vector<32x1xf32>
    %c0_57 = arith.constant 0 : index
    %c0_58 = arith.constant 0 : index
    %c0_59 = arith.constant 0 : index
    %69 = vector.load %arg6[%c0_57, %c0_58, %c0_59] : memref<1x32x1xf32, #tpu.memory_space<vmem>>, vector<1x32x1xf32>
    %70 = vector.shape_cast %69 : vector<1x32x1xf32> to vector<32x1xf32>
    %71 = vector.shape_cast %68 : vector<32x1xf32> to vector<1x32x1xf32>
    tpu.vector_store %arg6[%c0_57, %c0_58, %c0_59], %71 {strides = array<i32>} : memref<1x32x1xf32, #tpu.memory_space<vmem>>, vector<1x32x1xf32>,
    return
  }
  func.func @transform_0(%arg0: i32) -> (i32, i32, i32) {
    %c0_i32 = arith.constant 0 : i32
    %c0_i32_0 = arith.constant 0 : i32
    %c0_i32_1 = arith.constant 0 : i32
    return %arg0, %c0_i32, %c0_i32_0 : i32, i32, i32
  }
  func.func @transform_1(%arg0: i32) -> (i32, i32, i32) {
    %c0_i32 = arith.constant 0 : i32
    %c0_i32_0 = arith.constant 0 : i32
    %c0_i32_1 = arith.constant 0 : i32
    %c0_i32_2 = arith.constant 0 : i32
    return %c0_i32, %c0_i32_0, %c0_i32_1 : i32, i32, i32
  }
  func.func @transform_2(%arg0: i32) -> (i32, i32) {
    %c0_i32 = arith.constant 0 : i32
    %c0_i32_0 = arith.constant 0 : i32
    %c0_i32_1 = arith.constant 0 : i32
    return %c0_i32, %c0_i32_0 : i32, i32
  }
  func.func @transform_3(%arg0: i32) -> (i32, i32, i32) {
    %c0_i32 = arith.constant 0 : i32
    %c0_i32_0 = arith.constant 0 : i32
    %c0_i32_1 = arith.constant 0 : i32
    return %arg0, %c0_i32, %c0_i32_0 : i32, i32, i32
  }
  func.func @transform_4(%arg0: i32) -> (i32, i32, i32) {
    %c0_i32 = arith.constant 0 : i32
    %c0_i32_0 = arith.constant 0 : i32
    %c0_i32_1 = arith.constant 0 : i32
    return %arg0, %c0_i32, %c0_i32_0 : i32, i32, i32
  }
  func.func @transform_5(%arg0: i32) -> (i32, i32, i32) {
    %c0_i32 = arith.constant 0 : i32
    %c0_i32_0 = arith.constant 0 : i32
    %c0_i32_1 = arith.constant 0 : i32
    return %arg0, %c0_i32, %c0_i32_0 : i32, i32, i32
  }
}

module attributes {stable_mosaic.version = 11 : i64} {
  func.func @_bn_lrelu_kernel(%arg0: i32, %arg1: memref<1x32x256xf32, #tpu.memory_space<vmem>>, %arg2: memref<32x1xf32, #tpu.memory_space<vmem>>, %arg3: memref<32x1xf32, #tpu.memory_space<vmem>>, %arg4: memref<1x32x256xbf16, #tpu.memory_space<vmem>>) attributes {dimension_semantics = [#tpu.dimension_semantics<parallel>], iteration_bounds = array<i64: 2>, scalar_prefetch = 0 : i64, scratch_operands = 0 : i64, tpu.core_type = #tpu.core_type<tc>, window_params = [{transform_indices = @transform_0, window_bounds = array<i64: 1, 32, 256>}, {pipeline_mode = #tpu.pipeline_mode<synchronous>, transform_indices = @transform_1, window_bounds = array<i64: 32, 1>}, {pipeline_mode = #tpu.pipeline_mode<synchronous>, transform_indices = @transform_2, window_bounds = array<i64: 32, 1>}, {transform_indices = @transform_3, window_bounds = array<i64: 1, 32, 256>}]} {
    %c0 = arith.constant 0 : index
    %c0_0 = arith.constant 0 : index
    %c0_1 = arith.constant 0 : index
    %0 = vector.load %arg1[%c0, %c0_0, %c0_1] : memref<1x32x256xf32, #tpu.memory_space<vmem>>, vector<1x32x256xf32>
    %1 = vector.shape_cast %0 : vector<1x32x256xf32> to vector<32x256xf32>
    %c0_2 = arith.constant 0 : index
    %c0_3 = arith.constant 0 : index
    %2 = vector.load %arg2[%c0_2, %c0_3] : memref<32x1xf32, #tpu.memory_space<vmem>>, vector<32x1xf32>
    %3 = vector.broadcast %2 : vector<32x1xf32> to vector<32x256xf32>
    %4 = arith.mulf %1, %3 : vector<32x256xf32>
    %c0_4 = arith.constant 0 : index
    %c0_5 = arith.constant 0 : index
    %5 = vector.load %arg3[%c0_4, %c0_5] : memref<32x1xf32, #tpu.memory_space<vmem>>, vector<32x1xf32>
    %6 = vector.broadcast %5 : vector<32x1xf32> to vector<32x256xf32>
    %7 = arith.addf %4, %6 : vector<32x256xf32>
    %cst = arith.constant 0.000000e+00 : f32
    %8 = vector.broadcast %cst : f32 to vector<32x256xf32>
    %9 = arith.cmpf oge, %7, %8 : vector<32x256xf32>
    %cst_6 = arith.constant 0.00999999977 : f32
    %10 = vector.broadcast %cst_6 : f32 to vector<32x256xf32>
    %11 = arith.mulf %10, %7 : vector<32x256xf32>
    %12 = arith.select %9, %7, %11 : vector<32x256xi1>, vector<32x256xf32>
    %13 = arith.truncf %12 : vector<32x256xf32> to vector<32x256xbf16>
    %c0_7 = arith.constant 0 : index
    %c0_8 = arith.constant 0 : index
    %c0_9 = arith.constant 0 : index
    %14 = vector.load %arg4[%c0_7, %c0_8, %c0_9] : memref<1x32x256xbf16, #tpu.memory_space<vmem>>, vector<1x32x256xbf16>
    %15 = vector.shape_cast %14 : vector<1x32x256xbf16> to vector<32x256xbf16>
    %16 = vector.shape_cast %13 : vector<32x256xbf16> to vector<1x32x256xbf16>
    tpu.vector_store %arg4[%c0_7, %c0_8, %c0_9], %16 {strides = array<i32>} : memref<1x32x256xbf16, #tpu.memory_space<vmem>>, vector<1x32x256xbf16>,
    return
  }
  func.func @transform_0(%arg0: i32) -> (i32, i32, i32) {
    %c0_i32 = arith.constant 0 : i32
    %c0_i32_0 = arith.constant 0 : i32
    %c0_i32_1 = arith.constant 0 : i32
    return %arg0, %c0_i32, %c0_i32_0 : i32, i32, i32
  }
  func.func @transform_1(%arg0: i32) -> (i32, i32) {
    %c0_i32 = arith.constant 0 : i32
    %c0_i32_0 = arith.constant 0 : i32
    %c0_i32_1 = arith.constant 0 : i32
    return %c0_i32, %c0_i32_0 : i32, i32
  }
  func.func @transform_2(%arg0: i32) -> (i32, i32) {
    %c0_i32 = arith.constant 0 : i32
    %c0_i32_0 = arith.constant 0 : i32
    %c0_i32_1 = arith.constant 0 : i32
    return %c0_i32, %c0_i32_0 : i32, i32
  }
  func.func @transform_3(%arg0: i32) -> (i32, i32, i32) {
    %c0_i32 = arith.constant 0 : i32
    %c0_i32_0 = arith.constant 0 : i32
    %c0_i32_1 = arith.constant 0 : i32
    return %arg0, %c0_i32, %c0_i32_0 : i32, i32, i32
  }
}

module attributes {stable_mosaic.version = 11 : i64} {
  func.func @_bn_lrelu_kernel(%arg0: i32, %arg1: memref<1x16x256xf32, #tpu.memory_space<vmem>>, %arg2: memref<16x1xf32, #tpu.memory_space<vmem>>, %arg3: memref<16x1xf32, #tpu.memory_space<vmem>>, %arg4: memref<1x16x256xbf16, #tpu.memory_space<vmem>>) attributes {dimension_semantics = [#tpu.dimension_semantics<parallel>], iteration_bounds = array<i64: 2>, scalar_prefetch = 0 : i64, scratch_operands = 0 : i64, tpu.core_type = #tpu.core_type<tc>, window_params = [{transform_indices = @transform_0, window_bounds = array<i64: 1, 16, 256>}, {pipeline_mode = #tpu.pipeline_mode<synchronous>, transform_indices = @transform_1, window_bounds = array<i64: 16, 1>}, {pipeline_mode = #tpu.pipeline_mode<synchronous>, transform_indices = @transform_2, window_bounds = array<i64: 16, 1>}, {transform_indices = @transform_3, window_bounds = array<i64: 1, 16, 256>}]} {
    %c0 = arith.constant 0 : index
    %c0_0 = arith.constant 0 : index
    %c0_1 = arith.constant 0 : index
    %0 = vector.load %arg1[%c0, %c0_0, %c0_1] : memref<1x16x256xf32, #tpu.memory_space<vmem>>, vector<1x16x256xf32>
    %1 = vector.shape_cast %0 : vector<1x16x256xf32> to vector<16x256xf32>
    %c0_2 = arith.constant 0 : index
    %c0_3 = arith.constant 0 : index
    %2 = vector.load %arg2[%c0_2, %c0_3] : memref<16x1xf32, #tpu.memory_space<vmem>>, vector<16x1xf32>
    %3 = vector.broadcast %2 : vector<16x1xf32> to vector<16x256xf32>
    %4 = arith.mulf %1, %3 : vector<16x256xf32>
    %c0_4 = arith.constant 0 : index
    %c0_5 = arith.constant 0 : index
    %5 = vector.load %arg3[%c0_4, %c0_5] : memref<16x1xf32, #tpu.memory_space<vmem>>, vector<16x1xf32>
    %6 = vector.broadcast %5 : vector<16x1xf32> to vector<16x256xf32>
    %7 = arith.addf %4, %6 : vector<16x256xf32>
    %cst = arith.constant 0.000000e+00 : f32
    %8 = vector.broadcast %cst : f32 to vector<16x256xf32>
    %9 = arith.cmpf oge, %7, %8 : vector<16x256xf32>
    %cst_6 = arith.constant 0.00999999977 : f32
    %10 = vector.broadcast %cst_6 : f32 to vector<16x256xf32>
    %11 = arith.mulf %10, %7 : vector<16x256xf32>
    %12 = arith.select %9, %7, %11 : vector<16x256xi1>, vector<16x256xf32>
    %13 = arith.truncf %12 : vector<16x256xf32> to vector<16x256xbf16>
    %c0_7 = arith.constant 0 : index
    %c0_8 = arith.constant 0 : index
    %c0_9 = arith.constant 0 : index
    %14 = vector.load %arg4[%c0_7, %c0_8, %c0_9] : memref<1x16x256xbf16, #tpu.memory_space<vmem>>, vector<1x16x256xbf16>
    %15 = vector.shape_cast %14 : vector<1x16x256xbf16> to vector<16x256xbf16>
    %16 = vector.shape_cast %13 : vector<16x256xbf16> to vector<1x16x256xbf16>
    tpu.vector_store %arg4[%c0_7, %c0_8, %c0_9], %16 {strides = array<i32>} : memref<1x16x256xbf16, #tpu.memory_space<vmem>>, vector<1x16x256xbf16>,
    return
  }
  func.func @transform_0(%arg0: i32) -> (i32, i32, i32) {
    %c0_i32 = arith.constant 0 : i32
    %c0_i32_0 = arith.constant 0 : i32
    %c0_i32_1 = arith.constant 0 : i32
    return %arg0, %c0_i32, %c0_i32_0 : i32, i32, i32
  }
  func.func @transform_1(%arg0: i32) -> (i32, i32) {
    %c0_i32 = arith.constant 0 : i32
    %c0_i32_0 = arith.constant 0 : i32
    %c0_i32_1 = arith.constant 0 : i32
    return %c0_i32, %c0_i32_0 : i32, i32
  }
  func.func @transform_2(%arg0: i32) -> (i32, i32) {
    %c0_i32 = arith.constant 0 : i32
    %c0_i32_0 = arith.constant 0 : i32
    %c0_i32_1 = arith.constant 0 : i32
    return %c0_i32, %c0_i32_0 : i32, i32
  }
  func.func @transform_3(%arg0: i32) -> (i32, i32, i32) {
    %c0_i32 = arith.constant 0 : i32
    %c0_i32_0 = arith.constant 0 : i32
    %c0_i32_1 = arith.constant 0 : i32
    return %arg0, %c0_i32, %c0_i32_0 : i32, i32, i32
  }
}

module attributes {stable_mosaic.version = 11 : i64} {
  func.func @kernel(%arg0: i32, %arg1: memref<1x32x384xbf16, #tpu.memory_space<vmem>>, %arg2: memref<9x16x32xbf16, #tpu.memory_space<vmem>>, %arg3: memref<1x256xf32, #tpu.memory_space<vmem>>, %arg4: memref<1x16x256xf32, #tpu.memory_space<vmem>>, %arg5: memref<1x16x1xf32, #tpu.memory_space<vmem>>, %arg6: memref<1x16x1xf32, #tpu.memory_space<vmem>>) attributes {dimension_semantics = [#tpu.dimension_semantics<parallel>], iteration_bounds = array<i64: 2>, scalar_prefetch = 0 : i64, scratch_operands = 0 : i64, tpu.core_type = #tpu.core_type<tc>, window_params = [{transform_indices = @transform_0, window_bounds = array<i64: 1, 32, 384>}, {pipeline_mode = #tpu.pipeline_mode<synchronous>, transform_indices = @transform_1, window_bounds = array<i64: 9, 16, 32>}, {pipeline_mode = #tpu.pipeline_mode<synchronous>, transform_indices = @transform_2, window_bounds = array<i64: 1, 256>}, {transform_indices = @transform_3, window_bounds = array<i64: 1, 16, 256>}, {transform_indices = @transform_4, window_bounds = array<i64: 1, 16, 1>}, {transform_indices = @transform_5, window_bounds = array<i64: 1, 16, 1>}]} {
    %c0 = arith.constant 0 : index
    %c0_0 = arith.constant 0 : index
    %c0_1 = arith.constant 0 : index
    %0 = vector.load %arg2[%c0, %c0_0, %c0_1] : memref<9x16x32xbf16, #tpu.memory_space<vmem>>, vector<1x16x32xbf16>
    %1 = vector.shape_cast %0 : vector<1x16x32xbf16> to vector<16x32xbf16>
    %c0_2 = arith.constant 0 : index
    %c0_3 = arith.constant 0 : index
    %c0_4 = arith.constant 0 : index
    %2 = vector.load %arg1[%c0_2, %c0_3, %c0_4] : memref<1x32x384xbf16, #tpu.memory_space<vmem>>, vector<1x32x256xbf16>
    %3 = vector.shape_cast %2 : vector<1x32x256xbf16> to vector<32x256xbf16>
    %cst = arith.constant dense<0.000000e+00> : vector<16x256xf32>
    %4 = tpu.matmul %1, %3, %cst {dimension_numbers = #tpu.dot_dimension_numbers<[1], [0], [0], [1], [0, 0, 1, 1], [], []>} : vector<16x32xbf16>, vector<32x256xbf16>, vector<16x256xf32> -> vector<16x256xf32>
    %c1 = arith.constant 1 : index
    %c0_5 = arith.constant 0 : index
    %c0_6 = arith.constant 0 : index
    %5 = vector.load %arg2[%c1, %c0_5, %c0_6] : memref<9x16x32xbf16, #tpu.memory_space<vmem>>, vector<1x16x32xbf16>
    %6 = vector.shape_cast %5 : vector<1x16x32xbf16> to vector<16x32xbf16>
    %c0_7 = arith.constant 0 : index
    %c0_8 = arith.constant 0 : index
    %c1_9 = arith.constant 1 : index
    %7 = vector.load %arg1[%c0_7, %c0_8, %c1_9] : memref<1x32x384xbf16, #tpu.memory_space<vmem>>, vector<1x32x256xbf16>
    %8 = vector.shape_cast %7 : vector<1x32x256xbf16> to vector<32x256xbf16>
    %cst_10 = arith.constant dense<0.000000e+00> : vector<16x256xf32>
    %9 = tpu.matmul %6, %8, %cst_10 {dimension_numbers = #tpu.dot_dimension_numbers<[1], [0], [0], [1], [0, 0, 1, 1], [], []>} : vector<16x32xbf16>, vector<32x256xbf16>, vector<16x256xf32> -> vector<16x256xf32>
    %10 = arith.addf %4, %9 : vector<16x256xf32>
    %c2 = arith.constant 2 : index
    %c0_11 = arith.constant 0 : index
    %c0_12 = arith.constant 0 : index
    %11 = vector.load %arg2[%c2, %c0_11, %c0_12] : memref<9x16x32xbf16, #tpu.memory_space<vmem>>, vector<1x16x32xbf16>
    %12 = vector.shape_cast %11 : vector<1x16x32xbf16> to vector<16x32xbf16>
    %c0_13 = arith.constant 0 : index
    %c0_14 = arith.constant 0 : index
    %c2_15 = arith.constant 2 : index
    %13 = vector.load %arg1[%c0_13, %c0_14, %c2_15] : memref<1x32x384xbf16, #tpu.memory_space<vmem>>, vector<1x32x256xbf16>
    %14 = vector.shape_cast %13 : vector<1x32x256xbf16> to vector<32x256xbf16>
    %cst_16 = arith.constant dense<0.000000e+00> : vector<16x256xf32>
    %15 = tpu.matmul %12, %14, %cst_16 {dimension_numbers = #tpu.dot_dimension_numbers<[1], [0], [0], [1], [0, 0, 1, 1], [], []>} : vector<16x32xbf16>, vector<32x256xbf16>, vector<16x256xf32> -> vector<16x256xf32>
    %16 = arith.addf %10, %15 : vector<16x256xf32>
    %c3 = arith.constant 3 : index
    %c0_17 = arith.constant 0 : index
    %c0_18 = arith.constant 0 : index
    %17 = vector.load %arg2[%c3, %c0_17, %c0_18] : memref<9x16x32xbf16, #tpu.memory_space<vmem>>, vector<1x16x32xbf16>
    %18 = vector.shape_cast %17 : vector<1x16x32xbf16> to vector<16x32xbf16>
    %c0_19 = arith.constant 0 : index
    %c0_20 = arith.constant 0 : index
    %c16 = arith.constant 16 : index
    %19 = vector.load %arg1[%c0_19, %c0_20, %c16] : memref<1x32x384xbf16, #tpu.memory_space<vmem>>, vector<1x32x256xbf16>
    %20 = vector.shape_cast %19 : vector<1x32x256xbf16> to vector<32x256xbf16>
    %cst_21 = arith.constant dense<0.000000e+00> : vector<16x256xf32>
    %21 = tpu.matmul %18, %20, %cst_21 {dimension_numbers = #tpu.dot_dimension_numbers<[1], [0], [0], [1], [0, 0, 1, 1], [], []>} : vector<16x32xbf16>, vector<32x256xbf16>, vector<16x256xf32> -> vector<16x256xf32>
    %22 = arith.addf %16, %21 : vector<16x256xf32>
    %c4 = arith.constant 4 : index
    %c0_22 = arith.constant 0 : index
    %c0_23 = arith.constant 0 : index
    %23 = vector.load %arg2[%c4, %c0_22, %c0_23] : memref<9x16x32xbf16, #tpu.memory_space<vmem>>, vector<1x16x32xbf16>
    %24 = vector.shape_cast %23 : vector<1x16x32xbf16> to vector<16x32xbf16>
    %c0_24 = arith.constant 0 : index
    %c0_25 = arith.constant 0 : index
    %c17 = arith.constant 17 : index
    %25 = vector.load %arg1[%c0_24, %c0_25, %c17] : memref<1x32x384xbf16, #tpu.memory_space<vmem>>, vector<1x32x256xbf16>
    %26 = vector.shape_cast %25 : vector<1x32x256xbf16> to vector<32x256xbf16>
    %cst_26 = arith.constant dense<0.000000e+00> : vector<16x256xf32>
    %27 = tpu.matmul %24, %26, %cst_26 {dimension_numbers = #tpu.dot_dimension_numbers<[1], [0], [0], [1], [0, 0, 1, 1], [], []>} : vector<16x32xbf16>, vector<32x256xbf16>, vector<16x256xf32> -> vector<16x256xf32>
    %28 = arith.addf %22, %27 : vector<16x256xf32>
    %c5 = arith.constant 5 : index
    %c0_27 = arith.constant 0 : index
    %c0_28 = arith.constant 0 : index
    %29 = vector.load %arg2[%c5, %c0_27, %c0_28] : memref<9x16x32xbf16, #tpu.memory_space<vmem>>, vector<1x16x32xbf16>
    %30 = vector.shape_cast %29 : vector<1x16x32xbf16> to vector<16x32xbf16>
    %c0_29 = arith.constant 0 : index
    %c0_30 = arith.constant 0 : index
    %c18 = arith.constant 18 : index
    %31 = vector.load %arg1[%c0_29, %c0_30, %c18] : memref<1x32x384xbf16, #tpu.memory_space<vmem>>, vector<1x32x256xbf16>
    %32 = vector.shape_cast %31 : vector<1x32x256xbf16> to vector<32x256xbf16>
    %cst_31 = arith.constant dense<0.000000e+00> : vector<16x256xf32>
    %33 = tpu.matmul %30, %32, %cst_31 {dimension_numbers = #tpu.dot_dimension_numbers<[1], [0], [0], [1], [0, 0, 1, 1], [], []>} : vector<16x32xbf16>, vector<32x256xbf16>, vector<16x256xf32> -> vector<16x256xf32>
    %34 = arith.addf %28, %33 : vector<16x256xf32>
    %c6 = arith.constant 6 : index
    %c0_32 = arith.constant 0 : index
    %c0_33 = arith.constant 0 : index
    %35 = vector.load %arg2[%c6, %c0_32, %c0_33] : memref<9x16x32xbf16, #tpu.memory_space<vmem>>, vector<1x16x32xbf16>
    %36 = vector.shape_cast %35 : vector<1x16x32xbf16> to vector<16x32xbf16>
    %c0_34 = arith.constant 0 : index
    %c0_35 = arith.constant 0 : index
    %c32 = arith.constant 32 : index
    %37 = vector.load %arg1[%c0_34, %c0_35, %c32] : memref<1x32x384xbf16, #tpu.memory_space<vmem>>, vector<1x32x256xbf16>
    %38 = vector.shape_cast %37 : vector<1x32x256xbf16> to vector<32x256xbf16>
    %cst_36 = arith.constant dense<0.000000e+00> : vector<16x256xf32>
    %39 = tpu.matmul %36, %38, %cst_36 {dimension_numbers = #tpu.dot_dimension_numbers<[1], [0], [0], [1], [0, 0, 1, 1], [], []>} : vector<16x32xbf16>, vector<32x256xbf16>, vector<16x256xf32> -> vector<16x256xf32>
    %40 = arith.addf %34, %39 : vector<16x256xf32>
    %c7 = arith.constant 7 : index
    %c0_37 = arith.constant 0 : index
    %c0_38 = arith.constant 0 : index
    %41 = vector.load %arg2[%c7, %c0_37, %c0_38] : memref<9x16x32xbf16, #tpu.memory_space<vmem>>, vector<1x16x32xbf16>
    %42 = vector.shape_cast %41 : vector<1x16x32xbf16> to vector<16x32xbf16>
    %c0_39 = arith.constant 0 : index
    %c0_40 = arith.constant 0 : index
    %c33 = arith.constant 33 : index
    %43 = vector.load %arg1[%c0_39, %c0_40, %c33] : memref<1x32x384xbf16, #tpu.memory_space<vmem>>, vector<1x32x256xbf16>
    %44 = vector.shape_cast %43 : vector<1x32x256xbf16> to vector<32x256xbf16>
    %cst_41 = arith.constant dense<0.000000e+00> : vector<16x256xf32>
    %45 = tpu.matmul %42, %44, %cst_41 {dimension_numbers = #tpu.dot_dimension_numbers<[1], [0], [0], [1], [0, 0, 1, 1], [], []>} : vector<16x32xbf16>, vector<32x256xbf16>, vector<16x256xf32> -> vector<16x256xf32>
    %46 = arith.addf %40, %45 : vector<16x256xf32>
    %c8 = arith.constant 8 : index
    %c0_42 = arith.constant 0 : index
    %c0_43 = arith.constant 0 : index
    %47 = vector.load %arg2[%c8, %c0_42, %c0_43] : memref<9x16x32xbf16, #tpu.memory_space<vmem>>, vector<1x16x32xbf16>
    %48 = vector.shape_cast %47 : vector<1x16x32xbf16> to vector<16x32xbf16>
    %c0_44 = arith.constant 0 : index
    %c0_45 = arith.constant 0 : index
    %c34 = arith.constant 34 : index
    %49 = vector.load %arg1[%c0_44, %c0_45, %c34] : memref<1x32x384xbf16, #tpu.memory_space<vmem>>, vector<1x32x256xbf16>
    %50 = vector.shape_cast %49 : vector<1x32x256xbf16> to vector<32x256xbf16>
    %cst_46 = arith.constant dense<0.000000e+00> : vector<16x256xf32>
    %51 = tpu.matmul %48, %50, %cst_46 {dimension_numbers = #tpu.dot_dimension_numbers<[1], [0], [0], [1], [0, 0, 1, 1], [], []>} : vector<16x32xbf16>, vector<32x256xbf16>, vector<16x256xf32> -> vector<16x256xf32>
    %52 = arith.addf %46, %51 : vector<16x256xf32>
    %c0_47 = arith.constant 0 : index
    %c0_48 = arith.constant 0 : index
    %53 = vector.load %arg3[%c0_47, %c0_48] : memref<1x256xf32, #tpu.memory_space<vmem>>, vector<1x256xf32>
    %c0_49 = arith.constant 0 : index
    %c0_50 = arith.constant 0 : index
    %c0_51 = arith.constant 0 : index
    %54 = vector.load %arg4[%c0_49, %c0_50, %c0_51] : memref<1x16x256xf32, #tpu.memory_space<vmem>>, vector<1x16x256xf32>
    %55 = vector.shape_cast %54 : vector<1x16x256xf32> to vector<16x256xf32>
    %56 = vector.shape_cast %52 : vector<16x256xf32> to vector<1x16x256xf32>
    tpu.vector_store %arg4[%c0_49, %c0_50, %c0_51], %56 {strides = array<i32>} : memref<1x16x256xf32, #tpu.memory_space<vmem>>, vector<1x16x256xf32>,
    %57 = vector.broadcast %53 : vector<1x256xf32> to vector<16x256xf32>
    %58 = arith.mulf %52, %57 : vector<16x256xf32>
    %cst_52 = arith.constant dense<0.000000e+00> : vector<16xf32>
    %59 = vector.multi_reduction <add>, %58, %cst_52 [1] : vector<16x256xf32> to vector<16xf32>
    %60 = vector.shape_cast %59 : vector<16xf32> to vector<16x1xf32>
    %c0_53 = arith.constant 0 : index
    %c0_54 = arith.constant 0 : index
    %c0_55 = arith.constant 0 : index
    %61 = vector.load %arg5[%c0_53, %c0_54, %c0_55] : memref<1x16x1xf32, #tpu.memory_space<vmem>>, vector<1x16x1xf32>
    %62 = vector.shape_cast %61 : vector<1x16x1xf32> to vector<16x1xf32>
    %63 = vector.shape_cast %60 : vector<16x1xf32> to vector<1x16x1xf32>
    tpu.vector_store %arg5[%c0_53, %c0_54, %c0_55], %63 {strides = array<i32>} : memref<1x16x1xf32, #tpu.memory_space<vmem>>, vector<1x16x1xf32>,
    %64 = arith.mulf %52, %52 : vector<16x256xf32>
    %65 = vector.broadcast %53 : vector<1x256xf32> to vector<16x256xf32>
    %66 = arith.mulf %64, %65 : vector<16x256xf32>
    %cst_56 = arith.constant dense<0.000000e+00> : vector<16xf32>
    %67 = vector.multi_reduction <add>, %66, %cst_56 [1] : vector<16x256xf32> to vector<16xf32>
    %68 = vector.shape_cast %67 : vector<16xf32> to vector<16x1xf32>
    %c0_57 = arith.constant 0 : index
    %c0_58 = arith.constant 0 : index
    %c0_59 = arith.constant 0 : index
    %69 = vector.load %arg6[%c0_57, %c0_58, %c0_59] : memref<1x16x1xf32, #tpu.memory_space<vmem>>, vector<1x16x1xf32>
    %70 = vector.shape_cast %69 : vector<1x16x1xf32> to vector<16x1xf32>
    %71 = vector.shape_cast %68 : vector<16x1xf32> to vector<1x16x1xf32>
    tpu.vector_store %arg6[%c0_57, %c0_58, %c0_59], %71 {strides = array<i32>} : memref<1x16x1xf32, #tpu.memory_space<vmem>>, vector<1x16x1xf32>,
    return
  }
  func.func @transform_0(%arg0: i32) -> (i32, i32, i32) {
    %c0_i32 = arith.constant 0 : i32
    %c0_i32_0 = arith.constant 0 : i32
    %c0_i32_1 = arith.constant 0 : i32
    return %arg0, %c0_i32, %c0_i32_0 : i32, i32, i32
  }
  func.func @transform_1(%arg0: i32) -> (i32, i32, i32) {
    %c0_i32 = arith.constant 0 : i32
    %c0_i32_0 = arith.constant 0 : i32
    %c0_i32_1 = arith.constant 0 : i32
    %c0_i32_2 = arith.constant 0 : i32
    return %c0_i32, %c0_i32_0, %c0_i32_1 : i32, i32, i32
  }
  func.func @transform_2(%arg0: i32) -> (i32, i32) {
    %c0_i32 = arith.constant 0 : i32
    %c0_i32_0 = arith.constant 0 : i32
    %c0_i32_1 = arith.constant 0 : i32
    return %c0_i32, %c0_i32_0 : i32, i32
  }
  func.func @transform_3(%arg0: i32) -> (i32, i32, i32) {
    %c0_i32 = arith.constant 0 : i32
    %c0_i32_0 = arith.constant 0 : i32
    %c0_i32_1 = arith.constant 0 : i32
    return %arg0, %c0_i32, %c0_i32_0 : i32, i32, i32
  }
  func.func @transform_4(%arg0: i32) -> (i32, i32, i32) {
    %c0_i32 = arith.constant 0 : i32
    %c0_i32_0 = arith.constant 0 : i32
    %c0_i32_1 = arith.constant 0 : i32
    return %arg0, %c0_i32, %c0_i32_0 : i32, i32, i32
  }
  func.func @transform_5(%arg0: i32) -> (i32, i32, i32) {
    %c0_i32 = arith.constant 0 : i32
    %c0_i32_0 = arith.constant 0 : i32
    %c0_i32_1 = arith.constant 0 : i32
    return %arg0, %c0_i32, %c0_i32_0 : i32, i32, i32
  }
}

module attributes {stable_mosaic.version = 11 : i64} {
  func.func @kernel(%arg0: i32, %arg1: memref<1x16x384xbf16, #tpu.memory_space<vmem>>, %arg2: memref<9x8x16xbf16, #tpu.memory_space<vmem>>, %arg3: memref<1x256xf32, #tpu.memory_space<vmem>>, %arg4: memref<1x8x256xf32, #tpu.memory_space<vmem>>, %arg5: memref<1x8x1xf32, #tpu.memory_space<vmem>>, %arg6: memref<1x8x1xf32, #tpu.memory_space<vmem>>) attributes {dimension_semantics = [#tpu.dimension_semantics<parallel>], iteration_bounds = array<i64: 2>, scalar_prefetch = 0 : i64, scratch_operands = 0 : i64, tpu.core_type = #tpu.core_type<tc>, window_params = [{transform_indices = @transform_0, window_bounds = array<i64: 1, 16, 384>}, {pipeline_mode = #tpu.pipeline_mode<synchronous>, transform_indices = @transform_1, window_bounds = array<i64: 9, 8, 16>}, {pipeline_mode = #tpu.pipeline_mode<synchronous>, transform_indices = @transform_2, window_bounds = array<i64: 1, 256>}, {transform_indices = @transform_3, window_bounds = array<i64: 1, 8, 256>}, {transform_indices = @transform_4, window_bounds = array<i64: 1, 8, 1>}, {transform_indices = @transform_5, window_bounds = array<i64: 1, 8, 1>}]} {
    %c0 = arith.constant 0 : index
    %c0_0 = arith.constant 0 : index
    %c0_1 = arith.constant 0 : index
    %0 = vector.load %arg2[%c0, %c0_0, %c0_1] : memref<9x8x16xbf16, #tpu.memory_space<vmem>>, vector<1x8x16xbf16>
    %1 = vector.shape_cast %0 : vector<1x8x16xbf16> to vector<8x16xbf16>
    %c0_2 = arith.constant 0 : index
    %c0_3 = arith.constant 0 : index
    %c0_4 = arith.constant 0 : index
    %2 = vector.load %arg1[%c0_2, %c0_3, %c0_4] : memref<1x16x384xbf16, #tpu.memory_space<vmem>>, vector<1x16x256xbf16>
    %3 = vector.shape_cast %2 : vector<1x16x256xbf16> to vector<16x256xbf16>
    %cst = arith.constant dense<0.000000e+00> : vector<8x256xf32>
    %4 = tpu.matmul %1, %3, %cst {dimension_numbers = #tpu.dot_dimension_numbers<[1], [0], [0], [1], [0, 0, 1, 1], [], []>} : vector<8x16xbf16>, vector<16x256xbf16>, vector<8x256xf32> -> vector<8x256xf32>
    %c1 = arith.constant 1 : index
    %c0_5 = arith.constant 0 : index
    %c0_6 = arith.constant 0 : index
    %5 = vector.load %arg2[%c1, %c0_5, %c0_6] : memref<9x8x16xbf16, #tpu.memory_space<vmem>>, vector<1x8x16xbf16>
    %6 = vector.shape_cast %5 : vector<1x8x16xbf16> to vector<8x16xbf16>
    %c0_7 = arith.constant 0 : index
    %c0_8 = arith.constant 0 : index
    %c1_9 = arith.constant 1 : index
    %7 = vector.load %arg1[%c0_7, %c0_8, %c1_9] : memref<1x16x384xbf16, #tpu.memory_space<vmem>>, vector<1x16x256xbf16>
    %8 = vector.shape_cast %7 : vector<1x16x256xbf16> to vector<16x256xbf16>
    %cst_10 = arith.constant dense<0.000000e+00> : vector<8x256xf32>
    %9 = tpu.matmul %6, %8, %cst_10 {dimension_numbers = #tpu.dot_dimension_numbers<[1], [0], [0], [1], [0, 0, 1, 1], [], []>} : vector<8x16xbf16>, vector<16x256xbf16>, vector<8x256xf32> -> vector<8x256xf32>
    %10 = arith.addf %4, %9 : vector<8x256xf32>
    %c2 = arith.constant 2 : index
    %c0_11 = arith.constant 0 : index
    %c0_12 = arith.constant 0 : index
    %11 = vector.load %arg2[%c2, %c0_11, %c0_12] : memref<9x8x16xbf16, #tpu.memory_space<vmem>>, vector<1x8x16xbf16>
    %12 = vector.shape_cast %11 : vector<1x8x16xbf16> to vector<8x16xbf16>
    %c0_13 = arith.constant 0 : index
    %c0_14 = arith.constant 0 : index
    %c2_15 = arith.constant 2 : index
    %13 = vector.load %arg1[%c0_13, %c0_14, %c2_15] : memref<1x16x384xbf16, #tpu.memory_space<vmem>>, vector<1x16x256xbf16>
    %14 = vector.shape_cast %13 : vector<1x16x256xbf16> to vector<16x256xbf16>
    %cst_16 = arith.constant dense<0.000000e+00> : vector<8x256xf32>
    %15 = tpu.matmul %12, %14, %cst_16 {dimension_numbers = #tpu.dot_dimension_numbers<[1], [0], [0], [1], [0, 0, 1, 1], [], []>} : vector<8x16xbf16>, vector<16x256xbf16>, vector<8x256xf32> -> vector<8x256xf32>
    %16 = arith.addf %10, %15 : vector<8x256xf32>
    %c3 = arith.constant 3 : index
    %c0_17 = arith.constant 0 : index
    %c0_18 = arith.constant 0 : index
    %17 = vector.load %arg2[%c3, %c0_17, %c0_18] : memref<9x8x16xbf16, #tpu.memory_space<vmem>>, vector<1x8x16xbf16>
    %18 = vector.shape_cast %17 : vector<1x8x16xbf16> to vector<8x16xbf16>
    %c0_19 = arith.constant 0 : index
    %c0_20 = arith.constant 0 : index
    %c16 = arith.constant 16 : index
    %19 = vector.load %arg1[%c0_19, %c0_20, %c16] : memref<1x16x384xbf16, #tpu.memory_space<vmem>>, vector<1x16x256xbf16>
    %20 = vector.shape_cast %19 : vector<1x16x256xbf16> to vector<16x256xbf16>
    %cst_21 = arith.constant dense<0.000000e+00> : vector<8x256xf32>
    %21 = tpu.matmul %18, %20, %cst_21 {dimension_numbers = #tpu.dot_dimension_numbers<[1], [0], [0], [1], [0, 0, 1, 1], [], []>} : vector<8x16xbf16>, vector<16x256xbf16>, vector<8x256xf32> -> vector<8x256xf32>
    %22 = arith.addf %16, %21 : vector<8x256xf32>
    %c4 = arith.constant 4 : index
    %c0_22 = arith.constant 0 : index
    %c0_23 = arith.constant 0 : index
    %23 = vector.load %arg2[%c4, %c0_22, %c0_23] : memref<9x8x16xbf16, #tpu.memory_space<vmem>>, vector<1x8x16xbf16>
    %24 = vector.shape_cast %23 : vector<1x8x16xbf16> to vector<8x16xbf16>
    %c0_24 = arith.constant 0 : index
    %c0_25 = arith.constant 0 : index
    %c17 = arith.constant 17 : index
    %25 = vector.load %arg1[%c0_24, %c0_25, %c17] : memref<1x16x384xbf16, #tpu.memory_space<vmem>>, vector<1x16x256xbf16>
    %26 = vector.shape_cast %25 : vector<1x16x256xbf16> to vector<16x256xbf16>
    %cst_26 = arith.constant dense<0.000000e+00> : vector<8x256xf32>
    %27 = tpu.matmul %24, %26, %cst_26 {dimension_numbers = #tpu.dot_dimension_numbers<[1], [0], [0], [1], [0, 0, 1, 1], [], []>} : vector<8x16xbf16>, vector<16x256xbf16>, vector<8x256xf32> -> vector<8x256xf32>
    %28 = arith.addf %22, %27 : vector<8x256xf32>
    %c5 = arith.constant 5 : index
    %c0_27 = arith.constant 0 : index
    %c0_28 = arith.constant 0 : index
    %29 = vector.load %arg2[%c5, %c0_27, %c0_28] : memref<9x8x16xbf16, #tpu.memory_space<vmem>>, vector<1x8x16xbf16>
    %30 = vector.shape_cast %29 : vector<1x8x16xbf16> to vector<8x16xbf16>
    %c0_29 = arith.constant 0 : index
    %c0_30 = arith.constant 0 : index
    %c18 = arith.constant 18 : index
    %31 = vector.load %arg1[%c0_29, %c0_30, %c18] : memref<1x16x384xbf16, #tpu.memory_space<vmem>>, vector<1x16x256xbf16>
    %32 = vector.shape_cast %31 : vector<1x16x256xbf16> to vector<16x256xbf16>
    %cst_31 = arith.constant dense<0.000000e+00> : vector<8x256xf32>
    %33 = tpu.matmul %30, %32, %cst_31 {dimension_numbers = #tpu.dot_dimension_numbers<[1], [0], [0], [1], [0, 0, 1, 1], [], []>} : vector<8x16xbf16>, vector<16x256xbf16>, vector<8x256xf32> -> vector<8x256xf32>
    %34 = arith.addf %28, %33 : vector<8x256xf32>
    %c6 = arith.constant 6 : index
    %c0_32 = arith.constant 0 : index
    %c0_33 = arith.constant 0 : index
    %35 = vector.load %arg2[%c6, %c0_32, %c0_33] : memref<9x8x16xbf16, #tpu.memory_space<vmem>>, vector<1x8x16xbf16>
    %36 = vector.shape_cast %35 : vector<1x8x16xbf16> to vector<8x16xbf16>
    %c0_34 = arith.constant 0 : index
    %c0_35 = arith.constant 0 : index
    %c32 = arith.constant 32 : index
    %37 = vector.load %arg1[%c0_34, %c0_35, %c32] : memref<1x16x384xbf16, #tpu.memory_space<vmem>>, vector<1x16x256xbf16>
    %38 = vector.shape_cast %37 : vector<1x16x256xbf16> to vector<16x256xbf16>
    %cst_36 = arith.constant dense<0.000000e+00> : vector<8x256xf32>
    %39 = tpu.matmul %36, %38, %cst_36 {dimension_numbers = #tpu.dot_dimension_numbers<[1], [0], [0], [1], [0, 0, 1, 1], [], []>} : vector<8x16xbf16>, vector<16x256xbf16>, vector<8x256xf32> -> vector<8x256xf32>
    %40 = arith.addf %34, %39 : vector<8x256xf32>
    %c7 = arith.constant 7 : index
    %c0_37 = arith.constant 0 : index
    %c0_38 = arith.constant 0 : index
    %41 = vector.load %arg2[%c7, %c0_37, %c0_38] : memref<9x8x16xbf16, #tpu.memory_space<vmem>>, vector<1x8x16xbf16>
    %42 = vector.shape_cast %41 : vector<1x8x16xbf16> to vector<8x16xbf16>
    %c0_39 = arith.constant 0 : index
    %c0_40 = arith.constant 0 : index
    %c33 = arith.constant 33 : index
    %43 = vector.load %arg1[%c0_39, %c0_40, %c33] : memref<1x16x384xbf16, #tpu.memory_space<vmem>>, vector<1x16x256xbf16>
    %44 = vector.shape_cast %43 : vector<1x16x256xbf16> to vector<16x256xbf16>
    %cst_41 = arith.constant dense<0.000000e+00> : vector<8x256xf32>
    %45 = tpu.matmul %42, %44, %cst_41 {dimension_numbers = #tpu.dot_dimension_numbers<[1], [0], [0], [1], [0, 0, 1, 1], [], []>} : vector<8x16xbf16>, vector<16x256xbf16>, vector<8x256xf32> -> vector<8x256xf32>
    %46 = arith.addf %40, %45 : vector<8x256xf32>
    %c8 = arith.constant 8 : index
    %c0_42 = arith.constant 0 : index
    %c0_43 = arith.constant 0 : index
    %47 = vector.load %arg2[%c8, %c0_42, %c0_43] : memref<9x8x16xbf16, #tpu.memory_space<vmem>>, vector<1x8x16xbf16>
    %48 = vector.shape_cast %47 : vector<1x8x16xbf16> to vector<8x16xbf16>
    %c0_44 = arith.constant 0 : index
    %c0_45 = arith.constant 0 : index
    %c34 = arith.constant 34 : index
    %49 = vector.load %arg1[%c0_44, %c0_45, %c34] : memref<1x16x384xbf16, #tpu.memory_space<vmem>>, vector<1x16x256xbf16>
    %50 = vector.shape_cast %49 : vector<1x16x256xbf16> to vector<16x256xbf16>
    %cst_46 = arith.constant dense<0.000000e+00> : vector<8x256xf32>
    %51 = tpu.matmul %48, %50, %cst_46 {dimension_numbers = #tpu.dot_dimension_numbers<[1], [0], [0], [1], [0, 0, 1, 1], [], []>} : vector<8x16xbf16>, vector<16x256xbf16>, vector<8x256xf32> -> vector<8x256xf32>
    %52 = arith.addf %46, %51 : vector<8x256xf32>
    %c0_47 = arith.constant 0 : index
    %c0_48 = arith.constant 0 : index
    %53 = vector.load %arg3[%c0_47, %c0_48] : memref<1x256xf32, #tpu.memory_space<vmem>>, vector<1x256xf32>
    %c0_49 = arith.constant 0 : index
    %c0_50 = arith.constant 0 : index
    %c0_51 = arith.constant 0 : index
    %54 = vector.load %arg4[%c0_49, %c0_50, %c0_51] : memref<1x8x256xf32, #tpu.memory_space<vmem>>, vector<1x8x256xf32>
    %55 = vector.shape_cast %54 : vector<1x8x256xf32> to vector<8x256xf32>
    %56 = vector.shape_cast %52 : vector<8x256xf32> to vector<1x8x256xf32>
    tpu.vector_store %arg4[%c0_49, %c0_50, %c0_51], %56 {strides = array<i32>} : memref<1x8x256xf32, #tpu.memory_space<vmem>>, vector<1x8x256xf32>,
    %57 = vector.broadcast %53 : vector<1x256xf32> to vector<8x256xf32>
    %58 = arith.mulf %52, %57 : vector<8x256xf32>
    %cst_52 = arith.constant dense<0.000000e+00> : vector<8xf32>
    %59 = vector.multi_reduction <add>, %58, %cst_52 [1] : vector<8x256xf32> to vector<8xf32>
    %60 = vector.shape_cast %59 : vector<8xf32> to vector<8x1xf32>
    %c0_53 = arith.constant 0 : index
    %c0_54 = arith.constant 0 : index
    %c0_55 = arith.constant 0 : index
    %61 = vector.load %arg5[%c0_53, %c0_54, %c0_55] : memref<1x8x1xf32, #tpu.memory_space<vmem>>, vector<1x8x1xf32>
    %62 = vector.shape_cast %61 : vector<1x8x1xf32> to vector<8x1xf32>
    %63 = vector.shape_cast %60 : vector<8x1xf32> to vector<1x8x1xf32>
    tpu.vector_store %arg5[%c0_53, %c0_54, %c0_55], %63 {strides = array<i32>} : memref<1x8x1xf32, #tpu.memory_space<vmem>>, vector<1x8x1xf32>,
    %64 = arith.mulf %52, %52 : vector<8x256xf32>
    %65 = vector.broadcast %53 : vector<1x256xf32> to vector<8x256xf32>
    %66 = arith.mulf %64, %65 : vector<8x256xf32>
    %cst_56 = arith.constant dense<0.000000e+00> : vector<8xf32>
    %67 = vector.multi_reduction <add>, %66, %cst_56 [1] : vector<8x256xf32> to vector<8xf32>
    %68 = vector.shape_cast %67 : vector<8xf32> to vector<8x1xf32>
    %c0_57 = arith.constant 0 : index
    %c0_58 = arith.constant 0 : index
    %c0_59 = arith.constant 0 : index
    %69 = vector.load %arg6[%c0_57, %c0_58, %c0_59] : memref<1x8x1xf32, #tpu.memory_space<vmem>>, vector<1x8x1xf32>
    %70 = vector.shape_cast %69 : vector<1x8x1xf32> to vector<8x1xf32>
    %71 = vector.shape_cast %68 : vector<8x1xf32> to vector<1x8x1xf32>
    tpu.vector_store %arg6[%c0_57, %c0_58, %c0_59], %71 {strides = array<i32>} : memref<1x8x1xf32, #tpu.memory_space<vmem>>, vector<1x8x1xf32>,
    return
  }
  func.func @transform_0(%arg0: i32) -> (i32, i32, i32) {
    %c0_i32 = arith.constant 0 : i32
    %c0_i32_0 = arith.constant 0 : i32
    %c0_i32_1 = arith.constant 0 : i32
    return %arg0, %c0_i32, %c0_i32_0 : i32, i32, i32
  }
  func.func @transform_1(%arg0: i32) -> (i32, i32, i32) {
    %c0_i32 = arith.constant 0 : i32
    %c0_i32_0 = arith.constant 0 : i32
    %c0_i32_1 = arith.constant 0 : i32
    %c0_i32_2 = arith.constant 0 : i32
    return %c0_i32, %c0_i32_0, %c0_i32_1 : i32, i32, i32
  }
  func.func @transform_2(%arg0: i32) -> (i32, i32) {
    %c0_i32 = arith.constant 0 : i32
    %c0_i32_0 = arith.constant 0 : i32
    %c0_i32_1 = arith.constant 0 : i32
    return %c0_i32, %c0_i32_0 : i32, i32
  }
  func.func @transform_3(%arg0: i32) -> (i32, i32, i32) {
    %c0_i32 = arith.constant 0 : i32
    %c0_i32_0 = arith.constant 0 : i32
    %c0_i32_1 = arith.constant 0 : i32
    return %arg0, %c0_i32, %c0_i32_0 : i32, i32, i32
  }
  func.func @transform_4(%arg0: i32) -> (i32, i32, i32) {
    %c0_i32 = arith.constant 0 : i32
    %c0_i32_0 = arith.constant 0 : i32
    %c0_i32_1 = arith.constant 0 : i32
    return %arg0, %c0_i32, %c0_i32_0 : i32, i32, i32
  }
  func.func @transform_5(%arg0: i32) -> (i32, i32, i32) {
    %c0_i32 = arith.constant 0 : i32
    %c0_i32_0 = arith.constant 0 : i32
    %c0_i32_1 = arith.constant 0 : i32
    return %arg0, %c0_i32, %c0_i32_0 : i32, i32, i32
  }
}

module attributes {stable_mosaic.version = 11 : i64} {
  func.func @_bn_lrelu_kernel(%arg0: i32, %arg1: memref<1x8x256xf32, #tpu.memory_space<vmem>>, %arg2: memref<8x1xf32, #tpu.memory_space<vmem>>, %arg3: memref<8x1xf32, #tpu.memory_space<vmem>>, %arg4: memref<1x8x256xbf16, #tpu.memory_space<vmem>>) attributes {dimension_semantics = [#tpu.dimension_semantics<parallel>], iteration_bounds = array<i64: 2>, scalar_prefetch = 0 : i64, scratch_operands = 0 : i64, tpu.core_type = #tpu.core_type<tc>, window_params = [{transform_indices = @transform_0, window_bounds = array<i64: 1, 8, 256>}, {pipeline_mode = #tpu.pipeline_mode<synchronous>, transform_indices = @transform_1, window_bounds = array<i64: 8, 1>}, {pipeline_mode = #tpu.pipeline_mode<synchronous>, transform_indices = @transform_2, window_bounds = array<i64: 8, 1>}, {transform_indices = @transform_3, window_bounds = array<i64: 1, 8, 256>}]} {
    %c0 = arith.constant 0 : index
    %c0_0 = arith.constant 0 : index
    %c0_1 = arith.constant 0 : index
    %0 = vector.load %arg1[%c0, %c0_0, %c0_1] : memref<1x8x256xf32, #tpu.memory_space<vmem>>, vector<1x8x256xf32>
    %1 = vector.shape_cast %0 : vector<1x8x256xf32> to vector<8x256xf32>
    %c0_2 = arith.constant 0 : index
    %c0_3 = arith.constant 0 : index
    %2 = vector.load %arg2[%c0_2, %c0_3] : memref<8x1xf32, #tpu.memory_space<vmem>>, vector<8x1xf32>
    %3 = vector.broadcast %2 : vector<8x1xf32> to vector<8x256xf32>
    %4 = arith.mulf %1, %3 : vector<8x256xf32>
    %c0_4 = arith.constant 0 : index
    %c0_5 = arith.constant 0 : index
    %5 = vector.load %arg3[%c0_4, %c0_5] : memref<8x1xf32, #tpu.memory_space<vmem>>, vector<8x1xf32>
    %6 = vector.broadcast %5 : vector<8x1xf32> to vector<8x256xf32>
    %7 = arith.addf %4, %6 : vector<8x256xf32>
    %cst = arith.constant 0.000000e+00 : f32
    %8 = vector.broadcast %cst : f32 to vector<8x256xf32>
    %9 = arith.cmpf oge, %7, %8 : vector<8x256xf32>
    %cst_6 = arith.constant 0.00999999977 : f32
    %10 = vector.broadcast %cst_6 : f32 to vector<8x256xf32>
    %11 = arith.mulf %10, %7 : vector<8x256xf32>
    %12 = arith.select %9, %7, %11 : vector<8x256xi1>, vector<8x256xf32>
    %13 = arith.truncf %12 : vector<8x256xf32> to vector<8x256xbf16>
    %c0_7 = arith.constant 0 : index
    %c0_8 = arith.constant 0 : index
    %c0_9 = arith.constant 0 : index
    %14 = vector.load %arg4[%c0_7, %c0_8, %c0_9] : memref<1x8x256xbf16, #tpu.memory_space<vmem>>, vector<1x8x256xbf16>
    %15 = vector.shape_cast %14 : vector<1x8x256xbf16> to vector<8x256xbf16>
    %16 = vector.shape_cast %13 : vector<8x256xbf16> to vector<1x8x256xbf16>
    tpu.vector_store %arg4[%c0_7, %c0_8, %c0_9], %16 {strides = array<i32>} : memref<1x8x256xbf16, #tpu.memory_space<vmem>>, vector<1x8x256xbf16>,
    return
  }
  func.func @transform_0(%arg0: i32) -> (i32, i32, i32) {
    %c0_i32 = arith.constant 0 : i32
    %c0_i32_0 = arith.constant 0 : i32
    %c0_i32_1 = arith.constant 0 : i32
    return %arg0, %c0_i32, %c0_i32_0 : i32, i32, i32
  }
  func.func @transform_1(%arg0: i32) -> (i32, i32) {
    %c0_i32 = arith.constant 0 : i32
    %c0_i32_0 = arith.constant 0 : i32
    %c0_i32_1 = arith.constant 0 : i32
    return %c0_i32, %c0_i32_0 : i32, i32
  }
  func.func @transform_2(%arg0: i32) -> (i32, i32) {
    %c0_i32 = arith.constant 0 : i32
    %c0_i32_0 = arith.constant 0 : i32
    %c0_i32_1 = arith.constant 0 : i32
    return %c0_i32, %c0_i32_0 : i32, i32
  }
  func.func @transform_3(%arg0: i32) -> (i32, i32, i32) {
    %c0_i32 = arith.constant 0 : i32
    %c0_i32_0 = arith.constant 0 : i32
    %c0_i32_1 = arith.constant 0 : i32
    return %arg0, %c0_i32, %c0_i32_0 : i32, i32, i32
  }
}

module attributes {stable_mosaic.version = 11 : i64} {
  func.func @kernel(%arg0: i32, %arg1: memref<1x8x1024xbf16, #tpu.memory_space<vmem>>, %arg2: memref<9x8x8xbf16, #tpu.memory_space<vmem>>, %arg3: memref<8x1xf32, #tpu.memory_space<vmem>>, %arg4: memref<1x8x896xf32, #tpu.memory_space<vmem>>) attributes {dimension_semantics = [#tpu.dimension_semantics<parallel>], iteration_bounds = array<i64: 2>, scalar_prefetch = 0 : i64, scratch_operands = 0 : i64, tpu.core_type = #tpu.core_type<tc>, window_params = [{transform_indices = @transform_0, window_bounds = array<i64: 1, 8, 1024>}, {pipeline_mode = #tpu.pipeline_mode<synchronous>, transform_indices = @transform_1, window_bounds = array<i64: 9, 8, 8>}, {pipeline_mode = #tpu.pipeline_mode<synchronous>, transform_indices = @transform_2, window_bounds = array<i64: 8, 1>}, {transform_indices = @transform_3, window_bounds = array<i64: 1, 8, 896>}]} {
    %c0 = arith.constant 0 : index
    %c0_0 = arith.constant 0 : index
    %c0_1 = arith.constant 0 : index
    %0 = vector.load %arg2[%c0, %c0_0, %c0_1] : memref<9x8x8xbf16, #tpu.memory_space<vmem>>, vector<1x8x8xbf16>
    %1 = vector.shape_cast %0 : vector<1x8x8xbf16> to vector<8x8xbf16>
    %c0_2 = arith.constant 0 : index
    %c0_3 = arith.constant 0 : index
    %c0_4 = arith.constant 0 : index
    %2 = vector.load %arg1[%c0_2, %c0_3, %c0_4] : memref<1x8x1024xbf16, #tpu.memory_space<vmem>>, vector<1x8x896xbf16>
    %3 = vector.shape_cast %2 : vector<1x8x896xbf16> to vector<8x896xbf16>
    %cst = arith.constant dense<0.000000e+00> : vector<8x896xf32>
    %4 = tpu.matmul %1, %3, %cst {dimension_numbers = #tpu.dot_dimension_numbers<[1], [0], [0], [1], [0, 0, 1, 1], [], []>} : vector<8x8xbf16>, vector<8x896xbf16>, vector<8x896xf32> -> vector<8x896xf32>
    %c1 = arith.constant 1 : index
    %c0_5 = arith.constant 0 : index
    %c0_6 = arith.constant 0 : index
    %5 = vector.load %arg2[%c1, %c0_5, %c0_6] : memref<9x8x8xbf16, #tpu.memory_space<vmem>>, vector<1x8x8xbf16>
    %6 = vector.shape_cast %5 : vector<1x8x8xbf16> to vector<8x8xbf16>
    %c0_7 = arith.constant 0 : index
    %c0_8 = arith.constant 0 : index
    %c1_9 = arith.constant 1 : index
    %7 = vector.load %arg1[%c0_7, %c0_8, %c1_9] : memref<1x8x1024xbf16, #tpu.memory_space<vmem>>, vector<1x8x896xbf16>
    %8 = vector.shape_cast %7 : vector<1x8x896xbf16> to vector<8x896xbf16>
    %cst_10 = arith.constant dense<0.000000e+00> : vector<8x896xf32>
    %9 = tpu.matmul %6, %8, %cst_10 {dimension_numbers = #tpu.dot_dimension_numbers<[1], [0], [0], [1], [0, 0, 1, 1], [], []>} : vector<8x8xbf16>, vector<8x896xbf16>, vector<8x896xf32> -> vector<8x896xf32>
    %10 = arith.addf %4, %9 : vector<8x896xf32>
    %c2 = arith.constant 2 : index
    %c0_11 = arith.constant 0 : index
    %c0_12 = arith.constant 0 : index
    %11 = vector.load %arg2[%c2, %c0_11, %c0_12] : memref<9x8x8xbf16, #tpu.memory_space<vmem>>, vector<1x8x8xbf16>
    %12 = vector.shape_cast %11 : vector<1x8x8xbf16> to vector<8x8xbf16>
    %c0_13 = arith.constant 0 : index
    %c0_14 = arith.constant 0 : index
    %c2_15 = arith.constant 2 : index
    %13 = vector.load %arg1[%c0_13, %c0_14, %c2_15] : memref<1x8x1024xbf16, #tpu.memory_space<vmem>>, vector<1x8x896xbf16>
    %14 = vector.shape_cast %13 : vector<1x8x896xbf16> to vector<8x896xbf16>
    %cst_16 = arith.constant dense<0.000000e+00> : vector<8x896xf32>
    %15 = tpu.matmul %12, %14, %cst_16 {dimension_numbers = #tpu.dot_dimension_numbers<[1], [0], [0], [1], [0, 0, 1, 1], [], []>} : vector<8x8xbf16>, vector<8x896xbf16>, vector<8x896xf32> -> vector<8x896xf32>
    %16 = arith.addf %10, %15 : vector<8x896xf32>
    %c3 = arith.constant 3 : index
    %c0_17 = arith.constant 0 : index
    %c0_18 = arith.constant 0 : index
    %17 = vector.load %arg2[%c3, %c0_17, %c0_18] : memref<9x8x8xbf16, #tpu.memory_space<vmem>>, vector<1x8x8xbf16>
    %18 = vector.shape_cast %17 : vector<1x8x8xbf16> to vector<8x8xbf16>
    %c0_19 = arith.constant 0 : index
    %c0_20 = arith.constant 0 : index
    %c30 = arith.constant 30 : index
    %19 = vector.load %arg1[%c0_19, %c0_20, %c30] : memref<1x8x1024xbf16, #tpu.memory_space<vmem>>, vector<1x8x896xbf16>
    %20 = vector.shape_cast %19 : vector<1x8x896xbf16> to vector<8x896xbf16>
    %cst_21 = arith.constant dense<0.000000e+00> : vector<8x896xf32>
    %21 = tpu.matmul %18, %20, %cst_21 {dimension_numbers = #tpu.dot_dimension_numbers<[1], [0], [0], [1], [0, 0, 1, 1], [], []>} : vector<8x8xbf16>, vector<8x896xbf16>, vector<8x896xf32> -> vector<8x896xf32>
    %22 = arith.addf %16, %21 : vector<8x896xf32>
    %c4 = arith.constant 4 : index
    %c0_22 = arith.constant 0 : index
    %c0_23 = arith.constant 0 : index
    %23 = vector.load %arg2[%c4, %c0_22, %c0_23] : memref<9x8x8xbf16, #tpu.memory_space<vmem>>, vector<1x8x8xbf16>
    %24 = vector.shape_cast %23 : vector<1x8x8xbf16> to vector<8x8xbf16>
    %c0_24 = arith.constant 0 : index
    %c0_25 = arith.constant 0 : index
    %c31 = arith.constant 31 : index
    %25 = vector.load %arg1[%c0_24, %c0_25, %c31] : memref<1x8x1024xbf16, #tpu.memory_space<vmem>>, vector<1x8x896xbf16>
    %26 = vector.shape_cast %25 : vector<1x8x896xbf16> to vector<8x896xbf16>
    %cst_26 = arith.constant dense<0.000000e+00> : vector<8x896xf32>
    %27 = tpu.matmul %24, %26, %cst_26 {dimension_numbers = #tpu.dot_dimension_numbers<[1], [0], [0], [1], [0, 0, 1, 1], [], []>} : vector<8x8xbf16>, vector<8x896xbf16>, vector<8x896xf32> -> vector<8x896xf32>
    %28 = arith.addf %22, %27 : vector<8x896xf32>
    %c5 = arith.constant 5 : index
    %c0_27 = arith.constant 0 : index
    %c0_28 = arith.constant 0 : index
    %29 = vector.load %arg2[%c5, %c0_27, %c0_28] : memref<9x8x8xbf16, #tpu.memory_space<vmem>>, vector<1x8x8xbf16>
    %30 = vector.shape_cast %29 : vector<1x8x8xbf16> to vector<8x8xbf16>
    %c0_29 = arith.constant 0 : index
    %c0_30 = arith.constant 0 : index
    %c32 = arith.constant 32 : index
    %31 = vector.load %arg1[%c0_29, %c0_30, %c32] : memref<1x8x1024xbf16, #tpu.memory_space<vmem>>, vector<1x8x896xbf16>
    %32 = vector.shape_cast %31 : vector<1x8x896xbf16> to vector<8x896xbf16>
    %cst_31 = arith.constant dense<0.000000e+00> : vector<8x896xf32>
    %33 = tpu.matmul %30, %32, %cst_31 {dimension_numbers = #tpu.dot_dimension_numbers<[1], [0], [0], [1], [0, 0, 1, 1], [], []>} : vector<8x8xbf16>, vector<8x896xbf16>, vector<8x896xf32> -> vector<8x896xf32>
    %34 = arith.addf %28, %33 : vector<8x896xf32>
    %c6 = arith.constant 6 : index
    %c0_32 = arith.constant 0 : index
    %c0_33 = arith.constant 0 : index
    %35 = vector.load %arg2[%c6, %c0_32, %c0_33] : memref<9x8x8xbf16, #tpu.memory_space<vmem>>, vector<1x8x8xbf16>
    %36 = vector.shape_cast %35 : vector<1x8x8xbf16> to vector<8x8xbf16>
    %c0_34 = arith.constant 0 : index
    %c0_35 = arith.constant 0 : index
    %c60 = arith.constant 60 : index
    %37 = vector.load %arg1[%c0_34, %c0_35, %c60] : memref<1x8x1024xbf16, #tpu.memory_space<vmem>>, vector<1x8x896xbf16>
    %38 = vector.shape_cast %37 : vector<1x8x896xbf16> to vector<8x896xbf16>
    %cst_36 = arith.constant dense<0.000000e+00> : vector<8x896xf32>
    %39 = tpu.matmul %36, %38, %cst_36 {dimension_numbers = #tpu.dot_dimension_numbers<[1], [0], [0], [1], [0, 0, 1, 1], [], []>} : vector<8x8xbf16>, vector<8x896xbf16>, vector<8x896xf32> -> vector<8x896xf32>
    %40 = arith.addf %34, %39 : vector<8x896xf32>
    %c7 = arith.constant 7 : index
    %c0_37 = arith.constant 0 : index
    %c0_38 = arith.constant 0 : index
    %41 = vector.load %arg2[%c7, %c0_37, %c0_38] : memref<9x8x8xbf16, #tpu.memory_space<vmem>>, vector<1x8x8xbf16>
    %42 = vector.shape_cast %41 : vector<1x8x8xbf16> to vector<8x8xbf16>
    %c0_39 = arith.constant 0 : index
    %c0_40 = arith.constant 0 : index
    %c61 = arith.constant 61 : index
    %43 = vector.load %arg1[%c0_39, %c0_40, %c61] : memref<1x8x1024xbf16, #tpu.memory_space<vmem>>, vector<1x8x896xbf16>
    %44 = vector.shape_cast %43 : vector<1x8x896xbf16> to vector<8x896xbf16>
    %cst_41 = arith.constant dense<0.000000e+00> : vector<8x896xf32>
    %45 = tpu.matmul %42, %44, %cst_41 {dimension_numbers = #tpu.dot_dimension_numbers<[1], [0], [0], [1], [0, 0, 1, 1], [], []>} : vector<8x8xbf16>, vector<8x896xbf16>, vector<8x896xf32> -> vector<8x896xf32>
    %46 = arith.addf %40, %45 : vector<8x896xf32>
    %c8 = arith.constant 8 : index
    %c0_42 = arith.constant 0 : index
    %c0_43 = arith.constant 0 : index
    %47 = vector.load %arg2[%c8, %c0_42, %c0_43] : memref<9x8x8xbf16, #tpu.memory_space<vmem>>, vector<1x8x8xbf16>
    %48 = vector.shape_cast %47 : vector<1x8x8xbf16> to vector<8x8xbf16>
    %c0_44 = arith.constant 0 : index
    %c0_45 = arith.constant 0 : index
    %c62 = arith.constant 62 : index
    %49 = vector.load %arg1[%c0_44, %c0_45, %c62] : memref<1x8x1024xbf16, #tpu.memory_space<vmem>>, vector<1x8x896xbf16>
    %50 = vector.shape_cast %49 : vector<1x8x896xbf16> to vector<8x896xbf16>
    %cst_46 = arith.constant dense<0.000000e+00> : vector<8x896xf32>
    %51 = tpu.matmul %48, %50, %cst_46 {dimension_numbers = #tpu.dot_dimension_numbers<[1], [0], [0], [1], [0, 0, 1, 1], [], []>} : vector<8x8xbf16>, vector<8x896xbf16>, vector<8x896xf32> -> vector<8x896xf32>
    %52 = arith.addf %46, %51 : vector<8x896xf32>
    %c0_47 = arith.constant 0 : index
    %c0_48 = arith.constant 0 : index
    %53 = vector.load %arg3[%c0_47, %c0_48] : memref<8x1xf32, #tpu.memory_space<vmem>>, vector<8x1xf32>
    %54 = vector.broadcast %53 : vector<8x1xf32> to vector<8x896xf32>
    %55 = arith.addf %52, %54 : vector<8x896xf32>
    %56 = math.tanh %55 : vector<8x896xf32>
    %c0_49 = arith.constant 0 : index
    %c0_50 = arith.constant 0 : index
    %c0_51 = arith.constant 0 : index
    %57 = vector.load %arg4[%c0_49, %c0_50, %c0_51] : memref<1x8x896xf32, #tpu.memory_space<vmem>>, vector<1x8x896xf32>
    %58 = vector.shape_cast %57 : vector<1x8x896xf32> to vector<8x896xf32>
    %59 = vector.shape_cast %56 : vector<8x896xf32> to vector<1x8x896xf32>
    tpu.vector_store %arg4[%c0_49, %c0_50, %c0_51], %59 {strides = array<i32>} : memref<1x8x896xf32, #tpu.memory_space<vmem>>, vector<1x8x896xf32>,
    return
  }
  func.func @transform_0(%arg0: i32) -> (i32, i32, i32) {
    %c0_i32 = arith.constant 0 : i32
    %c0_i32_0 = arith.constant 0 : i32
    %c0_i32_1 = arith.constant 0 : i32
    return %arg0, %c0_i32, %c0_i32_0 : i32, i32, i32
  }
  func.func @transform_1(%arg0: i32) -> (i32, i32, i32) {
    %c0_i32 = arith.constant 0 : i32
    %c0_i32_0 = arith.constant 0 : i32
    %c0_i32_1 = arith.constant 0 : i32
    %c0_i32_2 = arith.constant 0 : i32
    return %c0_i32, %c0_i32_0, %c0_i32_1 : i32, i32, i32
  }
  func.func @transform_2(%arg0: i32) -> (i32, i32) {
    %c0_i32 = arith.constant 0 : i32
    %c0_i32_0 = arith.constant 0 : i32
    %c0_i32_1 = arith.constant 0 : i32
    return %c0_i32, %c0_i32_0 : i32, i32
  }
  func.func @transform_3(%arg0: i32) -> (i32, i32, i32) {
    %c0_i32 = arith.constant 0 : i32
    %c0_i32_0 = arith.constant 0 : i32
    %c0_i32_1 = arith.constant 0 : i32
    return %arg0, %c0_i32, %c0_i32_0 : i32, i32, i32
  }
}

</mosaic_0001>

<llo_original>
// kernel: generator_forward.8
$region0: #{generator_forward.8}
  #allocation0 [shape = 'u32[]', space=smem, size = 0x4, offset = 0x4, fixed_abs, tag = 'smem constant byte address 0x4 - core index']
  #allocation1 [shape = 'u32[144,128]{1,0:T(1,128)}', space=vmem, size = 0x12000, scoped, tag = 'internal scratch']
  %s0 = inlined_call_operand.vmem [shape: bf16[2,16], index: 0, kind: input, shape index: {}]
  %s1 = inlined_call_operand.vmem [shape: bf16[16,3584], index: 1, kind: input, shape index: {}]
  %s2 = inlined_call_operand.vmem [shape: f32[1,3584], index: 2, kind: input, shape index: {}]
  %s3 = inlined_call_operand.vmem [shape: f32[2,3584], index: 3, kind: output, shape index: {}]
  %s4 = sld [smem:[#allocation0]]
  $region68: #{generator_forward.8} parent=0
    _
  %s6 = ssub.s32 1, %s4
  %s7 = scalar_select 0, %s6, %s4
  $region1: #{generator_forward.8} parent=0
    #allocation2 [shape = 'u8[32768]{0}', space=vmem, size = 0x8000, scoped, tag = 'input window, operand 1']
    loop: start=0, step=1, limit=9
    $region2: #{generator_forward.8} parent=1 // loop_pre_header
      _
    $region3: #{generator_forward.8} parent=1 // loop_header
      %s9 = sphi 0, %s13
      %p10 = scmp.ge.s32.totalorder %s9, 9
      %s17 = sphi 0, %s17
      %s19 = sphi 0, %s17
      %s20 = sphi 0, %s19
      %s34 = sphi 0, %s20
      %s40 = sphi 0, %s42
      %s43 = sphi 0, %s40
      %s44 = sphi 0, %s43
      %s60 = sphi 0, %s44
      %s66 = sphi 0, %s68
      %s69 = sphi 0, %s66
      %s70 = sphi 0, %s69
      %s86 = sphi 0, %s70
      %s92 = sphi 0, %s94
      %s95 = sphi 0, %s92
      %s96 = sphi 0, %s95
      %s112 = sphi 0, %s96
    $region4: #{generator_forward.8} parent=1 // loop_header_branch
      %12 = sbr.rel (%p10) target = $region8
    $region5: #{generator_forward.8} parent=1 // loop_body
      %s14 = ssub.s32 %s9, 1
      %s15 = ssub.s32 %s9, 2
      %s16 = sadd.s32 %s9, 1
      %s18 = sadd.s32 %s17, 1
      %p21 = scmp.eq.s32.totalorder %s9, 6
      %p22 = scmp.ne.s32.totalorder %s17, %s19
      %p23 = scmp.eq.s32.totalorder %s9, 0
      %p24 = por %p22, %p23
      %p25 = scmp.ne.s32.totalorder %s17, %s19
      %p26 = scmp.eq.s32.totalorder %s14, 6
      %p27 = por %p25, %p26
      %p28 = scmp.ne.s32.totalorder %s19, %s20
      %p29 = scmp.eq.s32.totalorder %s14, 0
      %p30 = por %p28, %p29
      %p31 = scmp.ne.s32.totalorder %s19, %s20
      %p32 = scmp.eq.s32.totalorder %s15, 6
      %p33 = por %p31, %p32
      %p35 = scmp.ne.s32.totalorder %s20, %s34
      %p36 = scmp.eq.s32.totalorder %s15, 0
      %p37 = por %p35, %p36
      %s38 = ssub.s32 %s9, %s16
      %p39 = scmp.eq.s32.totalorder %s38, 0
      %s41 = sadd.s32 %s40, 1
      %s42 = scalar_select %p39, %s40, %s41
      %p45 = pneg %p39
      %p46 = scmp.eq.s32.totalorder %s9, 6
      %p47 = por %p45, %p46
      %p48 = scmp.ne.s32.totalorder %s40, %s43
      %p49 = scmp.eq.s32.totalorder %s9, 0
      %p50 = por %p48, %p49
      %p51 = scmp.ne.s32.totalorder %s40, %s43
      %p52 = scmp.eq.s32.totalorder %s14, 6
      %p53 = por %p51, %p52
      %p54 = scmp.ne.s32.totalorder %s43, %s44
      %p55 = scmp.eq.s32.totalorder %s14, 0
      %p56 = por %p54, %p55
      %p57 = scmp.ne.s32.totalorder %s43, %s44
      %p58 = scmp.eq.s32.totalorder %s15, 6
      %p59 = por %p57, %p58
      %p61 = scmp.ne.s32.totalorder %s44, %s60
      %p62 = scmp.eq.s32.totalorder %s15, 0
      %p63 = por %p61, %p62
      %s64 = ssub.s32 %s9, %s16
      %p65 = scmp.eq.s32.totalorder %s64, 0
      %s67 = sadd.s32 %s66, 1
      %s68 = scalar_select %p65, %s66, %s67
      %p71 = pneg %p65
      %p72 = scmp.eq.s32.totalorder %s9, 6
      %p73 = por %p71, %p72
      %p74 = scmp.ne.s32.totalorder %s66, %s69
      %p75 = scmp.eq.s32.totalorder %s9, 0
      %p76 = por %p74, %p75
      %p77 = scmp.ne.s32.totalorder %s66, %s69
      %p78 = scmp.eq.s32.totalorder %s14, 6
      %p79 = por %p77, %p78
      %p80 = scmp.ne.s32.totalorder %s69, %s70
      %p81 = scmp.eq.s32.totalorder %s14, 0
      %p82 = por %p80, %p81
      %p83 = scmp.ne.s32.totalorder %s69, %s70
      %p84 = scmp.eq.s32.totalorder %s15, 6
      %p85 = por %p83, %p84
      %p87 = scmp.ne.s32.totalorder %s70, %s86
      %p88 = scmp.eq.s32.totalorder %s15, 0
      %p89 = por %p87, %p88
      %s90 = ssub.s32 %s9, %s16
      %p91 = scmp.eq.s32.totalorder %s90, 0
      %s93 = sadd.s32 %s92, 1
      %s94 = scalar_select %p91, %s92, %s93
      %p97 = pneg %p91
      %p98 = scmp.eq.s32.totalorder %s9, 6
      %p99 = por %p97, %p98
      %p100 = scmp.ne.s32.totalorder %s92, %s95
      %p101 = scmp.eq.s32.totalorder %s9, 0
      %p102 = por %p100, %p101
      %p103 = scmp.ne.s32.totalorder %s92, %s95
      %p104 = scmp.eq.s32.totalorder %s14, 6
      %p105 = por %p103, %p104
      %p106 = scmp.ne.s32.totalorder %s95, %s96
      %p107 = scmp.eq.s32.totalorder %s14, 0
      %p108 = por %p106, %p107
      %p109 = scmp.ne.s32.totalorder %s95, %s96
      %p110 = scmp.eq.s32.totalorder %s15, 6
      %p111 = por %p109, %p110
      %p113 = scmp.ne.s32.totalorder %s96, %s112
      %p114 = scmp.eq.s32.totalorder %s15, 0
      %p115 = por %p113, %p114
      %p116 = scmp.le.s32.totalorder 1, %s9
      %p117 = scmp.lt.s32.totalorder %s9, 8
      %p118 = pnand %p116, %p117
      %p119 = pneg %p118
      // Predicated region
      $region9: #{generator_forward.8} parent=5 // pred_check
        _
      $region10: #{generator_forward.8} parent=5 // pred_check_branch
        %121 = sbr.rel (%p118) target = $region12
      $region11: #{generator_forward.8} parent=5 // pred_region
        %s122 = ssub.s32 %s9, 1
        // Predicated region
        $region13: #{generator_forward.8} parent=11 // pred_check
          %p123 = pneg %p30
        $region14: #{generator_forward.8} parent=11 // pred_check_branch
          %125 = sbr.rel (%p123) target = $region16
        $region15: #{generator_forward.8} parent=11 // pred_region
          _
        $region16: #{generator_forward.8} parent=11 // pred_fallthru
          _
      $region12: #{generator_forward.8} parent=5 // pred_fallthru
        _
      %p126 = scmp.lt.s32.totalorder %s9, 7
      // Predicated region
      $region17: #{generator_forward.8} parent=5 // pred_check
        %p127 = pneg %p126
      $region18: #{generator_forward.8} parent=5 // pred_check_branch
        %129 = sbr.rel (%p127) target = $region20
      $region19: #{generator_forward.8} parent=5 // pred_region
        // Predicated region
        $region21: #{generator_forward.8} parent=19 // pred_check
          %p130 = pneg %p50
        $region22: #{generator_forward.8} parent=19 // pred_check_branch
          %132 = sbr.rel (%p130) target = $region24
        $region23: #{generator_forward.8} parent=19 // pred_region
          %s133 = sand.u32 %s40, 1
          %s134 = sand.u32 %s40, 1
          %s135 = smul.addr %s134, 32
          %s136 = scalar_lea.vmem [#allocation2], %s135
          %s137 = smul.u32 4, %s9
          %s138 = smul.addr %s137, 4
          %s139 = scalar_lea.vmem %s1, %s138
          // Predicated region
          $region25: #{generator_forward.8} parent=23 // pred_check
            _
          $region26: #{generator_forward.8} parent=23 // pred_check_branch
            %141 = sbr.rel (0) target = $region28
          $region27: #{generator_forward.8} parent=23 // pred_region
            // Predicated region
            $region29: #{generator_forward.8} parent=27 // pred_check
              _
            $region30: #{generator_forward.8} parent=27 // pred_check_branch
              %143 = sbr.rel (0) target = $region32
            $region31: #{generator_forward.8} parent=27 // pred_region
              loop: start=0, step=1, limit=1
              $region33: #{generator_forward.8} parent=31 // loop_pre_header
                _
              $region34: #{generator_forward.8} parent=31 // loop_header
                %s145 = sphi 0, %s149
                %p146 = scmp.ge.s32.totalorder %s145, 1
                %s150 = sphi %s139, %s139
                %s151 = sphi %s136, %s136
              $region35: #{generator_forward.8} parent=31 // loop_header_branch
                %148 = sbr.rel (%p146) target = $region39
              $region36: #{generator_forward.8} parent=31 // loop_body
                %v152 = vld [vmem:[%s150] sm:$0xff]
                %153 = vst [vmem:[%s151] sm:$0xff] %v152
                %v154 = vld [vmem:[%s150 + $0x8] sm:$0xff]
                %155 = vst [vmem:[%s151 + $0x8] sm:$0xff] %v154
                %v156 = vld [vmem:[%s150 + $0x70] sm:$0xff]
                %157 = vst [vmem:[%s151 + $0x10] sm:$0xff] %v156
                %v158 = vld [vmem:[%s150 + $0x78] sm:$0xff]
                %159 = vst [vmem:[%s151 + $0x18] sm:$0xff] %v158
              $region37: #{generator_forward.8} parent=31 // loop_footer
                %s149 = sadd.s32 1, %s145
              $region38: #{generator_forward.8} parent=31 // loop_footer_branch
                %144 = sbr.rel target = $region34
              $region39: #{generator_forward.8} parent=31 // loop_exit
                _
            $region32: #{generator_forward.8} parent=27 // pred_fallthru
              _
            // Predicated region
            $region40: #{generator_forward.8} parent=27 // pred_check
              _
            $region41: #{generator_forward.8} parent=27 // pred_check_branch
              %161 = sbr.rel target = $region43
            $region42: #{generator_forward.8} parent=27 // pred_region
              _
            $region43: #{generator_forward.8} parent=27 // pred_fallthru
              _
          $region28: #{generator_forward.8} parent=23 // pred_fallthru
            _
          %162 = vnop
        $region24: #{generator_forward.8} parent=19 // pred_fallthru
          _
        // Predicated region
        $region44: #{generator_forward.8} parent=19 // pred_check
          %p163 = pneg %p76
        $region45: #{generator_forward.8} parent=19 // pred_check_branch
          %165 = sbr.rel (%p163) target = $region47
        $region46: #{generator_forward.8} parent=19 // pred_region
          %s166 = smul.u32 4, %s9
          %p167 = scmp.lt.s32.totalorder %s166, 27
          %s168 = scalar_select %p167, %s166, 27
          %s169 = scalar_lea.vmem %s2, %s168
          %s170 = smul.u32 4, %s9
        $region47: #{generator_forward.8} parent=19 // pred_fallthru
          _
      $region20: #{generator_forward.8} parent=5 // pred_fallthru
        _
      %p171 = scmp.le.s32.totalorder 1, %s9
      %p172 = scmp.lt.s32.totalorder %s9, 8
      %p173 = pnand %p171, %p172
      %p174 = pneg %p173
      // Predicated region
      $region48: #{generator_forward.8} parent=5 // pred_check
        _
      $region49: #{generator_forward.8} parent=5 // pred_check_branch
        %176 = sbr.rel (%p173) target = $region51
      $region50: #{generator_forward.8} parent=5 // pred_region
        %s177 = ssub.s32 %s9, 1
        %s178 = sand.u32 %s43, 1
        %s179 = sand.u32 %s43, 1
        %s180 = smul.addr %s179, 32
        %s181 = scalar_lea.vmem [#allocation2], %s180
        // Predicated region
        $region52: #{generator_forward.8} parent=50 // pred_check
          %p182 = pneg %p56
        $region53: #{generator_forward.8} parent=50 // pred_check_branch
          %184 = sbr.rel (%p182) target = $region55
        $region54: #{generator_forward.8} parent=50 // pred_region
          _
        $region55: #{generator_forward.8} parent=50 // pred_fallthru
          _
        %p185 = pneg %p30
        %p186 = pneg %p27
        %s187 = sand.u32 %s43, 1
        %s188 = sand.u32 %s43, 1
        %s189 = smul.addr %s188, 32
        %s190 = scalar_lea.vmem [#allocation2], %s189
        %p191 = pneg %p56
        %p192 = pneg %p53
        %s193 = smul.u32 4, %s14
        %p194 = scmp.lt.s32.totalorder %s193, 27
        %s195 = scalar_select %p194, %s193, 27
        %s196 = scalar_lea.vmem %s2, %s195
        %p197 = pneg %p82
        %p198 = pneg %p79
        %p199 = pneg %p108
        %p200 = pneg %p105
        %s201 = smul.u32 4, %s14
        %p202 = scmp.lt.s32.totalorder %s201, 27
        %s203 = scalar_select %p202, %s201, 27
        %s204 = smul.addr %s203, 2
        %s205 = scalar_lea.vmem %s3, %s204
        %s206 = smul.u32 4, %s14
        %s207 = smul.u32 4, %s14
        %p208 = scmp.lt.s32.totalorder %s207, 27
        %s209 = scalar_select %p208, %s207, 27
        %s210 = scalar_lea.vmem %s2, %s209
        %s211 = smul.u32 4, %s14
        %s212 = smul.u32 4, %s14
        %p213 = scmp.lt.s32.totalorder %s212, 27
        %s214 = scalar_select %p213, %s212, 27
        %s215 = smul.addr %s214, 2
        %s216 = scalar_lea.vmem %s3, %s215
        %s217 = smul.u32 4, %s14
        %v219 = vld [vmem:[%s0] sm:$0x1]
        %v220 = vld [vmem:[%s181] sm:$0xff]
        %v221 = vld [vmem:[%s181 + $0x8] sm:$0xff]
        %v222 = vld [vmem:[%s181 + $0x10] sm:$0xff]
        %v223 = vld [vmem:[%s181 + $0x18] sm:$0xff]
        %v224 = vld [vmem:[%s210] sm:$0xf]
        %v226 = vlaneseq
        %v227 = vshrl.u32 %v226, 7
        %v228 = vsub.s32 0, %v227
        %v229 = vrot.slane %v224, %v228
        %v230 = vlaneseq
        %v231 = vshrl.u32 %v230, 7
        %v232 = vsub.s32 1, %v231
        %v233 = vrot.slane %v224, %v232
        %v234 = vlaneseq
        %v235 = vshrl.u32 %v234, 7
        %v236 = vsub.s32 2, %v235
        %v237 = vrot.slane %v224, %v236
        %v238 = vlaneseq
        %v239 = vshrl.u32 %v238, 7
        %v240 = vsub.s32 3, %v239
        %v241 = vrot.slane %v224, %v240
        %v250 = vunpack.c.l.b16 %v220
        %v251 = vunpack.c.h.b16 %v220
        %v252 = vunpack.c.l.b16 %v221
        %v253 = vunpack.c.h.b16 %v221
        %v254 = vunpack.c.l.b16 %v222
        %v255 = vunpack.c.h.b16 %v222
        %v256 = vunpack.c.l.b16 %v223
        %v257 = vunpack.c.h.b16 %v223
        %v258 = vpack.c.b16 %v254, %v250
        %v259 = vpack.c.b16 %v255, %v251
        %v260 = vpack.c.b16 %v256, %v252
        %v261 = vpack.c.b16 %v257, %v253
        %vm266 = vcmask 130048
        %v268 = vsel %vm266, %v219, 0
        %270 = vmatprep.subr.bf16.mxu0 %v259
        %271 = vmatpush1.bf16.msra.mxu0 %v258
        %272 = vmatprep.subr.bf16.mxu0 0
        %273 = vmatpush1.bf16.msra.mxu0 0
        %274 = vmatprep.subr.bf16.mxu0 0
        %275 = vmatpush1.bf16.msra.mxu0 0
        %276 = vmatprep.subr.bf16.mxu0 0
        %277 = vmatpush1.bf16.msra.mxu0 0
        %278 = vmatprep.subr.bf16.mxu0 0
        %279 = vmatpush1.bf16.msra.mxu0 0
        %280 = vmatprep.subr.bf16.mxu0 0
        %281 = vmatpush1.bf16.msra.mxu0 0
        %282 = vmatprep.subr.bf16.mxu0 0
        %283 = vmatpush1.bf16.msra.mxu0 0
        %284 = vmatprep.subr.bf16.mxu0 0
        %285 = vmatpush1.bf16.msra.mxu0 0
        %286 = vmatprep.subr.bf16.mxu0 0
        %287 = vmatpush1.bf16.msra.mxu0 0
        %288 = vmatprep.subr.bf16.mxu0 0
        %289 = vmatpush1.bf16.msra.mxu0 0
        %290 = vmatprep.subr.bf16.mxu0 0
        %291 = vmatpush1.bf16.msra.mxu0 0
        %292 = vmatprep.subr.bf16.mxu0 0
        %293 = vmatpush1.bf16.msra.mxu0 0
        %294 = vmatprep.subr.bf16.mxu0 0
        %295 = vmatpush1.bf16.msra.mxu0 0
        %296 = vmatprep.subr.bf16.mxu0 0
        %297 = vmatpush1.bf16.msra.mxu0 0
        %298 = vmatprep.subr.bf16.mxu0 0
        %299 = vmatpush1.bf16.msra.mxu0 0
        %300 = vmatprep.subr.bf16.mxu0 0
        %301 = vmatpush1.bf16.msra.mxu0 0
        %302 = vmatprep.mubr.bf16.mxu0 0
        %303 = vmatmul.mubr.bf16.gmra.mrb[0].mxu0 %v268
        %v304 = vpop.f32.mrb[0].mxu0
        %v305 = vadd.f32 %v229, %v304
        %v306 = vpop.f32.mrb[0].mxu0
        %v307 = vadd.f32 %v233, %v306
        %v308 = vpop.f32.mrb[0].mxu0
        %v309 = vpop.f32.mrb[0].mxu0
        %310 = vdwg.mxu0
        %311 = vmatprep.subr.bf16.mxu0 %v261
        %312 = vmatpush1.bf16.msra.mxu0 %v260
        %313 = vmatprep.subr.bf16.mxu0 0
        %314 = vmatpush1.bf16.msra.mxu0 0
        %315 = vmatprep.subr.bf16.mxu0 0
        %316 = vmatpush1.bf16.msra.mxu0 0
        %317 = vmatprep.subr.bf16.mxu0 0
        %318 = vmatpush1.bf16.msra.mxu0 0
        %319 = vmatprep.subr.bf16.mxu0 0
        %320 = vmatpush1.bf16.msra.mxu0 0
        %321 = vmatprep.subr.bf16.mxu0 0
        %322 = vmatpush1.bf16.msra.mxu0 0
        %323 = vmatprep.subr.bf16.mxu0 0
        %324 = vmatpush1.bf16.msra.mxu0 0
        %325 = vmatprep.subr.bf16.mxu0 0
        %326 = vmatpush1.bf16.msra.mxu0 0
        %327 = vmatprep.subr.bf16.mxu0 0
        %328 = vmatpush1.bf16.msra.mxu0 0
        %329 = vmatprep.subr.bf16.mxu0 0
        %330 = vmatpush1.bf16.msra.mxu0 0
        %331 = vmatprep.subr.bf16.mxu0 0
        %332 = vmatpush1.bf16.msra.mxu0 0
        %333 = vmatprep.subr.bf16.mxu0 0
        %334 = vmatpush1.bf16.msra.mxu0 0
        %335 = vmatprep.subr.bf16.mxu0 0
        %336 = vmatpush1.bf16.msra.mxu0 0
        %337 = vmatprep.subr.bf16.mxu0 0
        %338 = vmatpush1.bf16.msra.mxu0 0
        %339 = vmatprep.subr.bf16.mxu0 0
        %340 = vmatpush1.bf16.msra.mxu0 0
        %341 = vmatprep.subr.bf16.mxu0 0
        %342 = vmatpush1.bf16.msra.mxu0 0
        %343 = vmatprep.mubr.bf16.mxu0 0
        %344 = vmatmul.mubr.bf16.gmra.mrb[0].mxu0 %v268
        %v345 = vpop.f32.mrb[0].mxu0
        %v346 = vadd.f32 %v237, %v345
        %v347 = vpop.f32.mrb[0].mxu0
        %v348 = vadd.f32 %v241, %v347
        %v349 = vpop.f32.mrb[0].mxu0
        %v350 = vpop.f32.mrb[0].mxu0
        %351 = vdwg.mxu0
        %v352 = vmax.f32 %v305, 0.0
        %v353 = vmax.f32 %v307, 0.0
        %v354 = vmax.f32 %v346, 0.0
        %v355 = vmax.f32 %v348, 0.0
        %v360 = vcombine.low %v352, %v353
        %v361 = vcombine.low %v354, %v355
        %v363 = vunpack.c.l.s4 1983009808
        %v364 = vunpack.c.0.s8 %v363
        %v365 = vlaneseq
        %v366 = vshrl.u32 %v365, 7
        %v367 = vsub.s32 %v364, %v366
        %v368 = vrot.slane %v360, %v367
        %v370 = vunpack.c.l.s4 1983009808
        %v371 = vunpack.c.0.s8 %v370
        %v372 = vlaneseq
        %v373 = vshrl.u32 %v372, 7
        %v374 = vsub.s32 %v371, %v373
        %v375 = vrot.slane %v361, %v374
        %v376 = vcombine.low %v368, %v375
        %378 = vst [vmem:[%s216] sm:$0xff] %v376
        %s379 = smul.u32 4, %s14
        %p380 = scmp.lt.s32.totalorder %s379, 27
        %s381 = scalar_select %p380, %s379, 27
        %s382 = smul.addr %s381, 2
        %s383 = scalar_lea.vmem %s3, %s382
        // Predicated region
        $region56: #{generator_forward.8} parent=50 // pred_check
          %p384 = pneg %p105
        $region57: #{generator_forward.8} parent=50 // pred_check_branch
          %386 = sbr.rel (%p384) target = $region59
        $region58: #{generator_forward.8} parent=50 // pred_region
          %s387 = smul.u32 4, %s14
        $region59: #{generator_forward.8} parent=50 // pred_fallthru
          _
      $region51: #{generator_forward.8} parent=5 // pred_fallthru
        _
      %p388 = scmp.le.s32.totalorder 2, %s9
      // Predicated region
      $region60: #{generator_forward.8} parent=5 // pred_check
        %p389 = pneg %p388
      $region61: #{generator_forward.8} parent=5 // pred_check_branch
        %391 = sbr.rel (%p389) target = $region63
      $region62: #{generator_forward.8} parent=5 // pred_region
        %s392 = ssub.s32 %s9, 2
        // Predicated region
        $region64: #{generator_forward.8} parent=62 // pred_check
          %p393 = pneg %p111
        $region65: #{generator_forward.8} parent=62 // pred_check_branch
          %395 = sbr.rel (%p393) target = $region67
        $region66: #{generator_forward.8} parent=62 // pred_region
          %s396 = smul.u32 4, %s15
          %p397 = scmp.lt.s32.totalorder %s396, 27
          %s398 = scalar_select %p397, %s396, 27
          %s399 = smul.addr %s398, 2
          %s400 = scalar_lea.vmem %s3, %s399
        $region67: #{generator_forward.8} parent=62 // pred_fallthru
          _
      $region63: #{generator_forward.8} parent=5 // pred_fallthru
        _
    $region6: #{generator_forward.8} parent=1 // loop_footer
      %s13 = sadd.s32 1, %s9
    $region7: #{generator_forward.8} parent=1 // loop_footer_branch
      %8 = sbr.rel target = $region3
    $region8: #{generator_forward.8} parent=1 // loop_exit
      _

// kernel: generator_forward.10
$region0: #{generator_forward.10}
  #allocation0 [shape = 'u32[]', space=smem, size = 0x4, offset = 0x4, fixed_abs, tag = 'smem constant byte address 0x4 - core index']
  #allocation1 [shape = 'u32[144,128]{1,0:T(1,128)}', space=vmem, size = 0x12000, scoped, tag = 'internal scratch']
  %s0 = inlined_call_operand.vmem [shape: f32[2,32,256], index: 0, kind: input, shape index: {}]
  %s1 = inlined_call_operand.vmem [shape: f32[32,1], index: 1, kind: input, shape index: {}]
  %s2 = inlined_call_operand.vmem [shape: f32[32,1], index: 2, kind: input, shape index: {}]
  %s3 = inlined_call_operand.vmem [shape: bf16[2,32,256], index: 3, kind: output, shape index: {}]
  %s4 = sld [smem:[#allocation0]]
  $region45: #{generator_forward.10} parent=0
    _
  %s6 = ssub.s32 1, %s4
  %s7 = scalar_select 0, %s6, %s4
  loop: start=0, step=1, limit=4
  $region2: #{generator_forward.10} parent=0 // loop_pre_header
    _
  $region3: #{generator_forward.10} parent=0 // loop_header
    %s9 = sphi 0, %s13
    %p10 = scmp.ge.s32.totalorder %s9, 4
    %s19 = sphi 0, %s21
    %s22 = sphi 0, %s19
    %s23 = sphi 0, %s22
    %s39 = sphi 0, %s23
    %s43 = sphi 0, %s43
    %s45 = sphi 0, %s43
    %s46 = sphi 0, %s45
    %s60 = sphi 0, %s46
    %s64 = sphi 0, %s64
    %s66 = sphi 0, %s64
    %s67 = sphi 0, %s66
    %s81 = sphi 0, %s67
    %s87 = sphi 0, %s89
    %s90 = sphi 0, %s87
    %s91 = sphi 0, %s90
    %s107 = sphi 0, %s91
  $region4: #{generator_forward.10} parent=0 // loop_header_branch
    %12 = sbr.rel (%p10) target = $region8
  $region5: #{generator_forward.10} parent=0 // loop_body
    %s14 = ssub.s32 %s9, 1
    %s15 = ssub.s32 %s9, 2
    %s16 = sadd.s32 %s9, 1
    %s17 = ssub.s32 %s9, %s16
    %p18 = scmp.eq.s32.totalorder %s17, 0
    %s20 = sadd.s32 %s19, 1
    %s21 = scalar_select %p18, %s19, %s20
    %p24 = pneg %p18
    %p25 = scmp.eq.s32.totalorder %s9, 1
    %p26 = por %p24, %p25
    %p27 = scmp.ne.s32.totalorder %s19, %s22
    %p28 = scmp.eq.s32.totalorder %s9, 0
    %p29 = por %p27, %p28
    %p30 = scmp.ne.s32.totalorder %s19, %s22
    %p31 = scmp.eq.s32.totalorder %s14, 1
    %p32 = por %p30, %p31
    %p33 = scmp.ne.s32.totalorder %s22, %s23
    %p34 = scmp.eq.s32.totalorder %s14, 0
    %p35 = por %p33, %p34
    %p36 = scmp.ne.s32.totalorder %s22, %s23
    %p37 = scmp.eq.s32.totalorder %s15, 1
    %p38 = por %p36, %p37
    %p40 = scmp.ne.s32.totalorder %s23, %s39
    %p41 = scmp.eq.s32.totalorder %s15, 0
    %p42 = por %p40, %p41
    %s44 = sadd.s32 %s43, 1
    %p47 = scmp.eq.s32.totalorder %s9, 1
    %p48 = scmp.ne.s32.totalorder %s43, %s45
    %p49 = scmp.eq.s32.totalorder %s9, 0
    %p50 = por %p48, %p49
    %p51 = scmp.ne.s32.totalorder %s43, %s45
    %p52 = scmp.eq.s32.totalorder %s14, 1
    %p53 = por %p51, %p52
    %p54 = scmp.ne.s32.totalorder %s45, %s46
    %p55 = scmp.eq.s32.totalorder %s14, 0
    %p56 = por %p54, %p55
    %p57 = scmp.ne.s32.totalorder %s45, %s46
    %p58 = scmp.eq.s32.totalorder %s15, 1
    %p59 = por %p57, %p58
    %p61 = scmp.ne.s32.totalorder %s46, %s60
    %p62 = scmp.eq.s32.totalorder %s15, 0
    %p63 = por %p61, %p62
    %s65 = sadd.s32 %s64, 1
    %p68 = scmp.eq.s32.totalorder %s9, 1
    %p69 = scmp.ne.s32.totalorder %s64, %s66
    %p70 = scmp.eq.s32.totalorder %s9, 0
    %p71 = por %p69, %p70
    %p72 = scmp.ne.s32.totalorder %s64, %s66
    %p73 = scmp.eq.s32.totalorder %s14, 1
    %p74 = por %p72, %p73
    %p75 = scmp.ne.s32.totalorder %s66, %s67
    %p76 = scmp.eq.s32.totalorder %s14, 0
    %p77 = por %p75, %p76
    %p78 = scmp.ne.s32.totalorder %s66, %s67
    %p79 = scmp.eq.s32.totalorder %s15, 1
    %p80 = por %p78, %p79
    %p82 = scmp.ne.s32.totalorder %s67, %s81
    %p83 = scmp.eq.s32.totalorder %s15, 0
    %p84 = por %p82, %p83
    %s85 = ssub.s32 %s9, %s16
    %p86 = scmp.eq.s32.totalorder %s85, 0
    %s88 = sadd.s32 %s87, 1
    %s89 = scalar_select %p86, %s87, %s88
    %p92 = pneg %p86
    %p93 = scmp.eq.s32.totalorder %s9, 1
    %p94 = por %p92, %p93
    %p95 = scmp.ne.s32.totalorder %s87, %s90
    %p96 = scmp.eq.s32.totalorder %s9, 0
    %p97 = por %p95, %p96
    %p98 = scmp.ne.s32.totalorder %s87, %s90
    %p99 = scmp.eq.s32.totalorder %s14, 1
    %p100 = por %p98, %p99
    %p101 = scmp.ne.s32.totalorder %s90, %s91
    %p102 = scmp.eq.s32.totalorder %s14, 0
    %p103 = por %p101, %p102
    %p104 = scmp.ne.s32.totalorder %s90, %s91
    %p105 = scmp.eq.s32.totalorder %s15, 1
    %p106 = por %p104, %p105
    %p108 = scmp.ne.s32.totalorder %s91, %s107
    %p109 = scmp.eq.s32.totalorder %s15, 0
    %p110 = por %p108, %p109
    %p111 = scmp.le.s32.totalorder 1, %s9
    %p112 = scmp.lt.s32.totalorder %s9, 3
    %p113 = pnand %p111, %p112
    %p114 = pneg %p113
    // Predicated region
    $region9: #{generator_forward.10} parent=5 // pred_check
      _
    $region10: #{generator_forward.10} parent=5 // pred_check_branch
      %116 = sbr.rel (%p113) target = $region12
    $region11: #{generator_forward.10} parent=5 // pred_region
      %s117 = ssub.s32 %s9, 1
      // Predicated region
      $region13: #{generator_forward.10} parent=11 // pred_check
        %p118 = pneg %p56
      $region14: #{generator_forward.10} parent=11 // pred_check_branch
        %120 = sbr.rel (%p118) target = $region16
      $region15: #{generator_forward.10} parent=11 // pred_region
        _
      $region16: #{generator_forward.10} parent=11 // pred_fallthru
        _
      // Predicated region
      $region17: #{generator_forward.10} parent=11 // pred_check
        %p121 = pneg %p77
      $region18: #{generator_forward.10} parent=11 // pred_check_branch
        %123 = sbr.rel (%p121) target = $region20
      $region19: #{generator_forward.10} parent=11 // pred_region
        _
      $region20: #{generator_forward.10} parent=11 // pred_fallthru
        _
    $region12: #{generator_forward.10} parent=5 // pred_fallthru
      _
    %p124 = scmp.lt.s32.totalorder %s9, 2
    // Predicated region
    $region21: #{generator_forward.10} parent=5 // pred_check
      %p125 = pneg %p124
    $region22: #{generator_forward.10} parent=5 // pred_check_branch
      %127 = sbr.rel (%p125) target = $region24
    $region23: #{generator_forward.10} parent=5 // pred_region
      // Predicated region
      $region25: #{generator_forward.10} parent=23 // pred_check
        %p128 = pneg %p29
      $region26: #{generator_forward.10} parent=23 // pred_check_branch
        %130 = sbr.rel (%p128) target = $region28
      $region27: #{generator_forward.10} parent=23 // pred_region
        %p131 = scmp.lt.s32.totalorder %s9, 1
        %s132 = scalar_select %p131, %s9, 1
        %s133 = smul.addr %s132, 8
        %s134 = smul.addr %s133, 8
        %s135 = scalar_lea.vmem %s0, %s134
      $region28: #{generator_forward.10} parent=23 // pred_fallthru
        _
    $region24: #{generator_forward.10} parent=5 // pred_fallthru
      _
    %p136 = scmp.le.s32.totalorder 1, %s9
    %p137 = scmp.lt.s32.totalorder %s9, 3
    %p138 = pnand %p136, %p137
    %p139 = pneg %p138
    // Predicated region
    $region29: #{generator_forward.10} parent=5 // pred_check
      _
    $region30: #{generator_forward.10} parent=5 // pred_check_branch
      %141 = sbr.rel (%p138) target = $region32
    $region31: #{generator_forward.10} parent=5 // pred_region
      %s142 = ssub.s32 %s9, 1
      %p143 = scmp.lt.s32.totalorder %s14, 1
      %s144 = scalar_select %p143, %s14, 1
      %s145 = smul.addr %s144, 8
      %s146 = smul.addr %s145, 8
      %s147 = scalar_lea.vmem %s0, %s146
      %p148 = pneg %p35
      %p149 = pneg %p32
      %p150 = pneg %p56
      %p151 = pneg %p53
      %p152 = pneg %p77
      %p153 = pneg %p74
      %p154 = pneg %p103
      %p155 = pneg %p100
      %p156 = scmp.lt.s32.totalorder %s14, 1
      %s157 = scalar_select %p156, %s14, 1
      %s158 = smul.addr %s157, 8
      %s159 = smul.addr %s158, 4
      %s160 = scalar_lea.vmem %s3, %s159
      %p161 = scmp.lt.s32.totalorder %s14, 1
      %s162 = scalar_select %p161, %s14, 1
      %s163 = smul.addr %s162, 8
      %s164 = smul.addr %s163, 8
      %s165 = scalar_lea.vmem %s0, %s164
      %p166 = scmp.lt.s32.totalorder %s14, 1
      %s167 = scalar_select %p166, %s14, 1
      %s168 = smul.addr %s167, 8
      %s169 = smul.addr %s168, 4
      %s170 = scalar_lea.vmem %s3, %s169
      %v171 = vld [vmem:[%s165] sm:$0xff]
      %v172 = vld [vmem:[%s165 + $0x8] sm:$0xff]
      %v173 = vld [vmem:[%s165 + $0x10] sm:$0xff]
      %v174 = vld [vmem:[%s165 + $0x18] sm:$0xff]
      %v175 = vld [vmem:[%s165 + $0x20] sm:$0xff]
      %v176 = vld [vmem:[%s165 + $0x28] sm:$0xff]
      %v177 = vld [vmem:[%s165 + $0x30] sm:$0xff]
      %v178 = vld [vmem:[%s165 + $0x38] sm:$0xff]
      %v179 = vld [vmem:[%s1] sm:$0xff]
      %v180 = vld [vmem:[%s1 + $0x8] sm:$0xff]
      %v181 = vld [vmem:[%s1 + $0x10] sm:$0xff]
      %v182 = vld [vmem:[%s1 + $0x18] sm:$0xff]
      %184 = vset.pattern.permute.xlu0 0
      %185 = vperm.xlu0 %184, %v179
      %v186 = vpop.permute.xlu0 %185
      %189 = vset.pattern.permute.xlu0 0
      %190 = vperm.xlu0 %189, %v180
      %v191 = vpop.permute.xlu0 %190
      %194 = vset.pattern.permute.xlu0 0
      %195 = vperm.xlu0 %194, %v181
      %v196 = vpop.permute.xlu0 %195
      %199 = vset.pattern.permute.xlu0 0
      %200 = vperm.xlu0 %199, %v182
      %v201 = vpop.permute.xlu0 %200
      %v203 = vmul.f32 %v171, %v186
      %v204 = vmul.f32 %v172, %v186
      %v205 = vmul.f32 %v173, %v191
      %v206 = vmul.f32 %v174, %v191
      %v207 = vmul.f32 %v175, %v196
      %v208 = vmul.f32 %v176, %v196
      %v209 = vmul.f32 %v177, %v201
      %v210 = vmul.f32 %v178, %v201
      %v211 = vld [vmem:[%s2] sm:$0xff]
      %v212 = vld [vmem:[%s2 + $0x8] sm:$0xff]
      %v213 = vld [vmem:[%s2 + $0x10] sm:$0xff]
      %v214 = vld [vmem:[%s2 + $0x18] sm:$0xff]
      %216 = vset.pattern.permute.xlu0 0
      %217 = vperm.xlu0 %216, %v211
      %v218 = vpop.permute.xlu0 %217
      %221 = vset.pattern.permute.xlu0 0
      %222 = vperm.xlu0 %221, %v212
      %v223 = vpop.permute.xlu0 %222
      %226 = vset.pattern.permute.xlu0 0
      %227 = vperm.xlu0 %226, %v213
      %v228 = vpop.permute.xlu0 %227
      %231 = vset.pattern.permute.xlu0 0
      %232 = vperm.xlu0 %231, %v214
      %v233 = vpop.permute.xlu0 %232
      %v235 = vadd.f32 %v203, %v218
      %v236 = vadd.f32 %v204, %v218
      %v237 = vadd.f32 %v205, %v223
      %v238 = vadd.f32 %v206, %v223
      %v239 = vadd.f32 %v207, %v228
      %v240 = vadd.f32 %v208, %v228
      %v241 = vadd.f32 %v209, %v233
      %v242 = vadd.f32 %v210, %v233
      %vm243 = vcmp.ge.f32.partialorder %v235, 0.0
      %vm244 = vcmp.ge.f32.partialorder %v236, 0.0
      %vm245 = vcmp.ge.f32.partialorder %v237, 0.0
      %vm246 = vcmp.ge.f32.partialorder %v238, 0.0
      %vm247 = vcmp.ge.f32.partialorder %v239, 0.0
      %vm248 = vcmp.ge.f32.partialorder %v240, 0.0
      %vm249 = vcmp.ge.f32.partialorder %v241, 0.0
      %vm250 = vcmp.ge.f32.partialorder %v242, 0.0
      %v251 = vmul.f32 %v235, 0.01
      %v252 = vmul.f32 %v236, 0.01
      %v253 = vmul.f32 %v237, 0.01
      %v254 = vmul.f32 %v238, 0.01
      %v255 = vmul.f32 %v239, 0.01
      %v256 = vmul.f32 %v240, 0.01
      %v257 = vmul.f32 %v241, 0.01
      %v258 = vmul.f32 %v242, 0.01
      %v259 = vsel %vm243, %v235, %v251
      %v260 = vsel %vm244, %v236, %v252
      %v261 = vsel %vm245, %v237, %v253
      %v262 = vsel %vm246, %v238, %v254
      %v263 = vsel %vm247, %v239, %v255
      %v264 = vsel %vm248, %v240, %v256
      %v265 = vsel %vm249, %v241, %v257
      %v266 = vsel %vm250, %v242, %v258
      %v267 = vpack.c.bf16 %v261, %v259
      %v268 = vpack.c.bf16 %v262, %v260
      %v269 = vpack.c.bf16 %v265, %v263
      %v270 = vpack.c.bf16 %v266, %v264
      %v275 = vunpack.c.l.b16 %v267
      %v276 = vunpack.c.l.b16 %v268
      %v277 = vunpack.c.h.b16 %v267
      %v278 = vunpack.c.h.b16 %v268
      %v279 = vunpack.c.l.b16 %v269
      %v280 = vunpack.c.l.b16 %v270
      %v281 = vunpack.c.h.b16 %v269
      %v282 = vunpack.c.h.b16 %v270
      %v283 = vpack.c.b16 %v276, %v275
      %v284 = vpack.c.b16 %v278, %v277
      %v285 = vpack.c.b16 %v280, %v279
      %v286 = vpack.c.b16 %v282, %v281
      %291 = vst [vmem:[%s170] sm:$0xff] %v283
      %292 = vst [vmem:[%s170 + $0x8] sm:$0xff] %v284
      %293 = vst [vmem:[%s170 + $0x10] sm:$0xff] %v285
      %294 = vst [vmem:[%s170 + $0x18] sm:$0xff] %v286
      %p295 = scmp.lt.s32.totalorder %s14, 1
      %s296 = scalar_select %p295, %s14, 1
      %s297 = smul.addr %s296, 8
      %s298 = smul.addr %s297, 4
      %s299 = scalar_lea.vmem %s3, %s298
      // Predicated region
      $region33: #{generator_forward.10} parent=31 // pred_check
        %p300 = pneg %p100
      $region34: #{generator_forward.10} parent=31 // pred_check_branch
        %302 = sbr.rel (%p300) target = $region36
      $region35: #{generator_forward.10} parent=31 // pred_region
        _
      $region36: #{generator_forward.10} parent=31 // pred_fallthru
        _
    $region32: #{generator_forward.10} parent=5 // pred_fallthru
      _
    %p303 = scmp.le.s32.totalorder 2, %s9
    // Predicated region
    $region37: #{generator_forward.10} parent=5 // pred_check
      %p304 = pneg %p303
    $region38: #{generator_forward.10} parent=5 // pred_check_branch
      %306 = sbr.rel (%p304) target = $region40
    $region39: #{generator_forward.10} parent=5 // pred_region
      %s307 = ssub.s32 %s9, 2
      // Predicated region
      $region41: #{generator_forward.10} parent=39 // pred_check
        %p308 = pneg %p106
      $region42: #{generator_forward.10} parent=39 // pred_check_branch
        %310 = sbr.rel (%p308) target = $region44
      $region43: #{generator_forward.10} parent=39 // pred_region
        %p311 = scmp.lt.s32.totalorder %s15, 1
        %s312 = scalar_select %p311, %s15, 1
        %s313 = smul.addr %s312, 8
        %s314 = smul.addr %s313, 4
        %s315 = scalar_lea.vmem %s3, %s314
      $region44: #{generator_forward.10} parent=39 // pred_fallthru
        _
    $region40: #{generator_forward.10} parent=5 // pred_fallthru
      _
  $region6: #{generator_forward.10} parent=0 // loop_footer
    %s13 = sadd.s32 1, %s9
  $region7: #{generator_forward.10} parent=0 // loop_footer_branch
    %8 = sbr.rel target = $region3
  $region8: #{generator_forward.10} parent=0 // loop_exit
    _

// kernel: generator_forward.9
$region0: #{generator_forward.9}
  #allocation0 [shape = 'u32[]', space=smem, size = 0x4, offset = 0x4, fixed_abs, tag = 'smem constant byte address 0x4 - core index']
  #allocation1 [shape = 'u32[144,128]{1,0:T(1,128)}', space=vmem, size = 0x12000, scoped, tag = 'internal scratch']
  %s0 = inlined_call_operand.vmem [shape: bf16[2,64,384], index: 0, kind: input, shape index: {}]
  %s1 = inlined_call_operand.vmem [shape: bf16[9,32,64], index: 1, kind: input, shape index: {}]
  %s2 = inlined_call_operand.vmem [shape: f32[1,256], index: 2, kind: input, shape index: {}]
  %s3 = inlined_call_operand.vmem [shape: f32[2,32,256], index: 3, kind: output, shape index: {0}]
  %s4 = inlined_call_operand.vmem [shape: f32[2,32,1], index: 4, kind: output, shape index: {1}]
  %s5 = inlined_call_operand.vmem [shape: f32[2,32,1], index: 5, kind: output, shape index: {2}]
  %6 = xla_tuple %s3, %s4, %s5
  %s7 = sld [smem:[#allocation0]]
  $region61: #{generator_forward.9} parent=0
    _
  %s9 = ssub.s32 1, %s7
  %s10 = scalar_select 0, %s9, %s7
  loop: start=0, step=1, limit=4
  $region2: #{generator_forward.9} parent=0 // loop_pre_header
    _
  $region3: #{generator_forward.9} parent=0 // loop_header
    %s12 = sphi 0, %s16
    %p13 = scmp.ge.s32.totalorder %s12, 4
    %s22 = sphi 0, %s24
    %s25 = sphi 0, %s22
    %s26 = sphi 0, %s25
    %s42 = sphi 0, %s26
    %s46 = sphi 0, %s46
    %s48 = sphi 0, %s46
    %s49 = sphi 0, %s48
    %s63 = sphi 0, %s49
    %s67 = sphi 0, %s67
    %s69 = sphi 0, %s67
    %s70 = sphi 0, %s69
    %s84 = sphi 0, %s70
    %s90 = sphi 0, %s92
    %s93 = sphi 0, %s90
    %s94 = sphi 0, %s93
    %s110 = sphi 0, %s94
    %s116 = sphi 0, %s118
    %s119 = sphi 0, %s116
    %s120 = sphi 0, %s119
    %s136 = sphi 0, %s120
    %s142 = sphi 0, %s144
    %s145 = sphi 0, %s142
    %s146 = sphi 0, %s145
    %s162 = sphi 0, %s146
  $region4: #{generator_forward.9} parent=0 // loop_header_branch
    %15 = sbr.rel (%p13) target = $region8
  $region5: #{generator_forward.9} parent=0 // loop_body
    %s17 = ssub.s32 %s12, 1
    %s18 = ssub.s32 %s12, 2
    %s19 = sadd.s32 %s12, 1
    %s20 = ssub.s32 %s12, %s19
    %p21 = scmp.eq.s32.totalorder %s20, 0
    %s23 = sadd.s32 %s22, 1
    %s24 = scalar_select %p21, %s22, %s23
    %p27 = pneg %p21
    %p28 = scmp.eq.s32.totalorder %s12, 1
    %p29 = por %p27, %p28
    %p30 = scmp.ne.s32.totalorder %s22, %s25
    %p31 = scmp.eq.s32.totalorder %s12, 0
    %p32 = por %p30, %p31
    %p33 = scmp.ne.s32.totalorder %s22, %s25
    %p34 = scmp.eq.s32.totalorder %s17, 1
    %p35 = por %p33, %p34
    %p36 = scmp.ne.s32.totalorder %s25, %s26
    %p37 = scmp.eq.s32.totalorder %s17, 0
    %p38 = por %p36, %p37
    %p39 = scmp.ne.s32.totalorder %s25, %s26
    %p40 = scmp.eq.s32.totalorder %s18, 1
    %p41 = por %p39, %p40
    %p43 = scmp.ne.s32.totalorder %s26, %s42
    %p44 = scmp.eq.s32.totalorder %s18, 0
    %p45 = por %p43, %p44
    %s47 = sadd.s32 %s46, 1
    %p50 = scmp.eq.s32.totalorder %s12, 1
    %p51 = scmp.ne.s32.totalorder %s46, %s48
    %p52 = scmp.eq.s32.totalorder %s12, 0
    %p53 = por %p51, %p52
    %p54 = scmp.ne.s32.totalorder %s46, %s48
    %p55 = scmp.eq.s32.totalorder %s17, 1
    %p56 = por %p54, %p55
    %p57 = scmp.ne.s32.totalorder %s48, %s49
    %p58 = scmp.eq.s32.totalorder %s17, 0
    %p59 = por %p57, %p58
    %p60 = scmp.ne.s32.totalorder %s48, %s49
    %p61 = scmp.eq.s32.totalorder %s18, 1
    %p62 = por %p60, %p61
    %p64 = scmp.ne.s32.totalorder %s49, %s63
    %p65 = scmp.eq.s32.totalorder %s18, 0
    %p66 = por %p64, %p65
    %s68 = sadd.s32 %s67, 1
    %p71 = scmp.eq.s32.totalorder %s12, 1
    %p72 = scmp.ne.s32.totalorder %s67, %s69
    %p73 = scmp.eq.s32.totalorder %s12, 0
    %p74 = por %p72, %p73
    %p75 = scmp.ne.s32.totalorder %s67, %s69
    %p76 = scmp.eq.s32.totalorder %s17, 1
    %p77 = por %p75, %p76
    %p78 = scmp.ne.s32.totalorder %s69, %s70
    %p79 = scmp.eq.s32.totalorder %s17, 0
    %p80 = por %p78, %p79
    %p81 = scmp.ne.s32.totalorder %s69, %s70
    %p82 = scmp.eq.s32.totalorder %s18, 1
    %p83 = por %p81, %p82
    %p85 = scmp.ne.s32.totalorder %s70, %s84
    %p86 = scmp.eq.s32.totalorder %s18, 0
    %p87 = por %p85, %p86
    %s88 = ssub.s32 %s12, %s19
    %p89 = scmp.eq.s32.totalorder %s88, 0
    %s91 = sadd.s32 %s90, 1
    %s92 = scalar_select %p89, %s90, %s91
    %p95 = pneg %p89
    %p96 = scmp.eq.s32.totalorder %s12, 1
    %p97 = por %p95, %p96
    %p98 = scmp.ne.s32.totalorder %s90, %s93
    %p99 = scmp.eq.s32.totalorder %s12, 0
    %p100 = por %p98, %p99
    %p101 = scmp.ne.s32.totalorder %s90, %s93
    %p102 = scmp.eq.s32.totalorder %s17, 1
    %p103 = por %p101, %p102
    %p104 = scmp.ne.s32.totalorder %s93, %s94
    %p105 = scmp.eq.s32.totalorder %s17, 0
    %p106 = por %p104, %p105
    %p107 = scmp.ne.s32.totalorder %s93, %s94
    %p108 = scmp.eq.s32.totalorder %s18, 1
    %p109 = por %p107, %p108
    %p111 = scmp.ne.s32.totalorder %s94, %s110
    %p112 = scmp.eq.s32.totalorder %s18, 0
    %p113 = por %p111, %p112
    %s114 = ssub.s32 %s12, %s19
    %p115 = scmp.eq.s32.totalorder %s114, 0
    %s117 = sadd.s32 %s116, 1
    %s118 = scalar_select %p115, %s116, %s117
    %p121 = pneg %p115
    %p122 = scmp.eq.s32.totalorder %s12, 1
    %p123 = por %p121, %p122
    %p124 = scmp.ne.s32.totalorder %s116, %s119
    %p125 = scmp.eq.s32.totalorder %s12, 0
    %p126 = por %p124, %p125
    %p127 = scmp.ne.s32.totalorder %s116, %s119
    %p128 = scmp.eq.s32.totalorder %s17, 1
    %p129 = por %p127, %p128
    %p130 = scmp.ne.s32.totalorder %s119, %s120
    %p131 = scmp.eq.s32.totalorder %s17, 0
    %p132 = por %p130, %p131
    %p133 = scmp.ne.s32.totalorder %s119, %s120
    %p134 = scmp.eq.s32.totalorder %s18, 1
    %p135 = por %p133, %p134
    %p137 = scmp.ne.s32.totalorder %s120, %s136
    %p138 = scmp.eq.s32.totalorder %s18, 0
    %p139 = por %p137, %p138
    %s140 = ssub.s32 %s12, %s19
    %p141 = scmp.eq.s32.totalorder %s140, 0
    %s143 = sadd.s32 %s142, 1
    %s144 = scalar_select %p141, %s142, %s143
    %p147 = pneg %p141
    %p148 = scmp.eq.s32.totalorder %s12, 1
    %p149 = por %p147, %p148
    %p150 = scmp.ne.s32.totalorder %s142, %s145
    %p151 = scmp.eq.s32.totalorder %s12, 0
    %p152 = por %p150, %p151
    %p153 = scmp.ne.s32.totalorder %s142, %s145
    %p154 = scmp.eq.s32.totalorder %s17, 1
    %p155 = por %p153, %p154
    %p156 = scmp.ne.s32.totalorder %s145, %s146
    %p157 = scmp.eq.s32.totalorder %s17, 0
    %p158 = por %p156, %p157
    %p159 = scmp.ne.s32.totalorder %s145, %s146
    %p160 = scmp.eq.s32.totalorder %s18, 1
    %p161 = por %p159, %p160
    %p163 = scmp.ne.s32.totalorder %s146, %s162
    %p164 = scmp.eq.s32.totalorder %s18, 0
    %p165 = por %p163, %p164
    %p166 = scmp.le.s32.totalorder 1, %s12
    %p167 = scmp.lt.s32.totalorder %s12, 3
    %p168 = pnand %p166, %p167
    %p169 = pneg %p168
    // Predicated region
    $region9: #{generator_forward.9} parent=5 // pred_check
      _
    $region10: #{generator_forward.9} parent=5 // pred_check_branch
      %171 = sbr.rel (%p168) target = $region12
    $region11: #{generator_forward.9} parent=5 // pred_region
      %s172 = ssub.s32 %s12, 1
      // Predicated region
      $region13: #{generator_forward.9} parent=11 // pred_check
        %p173 = pneg %p59
      $region14: #{generator_forward.9} parent=11 // pred_check_branch
        %175 = sbr.rel (%p173) target = $region16
      $region15: #{generator_forward.9} parent=11 // pred_region
        _
      $region16: #{generator_forward.9} parent=11 // pred_fallthru
        _
      // Predicated region
      $region17: #{generator_forward.9} parent=11 // pred_check
        %p176 = pneg %p80
      $region18: #{generator_forward.9} parent=11 // pred_check_branch
        %178 = sbr.rel (%p176) target = $region20
      $region19: #{generator_forward.9} parent=11 // pred_region
        _
      $region20: #{generator_forward.9} parent=11 // pred_fallthru
        _
    $region12: #{generator_forward.9} parent=5 // pred_fallthru
      _
    %p179 = scmp.lt.s32.totalorder %s12, 2
    // Predicated region
    $region21: #{generator_forward.9} parent=5 // pred_check
      %p180 = pneg %p179
    $region22: #{generator_forward.9} parent=5 // pred_check_branch
      %182 = sbr.rel (%p180) target = $region24
    $region23: #{generator_forward.9} parent=5 // pred_region
      // Predicated region
      $region25: #{generator_forward.9} parent=23 // pred_check
        %p183 = pneg %p32
      $region26: #{generator_forward.9} parent=23 // pred_check_branch
        %185 = sbr.rel (%p183) target = $region28
      $region27: #{generator_forward.9} parent=23 // pred_region
        %p186 = scmp.lt.s32.totalorder %s12, 1
        %s187 = scalar_select %p186, %s12, 1
        %s188 = smul.addr %s187, 24
        %s189 = smul.addr %s188, 4
        %s190 = scalar_lea.vmem %s0, %s189
      $region28: #{generator_forward.9} parent=23 // pred_fallthru
        _
    $region24: #{generator_forward.9} parent=5 // pred_fallthru
      _
    %p191 = scmp.le.s32.totalorder 1, %s12
    %p192 = scmp.lt.s32.totalorder %s12, 3
    %p193 = pnand %p191, %p192
    %p194 = pneg %p193
    // Predicated region
    $region29: #{generator_forward.9} parent=5 // pred_check
      _
    $region30: #{generator_forward.9} parent=5 // pred_check_branch
      %196 = sbr.rel (%p193) target = $region32
    $region31: #{generator_forward.9} parent=5 // pred_region
      %s197 = ssub.s32 %s12, 1
      %p198 = scmp.lt.s32.totalorder %s17, 1
      %s199 = scalar_select %p198, %s17, 1
      %s200 = smul.addr %s199, 24
      %s201 = smul.addr %s200, 4
      %s202 = scalar_lea.vmem %s0, %s201
      %p203 = pneg %p38
      %p204 = pneg %p35
      %p205 = pneg %p59
      %p206 = pneg %p56
      %p207 = pneg %p80
      %p208 = pneg %p77
      %p209 = pneg %p106
      %p210 = pneg %p103
      %p211 = scmp.lt.s32.totalorder %s17, 1
      %s212 = scalar_select %p211, %s17, 1
      %s213 = smul.addr %s212, 8
      %s214 = smul.addr %s213, 8
      %s215 = scalar_lea.vmem %s3, %s214
      %p216 = pneg %p132
      %p217 = pneg %p129
      %p218 = scmp.lt.s32.totalorder %s17, 1
      %s219 = scalar_select %p218, %s17, 1
      %s220 = smul.addr %s219, 4
      %s221 = smul.addr %s220, 8
      %s222 = scalar_lea.vmem %s4, %s221
      %p223 = pneg %p158
      %p224 = pneg %p155
      %p225 = scmp.lt.s32.totalorder %s17, 1
      %s226 = scalar_select %p225, %s17, 1
      %s227 = smul.addr %s226, 4
      %s228 = smul.addr %s227, 8
      %s229 = scalar_lea.vmem %s5, %s228
      %p230 = scmp.lt.s32.totalorder %s17, 1
      %s231 = scalar_select %p230, %s17, 1
      %s232 = smul.addr %s231, 24
      %s233 = smul.addr %s232, 4
      %s234 = scalar_lea.vmem %s0, %s233
      %p235 = scmp.lt.s32.totalorder %s17, 1
      %s236 = scalar_select %p235, %s17, 1
      %s237 = smul.addr %s236, 8
      %s238 = smul.addr %s237, 8
      %s239 = scalar_lea.vmem %s3, %s238
      %p240 = scmp.lt.s32.totalorder %s17, 1
      %s241 = scalar_select %p240, %s17, 1
      %s242 = smul.addr %s241, 4
      %s243 = smul.addr %s242, 8
      %s244 = scalar_lea.vmem %s4, %s243
      %p245 = scmp.lt.s32.totalorder %s17, 1
      %s246 = scalar_select %p245, %s17, 1
      %s247 = smul.addr %s246, 4
      %s248 = smul.addr %s247, 8
      %s249 = scalar_lea.vmem %s5, %s248
      %v251 = vld [vmem:[%s1] sm:$0xf]
      %v252 = vld [vmem:[%s1 + $0x4] sm:$0xf]
      %v253 = vld [vmem:[%s1 + $0x8] sm:$0xf]
      %v254 = vld [vmem:[%s1 + $0xc] sm:$0xf]
      %v255 = vld [vmem:[%s234] sm:$0xff]
      %v256 = vld [vmem:[%s234 + $0xc] sm:$0xff]
      %v257 = vld [vmem:[%s234 + $0x18] sm:$0xff]
      %v258 = vld [vmem:[%s234 + $0x24] sm:$0xff]
      %v259 = vld [vmem:[%s234 + $0x30] sm:$0xff]
      %v260 = vld [vmem:[%s234 + $0x3c] sm:$0xff]
      %v261 = vld [vmem:[%s234 + $0x48] sm:$0xff]
      %v262 = vld [vmem:[%s234 + $0x54] sm:$0xff]
      %s263 = scalar_lea.vmem %s1, 16
      %v264 = vld [vmem:[%s263] sm:$0xf]
      %v265 = vld [vmem:[%s263 + $0x4] sm:$0xf]
      %v266 = vld [vmem:[%s263 + $0x8] sm:$0xf]
      %v267 = vld [vmem:[%s263 + $0xc] sm:$0xf]
      %v268 = vld [vmem:[%s234] sm:$0xff]
      %v269 = vld [vmem:[%s234 + $0x8] sm:$0xf]
      %v270 = vld [vmem:[%s234 + $0xc] sm:$0xff]
      %v271 = vld [vmem:[%s234 + $0x14] sm:$0xf]
      %v272 = vld [vmem:[%s234 + $0x18] sm:$0xff]
      %v273 = vld [vmem:[%s234 + $0x20] sm:$0xf]
      %v274 = vld [vmem:[%s234 + $0x24] sm:$0xff]
      %v275 = vld [vmem:[%s234 + $0x2c] sm:$0xf]
      %v276 = vld [vmem:[%s234 + $0x30] sm:$0xff]
      %v277 = vld [vmem:[%s234 + $0x38] sm:$0xf]
      %v278 = vld [vmem:[%s234 + $0x3c] sm:$0xff]
      %v279 = vld [vmem:[%s234 + $0x44] sm:$0xf]
      %v280 = vld [vmem:[%s234 + $0x48] sm:$0xff]
      %v281 = vld [vmem:[%s234 + $0x50] sm:$0xf]
      %v282 = vld [vmem:[%s234 + $0x54] sm:$0xff]
      %v283 = vld [vmem:[%s234 + $0x5c] sm:$0xf]
      %v288 = vunpack.c.l.b16 %v264
      %v289 = vunpack.c.l.b16 %v265
      %v290 = vunpack.c.l.b16 %v266
      %v291 = vunpack.c.l.b16 %v267
      %v292 = vpack.c.b16 %v289, %v288
      %v293 = vpack.c.b16 %v291, %v290
      %v310 = vunpack.c.l.b16 %v268
      %v311 = vunpack.c.h.b16 %v268
      %v312 = vunpack.c.l.b16 %v269
      %v313 = vunpack.c.l.b16 %v270
      %v314 = vunpack.c.h.b16 %v270
      %v315 = vunpack.c.l.b16 %v271
      %v316 = vunpack.c.l.b16 %v272
      %v317 = vunpack.c.h.b16 %v272
      %v318 = vunpack.c.l.b16 %v273
      %v319 = vunpack.c.l.b16 %v274
      %v320 = vunpack.c.h.b16 %v274
      %v321 = vunpack.c.l.b16 %v275
      %v322 = vunpack.c.l.b16 %v276
      %v323 = vunpack.c.h.b16 %v276
      %v324 = vunpack.c.l.b16 %v277
      %v325 = vunpack.c.l.b16 %v278
      %v326 = vunpack.c.h.b16 %v278
      %v327 = vunpack.c.l.b16 %v279
      %v328 = vunpack.c.l.b16 %v280
      %v329 = vunpack.c.h.b16 %v280
      %v330 = vunpack.c.l.b16 %v281
      %v331 = vunpack.c.l.b16 %v282
      %v332 = vunpack.c.h.b16 %v282
      %v333 = vunpack.c.l.b16 %v283
      %v334 = vpack.c.b16 %v313, %v310
      %v335 = vpack.c.b16 %v314, %v311
      %v336 = vpack.c.b16 %v315, %v312
      %v337 = vpack.c.b16 %v319, %v316
      %v338 = vpack.c.b16 %v320, %v317
      %v339 = vpack.c.b16 %v321, %v318
      %v340 = vpack.c.b16 %v325, %v322
      %v341 = vpack.c.b16 %v326, %v323
      %v342 = vpack.c.b16 %v327, %v324
      %v343 = vpack.c.b16 %v331, %v328
      %v344 = vpack.c.b16 %v332, %v329
      %v345 = vpack.c.b16 %v333, %v330
      %346 = vrot.lane.b32.xlu0 %v334, 127
      %v347 = vpop.permute.xlu0 %346
      %348 = vrot.lane.b32.xlu0 %v335, 127
      %v349 = vpop.permute.xlu0 %348
      %350 = vrot.lane.b32.xlu0 %v336, 127
      %v351 = vpop.permute.xlu0 %350
      %352 = vrot.lane.b32.xlu0 %v337, 127
      %v353 = vpop.permute.xlu0 %352
      %354 = vrot.lane.b32.xlu0 %v338, 127
      %v355 = vpop.permute.xlu0 %354
      %356 = vrot.lane.b32.xlu0 %v339, 127
      %v357 = vpop.permute.xlu0 %356
      %358 = vrot.lane.b32.xlu0 %v340, 127
      %v359 = vpop.permute.xlu0 %358
      %360 = vrot.lane.b32.xlu0 %v341, 127
      %v361 = vpop.permute.xlu0 %360
      %362 = vrot.lane.b32.xlu0 %v342, 127
      %v363 = vpop.permute.xlu0 %362
      %364 = vrot.lane.b32.xlu0 %v343, 127
      %v365 = vpop.permute.xlu0 %364
      %366 = vrot.lane.b32.xlu0 %v344, 127
      %v367 = vpop.permute.xlu0 %366
      %368 = vrot.lane.b32.xlu0 %v345, 127
      %v369 = vpop.permute.xlu0 %368
      %vm370 = vcmask 1039360
      %v371 = vsel %vm370, %v347, %v349
      %v372 = vsel %vm370, %v349, %v351
      %v373 = vsel %vm370, %v353, %v355
      %v374 = vsel %vm370, %v355, %v357
      %v375 = vsel %vm370, %v359, %v361
      %v376 = vsel %vm370, %v361, %v363
      %v377 = vsel %vm370, %v365, %v367
      %v378 = vsel %vm370, %v367, %v369
      %vm387 = vcmask 523264
      %v389 = vsel %vm387, %v292, 0
      %v392 = vsel %vm387, %v293, 0
      %394 = vmatprep.subr.bf16.mxu0 %v372
      %395 = vmatpush1.bf16.msra.mxu0 %v371
      %396 = vmatprep.subr.bf16.mxu0 %v374
      %397 = vmatpush1.bf16.msra.mxu0 %v373
      %398 = vmatprep.subr.bf16.mxu0 %v376
      %399 = vmatpush1.bf16.msra.mxu0 %v375
      %400 = vmatprep.subr.bf16.mxu0 %v378
      %401 = vmatpush1.bf16.msra.mxu0 %v377
      %402 = vmatprep.subr.bf16.mxu0 0
      %403 = vmatpush1.bf16.msra.mxu0 0
      %404 = vmatprep.subr.bf16.mxu0 0
      %405 = vmatpush1.bf16.msra.mxu0 0
      %406 = vmatprep.subr.bf16.mxu0 0
      %407 = vmatpush1.bf16.msra.mxu0 0
      %408 = vmatprep.subr.bf16.mxu0 0
      %409 = vmatpush1.bf16.msra.mxu0 0
      %410 = vmatprep.subr.bf16.mxu0 0
      %411 = vmatpush1.bf16.msra.mxu0 0
      %412 = vmatprep.subr.bf16.mxu0 0
      %413 = vmatpush1.bf16.msra.mxu0 0
      %414 = vmatprep.subr.bf16.mxu0 0
      %415 = vmatpush1.bf16.msra.mxu0 0
      %416 = vmatprep.subr.bf16.mxu0 0
      %417 = vmatpush1.bf16.msra.mxu0 0
      %418 = vmatprep.subr.bf16.mxu0 0
      %419 = vmatpush1.bf16.msra.mxu0 0
      %420 = vmatprep.subr.bf16.mxu0 0
      %421 = vmatpush1.bf16.msra.mxu0 0
      %422 = vmatprep.subr.bf16.mxu0 0
      %423 = vmatpush1.bf16.msra.mxu0 0
      %424 = vmatprep.subr.bf16.mxu0 0
      %425 = vmatpush1.bf16.msra.mxu0 0
      %426 = vmatprep.mubr.bf16.mxu0 0
      %427 = vmatmul.mubr.bf16.gmra.mrb[0].mxu0 %v389
      %v428 = vpop.f32.mrb[0].mxu0
      %v429 = vadd.f32 0.0, %v428
      %v430 = vpop.f32.mrb[0].mxu0
      %v431 = vadd.f32 0.0, %v430
      %v432 = vpop.f32.mrb[0].mxu0
      %v433 = vadd.f32 0.0, %v432
      %v434 = vpop.f32.mrb[0].mxu0
      %v435 = vadd.f32 0.0, %v434
      %436 = vmatprep.mubr.bf16.mxu0 0
      %437 = vmatmul.mubr.bf16.gmra.mrb[0].mxu0 %v392
      %v438 = vpop.f32.mrb[0].mxu0
      %v439 = vadd.f32 0.0, %v438
      %v440 = vpop.f32.mrb[0].mxu0
      %v441 = vadd.f32 0.0, %v440
      %v442 = vpop.f32.mrb[0].mxu0
      %v443 = vadd.f32 0.0, %v442
      %v444 = vpop.f32.mrb[0].mxu0
      %v445 = vadd.f32 0.0, %v444
      %446 = vdwg.mxu0
      %v451 = vunpack.c.l.b16 %v251
      %v452 = vunpack.c.l.b16 %v252
      %v453 = vunpack.c.l.b16 %v253
      %v454 = vunpack.c.l.b16 %v254
      %v455 = vpack.c.b16 %v452, %v451
      %v456 = vpack.c.b16 %v454, %v453
      %v465 = vunpack.c.l.b16 %v255
      %v466 = vunpack.c.h.b16 %v255
      %v467 = vunpack.c.l.b16 %v256
      %v468 = vunpack.c.h.b16 %v256
      %v469 = vunpack.c.l.b16 %v257
      %v470 = vunpack.c.h.b16 %v257
      %v471 = vunpack.c.l.b16 %v258
      %v472 = vunpack.c.h.b16 %v258
      %v473 = vunpack.c.l.b16 %v259
      %v474 = vunpack.c.h.b16 %v259
      %v475 = vunpack.c.l.b16 %v260
      %v476 = vunpack.c.h.b16 %v260
      %v477 = vunpack.c.l.b16 %v261
      %v478 = vunpack.c.h.b16 %v261
      %v479 = vunpack.c.l.b16 %v262
      %v480 = vunpack.c.h.b16 %v262
      %v481 = vpack.c.b16 %v467, %v465
      %v482 = vpack.c.b16 %v468, %v466
      %v483 = vpack.c.b16 %v471, %v469
      %v484 = vpack.c.b16 %v472, %v470
      %v485 = vpack.c.b16 %v475, %v473
      %v486 = vpack.c.b16 %v476, %v474
      %v487 = vpack.c.b16 %v479, %v477
      %v488 = vpack.c.b16 %v480, %v478
      %v498 = vsel %vm387, %v455, 0
      %v501 = vsel %vm387, %v456, 0
      %503 = vmatprep.subr.bf16.mxu0 %v482
      %504 = vmatpush1.bf16.msra.mxu0 %v481
      %505 = vmatprep.subr.bf16.mxu0 %v484
      %506 = vmatpush1.bf16.msra.mxu0 %v483
      %507 = vmatprep.subr.bf16.mxu0 %v486
      %508 = vmatpush1.bf16.msra.mxu0 %v485
      %509 = vmatprep.subr.bf16.mxu0 %v488
      %510 = vmatpush1.bf16.msra.mxu0 %v487
      %511 = vmatprep.subr.bf16.mxu0 0
      %512 = vmatpush1.bf16.msra.mxu0 0
      %513 = vmatprep.subr.bf16.mxu0 0
      %514 = vmatpush1.bf16.msra.mxu0 0
      %515 = vmatprep.subr.bf16.mxu0 0
      %516 = vmatpush1.bf16.msra.mxu0 0
      %517 = vmatprep.subr.bf16.mxu0 0
      %518 = vmatpush1.bf16.msra.mxu0 0
      %519 = vmatprep.subr.bf16.mxu0 0
      %520 = vmatpush1.bf16.msra.mxu0 0
      %521 = vmatprep.subr.bf16.mxu0 0
      %522 = vmatpush1.bf16.msra.mxu0 0
      %523 = vmatprep.subr.bf16.mxu0 0
      %524 = vmatpush1.bf16.msra.mxu0 0
      %525 = vmatprep.subr.bf16.mxu0 0
      %526 = vmatpush1.bf16.msra.mxu0 0
      %527 = vmatprep.subr.bf16.mxu0 0
      %528 = vmatpush1.bf16.msra.mxu0 0
      %529 = vmatprep.subr.bf16.mxu0 0
      %530 = vmatpush1.bf16.msra.mxu0 0
      %531 = vmatprep.subr.bf16.mxu0 0
      %532 = vmatpush1.bf16.msra.mxu0 0
      %533 = vmatprep.subr.bf16.mxu0 0
      %534 = vmatpush1.bf16.msra.mxu0 0
      %535 = vmatprep.mubr.bf16.mxu0 0
      %536 = vmatmul.mubr.bf16.gmra.mrb[0].mxu0 %v498
      %v537 = vpop.f32.mrb[0].mxu0
      %v538 = vadd.f32 %v429, %v537
      %v539 = vpop.f32.mrb[0].mxu0
      %v540 = vadd.f32 %v431, %v539
      %v541 = vpop.f32.mrb[0].mxu0
      %v542 = vadd.f32 %v433, %v541
      %v543 = vpop.f32.mrb[0].mxu0
      %v544 = vadd.f32 %v435, %v543
      %545 = vmatprep.mubr.bf16.mxu0 0
      %546 = vmatmul.mubr.bf16.gmra.mrb[0].mxu0 %v501
      %v547 = vpop.f32.mrb[0].mxu0
      %v548 = vadd.f32 %v439, %v547
      %v549 = vpop.f32.mrb[0].mxu0
      %v550 = vadd.f32 %v441, %v549
      %v551 = vpop.f32.mrb[0].mxu0
      %v552 = vadd.f32 %v443, %v551
      %v553 = vpop.f32.mrb[0].mxu0
      %v554 = vadd.f32 %v445, %v553
      %555 = vdwg.mxu0
      %s556 = scalar_lea.vmem %s1, 32
      %v557 = vld [vmem:[%s556] sm:$0xf]
      %v558 = vld [vmem:[%s556 + $0x4] sm:$0xf]
      %v559 = vld [vmem:[%s556 + $0x8] sm:$0xf]
      %v560 = vld [vmem:[%s556 + $0xc] sm:$0xf]
      %v565 = vunpack.c.l.b16 %v557
      %v566 = vunpack.c.l.b16 %v558
      %v567 = vunpack.c.l.b16 %v559
      %v568 = vunpack.c.l.b16 %v560
      %v569 = vpack.c.b16 %v566, %v565
      %v570 = vpack.c.b16 %v568, %v567
      %571 = vrot.lane.b32.xlu0 %v334, 126
      %v572 = vpop.permute.xlu0 %571
      %573 = vrot.lane.b32.xlu0 %v335, 126
      %v574 = vpop.permute.xlu0 %573
      %575 = vrot.lane.b32.xlu0 %v336, 126
      %v576 = vpop.permute.xlu0 %575
      %577 = vrot.lane.b32.xlu0 %v337, 126
      %v578 = vpop.permute.xlu0 %577
      %579 = vrot.lane.b32.xlu0 %v338, 126
      %v580 = vpop.permute.xlu0 %579
      %581 = vrot.lane.b32.xlu0 %v339, 126
      %v582 = vpop.permute.xlu0 %581
      %583 = vrot.lane.b32.xlu0 %v340, 126
      %v584 = vpop.permute.xlu0 %583
      %585 = vrot.lane.b32.xlu0 %v341, 126
      %v586 = vpop.permute.xlu0 %585
      %587 = vrot.lane.b32.xlu0 %v342, 126
      %v588 = vpop.permute.xlu0 %587
      %589 = vrot.lane.b32.xlu0 %v343, 126
      %v590 = vpop.permute.xlu0 %589
      %591 = vrot.lane.b32.xlu0 %v344, 126
      %v592 = vpop.permute.xlu0 %591
      %593 = vrot.lane.b32.xlu0 %v345, 126
      %v594 = vpop.permute.xlu0 %593
      %vm595 = vcmask 1031168
      %v596 = vsel %vm595, %v572, %v574
      %v597 = vsel %vm595, %v574, %v576
      %v598 = vsel %vm595, %v578, %v580
      %v599 = vsel %vm595, %v580, %v582
      %v600 = vsel %vm595, %v584, %v586
      %v601 = vsel %vm595, %v586, %v588
      %v602 = vsel %vm595, %v590, %v592
      %v603 = vsel %vm595, %v592, %v594
      %v613 = vsel %vm387, %v569, 0
      %v616 = vsel %vm387, %v570, 0
      %618 = vmatprep.subr.bf16.mxu0 %v597
      %619 = vmatpush1.bf16.msra.mxu0 %v596
      %620 = vmatprep.subr.bf16.mxu0 %v599
      %621 = vmatpush1.bf16.msra.mxu0 %v598
      %622 = vmatprep.subr.bf16.mxu0 %v601
      %623 = vmatpush1.bf16.msra.mxu0 %v600
      %624 = vmatprep.subr.bf16.mxu0 %v603
      %625 = vmatpush1.bf16.msra.mxu0 %v602
      %626 = vmatprep.subr.bf16.mxu0 0
      %627 = vmatpush1.bf16.msra.mxu0 0
      %628 = vmatprep.subr.bf16.mxu0 0
      %629 = vmatpush1.bf16.msra.mxu0 0
      %630 = vmatprep.subr.bf16.mxu0 0
      %631 = vmatpush1.bf16.msra.mxu0 0
      %632 = vmatprep.subr.bf16.mxu0 0
      %633 = vmatpush1.bf16.msra.mxu0 0
      %634 = vmatprep.subr.bf16.mxu0 0
      %635 = vmatpush1.bf16.msra.mxu0 0
      %636 = vmatprep.subr.bf16.mxu0 0
      %637 = vmatpush1.bf16.msra.mxu0 0
      %638 = vmatprep.subr.bf16.mxu0 0
      %639 = vmatpush1.bf16.msra.mxu0 0
      %640 = vmatprep.subr.bf16.mxu0 0
      %641 = vmatpush1.bf16.msra.mxu0 0
      %642 = vmatprep.subr.bf16.mxu0 0
      %643 = vmatpush1.bf16.msra.mxu0 0
      %644 = vmatprep.subr.bf16.mxu0 0
      %645 = vmatpush1.bf16.msra.mxu0 0
      %646 = vmatprep.subr.bf16.mxu0 0
      %647 = vmatpush1.bf16.msra.mxu0 0
      %648 = vmatprep.subr.bf16.mxu0 0
      %649 = vmatpush1.bf16.msra.mxu0 0
      %650 = vmatprep.mubr.bf16.mxu0 0
      %651 = vmatmul.mubr.bf16.gmra.mrb[0].mxu0 %v613
      %v652 = vpop.f32.mrb[0].mxu0
      %v653 = vadd.f32 0.0, %v652
      %v654 = vpop.f32.mrb[0].mxu0
      %v655 = vadd.f32 0.0, %v654
      %v656 = vpop.f32.mrb[0].mxu0
      %v657 = vadd.f32 0.0, %v656
      %v658 = vpop.f32.mrb[0].mxu0
      %v659 = vadd.f32 0.0, %v658
      %660 = vmatprep.mubr.bf16.mxu0 0
      %661 = vmatmul.mubr.bf16.gmra.mrb[0].mxu0 %v616
      %v662 = vpop.f32.mrb[0].mxu0
      %v663 = vadd.f32 0.0, %v662
      %v664 = vpop.f32.mrb[0].mxu0
      %v665 = vadd.f32 0.0, %v664
      %v666 = vpop.f32.mrb[0].mxu0
      %v667 = vadd.f32 0.0, %v666
      %v668 = vpop.f32.mrb[0].mxu0
      %v669 = vadd.f32 0.0, %v668
      %670 = vdwg.mxu0
      %v671 = vadd.f32 %v538, %v653
      %v672 = vadd.f32 %v540, %v655
      %v673 = vadd.f32 %v542, %v657
      %v674 = vadd.f32 %v544, %v659
      %v675 = vadd.f32 %v548, %v663
      %v676 = vadd.f32 %v550, %v665
      %v677 = vadd.f32 %v552, %v667
      %v678 = vadd.f32 %v554, %v669
      %s679 = scalar_lea.vmem %s1, 48
      %v680 = vld [vmem:[%s679] sm:$0xf]
      %v681 = vld [vmem:[%s679 + $0x4] sm:$0xf]
      %v682 = vld [vmem:[%s679 + $0x8] sm:$0xf]
      %v683 = vld [vmem:[%s679 + $0xc] sm:$0xf]
      %v688 = vunpack.c.l.b16 %v680
      %v689 = vunpack.c.l.b16 %v681
      %v690 = vunpack.c.l.b16 %v682
      %v691 = vunpack.c.l.b16 %v683
      %v692 = vpack.c.b16 %v689, %v688
      %v693 = vpack.c.b16 %v691, %v690
      %694 = vrot.lane.b32.xlu0 %v334, 112
      %v695 = vpop.permute.xlu0 %694
      %696 = vrot.lane.b32.xlu0 %v335, 112
      %v697 = vpop.permute.xlu0 %696
      %698 = vrot.lane.b32.xlu0 %v336, 112
      %v699 = vpop.permute.xlu0 %698
      %700 = vrot.lane.b32.xlu0 %v337, 112
      %v701 = vpop.permute.xlu0 %700
      %702 = vrot.lane.b32.xlu0 %v338, 112
      %v703 = vpop.permute.xlu0 %702
      %704 = vrot.lane.b32.xlu0 %v339, 112
      %v705 = vpop.permute.xlu0 %704
      %706 = vrot.lane.b32.xlu0 %v340, 112
      %v707 = vpop.permute.xlu0 %706
      %708 = vrot.lane.b32.xlu0 %v341, 112
      %v709 = vpop.permute.xlu0 %708
      %710 = vrot.lane.b32.xlu0 %v342, 112
      %v711 = vpop.permute.xlu0 %710
      %712 = vrot.lane.b32.xlu0 %v343, 112
      %v713 = vpop.permute.xlu0 %712
      %714 = vrot.lane.b32.xlu0 %v344, 112
      %v715 = vpop.permute.xlu0 %714
      %716 = vrot.lane.b32.xlu0 %v345, 112
      %v717 = vpop.permute.xlu0 %716
      %vm718 = vcmask 916480
      %v719 = vsel %vm718, %v695, %v697
      %v720 = vsel %vm718, %v697, %v699
      %v721 = vsel %vm718, %v701, %v703
      %v722 = vsel %vm718, %v703, %v705
      %v723 = vsel %vm718, %v707, %v709
      %v724 = vsel %vm718, %v709, %v711
      %v725 = vsel %vm718, %v713, %v715
      %v726 = vsel %vm718, %v715, %v717
      %v736 = vsel %vm387, %v692, 0
      %v739 = vsel %vm387, %v693, 0
      %741 = vmatprep.subr.bf16.mxu0 %v720
      %742 = vmatpush1.bf16.msra.mxu0 %v719
      %743 = vmatprep.subr.bf16.mxu0 %v722
      %744 = vmatpush1.bf16.msra.mxu0 %v721
      %745 = vmatprep.subr.bf16.mxu0 %v724
      %746 = vmatpush1.bf16.msra.mxu0 %v723
      %747 = vmatprep.subr.bf16.mxu0 %v726
      %748 = vmatpush1.bf16.msra.mxu0 %v725
      %749 = vmatprep.subr.bf16.mxu0 0
      %750 = vmatpush1.bf16.msra.mxu0 0
      %751 = vmatprep.subr.bf16.mxu0 0
      %752 = vmatpush1.bf16.msra.mxu0 0
      %753 = vmatprep.subr.bf16.mxu0 0
      %754 = vmatpush1.bf16.msra.mxu0 0
      %755 = vmatprep.subr.bf16.mxu0 0
      %756 = vmatpush1.bf16.msra.mxu0 0
      %757 = vmatprep.subr.bf16.mxu0 0
      %758 = vmatpush1.bf16.msra.mxu0 0
      %759 = vmatprep.subr.bf16.mxu0 0
      %760 = vmatpush1.bf16.msra.mxu0 0
      %761 = vmatprep.subr.bf16.mxu0 0
      %762 = vmatpush1.bf16.msra.mxu0 0
      %763 = vmatprep.subr.bf16.mxu0 0
      %764 = vmatpush1.bf16.msra.mxu0 0
      %765 = vmatprep.subr.bf16.mxu0 0
      %766 = vmatpush1.bf16.msra.mxu0 0
      %767 = vmatprep.subr.bf16.mxu0 0
      %768 = vmatpush1.bf16.msra.mxu0 0
      %769 = vmatprep.subr.bf16.mxu0 0
      %770 = vmatpush1.bf16.msra.mxu0 0
      %771 = vmatprep.subr.bf16.mxu0 0
      %772 = vmatpush1.bf16.msra.mxu0 0
      %773 = vmatprep.mubr.bf16.mxu0 0
      %774 = vmatmul.mubr.bf16.gmra.mrb[0].mxu0 %v736
      %v775 = vpop.f32.mrb[0].mxu0
      %v776 = vadd.f32 0.0, %v775
      %v777 = vpop.f32.mrb[0].mxu0
      %v778 = vadd.f32 0.0, %v777
      %v779 = vpop.f32.mrb[0].mxu0
      %v780 = vadd.f32 0.0, %v779
      %v781 = vpop.f32.mrb[0].mxu0
      %v782 = vadd.f32 0.0, %v781
      %783 = vmatprep.mubr.bf16.mxu0 0
      %784 = vmatmul.mubr.bf16.gmra.mrb[0].mxu0 %v739
      %v785 = vpop.f32.mrb[0].mxu0
      %v786 = vadd.f32 0.0, %v785
      %v787 = vpop.f32.mrb[0].mxu0
      %v788 = vadd.f32 0.0, %v787
      %v789 = vpop.f32.mrb[0].mxu0
      %v790 = vadd.f32 0.0, %v789
      %v791 = vpop.f32.mrb[0].mxu0
      %v792 = vadd.f32 0.0, %v791
      %793 = vdwg.mxu0
      %v794 = vadd.f32 %v671, %v776
      %v795 = vadd.f32 %v672, %v778
      %v796 = vadd.f32 %v673, %v780
      %v797 = vadd.f32 %v674, %v782
      %v798 = vadd.f32 %v675, %v786
      %v799 = vadd.f32 %v676, %v788
      %v800 = vadd.f32 %v677, %v790
      %v801 = vadd.f32 %v678, %v792
      %s802 = scalar_lea.vmem %s1, 64
      %v803 = vld [vmem:[%s802] sm:$0xf]
      %v804 = vld [vmem:[%s802 + $0x4] sm:$0xf]
      %v805 = vld [vmem:[%s802 + $0x8] sm:$0xf]
      %v806 = vld [vmem:[%s802 + $0xc] sm:$0xf]
      %v811 = vunpack.c.l.b16 %v803
      %v812 = vunpack.c.l.b16 %v804
      %v813 = vunpack.c.l.b16 %v805
      %v814 = vunpack.c.l.b16 %v806
      %v815 = vpack.c.b16 %v812, %v811
      %v816 = vpack.c.b16 %v814, %v813
      %817 = vrot.lane.b32.xlu0 %v334, 111
      %v818 = vpop.permute.xlu0 %817
      %819 = vrot.lane.b32.xlu0 %v335, 111
      %v820 = vpop.permute.xlu0 %819
      %821 = vrot.lane.b32.xlu0 %v336, 111
      %v822 = vpop.permute.xlu0 %821
      %823 = vrot.lane.b32.xlu0 %v337, 111
      %v824 = vpop.permute.xlu0 %823
      %825 = vrot.lane.b32.xlu0 %v338, 111
      %v826 = vpop.permute.xlu0 %825
      %827 = vrot.lane.b32.xlu0 %v339, 111
      %v828 = vpop.permute.xlu0 %827
      %829 = vrot.lane.b32.xlu0 %v340, 111
      %v830 = vpop.permute.xlu0 %829
      %831 = vrot.lane.b32.xlu0 %v341, 111
      %v832 = vpop.permute.xlu0 %831
      %833 = vrot.lane.b32.xlu0 %v342, 111
      %v834 = vpop.permute.xlu0 %833
      %835 = vrot.lane.b32.xlu0 %v343, 111
      %v836 = vpop.permute.xlu0 %835
      %837 = vrot.lane.b32.xlu0 %v344, 111
      %v838 = vpop.permute.xlu0 %837
      %839 = vrot.lane.b32.xlu0 %v345, 111
      %v840 = vpop.permute.xlu0 %839
      %vm841 = vcmask 908288
      %v842 = vsel %vm841, %v818, %v820
      %v843 = vsel %vm841, %v820, %v822
      %v844 = vsel %vm841, %v824, %v826
      %v845 = vsel %vm841, %v826, %v828
      %v846 = vsel %vm841, %v830, %v832
      %v847 = vsel %vm841, %v832, %v834
      %v848 = vsel %vm841, %v836, %v838
      %v849 = vsel %vm841, %v838, %v840
      %v859 = vsel %vm387, %v815, 0
      %v862 = vsel %vm387, %v816, 0
      %864 = vmatprep.subr.bf16.mxu0 %v843
      %865 = vmatpush1.bf16.msra.mxu0 %v842
      %866 = vmatprep.subr.bf16.mxu0 %v845
      %867 = vmatpush1.bf16.msra.mxu0 %v844
      %868 = vmatprep.subr.bf16.mxu0 %v847
      %869 = vmatpush1.bf16.msra.mxu0 %v846
      %870 = vmatprep.subr.bf16.mxu0 %v849
      %871 = vmatpush1.bf16.msra.mxu0 %v848
      %872 = vmatprep.subr.bf16.mxu0 0
      %873 = vmatpush1.bf16.msra.mxu0 0
      %874 = vmatprep.subr.bf16.mxu0 0
      %875 = vmatpush1.bf16.msra.mxu0 0
      %876 = vmatprep.subr.bf16.mxu0 0
      %877 = vmatpush1.bf16.msra.mxu0 0
      %878 = vmatprep.subr.bf16.mxu0 0
      %879 = vmatpush1.bf16.msra.mxu0 0
      %880 = vmatprep.subr.bf16.mxu0 0
      %881 = vmatpush1.bf16.msra.mxu0 0
      %882 = vmatprep.subr.bf16.mxu0 0
      %883 = vmatpush1.bf16.msra.mxu0 0
      %884 = vmatprep.subr.bf16.mxu0 0
      %885 = vmatpush1.bf16.msra.mxu0 0
      %886 = vmatprep.subr.bf16.mxu0 0
      %887 = vmatpush1.bf16.msra.mxu0 0
      %888 = vmatprep.subr.bf16.mxu0 0
      %889 = vmatpush1.bf16.msra.mxu0 0
      %890 = vmatprep.subr.bf16.mxu0 0
      %891 = vmatpush1.bf16.msra.mxu0 0
      %892 = vmatprep.subr.bf16.mxu0 0
      %893 = vmatpush1.bf16.msra.mxu0 0
      %894 = vmatprep.subr.bf16.mxu0 0
      %895 = vmatpush1.bf16.msra.mxu0 0
      %896 = vmatprep.mubr.bf16.mxu0 0
      %897 = vmatmul.mubr.bf16.gmra.mrb[0].mxu0 %v859
      %v898 = vpop.f32.mrb[0].mxu0
      %v899 = vadd.f32 0.0, %v898
      %v900 = vpop.f32.mrb[0].mxu0
      %v901 = vadd.f32 0.0, %v900
      %v902 = vpop.f32.mrb[0].mxu0
      %v903 = vadd.f32 0.0, %v902
      %v904 = vpop.f32.mrb[0].mxu0
      %v905 = vadd.f32 0.0, %v904
      %906 = vmatprep.mubr.bf16.mxu0 0
      %907 = vmatmul.mubr.bf16.gmra.mrb[0].mxu0 %v862
      %v908 = vpop.f32.mrb[0].mxu0
      %v909 = vadd.f32 0.0, %v908
      %v910 = vpop.f32.mrb[0].mxu0
      %v911 = vadd.f32 0.0, %v910
      %v912 = vpop.f32.mrb[0].mxu0
      %v913 = vadd.f32 0.0, %v912
      %v914 = vpop.f32.mrb[0].mxu0
      %v915 = vadd.f32 0.0, %v914
      %916 = vdwg.mxu0
      %v917 = vadd.f32 %v794, %v899
      %v918 = vadd.f32 %v795, %v901
      %v919 = vadd.f32 %v796, %v903
      %v920 = vadd.f32 %v797, %v905
      %v921 = vadd.f32 %v798, %v909
      %v922 = vadd.f32 %v799, %v911
      %v923 = vadd.f32 %v800, %v913
      %v924 = vadd.f32 %v801, %v915
      %s925 = scalar_lea.vmem %s1, 80
      %v926 = vld [vmem:[%s925] sm:$0xf]
      %v927 = vld [vmem:[%s925 + $0x4] sm:$0xf]
      %v928 = vld [vmem:[%s925 + $0x8] sm:$0xf]
      %v929 = vld [vmem:[%s925 + $0xc] sm:$0xf]
      %v934 = vunpack.c.l.b16 %v926
      %v935 = vunpack.c.l.b16 %v927
      %v936 = vunpack.c.l.b16 %v928
      %v937 = vunpack.c.l.b16 %v929
      %v938 = vpack.c.b16 %v935, %v934
      %v939 = vpack.c.b16 %v937, %v936
      %940 = vrot.lane.b32.xlu0 %v334, 110
      %v941 = vpop.permute.xlu0 %940
      %942 = vrot.lane.b32.xlu0 %v335, 110
      %v943 = vpop.permute.xlu0 %942
      %944 = vrot.lane.b32.xlu0 %v336, 110
      %v945 = vpop.permute.xlu0 %944
      %946 = vrot.lane.b32.xlu0 %v337, 110
      %v947 = vpop.permute.xlu0 %946
      %948 = vrot.lane.b32.xlu0 %v338, 110
      %v949 = vpop.permute.xlu0 %948
      %950 = vrot.lane.b32.xlu0 %v339, 110
      %v951 = vpop.permute.xlu0 %950
      %952 = vrot.lane.b32.xlu0 %v340, 110
      %v953 = vpop.permute.xlu0 %952
      %954 = vrot.lane.b32.xlu0 %v341, 110
      %v955 = vpop.permute.xlu0 %954
      %956 = vrot.lane.b32.xlu0 %v342, 110
      %v957 = vpop.permute.xlu0 %956
      %958 = vrot.lane.b32.xlu0 %v343, 110
      %v959 = vpop.permute.xlu0 %958
      %960 = vrot.lane.b32.xlu0 %v344, 110
      %v961 = vpop.permute.xlu0 %960
      %962 = vrot.lane.b32.xlu0 %v345, 110
      %v963 = vpop.permute.xlu0 %962
      %vm964 = vcmask 900096
      %v965 = vsel %vm964, %v941, %v943
      %v966 = vsel %vm964, %v943, %v945
      %v967 = vsel %vm964, %v947, %v949
      %v968 = vsel %vm964, %v949, %v951
      %v969 = vsel %vm964, %v953, %v955
      %v970 = vsel %vm964, %v955, %v957
      %v971 = vsel %vm964, %v959, %v961
      %v972 = vsel %vm964, %v961, %v963
      %v982 = vsel %vm387, %v938, 0
      %v985 = vsel %vm387, %v939, 0
      %987 = vmatprep.subr.bf16.mxu0 %v966
      %988 = vmatpush1.bf16.msra.mxu0 %v965
      %989 = vmatprep.subr.bf16.mxu0 %v968
      %990 = vmatpush1.bf16.msra.mxu0 %v967
      %991 = vmatprep.subr.bf16.mxu0 %v970
      %992 = vmatpush1.bf16.msra.mxu0 %v969
      %993 = vmatprep.subr.bf16.mxu0 %v972
      %994 = vmatpush1.bf16.msra.mxu0 %v971
      %995 = vmatprep.subr.bf16.mxu0 0
      %996 = vmatpush1.bf16.msra.mxu0 0
      %997 = vmatprep.subr.bf16.mxu0 0
      %998 = vmatpush1.bf16.msra.mxu0 0
      %999 = vmatprep.subr.bf16.mxu0 0
      %1000 = vmatpush1.bf16.msra.mxu0 0
      %1001 = vmatprep.subr.bf16.mxu0 0
      %1002 = vmatpush1.bf16.msra.mxu0 0
      %1003 = vmatprep.subr.bf16.mxu0 0
      %1004 = vmatpush1.bf16.msra.mxu0 0
      %1005 = vmatprep.subr.bf16.mxu0 0
      %1006 = vmatpush1.bf16.msra.mxu0 0
      %1007 = vmatprep.subr.bf16.mxu0 0
      %1008 = vmatpush1.bf16.msra.mxu0 0
      %1009 = vmatprep.subr.bf16.mxu0 0
      %1010 = vmatpush1.bf16.msra.mxu0 0
      %1011 = vmatprep.subr.bf16.mxu0 0
      %1012 = vmatpush1.bf16.msra.mxu0 0
      %1013 = vmatprep.subr.bf16.mxu0 0
      %1014 = vmatpush1.bf16.msra.mxu0 0
      %1015 = vmatprep.subr.bf16.mxu0 0
      %1016 = vmatpush1.bf16.msra.mxu0 0
      %1017 = vmatprep.subr.bf16.mxu0 0
      %1018 = vmatpush1.bf16.msra.mxu0 0
      %1019 = vmatprep.mubr.bf16.mxu0 0
      %1020 = vmatmul.mubr.bf16.gmra.mrb[0].mxu0 %v982
      %v1021 = vpop.f32.mrb[0].mxu0
      %v1022 = vadd.f32 0.0, %v1021
      %v1023 = vpop.f32.mrb[0].mxu0
      %v1024 = vadd.f32 0.0, %v1023
      %v1025 = vpop.f32.mrb[0].mxu0
      %v1026 = vadd.f32 0.0, %v1025
      %v1027 = vpop.f32.mrb[0].mxu0
      %v1028 = vadd.f32 0.0, %v1027
      %1029 = vmatprep.mubr.bf16.mxu0 0
      %1030 = vmatmul.mubr.bf16.gmra.mrb[0].mxu0 %v985
      %v1031 = vpop.f32.mrb[0].mxu0
      %v1032 = vadd.f32 0.0, %v1031
      %v1033 = vpop.f32.mrb[0].mxu0
      %v1034 = vadd.f32 0.0, %v1033
      %v1035 = vpop.f32.mrb[0].mxu0
      %v1036 = vadd.f32 0.0, %v1035
      %v1037 = vpop.f32.mrb[0].mxu0
      %v1038 = vadd.f32 0.0, %v1037
      %1039 = vdwg.mxu0
      %v1040 = vadd.f32 %v917, %v1022
      %v1041 = vadd.f32 %v918, %v1024
      %v1042 = vadd.f32 %v919, %v1026
      %v1043 = vadd.f32 %v920, %v1028
      %v1044 = vadd.f32 %v921, %v1032
      %v1045 = vadd.f32 %v922, %v1034
      %v1046 = vadd.f32 %v923, %v1036
      %v1047 = vadd.f32 %v924, %v1038
      %s1048 = scalar_lea.vmem %s1, 96
      %v1049 = vld [vmem:[%s1048] sm:$0xf]
      %v1050 = vld [vmem:[%s1048 + $0x4] sm:$0xf]
      %v1051 = vld [vmem:[%s1048 + $0x8] sm:$0xf]
      %v1052 = vld [vmem:[%s1048 + $0xc] sm:$0xf]
      %v1057 = vunpack.c.l.b16 %v1049
      %v1058 = vunpack.c.l.b16 %v1050
      %v1059 = vunpack.c.l.b16 %v1051
      %v1060 = vunpack.c.l.b16 %v1052
      %v1061 = vpack.c.b16 %v1058, %v1057
      %v1062 = vpack.c.b16 %v1060, %v1059
      %1063 = vrot.lane.b32.xlu0 %v334, 96
      %v1064 = vpop.permute.xlu0 %1063
      %1065 = vrot.lane.b32.xlu0 %v335, 96
      %v1066 = vpop.permute.xlu0 %1065
      %1067 = vrot.lane.b32.xlu0 %v336, 96
      %v1068 = vpop.permute.xlu0 %1067
      %1069 = vrot.lane.b32.xlu0 %v337, 96
      %v1070 = vpop.permute.xlu0 %1069
      %1071 = vrot.lane.b32.xlu0 %v338, 96
      %v1072 = vpop.permute.xlu0 %1071
      %1073 = vrot.lane.b32.xlu0 %v339, 96
      %v1074 = vpop.permute.xlu0 %1073
      %1075 = vrot.lane.b32.xlu0 %v340, 96
      %v1076 = vpop.permute.xlu0 %1075
      %1077 = vrot.lane.b32.xlu0 %v341, 96
      %v1078 = vpop.permute.xlu0 %1077
      %1079 = vrot.lane.b32.xlu0 %v342, 96
      %v1080 = vpop.permute.xlu0 %1079
      %1081 = vrot.lane.b32.xlu0 %v343, 96
      %v1082 = vpop.permute.xlu0 %1081
      %1083 = vrot.lane.b32.xlu0 %v344, 96
      %v1084 = vpop.permute.xlu0 %1083
      %1085 = vrot.lane.b32.xlu0 %v345, 96
      %v1086 = vpop.permute.xlu0 %1085
      %vm1087 = vcmask 785408
      %v1088 = vsel %vm1087, %v1064, %v1066
      %v1089 = vsel %vm1087, %v1066, %v1068
      %v1090 = vsel %vm1087, %v1070, %v1072
      %v1091 = vsel %vm1087, %v1072, %v1074
      %v1092 = vsel %vm1087, %v1076, %v1078
      %v1093 = vsel %vm1087, %v1078, %v1080
      %v1094 = vsel %vm1087, %v1082, %v1084
      %v1095 = vsel %vm1087, %v1084, %v1086
      %v1105 = vsel %vm387, %v1061, 0
      %v1108 = vsel %vm387, %v1062, 0
      %1110 = vmatprep.subr.bf16.mxu0 %v1089
      %1111 = vmatpush1.bf16.msra.mxu0 %v1088
      %1112 = vmatprep.subr.bf16.mxu0 %v1091
      %1113 = vmatpush1.bf16.msra.mxu0 %v1090
      %1114 = vmatprep.subr.bf16.mxu0 %v1093
      %1115 = vmatpush1.bf16.msra.mxu0 %v1092
      %1116 = vmatprep.subr.bf16.mxu0 %v1095
      %1117 = vmatpush1.bf16.msra.mxu0 %v1094
      %1118 = vmatprep.subr.bf16.mxu0 0
      %1119 = vmatpush1.bf16.msra.mxu0 0
      %1120 = vmatprep.subr.bf16.mxu0 0
      %1121 = vmatpush1.bf16.msra.mxu0 0
      %1122 = vmatprep.subr.bf16.mxu0 0
      %1123 = vmatpush1.bf16.msra.mxu0 0
      %1124 = vmatprep.subr.bf16.mxu0 0
      %1125 = vmatpush1.bf16.msra.mxu0 0
      %1126 = vmatprep.subr.bf16.mxu0 0
      %1127 = vmatpush1.bf16.msra.mxu0 0
      %1128 = vmatprep.subr.bf16.mxu0 0
      %1129 = vmatpush1.bf16.msra.mxu0 0
      %1130 = vmatprep.subr.bf16.mxu0 0
      %1131 = vmatpush1.bf16.msra.mxu0 0
      %1132 = vmatprep.subr.bf16.mxu0 0
      %1133 = vmatpush1.bf16.msra.mxu0 0
      %1134 = vmatprep.subr.bf16.mxu0 0
      %1135 = vmatpush1.bf16.msra.mxu0 0
      %1136 = vmatprep.subr.bf16.mxu0 0
      %1137 = vmatpush1.bf16.msra.mxu0 0
      %1138 = vmatprep.subr.bf16.mxu0 0
      %1139 = vmatpush1.bf16.msra.mxu0 0
      %1140 = vmatprep.subr.bf16.mxu0 0
      %1141 = vmatpush1.bf16.msra.mxu0 0
      %1142 = vmatprep.mubr.bf16.mxu0 0
      %1143 = vmatmul.mubr.bf16.gmra.mrb[0].mxu0 %v1105
      %v1144 = vpop.f32.mrb[0].mxu0
      %v1145 = vadd.f32 0.0, %v1144
      %v1146 = vpop.f32.mrb[0].mxu0
      %v1147 = vadd.f32 0.0, %v1146
      %v1148 = vpop.f32.mrb[0].mxu0
      %v1149 = vadd.f32 0.0, %v1148
      %v1150 = vpop.f32.mrb[0].mxu0
      %v1151 = vadd.f32 0.0, %v1150
      %1152 = vmatprep.mubr.bf16.mxu0 0
      %1153 = vmatmul.mubr.bf16.gmra.mrb[0].mxu0 %v1108
      %v1154 = vpop.f32.mrb[0].mxu0
      %v1155 = vadd.f32 0.0, %v1154
      %v1156 = vpop.f32.mrb[0].mxu0
      %v1157 = vadd.f32 0.0, %v1156
      %v1158 = vpop.f32.mrb[0].mxu0
      %v1159 = vadd.f32 0.0, %v1158
      %v1160 = vpop.f32.mrb[0].mxu0
      %v1161 = vadd.f32 0.0, %v1160
      %1162 = vdwg.mxu0
      %v1163 = vadd.f32 %v1040, %v1145
      %v1164 = vadd.f32 %v1041, %v1147
      %v1165 = vadd.f32 %v1042, %v1149
      %v1166 = vadd.f32 %v1043, %v1151
      %v1167 = vadd.f32 %v1044, %v1155
      %v1168 = vadd.f32 %v1045, %v1157
      %v1169 = vadd.f32 %v1046, %v1159
      %v1170 = vadd.f32 %v1047, %v1161
      %s1171 = scalar_lea.vmem %s1, 112
      %v1172 = vld [vmem:[%s1171] sm:$0xf]
      %v1173 = vld [vmem:[%s1171 + $0x4] sm:$0xf]
      %v1174 = vld [vmem:[%s1171 + $0x8] sm:$0xf]
      %v1175 = vld [vmem:[%s1171 + $0xc] sm:$0xf]
      %v1180 = vunpack.c.l.b16 %v1172
      %v1181 = vunpack.c.l.b16 %v1173
      %v1182 = vunpack.c.l.b16 %v1174
      %v1183 = vunpack.c.l.b16 %v1175
      %v1184 = vpack.c.b16 %v1181, %v1180
      %v1185 = vpack.c.b16 %v1183, %v1182
      %1186 = vrot.lane.b32.xlu0 %v334, 95
      %v1187 = vpop.permute.xlu0 %1186
      %1188 = vrot.lane.b32.xlu0 %v335, 95
      %v1189 = vpop.permute.xlu0 %1188
      %1190 = vrot.lane.b32.xlu0 %v336, 95
      %v1191 = vpop.permute.xlu0 %1190
      %1192 = vrot.lane.b32.xlu0 %v337, 95
      %v1193 = vpop.permute.xlu0 %1192
      %1194 = vrot.lane.b32.xlu0 %v338, 95
      %v1195 = vpop.permute.xlu0 %1194
      %1196 = vrot.lane.b32.xlu0 %v339, 95
      %v1197 = vpop.permute.xlu0 %1196
      %1198 = vrot.lane.b32.xlu0 %v340, 95
      %v1199 = vpop.permute.xlu0 %1198
      %1200 = vrot.lane.b32.xlu0 %v341, 95
      %v1201 = vpop.permute.xlu0 %1200
      %1202 = vrot.lane.b32.xlu0 %v342, 95
      %v1203 = vpop.permute.xlu0 %1202
      %1204 = vrot.lane.b32.xlu0 %v343, 95
      %v1205 = vpop.permute.xlu0 %1204
      %1206 = vrot.lane.b32.xlu0 %v344, 95
      %v1207 = vpop.permute.xlu0 %1206
      %1208 = vrot.lane.b32.xlu0 %v345, 95
      %v1209 = vpop.permute.xlu0 %1208
      %vm1210 = vcmask 777216
      %v1211 = vsel %vm1210, %v1187, %v1189
      %v1212 = vsel %vm1210, %v1189, %v1191
      %v1213 = vsel %vm1210, %v1193, %v1195
      %v1214 = vsel %vm1210, %v1195, %v1197
      %v1215 = vsel %vm1210, %v1199, %v1201
      %v1216 = vsel %vm1210, %v1201, %v1203
      %v1217 = vsel %vm1210, %v1205, %v1207
      %v1218 = vsel %vm1210, %v1207, %v1209
      %v1228 = vsel %vm387, %v1184, 0
      %v1231 = vsel %vm387, %v1185, 0
      %1233 = vmatprep.subr.bf16.mxu0 %v1212
      %1234 = vmatpush1.bf16.msra.mxu0 %v1211
      %1235 = vmatprep.subr.bf16.mxu0 %v1214
      %1236 = vmatpush1.bf16.msra.mxu0 %v1213
      %1237 = vmatprep.subr.bf16.mxu0 %v1216
      %1238 = vmatpush1.bf16.msra.mxu0 %v1215
      %1239 = vmatprep.subr.bf16.mxu0 %v1218
      %1240 = vmatpush1.bf16.msra.mxu0 %v1217
      %1241 = vmatprep.subr.bf16.mxu0 0
      %1242 = vmatpush1.bf16.msra.mxu0 0
      %1243 = vmatprep.subr.bf16.mxu0 0
      %1244 = vmatpush1.bf16.msra.mxu0 0
      %1245 = vmatprep.subr.bf16.mxu0 0
      %1246 = vmatpush1.bf16.msra.mxu0 0
      %1247 = vmatprep.subr.bf16.mxu0 0
      %1248 = vmatpush1.bf16.msra.mxu0 0
      %1249 = vmatprep.subr.bf16.mxu0 0
      %1250 = vmatpush1.bf16.msra.mxu0 0
      %1251 = vmatprep.subr.bf16.mxu0 0
      %1252 = vmatpush1.bf16.msra.mxu0 0
      %1253 = vmatprep.subr.bf16.mxu0 0
      %1254 = vmatpush1.bf16.msra.mxu0 0
      %1255 = vmatprep.subr.bf16.mxu0 0
      %1256 = vmatpush1.bf16.msra.mxu0 0
      %1257 = vmatprep.subr.bf16.mxu0 0
      %1258 = vmatpush1.bf16.msra.mxu0 0
      %1259 = vmatprep.subr.bf16.mxu0 0
      %1260 = vmatpush1.bf16.msra.mxu0 0
      %1261 = vmatprep.subr.bf16.mxu0 0
      %1262 = vmatpush1.bf16.msra.mxu0 0
      %1263 = vmatprep.subr.bf16.mxu0 0
      %1264 = vmatpush1.bf16.msra.mxu0 0
      %1265 = vmatprep.mubr.bf16.mxu0 0
      %1266 = vmatmul.mubr.bf16.gmra.mrb[0].mxu0 %v1228
      %v1267 = vpop.f32.mrb[0].mxu0
      %v1268 = vadd.f32 0.0, %v1267
      %v1269 = vpop.f32.mrb[0].mxu0
      %v1270 = vadd.f32 0.0, %v1269
      %v1271 = vpop.f32.mrb[0].mxu0
      %v1272 = vadd.f32 0.0, %v1271
      %v1273 = vpop.f32.mrb[0].mxu0
      %v1274 = vadd.f32 0.0, %v1273
      %1275 = vmatprep.mubr.bf16.mxu0 0
      %1276 = vmatmul.mubr.bf16.gmra.mrb[0].mxu0 %v1231
      %v1277 = vpop.f32.mrb[0].mxu0
      %v1278 = vadd.f32 0.0, %v1277
      %v1279 = vpop.f32.mrb[0].mxu0
      %v1280 = vadd.f32 0.0, %v1279
      %v1281 = vpop.f32.mrb[0].mxu0
      %v1282 = vadd.f32 0.0, %v1281
      %v1283 = vpop.f32.mrb[0].mxu0
      %v1284 = vadd.f32 0.0, %v1283
      %1285 = vdwg.mxu0
      %v1286 = vadd.f32 %v1163, %v1268
      %v1287 = vadd.f32 %v1164, %v1270
      %v1288 = vadd.f32 %v1165, %v1272
      %v1289 = vadd.f32 %v1166, %v1274
      %v1290 = vadd.f32 %v1167, %v1278
      %v1291 = vadd.f32 %v1168, %v1280
      %v1292 = vadd.f32 %v1169, %v1282
      %v1293 = vadd.f32 %v1170, %v1284
      %s1294 = scalar_lea.vmem %s1, 128
      %v1295 = vld [vmem:[%s1294] sm:$0xf]
      %v1296 = vld [vmem:[%s1294 + $0x4] sm:$0xf]
      %v1297 = vld [vmem:[%s1294 + $0x8] sm:$0xf]
      %v1298 = vld [vmem:[%s1294 + $0xc] sm:$0xf]
      %v1303 = vunpack.c.l.b16 %v1295
      %v1304 = vunpack.c.l.b16 %v1296
      %v1305 = vunpack.c.l.b16 %v1297
      %v1306 = vunpack.c.l.b16 %v1298
      %v1307 = vpack.c.b16 %v1304, %v1303
      %v1308 = vpack.c.b16 %v1306, %v1305
      %1309 = vrot.lane.b32.xlu0 %v334, 94
      %v1310 = vpop.permute.xlu0 %1309
      %1311 = vrot.lane.b32.xlu0 %v335, 94
      %v1312 = vpop.permute.xlu0 %1311
      %1313 = vrot.lane.b32.xlu0 %v336, 94
      %v1314 = vpop.permute.xlu0 %1313
      %1315 = vrot.lane.b32.xlu0 %v337, 94
      %v1316 = vpop.permute.xlu0 %1315
      %1317 = vrot.lane.b32.xlu0 %v338, 94
      %v1318 = vpop.permute.xlu0 %1317
      %1319 = vrot.lane.b32.xlu0 %v339, 94
      %v1320 = vpop.permute.xlu0 %1319
      %1321 = vrot.lane.b32.xlu0 %v340, 94
      %v1322 = vpop.permute.xlu0 %1321
      %1323 = vrot.lane.b32.xlu0 %v341, 94
      %v1324 = vpop.permute.xlu0 %1323
      %1325 = vrot.lane.b32.xlu0 %v342, 94
      %v1326 = vpop.permute.xlu0 %1325
      %1327 = vrot.lane.b32.xlu0 %v343, 94
      %v1328 = vpop.permute.xlu0 %1327
      %1329 = vrot.lane.b32.xlu0 %v344, 94
      %v1330 = vpop.permute.xlu0 %1329
      %1331 = vrot.lane.b32.xlu0 %v345, 94
      %v1332 = vpop.permute.xlu0 %1331
      %vm1333 = vcmask 769024
      %v1334 = vsel %vm1333, %v1310, %v1312
      %v1335 = vsel %vm1333, %v1312, %v1314
      %v1336 = vsel %vm1333, %v1316, %v1318
      %v1337 = vsel %vm1333, %v1318, %v1320
      %v1338 = vsel %vm1333, %v1322, %v1324
      %v1339 = vsel %vm1333, %v1324, %v1326
      %v1340 = vsel %vm1333, %v1328, %v1330
      %v1341 = vsel %vm1333, %v1330, %v1332
      %v1351 = vsel %vm387, %v1307, 0
      %v1354 = vsel %vm387, %v1308, 0
      %1356 = vmatprep.subr.bf16.mxu0 %v1335
      %1357 = vmatpush1.bf16.msra.mxu0 %v1334
      %1358 = vmatprep.subr.bf16.mxu0 %v1337
      %1359 = vmatpush1.bf16.msra.mxu0 %v1336
      %1360 = vmatprep.subr.bf16.mxu0 %v1339
      %1361 = vmatpush1.bf16.msra.mxu0 %v1338
      %1362 = vmatprep.subr.bf16.mxu0 %v1341
      %1363 = vmatpush1.bf16.msra.mxu0 %v1340
      %1364 = vmatprep.subr.bf16.mxu0 0
      %1365 = vmatpush1.bf16.msra.mxu0 0
      %1366 = vmatprep.subr.bf16.mxu0 0
      %1367 = vmatpush1.bf16.msra.mxu0 0
      %1368 = vmatprep.subr.bf16.mxu0 0
      %1369 = vmatpush1.bf16.msra.mxu0 0
      %1370 = vmatprep.subr.bf16.mxu0 0
      %1371 = vmatpush1.bf16.msra.mxu0 0
      %1372 = vmatprep.subr.bf16.mxu0 0
      %1373 = vmatpush1.bf16.msra.mxu0 0
      %1374 = vmatprep.subr.bf16.mxu0 0
      %1375 = vmatpush1.bf16.msra.mxu0 0
      %1376 = vmatprep.subr.bf16.mxu0 0
      %1377 = vmatpush1.bf16.msra.mxu0 0
      %1378 = vmatprep.subr.bf16.mxu0 0
      %1379 = vmatpush1.bf16.msra.mxu0 0
      %1380 = vmatprep.subr.bf16.mxu0 0
      %1381 = vmatpush1.bf16.msra.mxu0 0
      %1382 = vmatprep.subr.bf16.mxu0 0
      %1383 = vmatpush1.bf16.msra.mxu0 0
      %1384 = vmatprep.subr.bf16.mxu0 0
      %1385 = vmatpush1.bf16.msra.mxu0 0
      %1386 = vmatprep.subr.bf16.mxu0 0
      %1387 = vmatpush1.bf16.msra.mxu0 0
      %1388 = vmatprep.mubr.bf16.mxu0 0
      %1389 = vmatmul.mubr.bf16.gmra.mrb[0].mxu0 %v1351
      %v1390 = vpop.f32.mrb[0].mxu0
      %v1391 = vadd.f32 0.0, %v1390
      %v1392 = vpop.f32.mrb[0].mxu0
      %v1393 = vadd.f32 0.0, %v1392
      %v1394 = vpop.f32.mrb[0].mxu0
      %v1395 = vadd.f32 0.0, %v1394
      %v1396 = vpop.f32.mrb[0].mxu0
      %v1397 = vadd.f32 0.0, %v1396
      %1398 = vmatprep.mubr.bf16.mxu0 0
      %1399 = vmatmul.mubr.bf16.gmra.mrb[0].mxu0 %v1354
      %v1400 = vpop.f32.mrb[0].mxu0
      %v1401 = vadd.f32 0.0, %v1400
      %v1402 = vpop.f32.mrb[0].mxu0
      %v1403 = vadd.f32 0.0, %v1402
      %v1404 = vpop.f32.mrb[0].mxu0
      %v1405 = vadd.f32 0.0, %v1404
      %v1406 = vpop.f32.mrb[0].mxu0
      %v1407 = vadd.f32 0.0, %v1406
      %1408 = vdwg.mxu0
      %v1409 = vadd.f32 %v1286, %v1391
      %v1410 = vadd.f32 %v1287, %v1393
      %v1411 = vadd.f32 %v1288, %v1395
      %v1412 = vadd.f32 %v1289, %v1397
      %v1413 = vadd.f32 %v1290, %v1401
      %v1414 = vadd.f32 %v1291, %v1403
      %v1415 = vadd.f32 %v1292, %v1405
      %v1416 = vadd.f32 %v1293, %v1407
      %v1417 = vld [vmem:[%s2] sm:$0x3]
      %1418 = vst [vmem:[%s239] sm:$0xff] %v1409
      %1419 = vst [vmem:[%s239 + $0x8] sm:$0xff] %v1410
      %1420 = vst [vmem:[%s239 + $0x10] sm:$0xff] %v1411
      %1421 = vst [vmem:[%s239 + $0x18] sm:$0xff] %v1412
      %1422 = vst [vmem:[%s239 + $0x20] sm:$0xff] %v1413
      %1423 = vst [vmem:[%s239 + $0x28] sm:$0xff] %v1414
      %1424 = vst [vmem:[%s239 + $0x30] sm:$0xff] %v1415
      %1425 = vst [vmem:[%s239 + $0x38] sm:$0xff] %v1416
      %v1427 = vlaneseq
      %v1428 = vshrl.u32 %v1427, 7
      %v1429 = vsub.s32 0, %v1428
      %v1430 = vrot.slane %v1417, %v1429
      %v1431 = vlaneseq
      %v1432 = vshrl.u32 %v1431, 7
      %v1433 = vsub.s32 1, %v1432
      %v1434 = vrot.slane %v1417, %v1433
      %v1437 = vmul.f32 %v1409, %v1430
      %v1438 = vmul.f32 %v1410, %v1434
      %v1439 = vmul.f32 %v1411, %v1430
      %v1440 = vmul.f32 %v1412, %v1434
      %v1441 = vmul.f32 %v1413, %v1430
      %v1442 = vmul.f32 %v1414, %v1434
      %v1443 = vmul.f32 %v1415, %v1430
      %v1444 = vmul.f32 %v1416, %v1434
      %v1445 = vadd.f32 %v1437, %v1438
      %1446 = vadd.xlane.f32.xlu0 %v1445
      %v1447 = vpop.xlane.xlu0 %1446
      %v1448 = vadd.f32 %v1439, %v1440
      %1449 = vadd.xlane.f32.xlu0 %v1448
      %v1450 = vpop.xlane.xlu0 %1449
      %v1451 = vadd.f32 %v1441, %v1442
      %1452 = vadd.xlane.f32.xlu0 %v1451
      %v1453 = vpop.xlane.xlu0 %1452
      %v1454 = vadd.f32 %v1443, %v1444
      %1455 = vadd.xlane.f32.xlu0 %v1454
      %v1456 = vpop.xlane.xlu0 %1455
      %vm1457 = vcmask 7168
      %1458 = vst.msk [vmem:[%s244] sm:$0xff] %vm1457, %v1447
      %1459 = vst.msk [vmem:[%s244 + $0x8] sm:$0xff] %vm1457, %v1450
      %1460 = vst.msk [vmem:[%s244 + $0x10] sm:$0xff] %vm1457, %v1453
      %1461 = vst.msk [vmem:[%s244 + $0x18] sm:$0xff] %vm1457, %v1456
      %v1462 = vmul.f32 %v1409, %v1409
      %v1463 = vmul.f32 %v1410, %v1410
      %v1464 = vmul.f32 %v1411, %v1411
      %v1465 = vmul.f32 %v1412, %v1412
      %v1466 = vmul.f32 %v1413, %v1413
      %v1467 = vmul.f32 %v1414, %v1414
      %v1468 = vmul.f32 %v1415, %v1415
      %v1469 = vmul.f32 %v1416, %v1416
      %v1470 = vmul.f32 %v1462, %v1430
      %v1471 = vmul.f32 %v1463, %v1434
      %v1472 = vmul.f32 %v1464, %v1430
      %v1473 = vmul.f32 %v1465, %v1434
      %v1474 = vmul.f32 %v1466, %v1430
      %v1475 = vmul.f32 %v1467, %v1434
      %v1476 = vmul.f32 %v1468, %v1430
      %v1477 = vmul.f32 %v1469, %v1434
      %v1478 = vadd.f32 %v1470, %v1471
      %1479 = vadd.xlane.f32.xlu0 %v1478
      %v1480 = vpop.xlane.xlu0 %1479
      %v1481 = vadd.f32 %v1472, %v1473
      %1482 = vadd.xlane.f32.xlu0 %v1481
      %v1483 = vpop.xlane.xlu0 %1482
      %v1484 = vadd.f32 %v1474, %v1475
      %1485 = vadd.xlane.f32.xlu0 %v1484
      %v1486 = vpop.xlane.xlu0 %1485
      %v1487 = vadd.f32 %v1476, %v1477
      %1488 = vadd.xlane.f32.xlu0 %v1487
      %v1489 = vpop.xlane.xlu0 %1488
      %1490 = vst.msk [vmem:[%s249] sm:$0xff] %vm1457, %v1480
      %1491 = vst.msk [vmem:[%s249 + $0x8] sm:$0xff] %vm1457, %v1483
      %1492 = vst.msk [vmem:[%s249 + $0x10] sm:$0xff] %vm1457, %v1486
      %1493 = vst.msk [vmem:[%s249 + $0x18] sm:$0xff] %vm1457, %v1489
      %p1494 = scmp.lt.s32.totalorder %s17, 1
      %s1495 = scalar_select %p1494, %s17, 1
      %s1496 = smul.addr %s1495, 8
      %s1497 = smul.addr %s1496, 8
      %s1498 = scalar_lea.vmem %s3, %s1497
      %p1499 = scmp.lt.s32.totalorder %s17, 1
      %s1500 = scalar_select %p1499, %s17, 1
      %s1501 = smul.addr %s1500, 4
      %s1502 = smul.addr %s1501, 8
      %s1503 = scalar_lea.vmem %s4, %s1502
      %p1504 = scmp.lt.s32.totalorder %s17, 1
      %s1505 = scalar_select %p1504, %s17, 1
      %s1506 = smul.addr %s1505, 4
      %s1507 = smul.addr %s1506, 8
      %s1508 = scalar_lea.vmem %s5, %s1507
      // Predicated region
      $region33: #{generator_forward.9} parent=31 // pred_check
        %p1509 = pneg %p103
      $region34: #{generator_forward.9} parent=31 // pred_check_branch
        %1511 = sbr.rel (%p1509) target = $region36
      $region35: #{generator_forward.9} parent=31 // pred_region
        _
      $region36: #{generator_forward.9} parent=31 // pred_fallthru
        _
      // Predicated region
      $region37: #{generator_forward.9} parent=31 // pred_check
        %p1512 = pneg %p129
      $region38: #{generator_forward.9} parent=31 // pred_check_branch
        %1514 = sbr.rel (%p1512) target = $region40
      $region39: #{generator_forward.9} parent=31 // pred_region
        _
      $region40: #{generator_forward.9} parent=31 // pred_fallthru
        _
      // Predicated region
      $region41: #{generator_forward.9} parent=31 // pred_check
        %p1515 = pneg %p155
      $region42: #{generator_forward.9} parent=31 // pred_check_branch
        %1517 = sbr.rel (%p1515) target = $region44
      $region43: #{generator_forward.9} parent=31 // pred_region
        _
      $region44: #{generator_forward.9} parent=31 // pred_fallthru
        _
    $region32: #{generator_forward.9} parent=5 // pred_fallthru
      _
    %p1518 = scmp.le.s32.totalorder 2, %s12
    // Predicated region
    $region45: #{generator_forward.9} parent=5 // pred_check
      %p1519 = pneg %p1518
    $region46: #{generator_forward.9} parent=5 // pred_check_branch
      %1521 = sbr.rel (%p1519) target = $region48
    $region47: #{generator_forward.9} parent=5 // pred_region
      %s1522 = ssub.s32 %s12, 2
      // Predicated region
      $region49: #{generator_forward.9} parent=47 // pred_check
        %p1523 = pneg %p109
      $region50: #{generator_forward.9} parent=47 // pred_check_branch
        %1525 = sbr.rel (%p1523) target = $region52
      $region51: #{generator_forward.9} parent=47 // pred_region
        %p1526 = scmp.lt.s32.totalorder %s18, 1
        %s1527 = scalar_select %p1526, %s18, 1
        %s1528 = smul.addr %s1527, 8
        %s1529 = smul.addr %s1528, 8
        %s1530 = scalar_lea.vmem %s3, %s1529
      $region52: #{generator_forward.9} parent=47 // pred_fallthru
        _
      // Predicated region
      $region53: #{generator_forward.9} parent=47 // pred_check
        %p1531 = pneg %p135
      $region54: #{generator_forward.9} parent=47 // pred_check_branch
        %1533 = sbr.rel (%p1531) target = $region56
      $region55: #{generator_forward.9} parent=47 // pred_region
        %p1534 = scmp.lt.s32.totalorder %s18, 1
        %s1535 = scalar_select %p1534, %s18, 1
        %s1536 = smul.addr %s1535, 4
        %s1537 = smul.addr %s1536, 8
        %s1538 = scalar_lea.vmem %s4, %s1537
      $region56: #{generator_forward.9} parent=47 // pred_fallthru
        _
      // Predicated region
      $region57: #{generator_forward.9} parent=47 // pred_check
        %p1539 = pneg %p161
      $region58: #{generator_forward.9} parent=47 // pred_check_branch
        %1541 = sbr.rel (%p1539) target = $region60
      $region59: #{generator_forward.9} parent=47 // pred_region
        %p1542 = scmp.lt.s32.totalorder %s18, 1
        %s1543 = scalar_select %p1542, %s18, 1
        %s1544 = smul.addr %s1543, 4
        %s1545 = smul.addr %s1544, 8
        %s1546 = scalar_lea.vmem %s5, %s1545
      $region60: #{generator_forward.9} parent=47 // pred_fallthru
        _
    $region48: #{generator_forward.9} parent=5 // pred_fallthru
      _
  $region6: #{generator_forward.9} parent=0 // loop_footer
    %s16 = sadd.s32 1, %s12
  $region7: #{generator_forward.9} parent=0 // loop_footer_branch
    %11 = sbr.rel target = $region3
  $region8: #{generator_forward.9} parent=0 // loop_exit
    _

// kernel: generator_forward.12
$region0: #{generator_forward.12}
  #allocation0 [shape = 'u32[]', space=smem, size = 0x4, offset = 0x4, fixed_abs, tag = 'smem constant byte address 0x4 - core index']
  #allocation1 [shape = 'u32[144,128]{1,0:T(1,128)}', space=vmem, size = 0x12000, scoped, tag = 'internal scratch']
  %s0 = inlined_call_operand.vmem [shape: f32[2,16,256], index: 0, kind: input, shape index: {}]
  %s1 = inlined_call_operand.vmem [shape: f32[16,1], index: 1, kind: input, shape index: {}]
  %s2 = inlined_call_operand.vmem [shape: f32[16,1], index: 2, kind: input, shape index: {}]
  %s3 = inlined_call_operand.vmem [shape: bf16[2,16,256], index: 3, kind: output, shape index: {}]
  %s4 = sld [smem:[#allocation0]]
  $region45: #{generator_forward.12} parent=0
    _
  %s6 = ssub.s32 1, %s4
  %s7 = scalar_select 0, %s6, %s4
  loop: start=0, step=1, limit=4
  $region2: #{generator_forward.12} parent=0 // loop_pre_header
    _
  $region3: #{generator_forward.12} parent=0 // loop_header
    %s9 = sphi 0, %s13
    %p10 = scmp.ge.s32.totalorder %s9, 4
    %s19 = sphi 0, %s21
    %s22 = sphi 0, %s19
    %s23 = sphi 0, %s22
    %s39 = sphi 0, %s23
    %s43 = sphi 0, %s43
    %s45 = sphi 0, %s43
    %s46 = sphi 0, %s45
    %s60 = sphi 0, %s46
    %s64 = sphi 0, %s64
    %s66 = sphi 0, %s64
    %s67 = sphi 0, %s66
    %s81 = sphi 0, %s67
    %s87 = sphi 0, %s89
    %s90 = sphi 0, %s87
    %s91 = sphi 0, %s90
    %s107 = sphi 0, %s91
  $region4: #{generator_forward.12} parent=0 // loop_header_branch
    %12 = sbr.rel (%p10) target = $region8
  $region5: #{generator_forward.12} parent=0 // loop_body
    %s14 = ssub.s32 %s9, 1
    %s15 = ssub.s32 %s9, 2
    %s16 = sadd.s32 %s9, 1
    %s17 = ssub.s32 %s9, %s16
    %p18 = scmp.eq.s32.totalorder %s17, 0
    %s20 = sadd.s32 %s19, 1
    %s21 = scalar_select %p18, %s19, %s20
    %p24 = pneg %p18
    %p25 = scmp.eq.s32.totalorder %s9, 1
    %p26 = por %p24, %p25
    %p27 = scmp.ne.s32.totalorder %s19, %s22
    %p28 = scmp.eq.s32.totalorder %s9, 0
    %p29 = por %p27, %p28
    %p30 = scmp.ne.s32.totalorder %s19, %s22
    %p31 = scmp.eq.s32.totalorder %s14, 1
    %p32 = por %p30, %p31
    %p33 = scmp.ne.s32.totalorder %s22, %s23
    %p34 = scmp.eq.s32.totalorder %s14, 0
    %p35 = por %p33, %p34
    %p36 = scmp.ne.s32.totalorder %s22, %s23
    %p37 = scmp.eq.s32.totalorder %s15, 1
    %p38 = por %p36, %p37
    %p40 = scmp.ne.s32.totalorder %s23, %s39
    %p41 = scmp.eq.s32.totalorder %s15, 0
    %p42 = por %p40, %p41
    %s44 = sadd.s32 %s43, 1
    %p47 = scmp.eq.s32.totalorder %s9, 1
    %p48 = scmp.ne.s32.totalorder %s43, %s45
    %p49 = scmp.eq.s32.totalorder %s9, 0
    %p50 = por %p48, %p49
    %p51 = scmp.ne.s32.totalorder %s43, %s45
    %p52 = scmp.eq.s32.totalorder %s14, 1
    %p53 = por %p51, %p52
    %p54 = scmp.ne.s32.totalorder %s45, %s46
    %p55 = scmp.eq.s32.totalorder %s14, 0
    %p56 = por %p54, %p55
    %p57 = scmp.ne.s32.totalorder %s45, %s46
    %p58 = scmp.eq.s32.totalorder %s15, 1
    %p59 = por %p57, %p58
    %p61 = scmp.ne.s32.totalorder %s46, %s60
    %p62 = scmp.eq.s32.totalorder %s15, 0
    %p63 = por %p61, %p62
    %s65 = sadd.s32 %s64, 1
    %p68 = scmp.eq.s32.totalorder %s9, 1
    %p69 = scmp.ne.s32.totalorder %s64, %s66
    %p70 = scmp.eq.s32.totalorder %s9, 0
    %p71 = por %p69, %p70
    %p72 = scmp.ne.s32.totalorder %s64, %s66
    %p73 = scmp.eq.s32.totalorder %s14, 1
    %p74 = por %p72, %p73
    %p75 = scmp.ne.s32.totalorder %s66, %s67
    %p76 = scmp.eq.s32.totalorder %s14, 0
    %p77 = por %p75, %p76
    %p78 = scmp.ne.s32.totalorder %s66, %s67
    %p79 = scmp.eq.s32.totalorder %s15, 1
    %p80 = por %p78, %p79
    %p82 = scmp.ne.s32.totalorder %s67, %s81
    %p83 = scmp.eq.s32.totalorder %s15, 0
    %p84 = por %p82, %p83
    %s85 = ssub.s32 %s9, %s16
    %p86 = scmp.eq.s32.totalorder %s85, 0
    %s88 = sadd.s32 %s87, 1
    %s89 = scalar_select %p86, %s87, %s88
    %p92 = pneg %p86
    %p93 = scmp.eq.s32.totalorder %s9, 1
    %p94 = por %p92, %p93
    %p95 = scmp.ne.s32.totalorder %s87, %s90
    %p96 = scmp.eq.s32.totalorder %s9, 0
    %p97 = por %p95, %p96
    %p98 = scmp.ne.s32.totalorder %s87, %s90
    %p99 = scmp.eq.s32.totalorder %s14, 1
    %p100 = por %p98, %p99
    %p101 = scmp.ne.s32.totalorder %s90, %s91
    %p102 = scmp.eq.s32.totalorder %s14, 0
    %p103 = por %p101, %p102
    %p104 = scmp.ne.s32.totalorder %s90, %s91
    %p105 = scmp.eq.s32.totalorder %s15, 1
    %p106 = por %p104, %p105
    %p108 = scmp.ne.s32.totalorder %s91, %s107
    %p109 = scmp.eq.s32.totalorder %s15, 0
    %p110 = por %p108, %p109
    %p111 = scmp.le.s32.totalorder 1, %s9
    %p112 = scmp.lt.s32.totalorder %s9, 3
    %p113 = pnand %p111, %p112
    %p114 = pneg %p113
    // Predicated region
    $region9: #{generator_forward.12} parent=5 // pred_check
      _
    $region10: #{generator_forward.12} parent=5 // pred_check_branch
      %116 = sbr.rel (%p113) target = $region12
    $region11: #{generator_forward.12} parent=5 // pred_region
      %s117 = ssub.s32 %s9, 1
      // Predicated region
      $region13: #{generator_forward.12} parent=11 // pred_check
        %p118 = pneg %p56
      $region14: #{generator_forward.12} parent=11 // pred_check_branch
        %120 = sbr.rel (%p118) target = $region16
      $region15: #{generator_forward.12} parent=11 // pred_region
        _
      $region16: #{generator_forward.12} parent=11 // pred_fallthru
        _
      // Predicated region
      $region17: #{generator_forward.12} parent=11 // pred_check
        %p121 = pneg %p77
      $region18: #{generator_forward.12} parent=11 // pred_check_branch
        %123 = sbr.rel (%p121) target = $region20
      $region19: #{generator_forward.12} parent=11 // pred_region
        _
      $region20: #{generator_forward.12} parent=11 // pred_fallthru
        _
    $region12: #{generator_forward.12} parent=5 // pred_fallthru
      _
    %p124 = scmp.lt.s32.totalorder %s9, 2
    // Predicated region
    $region21: #{generator_forward.12} parent=5 // pred_check
      %p125 = pneg %p124
    $region22: #{generator_forward.12} parent=5 // pred_check_branch
      %127 = sbr.rel (%p125) target = $region24
    $region23: #{generator_forward.12} parent=5 // pred_region
      // Predicated region
      $region25: #{generator_forward.12} parent=23 // pred_check
        %p128 = pneg %p29
      $region26: #{generator_forward.12} parent=23 // pred_check_branch
        %130 = sbr.rel (%p128) target = $region28
      $region27: #{generator_forward.12} parent=23 // pred_region
        %p131 = scmp.lt.s32.totalorder %s9, 1
        %s132 = scalar_select %p131, %s9, 1
        %s133 = smul.addr %s132, 4
        %s134 = smul.addr %s133, 8
        %s135 = scalar_lea.vmem %s0, %s134
      $region28: #{generator_forward.12} parent=23 // pred_fallthru
        _
    $region24: #{generator_forward.12} parent=5 // pred_fallthru
      _
    %p136 = scmp.le.s32.totalorder 1, %s9
    %p137 = scmp.lt.s32.totalorder %s9, 3
    %p138 = pnand %p136, %p137
    %p139 = pneg %p138
    // Predicated region
    $region29: #{generator_forward.12} parent=5 // pred_check
      _
    $region30: #{generator_forward.12} parent=5 // pred_check_branch
      %141 = sbr.rel (%p138) target = $region32
    $region31: #{generator_forward.12} parent=5 // pred_region
      %s142 = ssub.s32 %s9, 1
      %p143 = scmp.lt.s32.totalorder %s14, 1
      %s144 = scalar_select %p143, %s14, 1
      %s145 = smul.addr %s144, 4
      %s146 = smul.addr %s145, 8
      %s147 = scalar_lea.vmem %s0, %s146
      %p148 = pneg %p35
      %p149 = pneg %p32
      %p150 = pneg %p56
      %p151 = pneg %p53
      %p152 = pneg %p77
      %p153 = pneg %p74
      %p154 = pneg %p103
      %p155 = pneg %p100
      %p156 = scmp.lt.s32.totalorder %s14, 1
      %s157 = scalar_select %p156, %s14, 1
      %s158 = smul.addr %s157, 4
      %s159 = smul.addr %s158, 4
      %s160 = scalar_lea.vmem %s3, %s159
      %p161 = scmp.lt.s32.totalorder %s14, 1
      %s162 = scalar_select %p161, %s14, 1
      %s163 = smul.addr %s162, 4
      %s164 = smul.addr %s163, 8
      %s165 = scalar_lea.vmem %s0, %s164
      %p166 = scmp.lt.s32.totalorder %s14, 1
      %s167 = scalar_select %p166, %s14, 1
      %s168 = smul.addr %s167, 4
      %s169 = smul.addr %s168, 4
      %s170 = scalar_lea.vmem %s3, %s169
      %v171 = vld [vmem:[%s165] sm:$0xff]
      %v172 = vld [vmem:[%s165 + $0x8] sm:$0xff]
      %v173 = vld [vmem:[%s165 + $0x10] sm:$0xff]
      %v174 = vld [vmem:[%s165 + $0x18] sm:$0xff]
      %v175 = vld [vmem:[%s1] sm:$0xff]
      %v176 = vld [vmem:[%s1 + $0x8] sm:$0xff]
      %178 = vset.pattern.permute.xlu0 0
      %179 = vperm.xlu0 %178, %v175
      %v180 = vpop.permute.xlu0 %179
      %183 = vset.pattern.permute.xlu0 0
      %184 = vperm.xlu0 %183, %v176
      %v185 = vpop.permute.xlu0 %184
      %v187 = vmul.f32 %v171, %v180
      %v188 = vmul.f32 %v172, %v180
      %v189 = vmul.f32 %v173, %v185
      %v190 = vmul.f32 %v174, %v185
      %v191 = vld [vmem:[%s2] sm:$0xff]
      %v192 = vld [vmem:[%s2 + $0x8] sm:$0xff]
      %194 = vset.pattern.permute.xlu0 0
      %195 = vperm.xlu0 %194, %v191
      %v196 = vpop.permute.xlu0 %195
      %199 = vset.pattern.permute.xlu0 0
      %200 = vperm.xlu0 %199, %v192
      %v201 = vpop.permute.xlu0 %200
      %v203 = vadd.f32 %v187, %v196
      %v204 = vadd.f32 %v188, %v196
      %v205 = vadd.f32 %v189, %v201
      %v206 = vadd.f32 %v190, %v201
      %vm207 = vcmp.ge.f32.partialorder %v203, 0.0
      %vm208 = vcmp.ge.f32.partialorder %v204, 0.0
      %vm209 = vcmp.ge.f32.partialorder %v205, 0.0
      %vm210 = vcmp.ge.f32.partialorder %v206, 0.0
      %v211 = vmul.f32 %v203, 0.01
      %v212 = vmul.f32 %v204, 0.01
      %v213 = vmul.f32 %v205, 0.01
      %v214 = vmul.f32 %v206, 0.01
      %v215 = vsel %vm207, %v203, %v211
      %v216 = vsel %vm208, %v204, %v212
      %v217 = vsel %vm209, %v205, %v213
      %v218 = vsel %vm210, %v206, %v214
      %v219 = vpack.c.bf16 %v217, %v215
      %v220 = vpack.c.bf16 %v218, %v216
      %v223 = vunpack.c.l.b16 %v219
      %v224 = vunpack.c.l.b16 %v220
      %v225 = vunpack.c.h.b16 %v219
      %v226 = vunpack.c.h.b16 %v220
      %v227 = vpack.c.b16 %v224, %v223
      %v228 = vpack.c.b16 %v226, %v225
      %231 = vst [vmem:[%s170] sm:$0xff] %v227
      %232 = vst [vmem:[%s170 + $0x8] sm:$0xff] %v228
      %p233 = scmp.lt.s32.totalorder %s14, 1
      %s234 = scalar_select %p233, %s14, 1
      %s235 = smul.addr %s234, 4
      %s236 = smul.addr %s235, 4
      %s237 = scalar_lea.vmem %s3, %s236
      // Predicated region
      $region33: #{generator_forward.12} parent=31 // pred_check
        %p238 = pneg %p100
      $region34: #{generator_forward.12} parent=31 // pred_check_branch
        %240 = sbr.rel (%p238) target = $region36
      $region35: #{generator_forward.12} parent=31 // pred_region
        _
      $region36: #{generator_forward.12} parent=31 // pred_fallthru
        _
    $region32: #{generator_forward.12} parent=5 // pred_fallthru
      _
    %p241 = scmp.le.s32.totalorder 2, %s9
    // Predicated region
    $region37: #{generator_forward.12} parent=5 // pred_check
      %p242 = pneg %p241
    $region38: #{generator_forward.12} parent=5 // pred_check_branch
      %244 = sbr.rel (%p242) target = $region40
    $region39: #{generator_forward.12} parent=5 // pred_region
      %s245 = ssub.s32 %s9, 2
      // Predicated region
      $region41: #{generator_forward.12} parent=39 // pred_check
        %p246 = pneg %p106
      $region42: #{generator_forward.12} parent=39 // pred_check_branch
        %248 = sbr.rel (%p246) target = $region44
      $region43: #{generator_forward.12} parent=39 // pred_region
        %p249 = scmp.lt.s32.totalorder %s15, 1
        %s250 = scalar_select %p249, %s15, 1
        %s251 = smul.addr %s250, 4
        %s252 = smul.addr %s251, 4
        %s253 = scalar_lea.vmem %s3, %s252
      $region44: #{generator_forward.12} parent=39 // pred_fallthru
        _
    $region40: #{generator_forward.12} parent=5 // pred_fallthru
      _
  $region6: #{generator_forward.12} parent=0 // loop_footer
    %s13 = sadd.s32 1, %s9
  $region7: #{generator_forward.12} parent=0 // loop_footer_branch
    %8 = sbr.rel target = $region3
  $region8: #{generator_forward.12} parent=0 // loop_exit
    _

// kernel: generator_forward.11
$region0: #{generator_forward.11}
  #allocation0 [shape = 'u32[]', space=smem, size = 0x4, offset = 0x4, fixed_abs, tag = 'smem constant byte address 0x4 - core index']
  #allocation1 [shape = 'u32[144,128]{1,0:T(1,128)}', space=vmem, size = 0x12000, scoped, tag = 'internal scratch']
  %s0 = inlined_call_operand.vmem [shape: bf16[2,32,384], index: 0, kind: input, shape index: {}]
  %s1 = inlined_call_operand.vmem [shape: bf16[9,16,32], index: 1, kind: input, shape index: {}]
  %s2 = inlined_call_operand.vmem [shape: f32[1,256], index: 2, kind: input, shape index: {}]
  %s3 = inlined_call_operand.vmem [shape: f32[2,16,256], index: 3, kind: output, shape index: {0}]
  %s4 = inlined_call_operand.vmem [shape: f32[2,16,1], index: 4, kind: output, shape index: {1}]
  %s5 = inlined_call_operand.vmem [shape: f32[2,16,1], index: 5, kind: output, shape index: {2}]
  %6 = xla_tuple %s3, %s4, %s5
  %s7 = sld [smem:[#allocation0]]
  $region61: #{generator_forward.11} parent=0
    _
  %s9 = ssub.s32 1, %s7
  %s10 = scalar_select 0, %s9, %s7
  loop: start=0, step=1, limit=4
  $region2: #{generator_forward.11} parent=0 // loop_pre_header
    _
  $region3: #{generator_forward.11} parent=0 // loop_header
    %s12 = sphi 0, %s16
    %p13 = scmp.ge.s32.totalorder %s12, 4
    %s22 = sphi 0, %s24
    %s25 = sphi 0, %s22
    %s26 = sphi 0, %s25
    %s42 = sphi 0, %s26
    %s46 = sphi 0, %s46
    %s48 = sphi 0, %s46
    %s49 = sphi 0, %s48
    %s63 = sphi 0, %s49
    %s67 = sphi 0, %s67
    %s69 = sphi 0, %s67
    %s70 = sphi 0, %s69
    %s84 = sphi 0, %s70
    %s90 = sphi 0, %s92
    %s93 = sphi 0, %s90
    %s94 = sphi 0, %s93
    %s110 = sphi 0, %s94
    %s116 = sphi 0, %s118
    %s119 = sphi 0, %s116
    %s120 = sphi 0, %s119
    %s136 = sphi 0, %s120
    %s142 = sphi 0, %s144
    %s145 = sphi 0, %s142
    %s146 = sphi 0, %s145
    %s162 = sphi 0, %s146
  $region4: #{generator_forward.11} parent=0 // loop_header_branch
    %15 = sbr.rel (%p13) target = $region8
  $region5: #{generator_forward.11} parent=0 // loop_body
    %s17 = ssub.s32 %s12, 1
    %s18 = ssub.s32 %s12, 2
    %s19 = sadd.s32 %s12, 1
    %s20 = ssub.s32 %s12, %s19
    %p21 = scmp.eq.s32.totalorder %s20, 0
    %s23 = sadd.s32 %s22, 1
    %s24 = scalar_select %p21, %s22, %s23
    %p27 = pneg %p21
    %p28 = scmp.eq.s32.totalorder %s12, 1
    %p29 = por %p27, %p28
    %p30 = scmp.ne.s32.totalorder %s22, %s25
    %p31 = scmp.eq.s32.totalorder %s12, 0
    %p32 = por %p30, %p31
    %p33 = scmp.ne.s32.totalorder %s22, %s25
    %p34 = scmp.eq.s32.totalorder %s17, 1
    %p35 = por %p33, %p34
    %p36 = scmp.ne.s32.totalorder %s25, %s26
    %p37 = scmp.eq.s32.totalorder %s17, 0
    %p38 = por %p36, %p37
    %p39 = scmp.ne.s32.totalorder %s25, %s26
    %p40 = scmp.eq.s32.totalorder %s18, 1
    %p41 = por %p39, %p40
    %p43 = scmp.ne.s32.totalorder %s26, %s42
    %p44 = scmp.eq.s32.totalorder %s18, 0
    %p45 = por %p43, %p44
    %s47 = sadd.s32 %s46, 1
    %p50 = scmp.eq.s32.totalorder %s12, 1
    %p51 = scmp.ne.s32.totalorder %s46, %s48
    %p52 = scmp.eq.s32.totalorder %s12, 0
    %p53 = por %p51, %p52
    %p54 = scmp.ne.s32.totalorder %s46, %s48
    %p55 = scmp.eq.s32.totalorder %s17, 1
    %p56 = por %p54, %p55
    %p57 = scmp.ne.s32.totalorder %s48, %s49
    %p58 = scmp.eq.s32.totalorder %s17, 0
    %p59 = por %p57, %p58
    %p60 = scmp.ne.s32.totalorder %s48, %s49
    %p61 = scmp.eq.s32.totalorder %s18, 1
    %p62 = por %p60, %p61
    %p64 = scmp.ne.s32.totalorder %s49, %s63
    %p65 = scmp.eq.s32.totalorder %s18, 0
    %p66 = por %p64, %p65
    %s68 = sadd.s32 %s67, 1
    %p71 = scmp.eq.s32.totalorder %s12, 1
    %p72 = scmp.ne.s32.totalorder %s67, %s69
    %p73 = scmp.eq.s32.totalorder %s12, 0
    %p74 = por %p72, %p73
    %p75 = scmp.ne.s32.totalorder %s67, %s69
    %p76 = scmp.eq.s32.totalorder %s17, 1
    %p77 = por %p75, %p76
    %p78 = scmp.ne.s32.totalorder %s69, %s70
    %p79 = scmp.eq.s32.totalorder %s17, 0
    %p80 = por %p78, %p79
    %p81 = scmp.ne.s32.totalorder %s69, %s70
    %p82 = scmp.eq.s32.totalorder %s18, 1
    %p83 = por %p81, %p82
    %p85 = scmp.ne.s32.totalorder %s70, %s84
    %p86 = scmp.eq.s32.totalorder %s18, 0
    %p87 = por %p85, %p86
    %s88 = ssub.s32 %s12, %s19
    %p89 = scmp.eq.s32.totalorder %s88, 0
    %s91 = sadd.s32 %s90, 1
    %s92 = scalar_select %p89, %s90, %s91
    %p95 = pneg %p89
    %p96 = scmp.eq.s32.totalorder %s12, 1
    %p97 = por %p95, %p96
    %p98 = scmp.ne.s32.totalorder %s90, %s93
    %p99 = scmp.eq.s32.totalorder %s12, 0
    %p100 = por %p98, %p99
    %p101 = scmp.ne.s32.totalorder %s90, %s93
    %p102 = scmp.eq.s32.totalorder %s17, 1
    %p103 = por %p101, %p102
    %p104 = scmp.ne.s32.totalorder %s93, %s94
    %p105 = scmp.eq.s32.totalorder %s17, 0
    %p106 = por %p104, %p105
    %p107 = scmp.ne.s32.totalorder %s93, %s94
    %p108 = scmp.eq.s32.totalorder %s18, 1
    %p109 = por %p107, %p108
    %p111 = scmp.ne.s32.totalorder %s94, %s110
    %p112 = scmp.eq.s32.totalorder %s18, 0
    %p113 = por %p111, %p112
    %s114 = ssub.s32 %s12, %s19
    %p115 = scmp.eq.s32.totalorder %s114, 0
    %s117 = sadd.s32 %s116, 1
    %s118 = scalar_select %p115, %s116, %s117
    %p121 = pneg %p115
    %p122 = scmp.eq.s32.totalorder %s12, 1
    %p123 = por %p121, %p122
    %p124 = scmp.ne.s32.totalorder %s116, %s119
    %p125 = scmp.eq.s32.totalorder %s12, 0
    %p126 = por %p124, %p125
    %p127 = scmp.ne.s32.totalorder %s116, %s119
    %p128 = scmp.eq.s32.totalorder %s17, 1
    %p129 = por %p127, %p128
    %p130 = scmp.ne.s32.totalorder %s119, %s120
    %p131 = scmp.eq.s32.totalorder %s17, 0
    %p132 = por %p130, %p131
    %p133 = scmp.ne.s32.totalorder %s119, %s120
    %p134 = scmp.eq.s32.totalorder %s18, 1
    %p135 = por %p133, %p134
    %p137 = scmp.ne.s32.totalorder %s120, %s136
    %p138 = scmp.eq.s32.totalorder %s18, 0
    %p139 = por %p137, %p138
    %s140 = ssub.s32 %s12, %s19
    %p141 = scmp.eq.s32.totalorder %s140, 0
    %s143 = sadd.s32 %s142, 1
    %s144 = scalar_select %p141, %s142, %s143
    %p147 = pneg %p141
    %p148 = scmp.eq.s32.totalorder %s12, 1
    %p149 = por %p147, %p148
    %p150 = scmp.ne.s32.totalorder %s142, %s145
    %p151 = scmp.eq.s32.totalorder %s12, 0
    %p152 = por %p150, %p151
    %p153 = scmp.ne.s32.totalorder %s142, %s145
    %p154 = scmp.eq.s32.totalorder %s17, 1
    %p155 = por %p153, %p154
    %p156 = scmp.ne.s32.totalorder %s145, %s146
    %p157 = scmp.eq.s32.totalorder %s17, 0
    %p158 = por %p156, %p157
    %p159 = scmp.ne.s32.totalorder %s145, %s146
    %p160 = scmp.eq.s32.totalorder %s18, 1
    %p161 = por %p159, %p160
    %p163 = scmp.ne.s32.totalorder %s146, %s162
    %p164 = scmp.eq.s32.totalorder %s18, 0
    %p165 = por %p163, %p164
    %p166 = scmp.le.s32.totalorder 1, %s12
    %p167 = scmp.lt.s32.totalorder %s12, 3
    %p168 = pnand %p166, %p167
    %p169 = pneg %p168
    // Predicated region
    $region9: #{generator_forward.11} parent=5 // pred_check
      _
    $region10: #{generator_forward.11} parent=5 // pred_check_branch
      %171 = sbr.rel (%p168) target = $region12
    $region11: #{generator_forward.11} parent=5 // pred_region
      %s172 = ssub.s32 %s12, 1
      // Predicated region
      $region13: #{generator_forward.11} parent=11 // pred_check
        %p173 = pneg %p59
      $region14: #{generator_forward.11} parent=11 // pred_check_branch
        %175 = sbr.rel (%p173) target = $region16
      $region15: #{generator_forward.11} parent=11 // pred_region
        _
      $region16: #{generator_forward.11} parent=11 // pred_fallthru
        _
      // Predicated region
      $region17: #{generator_forward.11} parent=11 // pred_check
        %p176 = pneg %p80
      $region18: #{generator_forward.11} parent=11 // pred_check_branch
        %178 = sbr.rel (%p176) target = $region20
      $region19: #{generator_forward.11} parent=11 // pred_region
        _
      $region20: #{generator_forward.11} parent=11 // pred_fallthru
        _
    $region12: #{generator_forward.11} parent=5 // pred_fallthru
      _
    %p179 = scmp.lt.s32.totalorder %s12, 2
    // Predicated region
    $region21: #{generator_forward.11} parent=5 // pred_check
      %p180 = pneg %p179
    $region22: #{generator_forward.11} parent=5 // pred_check_branch
      %182 = sbr.rel (%p180) target = $region24
    $region23: #{generator_forward.11} parent=5 // pred_region
      // Predicated region
      $region25: #{generator_forward.11} parent=23 // pred_check
        %p183 = pneg %p32
      $region26: #{generator_forward.11} parent=23 // pred_check_branch
        %185 = sbr.rel (%p183) target = $region28
      $region27: #{generator_forward.11} parent=23 // pred_region
        %p186 = scmp.lt.s32.totalorder %s12, 1
        %s187 = scalar_select %p186, %s12, 1
        %s188 = smul.addr %s187, 12
        %s189 = smul.addr %s188, 4
        %s190 = scalar_lea.vmem %s0, %s189
      $region28: #{generator_forward.11} parent=23 // pred_fallthru
        _
    $region24: #{generator_forward.11} parent=5 // pred_fallthru
      _
    %p191 = scmp.le.s32.totalorder 1, %s12
    %p192 = scmp.lt.s32.totalorder %s12, 3
    %p193 = pnand %p191, %p192
    %p194 = pneg %p193
    // Predicated region
    $region29: #{generator_forward.11} parent=5 // pred_check
      _
    $region30: #{generator_forward.11} parent=5 // pred_check_branch
      %196 = sbr.rel (%p193) target = $region32
    $region31: #{generator_forward.11} parent=5 // pred_region
      %s197 = ssub.s32 %s12, 1
      %p198 = scmp.lt.s32.totalorder %s17, 1
      %s199 = scalar_select %p198, %s17, 1
      %s200 = smul.addr %s199, 12
      %s201 = smul.addr %s200, 4
      %s202 = scalar_lea.vmem %s0, %s201
      %p203 = pneg %p38
      %p204 = pneg %p35
      %p205 = pneg %p59
      %p206 = pneg %p56
      %p207 = pneg %p80
      %p208 = pneg %p77
      %p209 = pneg %p106
      %p210 = pneg %p103
      %p211 = scmp.lt.s32.totalorder %s17, 1
      %s212 = scalar_select %p211, %s17, 1
      %s213 = smul.addr %s212, 4
      %s214 = smul.addr %s213, 8
      %s215 = scalar_lea.vmem %s3, %s214
      %p216 = pneg %p132
      %p217 = pneg %p129
      %p218 = scmp.lt.s32.totalorder %s17, 1
      %s219 = scalar_select %p218, %s17, 1
      %s220 = smul.addr %s219, 2
      %s221 = smul.addr %s220, 8
      %s222 = scalar_lea.vmem %s4, %s221
      %p223 = pneg %p158
      %p224 = pneg %p155
      %p225 = scmp.lt.s32.totalorder %s17, 1
      %s226 = scalar_select %p225, %s17, 1
      %s227 = smul.addr %s226, 2
      %s228 = smul.addr %s227, 8
      %s229 = scalar_lea.vmem %s5, %s228
      %p230 = scmp.lt.s32.totalorder %s17, 1
      %s231 = scalar_select %p230, %s17, 1
      %s232 = smul.addr %s231, 12
      %s233 = smul.addr %s232, 4
      %s234 = scalar_lea.vmem %s0, %s233
      %p235 = scmp.lt.s32.totalorder %s17, 1
      %s236 = scalar_select %p235, %s17, 1
      %s237 = smul.addr %s236, 4
      %s238 = smul.addr %s237, 8
      %s239 = scalar_lea.vmem %s3, %s238
      %p240 = scmp.lt.s32.totalorder %s17, 1
      %s241 = scalar_select %p240, %s17, 1
      %s242 = smul.addr %s241, 2
      %s243 = smul.addr %s242, 8
      %s244 = scalar_lea.vmem %s4, %s243
      %p245 = scmp.lt.s32.totalorder %s17, 1
      %s246 = scalar_select %p245, %s17, 1
      %s247 = smul.addr %s246, 2
      %s248 = smul.addr %s247, 8
      %s249 = scalar_lea.vmem %s5, %s248
      %v251 = vld [vmem:[%s1] sm:$0xf]
      %v252 = vld [vmem:[%s1 + $0x4] sm:$0xf]
      %v253 = vld [vmem:[%s234] sm:$0xff]
      %v254 = vld [vmem:[%s234 + $0xc] sm:$0xff]
      %v255 = vld [vmem:[%s234 + $0x18] sm:$0xff]
      %v256 = vld [vmem:[%s234 + $0x24] sm:$0xff]
      %s257 = scalar_lea.vmem %s1, 8
      %v258 = vld [vmem:[%s257] sm:$0xf]
      %v259 = vld [vmem:[%s257 + $0x4] sm:$0xf]
      %v260 = vld [vmem:[%s234] sm:$0xff]
      %v261 = vld [vmem:[%s234 + $0x8] sm:$0xf]
      %v262 = vld [vmem:[%s234 + $0xc] sm:$0xff]
      %v263 = vld [vmem:[%s234 + $0x14] sm:$0xf]
      %v264 = vld [vmem:[%s234 + $0x18] sm:$0xff]
      %v265 = vld [vmem:[%s234 + $0x20] sm:$0xf]
      %v266 = vld [vmem:[%s234 + $0x24] sm:$0xff]
      %v267 = vld [vmem:[%s234 + $0x2c] sm:$0xf]
      %v270 = vunpack.c.l.b16 %v258
      %v271 = vunpack.c.l.b16 %v259
      %v272 = vpack.c.b16 %v271, %v270
      %v281 = vunpack.c.l.b16 %v260
      %v282 = vunpack.c.h.b16 %v260
      %v283 = vunpack.c.l.b16 %v261
      %v284 = vunpack.c.l.b16 %v262
      %v285 = vunpack.c.h.b16 %v262
      %v286 = vunpack.c.l.b16 %v263
      %v287 = vunpack.c.l.b16 %v264
      %v288 = vunpack.c.h.b16 %v264
      %v289 = vunpack.c.l.b16 %v265
      %v290 = vunpack.c.l.b16 %v266
      %v291 = vunpack.c.h.b16 %v266
      %v292 = vunpack.c.l.b16 %v267
      %v293 = vpack.c.b16 %v284, %v281
      %v294 = vpack.c.b16 %v285, %v282
      %v295 = vpack.c.b16 %v286, %v283
      %v296 = vpack.c.b16 %v290, %v287
      %v297 = vpack.c.b16 %v291, %v288
      %v298 = vpack.c.b16 %v292, %v289
      %299 = vrot.lane.b32.xlu0 %v293, 127
      %v300 = vpop.permute.xlu0 %299
      %301 = vrot.lane.b32.xlu0 %v294, 127
      %v302 = vpop.permute.xlu0 %301
      %303 = vrot.lane.b32.xlu0 %v295, 127
      %v304 = vpop.permute.xlu0 %303
      %305 = vrot.lane.b32.xlu0 %v296, 127
      %v306 = vpop.permute.xlu0 %305
      %307 = vrot.lane.b32.xlu0 %v297, 127
      %v308 = vpop.permute.xlu0 %307
      %309 = vrot.lane.b32.xlu0 %v298, 127
      %v310 = vpop.permute.xlu0 %309
      %vm311 = vcmask 1039360
      %v312 = vsel %vm311, %v300, %v302
      %v313 = vsel %vm311, %v302, %v304
      %v314 = vsel %vm311, %v306, %v308
      %v315 = vsel %vm311, %v308, %v310
      %vm320 = vcmask 261120
      %v322 = vsel %vm320, %v272, 0
      %324 = vmatprep.subr.bf16.mxu0 %v313
      %325 = vmatpush1.bf16.msra.mxu0 %v312
      %326 = vmatprep.subr.bf16.mxu0 %v315
      %327 = vmatpush1.bf16.msra.mxu0 %v314
      %328 = vmatprep.subr.bf16.mxu0 0
      %329 = vmatpush1.bf16.msra.mxu0 0
      %330 = vmatprep.subr.bf16.mxu0 0
      %331 = vmatpush1.bf16.msra.mxu0 0
      %332 = vmatprep.subr.bf16.mxu0 0
      %333 = vmatpush1.bf16.msra.mxu0 0
      %334 = vmatprep.subr.bf16.mxu0 0
      %335 = vmatpush1.bf16.msra.mxu0 0
      %336 = vmatprep.subr.bf16.mxu0 0
      %337 = vmatpush1.bf16.msra.mxu0 0
      %338 = vmatprep.subr.bf16.mxu0 0
      %339 = vmatpush1.bf16.msra.mxu0 0
      %340 = vmatprep.subr.bf16.mxu0 0
      %341 = vmatpush1.bf16.msra.mxu0 0
      %342 = vmatprep.subr.bf16.mxu0 0
      %343 = vmatpush1.bf16.msra.mxu0 0
      %344 = vmatprep.subr.bf16.mxu0 0
      %345 = vmatpush1.bf16.msra.mxu0 0
      %346 = vmatprep.subr.bf16.mxu0 0
      %347 = vmatpush1.bf16.msra.mxu0 0
      %348 = vmatprep.subr.bf16.mxu0 0
      %349 = vmatpush1.bf16.msra.mxu0 0
      %350 = vmatprep.subr.bf16.mxu0 0
      %351 = vmatpush1.bf16.msra.mxu0 0
      %352 = vmatprep.subr.bf16.mxu0 0
      %353 = vmatpush1.bf16.msra.mxu0 0
      %354 = vmatprep.subr.bf16.mxu0 0
      %355 = vmatpush1.bf16.msra.mxu0 0
      %356 = vmatprep.mubr.bf16.mxu0 0
      %357 = vmatmul.mubr.bf16.gmra.mrb[0].mxu0 %v322
      %v358 = vpop.f32.mrb[0].mxu0
      %v359 = vadd.f32 0.0, %v358
      %v360 = vpop.f32.mrb[0].mxu0
      %v361 = vadd.f32 0.0, %v360
      %v362 = vpop.f32.mrb[0].mxu0
      %v363 = vadd.f32 0.0, %v362
      %v364 = vpop.f32.mrb[0].mxu0
      %v365 = vadd.f32 0.0, %v364
      %366 = vdwg.mxu0
      %v369 = vunpack.c.l.b16 %v251
      %v370 = vunpack.c.l.b16 %v252
      %v371 = vpack.c.b16 %v370, %v369
      %v376 = vunpack.c.l.b16 %v253
      %v377 = vunpack.c.h.b16 %v253
      %v378 = vunpack.c.l.b16 %v254
      %v379 = vunpack.c.h.b16 %v254
      %v380 = vunpack.c.l.b16 %v255
      %v381 = vunpack.c.h.b16 %v255
      %v382 = vunpack.c.l.b16 %v256
      %v383 = vunpack.c.h.b16 %v256
      %v384 = vpack.c.b16 %v378, %v376
      %v385 = vpack.c.b16 %v379, %v377
      %v386 = vpack.c.b16 %v382, %v380
      %v387 = vpack.c.b16 %v383, %v381
      %v393 = vsel %vm320, %v371, 0
      %395 = vmatprep.subr.bf16.mxu0 %v385
      %396 = vmatpush1.bf16.msra.mxu0 %v384
      %397 = vmatprep.subr.bf16.mxu0 %v387
      %398 = vmatpush1.bf16.msra.mxu0 %v386
      %399 = vmatprep.subr.bf16.mxu0 0
      %400 = vmatpush1.bf16.msra.mxu0 0
      %401 = vmatprep.subr.bf16.mxu0 0
      %402 = vmatpush1.bf16.msra.mxu0 0
      %403 = vmatprep.subr.bf16.mxu0 0
      %404 = vmatpush1.bf16.msra.mxu0 0
      %405 = vmatprep.subr.bf16.mxu0 0
      %406 = vmatpush1.bf16.msra.mxu0 0
      %407 = vmatprep.subr.bf16.mxu0 0
      %408 = vmatpush1.bf16.msra.mxu0 0
      %409 = vmatprep.subr.bf16.mxu0 0
      %410 = vmatpush1.bf16.msra.mxu0 0
      %411 = vmatprep.subr.bf16.mxu0 0
      %412 = vmatpush1.bf16.msra.mxu0 0
      %413 = vmatprep.subr.bf16.mxu0 0
      %414 = vmatpush1.bf16.msra.mxu0 0
      %415 = vmatprep.subr.bf16.mxu0 0
      %416 = vmatpush1.bf16.msra.mxu0 0
      %417 = vmatprep.subr.bf16.mxu0 0
      %418 = vmatpush1.bf16.msra.mxu0 0
      %419 = vmatprep.subr.bf16.mxu0 0
      %420 = vmatpush1.bf16.msra.mxu0 0
      %421 = vmatprep.subr.bf16.mxu0 0
      %422 = vmatpush1.bf16.msra.mxu0 0
      %423 = vmatprep.subr.bf16.mxu0 0
      %424 = vmatpush1.bf16.msra.mxu0 0
      %425 = vmatprep.subr.bf16.mxu0 0
      %426 = vmatpush1.bf16.msra.mxu0 0
      %427 = vmatprep.mubr.bf16.mxu0 0
      %428 = vmatmul.mubr.bf16.gmra.mrb[0].mxu0 %v393
      %v429 = vpop.f32.mrb[0].mxu0
      %v430 = vadd.f32 %v359, %v429
      %v431 = vpop.f32.mrb[0].mxu0
      %v432 = vadd.f32 %v361, %v431
      %v433 = vpop.f32.mrb[0].mxu0
      %v434 = vadd.f32 %v363, %v433
      %v435 = vpop.f32.mrb[0].mxu0
      %v436 = vadd.f32 %v365, %v435
      %437 = vdwg.mxu0
      %s438 = scalar_lea.vmem %s1, 16
      %v439 = vld [vmem:[%s438] sm:$0xf]
      %v440 = vld [vmem:[%s438 + $0x4] sm:$0xf]
      %v443 = vunpack.c.l.b16 %v439
      %v444 = vunpack.c.l.b16 %v440
      %v445 = vpack.c.b16 %v444, %v443
      %446 = vrot.lane.b32.xlu0 %v293, 126
      %v447 = vpop.permute.xlu0 %446
      %448 = vrot.lane.b32.xlu0 %v294, 126
      %v449 = vpop.permute.xlu0 %448
      %450 = vrot.lane.b32.xlu0 %v295, 126
      %v451 = vpop.permute.xlu0 %450
      %452 = vrot.lane.b32.xlu0 %v296, 126
      %v453 = vpop.permute.xlu0 %452
      %454 = vrot.lane.b32.xlu0 %v297, 126
      %v455 = vpop.permute.xlu0 %454
      %456 = vrot.lane.b32.xlu0 %v298, 126
      %v457 = vpop.permute.xlu0 %456
      %vm458 = vcmask 1031168
      %v459 = vsel %vm458, %v447, %v449
      %v460 = vsel %vm458, %v449, %v451
      %v461 = vsel %vm458, %v453, %v455
      %v462 = vsel %vm458, %v455, %v457
      %v468 = vsel %vm320, %v445, 0
      %470 = vmatprep.subr.bf16.mxu0 %v460
      %471 = vmatpush1.bf16.msra.mxu0 %v459
      %472 = vmatprep.subr.bf16.mxu0 %v462
      %473 = vmatpush1.bf16.msra.mxu0 %v461
      %474 = vmatprep.subr.bf16.mxu0 0
      %475 = vmatpush1.bf16.msra.mxu0 0
      %476 = vmatprep.subr.bf16.mxu0 0
      %477 = vmatpush1.bf16.msra.mxu0 0
      %478 = vmatprep.subr.bf16.mxu0 0
      %479 = vmatpush1.bf16.msra.mxu0 0
      %480 = vmatprep.subr.bf16.mxu0 0
      %481 = vmatpush1.bf16.msra.mxu0 0
      %482 = vmatprep.subr.bf16.mxu0 0
      %483 = vmatpush1.bf16.msra.mxu0 0
      %484 = vmatprep.subr.bf16.mxu0 0
      %485 = vmatpush1.bf16.msra.mxu0 0
      %486 = vmatprep.subr.bf16.mxu0 0
      %487 = vmatpush1.bf16.msra.mxu0 0
      %488 = vmatprep.subr.bf16.mxu0 0
      %489 = vmatpush1.bf16.msra.mxu0 0
      %490 = vmatprep.subr.bf16.mxu0 0
      %491 = vmatpush1.bf16.msra.mxu0 0
      %492 = vmatprep.subr.bf16.mxu0 0
      %493 = vmatpush1.bf16.msra.mxu0 0
      %494 = vmatprep.subr.bf16.mxu0 0
      %495 = vmatpush1.bf16.msra.mxu0 0
      %496 = vmatprep.subr.bf16.mxu0 0
      %497 = vmatpush1.bf16.msra.mxu0 0
      %498 = vmatprep.subr.bf16.mxu0 0
      %499 = vmatpush1.bf16.msra.mxu0 0
      %500 = vmatprep.subr.bf16.mxu0 0
      %501 = vmatpush1.bf16.msra.mxu0 0
      %502 = vmatprep.mubr.bf16.mxu0 0
      %503 = vmatmul.mubr.bf16.gmra.mrb[0].mxu0 %v468
      %v504 = vpop.f32.mrb[0].mxu0
      %v505 = vadd.f32 0.0, %v504
      %v506 = vpop.f32.mrb[0].mxu0
      %v507 = vadd.f32 0.0, %v506
      %v508 = vpop.f32.mrb[0].mxu0
      %v509 = vadd.f32 0.0, %v508
      %v510 = vpop.f32.mrb[0].mxu0
      %v511 = vadd.f32 0.0, %v510
      %512 = vdwg.mxu0
      %v513 = vadd.f32 %v430, %v505
      %v514 = vadd.f32 %v432, %v507
      %v515 = vadd.f32 %v434, %v509
      %v516 = vadd.f32 %v436, %v511
      %s517 = scalar_lea.vmem %s1, 24
      %v518 = vld [vmem:[%s517] sm:$0xf]
      %v519 = vld [vmem:[%s517 + $0x4] sm:$0xf]
      %v522 = vunpack.c.l.b16 %v518
      %v523 = vunpack.c.l.b16 %v519
      %v524 = vpack.c.b16 %v523, %v522
      %525 = vrot.lane.b32.xlu0 %v293, 112
      %v526 = vpop.permute.xlu0 %525
      %527 = vrot.lane.b32.xlu0 %v294, 112
      %v528 = vpop.permute.xlu0 %527
      %529 = vrot.lane.b32.xlu0 %v295, 112
      %v530 = vpop.permute.xlu0 %529
      %531 = vrot.lane.b32.xlu0 %v296, 112
      %v532 = vpop.permute.xlu0 %531
      %533 = vrot.lane.b32.xlu0 %v297, 112
      %v534 = vpop.permute.xlu0 %533
      %535 = vrot.lane.b32.xlu0 %v298, 112
      %v536 = vpop.permute.xlu0 %535
      %vm537 = vcmask 916480
      %v538 = vsel %vm537, %v526, %v528
      %v539 = vsel %vm537, %v528, %v530
      %v540 = vsel %vm537, %v532, %v534
      %v541 = vsel %vm537, %v534, %v536
      %v547 = vsel %vm320, %v524, 0
      %549 = vmatprep.subr.bf16.mxu0 %v539
      %550 = vmatpush1.bf16.msra.mxu0 %v538
      %551 = vmatprep.subr.bf16.mxu0 %v541
      %552 = vmatpush1.bf16.msra.mxu0 %v540
      %553 = vmatprep.subr.bf16.mxu0 0
      %554 = vmatpush1.bf16.msra.mxu0 0
      %555 = vmatprep.subr.bf16.mxu0 0
      %556 = vmatpush1.bf16.msra.mxu0 0
      %557 = vmatprep.subr.bf16.mxu0 0
      %558 = vmatpush1.bf16.msra.mxu0 0
      %559 = vmatprep.subr.bf16.mxu0 0
      %560 = vmatpush1.bf16.msra.mxu0 0
      %561 = vmatprep.subr.bf16.mxu0 0
      %562 = vmatpush1.bf16.msra.mxu0 0
      %563 = vmatprep.subr.bf16.mxu0 0
      %564 = vmatpush1.bf16.msra.mxu0 0
      %565 = vmatprep.subr.bf16.mxu0 0
      %566 = vmatpush1.bf16.msra.mxu0 0
      %567 = vmatprep.subr.bf16.mxu0 0
      %568 = vmatpush1.bf16.msra.mxu0 0
      %569 = vmatprep.subr.bf16.mxu0 0
      %570 = vmatpush1.bf16.msra.mxu0 0
      %571 = vmatprep.subr.bf16.mxu0 0
      %572 = vmatpush1.bf16.msra.mxu0 0
      %573 = vmatprep.subr.bf16.mxu0 0
      %574 = vmatpush1.bf16.msra.mxu0 0
      %575 = vmatprep.subr.bf16.mxu0 0
      %576 = vmatpush1.bf16.msra.mxu0 0
      %577 = vmatprep.subr.bf16.mxu0 0
      %578 = vmatpush1.bf16.msra.mxu0 0
      %579 = vmatprep.subr.bf16.mxu0 0
      %580 = vmatpush1.bf16.msra.mxu0 0
      %581 = vmatprep.mubr.bf16.mxu0 0
      %582 = vmatmul.mubr.bf16.gmra.mrb[0].mxu0 %v547
      %v583 = vpop.f32.mrb[0].mxu0
      %v584 = vadd.f32 0.0, %v583
      %v585 = vpop.f32.mrb[0].mxu0
      %v586 = vadd.f32 0.0, %v585
      %v587 = vpop.f32.mrb[0].mxu0
      %v588 = vadd.f32 0.0, %v587
      %v589 = vpop.f32.mrb[0].mxu0
      %v590 = vadd.f32 0.0, %v589
      %591 = vdwg.mxu0
      %v592 = vadd.f32 %v513, %v584
      %v593 = vadd.f32 %v514, %v586
      %v594 = vadd.f32 %v515, %v588
      %v595 = vadd.f32 %v516, %v590
      %s596 = scalar_lea.vmem %s1, 32
      %v597 = vld [vmem:[%s596] sm:$0xf]
      %v598 = vld [vmem:[%s596 + $0x4] sm:$0xf]
      %v601 = vunpack.c.l.b16 %v597
      %v602 = vunpack.c.l.b16 %v598
      %v603 = vpack.c.b16 %v602, %v601
      %604 = vrot.lane.b32.xlu0 %v293, 111
      %v605 = vpop.permute.xlu0 %604
      %606 = vrot.lane.b32.xlu0 %v294, 111
      %v607 = vpop.permute.xlu0 %606
      %608 = vrot.lane.b32.xlu0 %v295, 111
      %v609 = vpop.permute.xlu0 %608
      %610 = vrot.lane.b32.xlu0 %v296, 111
      %v611 = vpop.permute.xlu0 %610
      %612 = vrot.lane.b32.xlu0 %v297, 111
      %v613 = vpop.permute.xlu0 %612
      %614 = vrot.lane.b32.xlu0 %v298, 111
      %v615 = vpop.permute.xlu0 %614
      %vm616 = vcmask 908288
      %v617 = vsel %vm616, %v605, %v607
      %v618 = vsel %vm616, %v607, %v609
      %v619 = vsel %vm616, %v611, %v613
      %v620 = vsel %vm616, %v613, %v615
      %v626 = vsel %vm320, %v603, 0
      %628 = vmatprep.subr.bf16.mxu0 %v618
      %629 = vmatpush1.bf16.msra.mxu0 %v617
      %630 = vmatprep.subr.bf16.mxu0 %v620
      %631 = vmatpush1.bf16.msra.mxu0 %v619
      %632 = vmatprep.subr.bf16.mxu0 0
      %633 = vmatpush1.bf16.msra.mxu0 0
      %634 = vmatprep.subr.bf16.mxu0 0
      %635 = vmatpush1.bf16.msra.mxu0 0
      %636 = vmatprep.subr.bf16.mxu0 0
      %637 = vmatpush1.bf16.msra.mxu0 0
      %638 = vmatprep.subr.bf16.mxu0 0
      %639 = vmatpush1.bf16.msra.mxu0 0
      %640 = vmatprep.subr.bf16.mxu0 0
      %641 = vmatpush1.bf16.msra.mxu0 0
      %642 = vmatprep.subr.bf16.mxu0 0
      %643 = vmatpush1.bf16.msra.mxu0 0
      %644 = vmatprep.subr.bf16.mxu0 0
      %645 = vmatpush1.bf16.msra.mxu0 0
      %646 = vmatprep.subr.bf16.mxu0 0
      %647 = vmatpush1.bf16.msra.mxu0 0
      %648 = vmatprep.subr.bf16.mxu0 0
      %649 = vmatpush1.bf16.msra.mxu0 0
      %650 = vmatprep.subr.bf16.mxu0 0
      %651 = vmatpush1.bf16.msra.mxu0 0
      %652 = vmatprep.subr.bf16.mxu0 0
      %653 = vmatpush1.bf16.msra.mxu0 0
      %654 = vmatprep.subr.bf16.mxu0 0
      %655 = vmatpush1.bf16.msra.mxu0 0
      %656 = vmatprep.subr.bf16.mxu0 0
      %657 = vmatpush1.bf16.msra.mxu0 0
      %658 = vmatprep.subr.bf16.mxu0 0
      %659 = vmatpush1.bf16.msra.mxu0 0
      %660 = vmatprep.mubr.bf16.mxu0 0
      %661 = vmatmul.mubr.bf16.gmra.mrb[0].mxu0 %v626
      %v662 = vpop.f32.mrb[0].mxu0
      %v663 = vadd.f32 0.0, %v662
      %v664 = vpop.f32.mrb[0].mxu0
      %v665 = vadd.f32 0.0, %v664
      %v666 = vpop.f32.mrb[0].mxu0
      %v667 = vadd.f32 0.0, %v666
      %v668 = vpop.f32.mrb[0].mxu0
      %v669 = vadd.f32 0.0, %v668
      %670 = vdwg.mxu0
      %v671 = vadd.f32 %v592, %v663
      %v672 = vadd.f32 %v593, %v665
      %v673 = vadd.f32 %v594, %v667
      %v674 = vadd.f32 %v595, %v669
      %s675 = scalar_lea.vmem %s1, 40
      %v676 = vld [vmem:[%s675] sm:$0xf]
      %v677 = vld [vmem:[%s675 + $0x4] sm:$0xf]
      %v680 = vunpack.c.l.b16 %v676
      %v681 = vunpack.c.l.b16 %v677
      %v682 = vpack.c.b16 %v681, %v680
      %683 = vrot.lane.b32.xlu0 %v293, 110
      %v684 = vpop.permute.xlu0 %683
      %685 = vrot.lane.b32.xlu0 %v294, 110
      %v686 = vpop.permute.xlu0 %685
      %687 = vrot.lane.b32.xlu0 %v295, 110
      %v688 = vpop.permute.xlu0 %687
      %689 = vrot.lane.b32.xlu0 %v296, 110
      %v690 = vpop.permute.xlu0 %689
      %691 = vrot.lane.b32.xlu0 %v297, 110
      %v692 = vpop.permute.xlu0 %691
      %693 = vrot.lane.b32.xlu0 %v298, 110
      %v694 = vpop.permute.xlu0 %693
      %vm695 = vcmask 900096
      %v696 = vsel %vm695, %v684, %v686
      %v697 = vsel %vm695, %v686, %v688
      %v698 = vsel %vm695, %v690, %v692
      %v699 = vsel %vm695, %v692, %v694
      %v705 = vsel %vm320, %v682, 0
      %707 = vmatprep.subr.bf16.mxu0 %v697
      %708 = vmatpush1.bf16.msra.mxu0 %v696
      %709 = vmatprep.subr.bf16.mxu0 %v699
      %710 = vmatpush1.bf16.msra.mxu0 %v698
      %711 = vmatprep.subr.bf16.mxu0 0
      %712 = vmatpush1.bf16.msra.mxu0 0
      %713 = vmatprep.subr.bf16.mxu0 0
      %714 = vmatpush1.bf16.msra.mxu0 0
      %715 = vmatprep.subr.bf16.mxu0 0
      %716 = vmatpush1.bf16.msra.mxu0 0
      %717 = vmatprep.subr.bf16.mxu0 0
      %718 = vmatpush1.bf16.msra.mxu0 0
      %719 = vmatprep.subr.bf16.mxu0 0
      %720 = vmatpush1.bf16.msra.mxu0 0
      %721 = vmatprep.subr.bf16.mxu0 0
      %722 = vmatpush1.bf16.msra.mxu0 0
      %723 = vmatprep.subr.bf16.mxu0 0
      %724 = vmatpush1.bf16.msra.mxu0 0
      %725 = vmatprep.subr.bf16.mxu0 0
      %726 = vmatpush1.bf16.msra.mxu0 0
      %727 = vmatprep.subr.bf16.mxu0 0
      %728 = vmatpush1.bf16.msra.mxu0 0
      %729 = vmatprep.subr.bf16.mxu0 0
      %730 = vmatpush1.bf16.msra.mxu0 0
      %731 = vmatprep.subr.bf16.mxu0 0
      %732 = vmatpush1.bf16.msra.mxu0 0
      %733 = vmatprep.subr.bf16.mxu0 0
      %734 = vmatpush1.bf16.msra.mxu0 0
      %735 = vmatprep.subr.bf16.mxu0 0
      %736 = vmatpush1.bf16.msra.mxu0 0
      %737 = vmatprep.subr.bf16.mxu0 0
      %738 = vmatpush1.bf16.msra.mxu0 0
      %739 = vmatprep.mubr.bf16.mxu0 0
      %740 = vmatmul.mubr.bf16.gmra.mrb[0].mxu0 %v705
      %v741 = vpop.f32.mrb[0].mxu0
      %v742 = vadd.f32 0.0, %v741
      %v743 = vpop.f32.mrb[0].mxu0
      %v744 = vadd.f32 0.0, %v743
      %v745 = vpop.f32.mrb[0].mxu0
      %v746 = vadd.f32 0.0, %v745
      %v747 = vpop.f32.mrb[0].mxu0
      %v748 = vadd.f32 0.0, %v747
      %749 = vdwg.mxu0
      %v750 = vadd.f32 %v671, %v742
      %v751 = vadd.f32 %v672, %v744
      %v752 = vadd.f32 %v673, %v746
      %v753 = vadd.f32 %v674, %v748
      %s754 = scalar_lea.vmem %s1, 48
      %v755 = vld [vmem:[%s754] sm:$0xf]
      %v756 = vld [vmem:[%s754 + $0x4] sm:$0xf]
      %v759 = vunpack.c.l.b16 %v755
      %v760 = vunpack.c.l.b16 %v756
      %v761 = vpack.c.b16 %v760, %v759
      %762 = vrot.lane.b32.xlu0 %v293, 96
      %v763 = vpop.permute.xlu0 %762
      %764 = vrot.lane.b32.xlu0 %v294, 96
      %v765 = vpop.permute.xlu0 %764
      %766 = vrot.lane.b32.xlu0 %v295, 96
      %v767 = vpop.permute.xlu0 %766
      %768 = vrot.lane.b32.xlu0 %v296, 96
      %v769 = vpop.permute.xlu0 %768
      %770 = vrot.lane.b32.xlu0 %v297, 96
      %v771 = vpop.permute.xlu0 %770
      %772 = vrot.lane.b32.xlu0 %v298, 96
      %v773 = vpop.permute.xlu0 %772
      %vm774 = vcmask 785408
      %v775 = vsel %vm774, %v763, %v765
      %v776 = vsel %vm774, %v765, %v767
      %v777 = vsel %vm774, %v769, %v771
      %v778 = vsel %vm774, %v771, %v773
      %v784 = vsel %vm320, %v761, 0
      %786 = vmatprep.subr.bf16.mxu0 %v776
      %787 = vmatpush1.bf16.msra.mxu0 %v775
      %788 = vmatprep.subr.bf16.mxu0 %v778
      %789 = vmatpush1.bf16.msra.mxu0 %v777
      %790 = vmatprep.subr.bf16.mxu0 0
      %791 = vmatpush1.bf16.msra.mxu0 0
      %792 = vmatprep.subr.bf16.mxu0 0
      %793 = vmatpush1.bf16.msra.mxu0 0
      %794 = vmatprep.subr.bf16.mxu0 0
      %795 = vmatpush1.bf16.msra.mxu0 0
      %796 = vmatprep.subr.bf16.mxu0 0
      %797 = vmatpush1.bf16.msra.mxu0 0
      %798 = vmatprep.subr.bf16.mxu0 0
      %799 = vmatpush1.bf16.msra.mxu0 0
      %800 = vmatprep.subr.bf16.mxu0 0
      %801 = vmatpush1.bf16.msra.mxu0 0
      %802 = vmatprep.subr.bf16.mxu0 0
      %803 = vmatpush1.bf16.msra.mxu0 0
      %804 = vmatprep.subr.bf16.mxu0 0
      %805 = vmatpush1.bf16.msra.mxu0 0
      %806 = vmatprep.subr.bf16.mxu0 0
      %807 = vmatpush1.bf16.msra.mxu0 0
      %808 = vmatprep.subr.bf16.mxu0 0
      %809 = vmatpush1.bf16.msra.mxu0 0
      %810 = vmatprep.subr.bf16.mxu0 0
      %811 = vmatpush1.bf16.msra.mxu0 0
      %812 = vmatprep.subr.bf16.mxu0 0
      %813 = vmatpush1.bf16.msra.mxu0 0
      %814 = vmatprep.subr.bf16.mxu0 0
      %815 = vmatpush1.bf16.msra.mxu0 0
      %816 = vmatprep.subr.bf16.mxu0 0
      %817 = vmatpush1.bf16.msra.mxu0 0
      %818 = vmatprep.mubr.bf16.mxu0 0
      %819 = vmatmul.mubr.bf16.gmra.mrb[0].mxu0 %v784
      %v820 = vpop.f32.mrb[0].mxu0
      %v821 = vadd.f32 0.0, %v820
      %v822 = vpop.f32.mrb[0].mxu0
      %v823 = vadd.f32 0.0, %v822
      %v824 = vpop.f32.mrb[0].mxu0
      %v825 = vadd.f32 0.0, %v824
      %v826 = vpop.f32.mrb[0].mxu0
      %v827 = vadd.f32 0.0, %v826
      %828 = vdwg.mxu0
      %v829 = vadd.f32 %v750, %v821
      %v830 = vadd.f32 %v751, %v823
      %v831 = vadd.f32 %v752, %v825
      %v832 = vadd.f32 %v753, %v827
      %s833 = scalar_lea.vmem %s1, 56
      %v834 = vld [vmem:[%s833] sm:$0xf]
      %v835 = vld [vmem:[%s833 + $0x4] sm:$0xf]
      %v838 = vunpack.c.l.b16 %v834
      %v839 = vunpack.c.l.b16 %v835
      %v840 = vpack.c.b16 %v839, %v838
      %841 = vrot.lane.b32.xlu0 %v293, 95
      %v842 = vpop.permute.xlu0 %841
      %843 = vrot.lane.b32.xlu0 %v294, 95
      %v844 = vpop.permute.xlu0 %843
      %845 = vrot.lane.b32.xlu0 %v295, 95
      %v846 = vpop.permute.xlu0 %845
      %847 = vrot.lane.b32.xlu0 %v296, 95
      %v848 = vpop.permute.xlu0 %847
      %849 = vrot.lane.b32.xlu0 %v297, 95
      %v850 = vpop.permute.xlu0 %849
      %851 = vrot.lane.b32.xlu0 %v298, 95
      %v852 = vpop.permute.xlu0 %851
      %vm853 = vcmask 777216
      %v854 = vsel %vm853, %v842, %v844
      %v855 = vsel %vm853, %v844, %v846
      %v856 = vsel %vm853, %v848, %v850
      %v857 = vsel %vm853, %v850, %v852
      %v863 = vsel %vm320, %v840, 0
      %865 = vmatprep.subr.bf16.mxu0 %v855
      %866 = vmatpush1.bf16.msra.mxu0 %v854
      %867 = vmatprep.subr.bf16.mxu0 %v857
      %868 = vmatpush1.bf16.msra.mxu0 %v856
      %869 = vmatprep.subr.bf16.mxu0 0
      %870 = vmatpush1.bf16.msra.mxu0 0
      %871 = vmatprep.subr.bf16.mxu0 0
      %872 = vmatpush1.bf16.msra.mxu0 0
      %873 = vmatprep.subr.bf16.mxu0 0
      %874 = vmatpush1.bf16.msra.mxu0 0
      %875 = vmatprep.subr.bf16.mxu0 0
      %876 = vmatpush1.bf16.msra.mxu0 0
      %877 = vmatprep.subr.bf16.mxu0 0
      %878 = vmatpush1.bf16.msra.mxu0 0
      %879 = vmatprep.subr.bf16.mxu0 0
      %880 = vmatpush1.bf16.msra.mxu0 0
      %881 = vmatprep.subr.bf16.mxu0 0
      %882 = vmatpush1.bf16.msra.mxu0 0
      %883 = vmatprep.subr.bf16.mxu0 0
      %884 = vmatpush1.bf16.msra.mxu0 0
      %885 = vmatprep.subr.bf16.mxu0 0
      %886 = vmatpush1.bf16.msra.mxu0 0
      %887 = vmatprep.subr.bf16.mxu0 0
      %888 = vmatpush1.bf16.msra.mxu0 0
      %889 = vmatprep.subr.bf16.mxu0 0
      %890 = vmatpush1.bf16.msra.mxu0 0
      %891 = vmatprep.subr.bf16.mxu0 0
      %892 = vmatpush1.bf16.msra.mxu0 0
      %893 = vmatprep.subr.bf16.mxu0 0
      %894 = vmatpush1.bf16.msra.mxu0 0
      %895 = vmatprep.subr.bf16.mxu0 0
      %896 = vmatpush1.bf16.msra.mxu0 0
      %897 = vmatprep.mubr.bf16.mxu0 0
      %898 = vmatmul.mubr.bf16.gmra.mrb[0].mxu0 %v863
      %v899 = vpop.f32.mrb[0].mxu0
      %v900 = vadd.f32 0.0, %v899
      %v901 = vpop.f32.mrb[0].mxu0
      %v902 = vadd.f32 0.0, %v901
      %v903 = vpop.f32.mrb[0].mxu0
      %v904 = vadd.f32 0.0, %v903
      %v905 = vpop.f32.mrb[0].mxu0
      %v906 = vadd.f32 0.0, %v905
      %907 = vdwg.mxu0
      %v908 = vadd.f32 %v829, %v900
      %v909 = vadd.f32 %v830, %v902
      %v910 = vadd.f32 %v831, %v904
      %v911 = vadd.f32 %v832, %v906
      %s912 = scalar_lea.vmem %s1, 64
      %v913 = vld [vmem:[%s912] sm:$0xf]
      %v914 = vld [vmem:[%s912 + $0x4] sm:$0xf]
      %v917 = vunpack.c.l.b16 %v913
      %v918 = vunpack.c.l.b16 %v914
      %v919 = vpack.c.b16 %v918, %v917
      %920 = vrot.lane.b32.xlu0 %v293, 94
      %v921 = vpop.permute.xlu0 %920
      %922 = vrot.lane.b32.xlu0 %v294, 94
      %v923 = vpop.permute.xlu0 %922
      %924 = vrot.lane.b32.xlu0 %v295, 94
      %v925 = vpop.permute.xlu0 %924
      %926 = vrot.lane.b32.xlu0 %v296, 94
      %v927 = vpop.permute.xlu0 %926
      %928 = vrot.lane.b32.xlu0 %v297, 94
      %v929 = vpop.permute.xlu0 %928
      %930 = vrot.lane.b32.xlu0 %v298, 94
      %v931 = vpop.permute.xlu0 %930
      %vm932 = vcmask 769024
      %v933 = vsel %vm932, %v921, %v923
      %v934 = vsel %vm932, %v923, %v925
      %v935 = vsel %vm932, %v927, %v929
      %v936 = vsel %vm932, %v929, %v931
      %v942 = vsel %vm320, %v919, 0
      %944 = vmatprep.subr.bf16.mxu0 %v934
      %945 = vmatpush1.bf16.msra.mxu0 %v933
      %946 = vmatprep.subr.bf16.mxu0 %v936
      %947 = vmatpush1.bf16.msra.mxu0 %v935
      %948 = vmatprep.subr.bf16.mxu0 0
      %949 = vmatpush1.bf16.msra.mxu0 0
      %950 = vmatprep.subr.bf16.mxu0 0
      %951 = vmatpush1.bf16.msra.mxu0 0
      %952 = vmatprep.subr.bf16.mxu0 0
      %953 = vmatpush1.bf16.msra.mxu0 0
      %954 = vmatprep.subr.bf16.mxu0 0
      %955 = vmatpush1.bf16.msra.mxu0 0
      %956 = vmatprep.subr.bf16.mxu0 0
      %957 = vmatpush1.bf16.msra.mxu0 0
      %958 = vmatprep.subr.bf16.mxu0 0
      %959 = vmatpush1.bf16.msra.mxu0 0
      %960 = vmatprep.subr.bf16.mxu0 0
      %961 = vmatpush1.bf16.msra.mxu0 0
      %962 = vmatprep.subr.bf16.mxu0 0
      %963 = vmatpush1.bf16.msra.mxu0 0
      %964 = vmatprep.subr.bf16.mxu0 0
      %965 = vmatpush1.bf16.msra.mxu0 0
      %966 = vmatprep.subr.bf16.mxu0 0
      %967 = vmatpush1.bf16.msra.mxu0 0
      %968 = vmatprep.subr.bf16.mxu0 0
      %969 = vmatpush1.bf16.msra.mxu0 0
      %970 = vmatprep.subr.bf16.mxu0 0
      %971 = vmatpush1.bf16.msra.mxu0 0
      %972 = vmatprep.subr.bf16.mxu0 0
      %973 = vmatpush1.bf16.msra.mxu0 0
      %974 = vmatprep.subr.bf16.mxu0 0
      %975 = vmatpush1.bf16.msra.mxu0 0
      %976 = vmatprep.mubr.bf16.mxu0 0
      %977 = vmatmul.mubr.bf16.gmra.mrb[0].mxu0 %v942
      %v978 = vpop.f32.mrb[0].mxu0
      %v979 = vadd.f32 0.0, %v978
      %v980 = vpop.f32.mrb[0].mxu0
      %v981 = vadd.f32 0.0, %v980
      %v982 = vpop.f32.mrb[0].mxu0
      %v983 = vadd.f32 0.0, %v982
      %v984 = vpop.f32.mrb[0].mxu0
      %v985 = vadd.f32 0.0, %v984
      %986 = vdwg.mxu0
      %v987 = vadd.f32 %v908, %v979
      %v988 = vadd.f32 %v909, %v981
      %v989 = vadd.f32 %v910, %v983
      %v990 = vadd.f32 %v911, %v985
      %v991 = vld [vmem:[%s2] sm:$0x3]
      %992 = vst [vmem:[%s239] sm:$0xff] %v987
      %993 = vst [vmem:[%s239 + $0x8] sm:$0xff] %v988
      %994 = vst [vmem:[%s239 + $0x10] sm:$0xff] %v989
      %995 = vst [vmem:[%s239 + $0x18] sm:$0xff] %v990
      %v997 = vlaneseq
      %v998 = vshrl.u32 %v997, 7
      %v999 = vsub.s32 0, %v998
      %v1000 = vrot.slane %v991, %v999
      %v1001 = vlaneseq
      %v1002 = vshrl.u32 %v1001, 7
      %v1003 = vsub.s32 1, %v1002
      %v1004 = vrot.slane %v991, %v1003
      %v1007 = vmul.f32 %v987, %v1000
      %v1008 = vmul.f32 %v988, %v1004
      %v1009 = vmul.f32 %v989, %v1000
      %v1010 = vmul.f32 %v990, %v1004
      %v1011 = vadd.f32 %v1007, %v1008
      %1012 = vadd.xlane.f32.xlu0 %v1011
      %v1013 = vpop.xlane.xlu0 %1012
      %v1014 = vadd.f32 %v1009, %v1010
      %1015 = vadd.xlane.f32.xlu0 %v1014
      %v1016 = vpop.xlane.xlu0 %1015
      %vm1017 = vcmask 7168
      %1018 = vst.msk [vmem:[%s244] sm:$0xff] %vm1017, %v1013
      %1019 = vst.msk [vmem:[%s244 + $0x8] sm:$0xff] %vm1017, %v1016
      %v1020 = vmul.f32 %v987, %v987
      %v1021 = vmul.f32 %v988, %v988
      %v1022 = vmul.f32 %v989, %v989
      %v1023 = vmul.f32 %v990, %v990
      %v1024 = vmul.f32 %v1020, %v1000
      %v1025 = vmul.f32 %v1021, %v1004
      %v1026 = vmul.f32 %v1022, %v1000
      %v1027 = vmul.f32 %v1023, %v1004
      %v1028 = vadd.f32 %v1024, %v1025
      %1029 = vadd.xlane.f32.xlu0 %v1028
      %v1030 = vpop.xlane.xlu0 %1029
      %v1031 = vadd.f32 %v1026, %v1027
      %1032 = vadd.xlane.f32.xlu0 %v1031
      %v1033 = vpop.xlane.xlu0 %1032
      %1034 = vst.msk [vmem:[%s249] sm:$0xff] %vm1017, %v1030
      %1035 = vst.msk [vmem:[%s249 + $0x8] sm:$0xff] %vm1017, %v1033
      %p1036 = scmp.lt.s32.totalorder %s17, 1
      %s1037 = scalar_select %p1036, %s17, 1
      %s1038 = smul.addr %s1037, 4
      %s1039 = smul.addr %s1038, 8
      %s1040 = scalar_lea.vmem %s3, %s1039
      %p1041 = scmp.lt.s32.totalorder %s17, 1
      %s1042 = scalar_select %p1041, %s17, 1
      %s1043 = smul.addr %s1042, 2
      %s1044 = smul.addr %s1043, 8
      %s1045 = scalar_lea.vmem %s4, %s1044
      %p1046 = scmp.lt.s32.totalorder %s17, 1
      %s1047 = scalar_select %p1046, %s17, 1
      %s1048 = smul.addr %s1047, 2
      %s1049 = smul.addr %s1048, 8
      %s1050 = scalar_lea.vmem %s5, %s1049
      // Predicated region
      $region33: #{generator_forward.11} parent=31 // pred_check
        %p1051 = pneg %p103
      $region34: #{generator_forward.11} parent=31 // pred_check_branch
        %1053 = sbr.rel (%p1051) target = $region36
      $region35: #{generator_forward.11} parent=31 // pred_region
        _
      $region36: #{generator_forward.11} parent=31 // pred_fallthru
        _
      // Predicated region
      $region37: #{generator_forward.11} parent=31 // pred_check
        %p1054 = pneg %p129
      $region38: #{generator_forward.11} parent=31 // pred_check_branch
        %1056 = sbr.rel (%p1054) target = $region40
      $region39: #{generator_forward.11} parent=31 // pred_region
        _
      $region40: #{generator_forward.11} parent=31 // pred_fallthru
        _
      // Predicated region
      $region41: #{generator_forward.11} parent=31 // pred_check
        %p1057 = pneg %p155
      $region42: #{generator_forward.11} parent=31 // pred_check_branch
        %1059 = sbr.rel (%p1057) target = $region44
      $region43: #{generator_forward.11} parent=31 // pred_region
        _
      $region44: #{generator_forward.11} parent=31 // pred_fallthru
        _
    $region32: #{generator_forward.11} parent=5 // pred_fallthru
      _
    %p1060 = scmp.le.s32.totalorder 2, %s12
    // Predicated region
    $region45: #{generator_forward.11} parent=5 // pred_check
      %p1061 = pneg %p1060
    $region46: #{generator_forward.11} parent=5 // pred_check_branch
      %1063 = sbr.rel (%p1061) target = $region48
    $region47: #{generator_forward.11} parent=5 // pred_region
      %s1064 = ssub.s32 %s12, 2
      // Predicated region
      $region49: #{generator_forward.11} parent=47 // pred_check
        %p1065 = pneg %p109
      $region50: #{generator_forward.11} parent=47 // pred_check_branch
        %1067 = sbr.rel (%p1065) target = $region52
      $region51: #{generator_forward.11} parent=47 // pred_region
        %p1068 = scmp.lt.s32.totalorder %s18, 1
        %s1069 = scalar_select %p1068, %s18, 1
        %s1070 = smul.addr %s1069, 4
        %s1071 = smul.addr %s1070, 8
        %s1072 = scalar_lea.vmem %s3, %s1071
      $region52: #{generator_forward.11} parent=47 // pred_fallthru
        _
      // Predicated region
      $region53: #{generator_forward.11} parent=47 // pred_check
        %p1073 = pneg %p135
      $region54: #{generator_forward.11} parent=47 // pred_check_branch
        %1075 = sbr.rel (%p1073) target = $region56
      $region55: #{generator_forward.11} parent=47 // pred_region
        %p1076 = scmp.lt.s32.totalorder %s18, 1
        %s1077 = scalar_select %p1076, %s18, 1
        %s1078 = smul.addr %s1077, 2
        %s1079 = smul.addr %s1078, 8
        %s1080 = scalar_lea.vmem %s4, %s1079
      $region56: #{generator_forward.11} parent=47 // pred_fallthru
        _
      // Predicated region
      $region57: #{generator_forward.11} parent=47 // pred_check
        %p1081 = pneg %p161
      $region58: #{generator_forward.11} parent=47 // pred_check_branch
        %1083 = sbr.rel (%p1081) target = $region60
      $region59: #{generator_forward.11} parent=47 // pred_region
        %p1084 = scmp.lt.s32.totalorder %s18, 1
        %s1085 = scalar_select %p1084, %s18, 1
        %s1086 = smul.addr %s1085, 2
        %s1087 = smul.addr %s1086, 8
        %s1088 = scalar_lea.vmem %s5, %s1087
      $region60: #{generator_forward.11} parent=47 // pred_fallthru
        _
    $region48: #{generator_forward.11} parent=5 // pred_fallthru
      _
  $region6: #{generator_forward.11} parent=0 // loop_footer
    %s16 = sadd.s32 1, %s12
  $region7: #{generator_forward.11} parent=0 // loop_footer_branch
    %11 = sbr.rel target = $region3
  $region8: #{generator_forward.11} parent=0 // loop_exit
    _

// kernel: generator_forward.14
$region0: #{generator_forward.14}
  #allocation0 [shape = 'u32[]', space=smem, size = 0x4, offset = 0x4, fixed_abs, tag = 'smem constant byte address 0x4 - core index']
  #allocation1 [shape = 'u32[144,128]{1,0:T(1,128)}', space=vmem, size = 0x12000, scoped, tag = 'internal scratch']
  %s0 = inlined_call_operand.vmem [shape: f32[2,8,256], index: 0, kind: input, shape index: {}]
  %s1 = inlined_call_operand.vmem [shape: f32[8,1], index: 1, kind: input, shape index: {}]
  %s2 = inlined_call_operand.vmem [shape: f32[8,1], index: 2, kind: input, shape index: {}]
  %s3 = inlined_call_operand.vmem [shape: bf16[2,8,256], index: 3, kind: output, shape index: {}]
  %s4 = sld [smem:[#allocation0]]
  $region45: #{generator_forward.14} parent=0
    _
  %s6 = ssub.s32 1, %s4
  %s7 = scalar_select 0, %s6, %s4
  loop: start=0, step=1, limit=4
  $region2: #{generator_forward.14} parent=0 // loop_pre_header
    _
  $region3: #{generator_forward.14} parent=0 // loop_header
    %s9 = sphi 0, %s13
    %p10 = scmp.ge.s32.totalorder %s9, 4
    %s19 = sphi 0, %s21
    %s22 = sphi 0, %s19
    %s23 = sphi 0, %s22
    %s39 = sphi 0, %s23
    %s43 = sphi 0, %s43
    %s45 = sphi 0, %s43
    %s46 = sphi 0, %s45
    %s60 = sphi 0, %s46
    %s64 = sphi 0, %s64
    %s66 = sphi 0, %s64
    %s67 = sphi 0, %s66
    %s81 = sphi 0, %s67
    %s87 = sphi 0, %s89
    %s90 = sphi 0, %s87
    %s91 = sphi 0, %s90
    %s107 = sphi 0, %s91
  $region4: #{generator_forward.14} parent=0 // loop_header_branch
    %12 = sbr.rel (%p10) target = $region8
  $region5: #{generator_forward.14} parent=0 // loop_body
    %s14 = ssub.s32 %s9, 1
    %s15 = ssub.s32 %s9, 2
    %s16 = sadd.s32 %s9, 1
    %s17 = ssub.s32 %s9, %s16
    %p18 = scmp.eq.s32.totalorder %s17, 0
    %s20 = sadd.s32 %s19, 1
    %s21 = scalar_select %p18, %s19, %s20
    %p24 = pneg %p18
    %p25 = scmp.eq.s32.totalorder %s9, 1
    %p26 = por %p24, %p25
    %p27 = scmp.ne.s32.totalorder %s19, %s22
    %p28 = scmp.eq.s32.totalorder %s9, 0
    %p29 = por %p27, %p28
    %p30 = scmp.ne.s32.totalorder %s19, %s22
    %p31 = scmp.eq.s32.totalorder %s14, 1
    %p32 = por %p30, %p31
    %p33 = scmp.ne.s32.totalorder %s22, %s23
    %p34 = scmp.eq.s32.totalorder %s14, 0
    %p35 = por %p33, %p34
    %p36 = scmp.ne.s32.totalorder %s22, %s23
    %p37 = scmp.eq.s32.totalorder %s15, 1
    %p38 = por %p36, %p37
    %p40 = scmp.ne.s32.totalorder %s23, %s39
    %p41 = scmp.eq.s32.totalorder %s15, 0
    %p42 = por %p40, %p41
    %s44 = sadd.s32 %s43, 1
    %p47 = scmp.eq.s32.totalorder %s9, 1
    %p48 = scmp.ne.s32.totalorder %s43, %s45
    %p49 = scmp.eq.s32.totalorder %s9, 0
    %p50 = por %p48, %p49
    %p51 = scmp.ne.s32.totalorder %s43, %s45
    %p52 = scmp.eq.s32.totalorder %s14, 1
    %p53 = por %p51, %p52
    %p54 = scmp.ne.s32.totalorder %s45, %s46
    %p55 = scmp.eq.s32.totalorder %s14, 0
    %p56 = por %p54, %p55
    %p57 = scmp.ne.s32.totalorder %s45, %s46
    %p58 = scmp.eq.s32.totalorder %s15, 1
    %p59 = por %p57, %p58
    %p61 = scmp.ne.s32.totalorder %s46, %s60
    %p62 = scmp.eq.s32.totalorder %s15, 0
    %p63 = por %p61, %p62
    %s65 = sadd.s32 %s64, 1
    %p68 = scmp.eq.s32.totalorder %s9, 1
    %p69 = scmp.ne.s32.totalorder %s64, %s66
    %p70 = scmp.eq.s32.totalorder %s9, 0
    %p71 = por %p69, %p70
    %p72 = scmp.ne.s32.totalorder %s64, %s66
    %p73 = scmp.eq.s32.totalorder %s14, 1
    %p74 = por %p72, %p73
    %p75 = scmp.ne.s32.totalorder %s66, %s67
    %p76 = scmp.eq.s32.totalorder %s14, 0
    %p77 = por %p75, %p76
    %p78 = scmp.ne.s32.totalorder %s66, %s67
    %p79 = scmp.eq.s32.totalorder %s15, 1
    %p80 = por %p78, %p79
    %p82 = scmp.ne.s32.totalorder %s67, %s81
    %p83 = scmp.eq.s32.totalorder %s15, 0
    %p84 = por %p82, %p83
    %s85 = ssub.s32 %s9, %s16
    %p86 = scmp.eq.s32.totalorder %s85, 0
    %s88 = sadd.s32 %s87, 1
    %s89 = scalar_select %p86, %s87, %s88
    %p92 = pneg %p86
    %p93 = scmp.eq.s32.totalorder %s9, 1
    %p94 = por %p92, %p93
    %p95 = scmp.ne.s32.totalorder %s87, %s90
    %p96 = scmp.eq.s32.totalorder %s9, 0
    %p97 = por %p95, %p96
    %p98 = scmp.ne.s32.totalorder %s87, %s90
    %p99 = scmp.eq.s32.totalorder %s14, 1
    %p100 = por %p98, %p99
    %p101 = scmp.ne.s32.totalorder %s90, %s91
    %p102 = scmp.eq.s32.totalorder %s14, 0
    %p103 = por %p101, %p102
    %p104 = scmp.ne.s32.totalorder %s90, %s91
    %p105 = scmp.eq.s32.totalorder %s15, 1
    %p106 = por %p104, %p105
    %p108 = scmp.ne.s32.totalorder %s91, %s107
    %p109 = scmp.eq.s32.totalorder %s15, 0
    %p110 = por %p108, %p109
    %p111 = scmp.le.s32.totalorder 1, %s9
    %p112 = scmp.lt.s32.totalorder %s9, 3
    %p113 = pnand %p111, %p112
    %p114 = pneg %p113
    // Predicated region
    $region9: #{generator_forward.14} parent=5 // pred_check
      _
    $region10: #{generator_forward.14} parent=5 // pred_check_branch
      %116 = sbr.rel (%p113) target = $region12
    $region11: #{generator_forward.14} parent=5 // pred_region
      %s117 = ssub.s32 %s9, 1
      // Predicated region
      $region13: #{generator_forward.14} parent=11 // pred_check
        %p118 = pneg %p56
      $region14: #{generator_forward.14} parent=11 // pred_check_branch
        %120 = sbr.rel (%p118) target = $region16
      $region15: #{generator_forward.14} parent=11 // pred_region
        _
      $region16: #{generator_forward.14} parent=11 // pred_fallthru
        _
      // Predicated region
      $region17: #{generator_forward.14} parent=11 // pred_check
        %p121 = pneg %p77
      $region18: #{generator_forward.14} parent=11 // pred_check_branch
        %123 = sbr.rel (%p121) target = $region20
      $region19: #{generator_forward.14} parent=11 // pred_region
        _
      $region20: #{generator_forward.14} parent=11 // pred_fallthru
        _
    $region12: #{generator_forward.14} parent=5 // pred_fallthru
      _
    %p124 = scmp.lt.s32.totalorder %s9, 2
    // Predicated region
    $region21: #{generator_forward.14} parent=5 // pred_check
      %p125 = pneg %p124
    $region22: #{generator_forward.14} parent=5 // pred_check_branch
      %127 = sbr.rel (%p125) target = $region24
    $region23: #{generator_forward.14} parent=5 // pred_region
      // Predicated region
      $region25: #{generator_forward.14} parent=23 // pred_check
        %p128 = pneg %p29
      $region26: #{generator_forward.14} parent=23 // pred_check_branch
        %130 = sbr.rel (%p128) target = $region28
      $region27: #{generator_forward.14} parent=23 // pred_region
        %p131 = scmp.lt.s32.totalorder %s9, 1
        %s132 = scalar_select %p131, %s9, 1
        %s133 = smul.addr %s132, 2
        %s134 = smul.addr %s133, 8
        %s135 = scalar_lea.vmem %s0, %s134
      $region28: #{generator_forward.14} parent=23 // pred_fallthru
        _
    $region24: #{generator_forward.14} parent=5 // pred_fallthru
      _
    %p136 = scmp.le.s32.totalorder 1, %s9
    %p137 = scmp.lt.s32.totalorder %s9, 3
    %p138 = pnand %p136, %p137
    %p139 = pneg %p138
    // Predicated region
    $region29: #{generator_forward.14} parent=5 // pred_check
      _
    $region30: #{generator_forward.14} parent=5 // pred_check_branch
      %141 = sbr.rel (%p138) target = $region32
    $region31: #{generator_forward.14} parent=5 // pred_region
      %s142 = ssub.s32 %s9, 1
      %p143 = scmp.lt.s32.totalorder %s14, 1
      %s144 = scalar_select %p143, %s14, 1
      %s145 = smul.addr %s144, 2
      %s146 = smul.addr %s145, 8
      %s147 = scalar_lea.vmem %s0, %s146
      %p148 = pneg %p35
      %p149 = pneg %p32
      %p150 = pneg %p56
      %p151 = pneg %p53
      %p152 = pneg %p77
      %p153 = pneg %p74
      %p154 = pneg %p103
      %p155 = pneg %p100
      %p156 = scmp.lt.s32.totalorder %s14, 1
      %s157 = scalar_select %p156, %s14, 1
      %s158 = smul.addr %s157, 2
      %s159 = smul.addr %s158, 4
      %s160 = scalar_lea.vmem %s3, %s159
      %p161 = scmp.lt.s32.totalorder %s14, 1
      %s162 = scalar_select %p161, %s14, 1
      %s163 = smul.addr %s162, 2
      %s164 = smul.addr %s163, 8
      %s165 = scalar_lea.vmem %s0, %s164
      %p166 = scmp.lt.s32.totalorder %s14, 1
      %s167 = scalar_select %p166, %s14, 1
      %s168 = smul.addr %s167, 2
      %s169 = smul.addr %s168, 4
      %s170 = scalar_lea.vmem %s3, %s169
      %v171 = vld [vmem:[%s165] sm:$0xff]
      %v172 = vld [vmem:[%s165 + $0x8] sm:$0xff]
      %v173 = vld [vmem:[%s1] sm:$0xff]
      %175 = vset.pattern.permute.xlu0 0
      %176 = vperm.xlu0 %175, %v173
      %v177 = vpop.permute.xlu0 %176
      %v179 = vmul.f32 %v171, %v177
      %v180 = vmul.f32 %v172, %v177
      %v181 = vld [vmem:[%s2] sm:$0xff]
      %183 = vset.pattern.permute.xlu0 0
      %184 = vperm.xlu0 %183, %v181
      %v185 = vpop.permute.xlu0 %184
      %v187 = vadd.f32 %v179, %v185
      %v188 = vadd.f32 %v180, %v185
      %vm189 = vcmp.ge.f32.partialorder %v187, 0.0
      %vm190 = vcmp.ge.f32.partialorder %v188, 0.0
      %v191 = vmul.f32 %v187, 0.01
      %v192 = vmul.f32 %v188, 0.01
      %v193 = vsel %vm189, %v187, %v191
      %v194 = vsel %vm190, %v188, %v192
      %v195 = vpack.c.bf16 %v193, %v193
      %v196 = vpack.c.bf16 %v194, %v194
      %v199 = vunpack.c.l.b16 %v195
      %v200 = vunpack.c.l.b16 %v196
      %v201 = vpack.c.b16 %v200, %v199
      %203 = vst [vmem:[%s170] sm:$0xff] %v201
      %p204 = scmp.lt.s32.totalorder %s14, 1
      %s205 = scalar_select %p204, %s14, 1
      %s206 = smul.addr %s205, 2
      %s207 = smul.addr %s206, 4
      %s208 = scalar_lea.vmem %s3, %s207
      // Predicated region
      $region33: #{generator_forward.14} parent=31 // pred_check
        %p209 = pneg %p100
      $region34: #{generator_forward.14} parent=31 // pred_check_branch
        %211 = sbr.rel (%p209) target = $region36
      $region35: #{generator_forward.14} parent=31 // pred_region
        _
      $region36: #{generator_forward.14} parent=31 // pred_fallthru
        _
    $region32: #{generator_forward.14} parent=5 // pred_fallthru
      _
    %p212 = scmp.le.s32.totalorder 2, %s9
    // Predicated region
    $region37: #{generator_forward.14} parent=5 // pred_check
      %p213 = pneg %p212
    $region38: #{generator_forward.14} parent=5 // pred_check_branch
      %215 = sbr.rel (%p213) target = $region40
    $region39: #{generator_forward.14} parent=5 // pred_region
      %s216 = ssub.s32 %s9, 2
      // Predicated region
      $region41: #{generator_forward.14} parent=39 // pred_check
        %p217 = pneg %p106
      $region42: #{generator_forward.14} parent=39 // pred_check_branch
        %219 = sbr.rel (%p217) target = $region44
      $region43: #{generator_forward.14} parent=39 // pred_region
        %p220 = scmp.lt.s32.totalorder %s15, 1
        %s221 = scalar_select %p220, %s15, 1
        %s222 = smul.addr %s221, 2
        %s223 = smul.addr %s222, 4
        %s224 = scalar_lea.vmem %s3, %s223
      $region44: #{generator_forward.14} parent=39 // pred_fallthru
        _
    $region40: #{generator_forward.14} parent=5 // pred_fallthru
      _
  $region6: #{generator_forward.14} parent=0 // loop_footer
    %s13 = sadd.s32 1, %s9
  $region7: #{generator_forward.14} parent=0 // loop_footer_branch
    %8 = sbr.rel target = $region3
  $region8: #{generator_forward.14} parent=0 // loop_exit
    _

// kernel: generator_forward.13
$region0: #{generator_forward.13}
  #allocation0 [shape = 'u32[]', space=smem, size = 0x4, offset = 0x4, fixed_abs, tag = 'smem constant byte address 0x4 - core index']
  #allocation1 [shape = 'u32[144,128]{1,0:T(1,128)}', space=vmem, size = 0x12000, scoped, tag = 'internal scratch']
  %s0 = inlined_call_operand.vmem [shape: bf16[2,16,384], index: 0, kind: input, shape index: {}]
  %s1 = inlined_call_operand.vmem [shape: bf16[9,8,16], index: 1, kind: input, shape index: {}]
  %s2 = inlined_call_operand.vmem [shape: f32[1,256], index: 2, kind: input, shape index: {}]
  %s3 = inlined_call_operand.vmem [shape: f32[2,8,256], index: 3, kind: output, shape index: {0}]
  %s4 = inlined_call_operand.vmem [shape: f32[2,8,1], index: 4, kind: output, shape index: {1}]
  %s5 = inlined_call_operand.vmem [shape: f32[2,8,1], index: 5, kind: output, shape index: {2}]
  %6 = xla_tuple %s3, %s4, %s5
  %s7 = sld [smem:[#allocation0]]
  $region61: #{generator_forward.13} parent=0
    _
  %s9 = ssub.s32 1, %s7
  %s10 = scalar_select 0, %s9, %s7
  loop: start=0, step=1, limit=4
  $region2: #{generator_forward.13} parent=0 // loop_pre_header
    _
  $region3: #{generator_forward.13} parent=0 // loop_header
    %s12 = sphi 0, %s16
    %p13 = scmp.ge.s32.totalorder %s12, 4
    %s22 = sphi 0, %s24
    %s25 = sphi 0, %s22
    %s26 = sphi 0, %s25
    %s42 = sphi 0, %s26
    %s46 = sphi 0, %s46
    %s48 = sphi 0, %s46
    %s49 = sphi 0, %s48
    %s63 = sphi 0, %s49
    %s67 = sphi 0, %s67
    %s69 = sphi 0, %s67
    %s70 = sphi 0, %s69
    %s84 = sphi 0, %s70
    %s90 = sphi 0, %s92
    %s93 = sphi 0, %s90
    %s94 = sphi 0, %s93
    %s110 = sphi 0, %s94
    %s116 = sphi 0, %s118
    %s119 = sphi 0, %s116
    %s120 = sphi 0, %s119
    %s136 = sphi 0, %s120
    %s142 = sphi 0, %s144
    %s145 = sphi 0, %s142
    %s146 = sphi 0, %s145
    %s162 = sphi 0, %s146
  $region4: #{generator_forward.13} parent=0 // loop_header_branch
    %15 = sbr.rel (%p13) target = $region8
  $region5: #{generator_forward.13} parent=0 // loop_body
    %s17 = ssub.s32 %s12, 1
    %s18 = ssub.s32 %s12, 2
    %s19 = sadd.s32 %s12, 1
    %s20 = ssub.s32 %s12, %s19
    %p21 = scmp.eq.s32.totalorder %s20, 0
    %s23 = sadd.s32 %s22, 1
    %s24 = scalar_select %p21, %s22, %s23
    %p27 = pneg %p21
    %p28 = scmp.eq.s32.totalorder %s12, 1
    %p29 = por %p27, %p28
    %p30 = scmp.ne.s32.totalorder %s22, %s25
    %p31 = scmp.eq.s32.totalorder %s12, 0
    %p32 = por %p30, %p31
    %p33 = scmp.ne.s32.totalorder %s22, %s25
    %p34 = scmp.eq.s32.totalorder %s17, 1
    %p35 = por %p33, %p34
    %p36 = scmp.ne.s32.totalorder %s25, %s26
    %p37 = scmp.eq.s32.totalorder %s17, 0
    %p38 = por %p36, %p37
    %p39 = scmp.ne.s32.totalorder %s25, %s26
    %p40 = scmp.eq.s32.totalorder %s18, 1
    %p41 = por %p39, %p40
    %p43 = scmp.ne.s32.totalorder %s26, %s42
    %p44 = scmp.eq.s32.totalorder %s18, 0
    %p45 = por %p43, %p44
    %s47 = sadd.s32 %s46, 1
    %p50 = scmp.eq.s32.totalorder %s12, 1
    %p51 = scmp.ne.s32.totalorder %s46, %s48
    %p52 = scmp.eq.s32.totalorder %s12, 0
    %p53 = por %p51, %p52
    %p54 = scmp.ne.s32.totalorder %s46, %s48
    %p55 = scmp.eq.s32.totalorder %s17, 1
    %p56 = por %p54, %p55
    %p57 = scmp.ne.s32.totalorder %s48, %s49
    %p58 = scmp.eq.s32.totalorder %s17, 0
    %p59 = por %p57, %p58
    %p60 = scmp.ne.s32.totalorder %s48, %s49
    %p61 = scmp.eq.s32.totalorder %s18, 1
    %p62 = por %p60, %p61
    %p64 = scmp.ne.s32.totalorder %s49, %s63
    %p65 = scmp.eq.s32.totalorder %s18, 0
    %p66 = por %p64, %p65
    %s68 = sadd.s32 %s67, 1
    %p71 = scmp.eq.s32.totalorder %s12, 1
    %p72 = scmp.ne.s32.totalorder %s67, %s69
    %p73 = scmp.eq.s32.totalorder %s12, 0
    %p74 = por %p72, %p73
    %p75 = scmp.ne.s32.totalorder %s67, %s69
    %p76 = scmp.eq.s32.totalorder %s17, 1
    %p77 = por %p75, %p76
    %p78 = scmp.ne.s32.totalorder %s69, %s70
    %p79 = scmp.eq.s32.totalorder %s17, 0
    %p80 = por %p78, %p79
    %p81 = scmp.ne.s32.totalorder %s69, %s70
    %p82 = scmp.eq.s32.totalorder %s18, 1
    %p83 = por %p81, %p82
    %p85 = scmp.ne.s32.totalorder %s70, %s84
    %p86 = scmp.eq.s32.totalorder %s18, 0
    %p87 = por %p85, %p86
    %s88 = ssub.s32 %s12, %s19
    %p89 = scmp.eq.s32.totalorder %s88, 0
    %s91 = sadd.s32 %s90, 1
    %s92 = scalar_select %p89, %s90, %s91
    %p95 = pneg %p89
    %p96 = scmp.eq.s32.totalorder %s12, 1
    %p97 = por %p95, %p96
    %p98 = scmp.ne.s32.totalorder %s90, %s93
    %p99 = scmp.eq.s32.totalorder %s12, 0
    %p100 = por %p98, %p99
    %p101 = scmp.ne.s32.totalorder %s90, %s93
    %p102 = scmp.eq.s32.totalorder %s17, 1
    %p103 = por %p101, %p102
    %p104 = scmp.ne.s32.totalorder %s93, %s94
    %p105 = scmp.eq.s32.totalorder %s17, 0
    %p106 = por %p104, %p105
    %p107 = scmp.ne.s32.totalorder %s93, %s94
    %p108 = scmp.eq.s32.totalorder %s18, 1
    %p109 = por %p107, %p108
    %p111 = scmp.ne.s32.totalorder %s94, %s110
    %p112 = scmp.eq.s32.totalorder %s18, 0
    %p113 = por %p111, %p112
    %s114 = ssub.s32 %s12, %s19
    %p115 = scmp.eq.s32.totalorder %s114, 0
    %s117 = sadd.s32 %s116, 1
    %s118 = scalar_select %p115, %s116, %s117
    %p121 = pneg %p115
    %p122 = scmp.eq.s32.totalorder %s12, 1
    %p123 = por %p121, %p122
    %p124 = scmp.ne.s32.totalorder %s116, %s119
    %p125 = scmp.eq.s32.totalorder %s12, 0
    %p126 = por %p124, %p125
    %p127 = scmp.ne.s32.totalorder %s116, %s119
    %p128 = scmp.eq.s32.totalorder %s17, 1
    %p129 = por %p127, %p128
    %p130 = scmp.ne.s32.totalorder %s119, %s120
    %p131 = scmp.eq.s32.totalorder %s17, 0
    %p132 = por %p130, %p131
    %p133 = scmp.ne.s32.totalorder %s119, %s120
    %p134 = scmp.eq.s32.totalorder %s18, 1
    %p135 = por %p133, %p134
    %p137 = scmp.ne.s32.totalorder %s120, %s136
    %p138 = scmp.eq.s32.totalorder %s18, 0
    %p139 = por %p137, %p138
    %s140 = ssub.s32 %s12, %s19
    %p141 = scmp.eq.s32.totalorder %s140, 0
    %s143 = sadd.s32 %s142, 1
    %s144 = scalar_select %p141, %s142, %s143
    %p147 = pneg %p141
    %p148 = scmp.eq.s32.totalorder %s12, 1
    %p149 = por %p147, %p148
    %p150 = scmp.ne.s32.totalorder %s142, %s145
    %p151 = scmp.eq.s32.totalorder %s12, 0
    %p152 = por %p150, %p151
    %p153 = scmp.ne.s32.totalorder %s142, %s145
    %p154 = scmp.eq.s32.totalorder %s17, 1
    %p155 = por %p153, %p154
    %p156 = scmp.ne.s32.totalorder %s145, %s146
    %p157 = scmp.eq.s32.totalorder %s17, 0
    %p158 = por %p156, %p157
    %p159 = scmp.ne.s32.totalorder %s145, %s146
    %p160 = scmp.eq.s32.totalorder %s18, 1
    %p161 = por %p159, %p160
    %p163 = scmp.ne.s32.totalorder %s146, %s162
    %p164 = scmp.eq.s32.totalorder %s18, 0
    %p165 = por %p163, %p164
    %p166 = scmp.le.s32.totalorder 1, %s12
    %p167 = scmp.lt.s32.totalorder %s12, 3
    %p168 = pnand %p166, %p167
    %p169 = pneg %p168
    // Predicated region
    $region9: #{generator_forward.13} parent=5 // pred_check
      _
    $region10: #{generator_forward.13} parent=5 // pred_check_branch
      %171 = sbr.rel (%p168) target = $region12
    $region11: #{generator_forward.13} parent=5 // pred_region
      %s172 = ssub.s32 %s12, 1
      // Predicated region
      $region13: #{generator_forward.13} parent=11 // pred_check
        %p173 = pneg %p59
      $region14: #{generator_forward.13} parent=11 // pred_check_branch
        %175 = sbr.rel (%p173) target = $region16
      $region15: #{generator_forward.13} parent=11 // pred_region
        _
      $region16: #{generator_forward.13} parent=11 // pred_fallthru
        _
      // Predicated region
      $region17: #{generator_forward.13} parent=11 // pred_check
        %p176 = pneg %p80
      $region18: #{generator_forward.13} parent=11 // pred_check_branch
        %178 = sbr.rel (%p176) target = $region20
      $region19: #{generator_forward.13} parent=11 // pred_region
        _
      $region20: #{generator_forward.13} parent=11 // pred_fallthru
        _
    $region12: #{generator_forward.13} parent=5 // pred_fallthru
      _
    %p179 = scmp.lt.s32.totalorder %s12, 2
    // Predicated region
    $region21: #{generator_forward.13} parent=5 // pred_check
      %p180 = pneg %p179
    $region22: #{generator_forward.13} parent=5 // pred_check_branch
      %182 = sbr.rel (%p180) target = $region24
    $region23: #{generator_forward.13} parent=5 // pred_region
      // Predicated region
      $region25: #{generator_forward.13} parent=23 // pred_check
        %p183 = pneg %p32
      $region26: #{generator_forward.13} parent=23 // pred_check_branch
        %185 = sbr.rel (%p183) target = $region28
      $region27: #{generator_forward.13} parent=23 // pred_region
        %p186 = scmp.lt.s32.totalorder %s12, 1
        %s187 = scalar_select %p186, %s12, 1
        %s188 = smul.addr %s187, 6
        %s189 = smul.addr %s188, 4
        %s190 = scalar_lea.vmem %s0, %s189
      $region28: #{generator_forward.13} parent=23 // pred_fallthru
        _
    $region24: #{generator_forward.13} parent=5 // pred_fallthru
      _
    %p191 = scmp.le.s32.totalorder 1, %s12
    %p192 = scmp.lt.s32.totalorder %s12, 3
    %p193 = pnand %p191, %p192
    %p194 = pneg %p193
    // Predicated region
    $region29: #{generator_forward.13} parent=5 // pred_check
      _
    $region30: #{generator_forward.13} parent=5 // pred_check_branch
      %196 = sbr.rel (%p193) target = $region32
    $region31: #{generator_forward.13} parent=5 // pred_region
      %s197 = ssub.s32 %s12, 1
      %p198 = scmp.lt.s32.totalorder %s17, 1
      %s199 = scalar_select %p198, %s17, 1
      %s200 = smul.addr %s199, 6
      %s201 = smul.addr %s200, 4
      %s202 = scalar_lea.vmem %s0, %s201
      %p203 = pneg %p38
      %p204 = pneg %p35
      %p205 = pneg %p59
      %p206 = pneg %p56
      %p207 = pneg %p80
      %p208 = pneg %p77
      %p209 = pneg %p106
      %p210 = pneg %p103
      %p211 = scmp.lt.s32.totalorder %s17, 1
      %s212 = scalar_select %p211, %s17, 1
      %s213 = smul.addr %s212, 2
      %s214 = smul.addr %s213, 8
      %s215 = scalar_lea.vmem %s3, %s214
      %p216 = pneg %p132
      %p217 = pneg %p129
      %p218 = scmp.lt.s32.totalorder %s17, 1
      %s219 = scalar_select %p218, %s17, 1
      %s220 = smul.addr %s219, 8
      %s221 = scalar_lea.vmem %s4, %s220
      %p222 = pneg %p158
      %p223 = pneg %p155
      %p224 = scmp.lt.s32.totalorder %s17, 1
      %s225 = scalar_select %p224, %s17, 1
      %s226 = smul.addr %s225, 8
      %s227 = scalar_lea.vmem %s5, %s226
      %p228 = scmp.lt.s32.totalorder %s17, 1
      %s229 = scalar_select %p228, %s17, 1
      %s230 = smul.addr %s229, 6
      %s231 = smul.addr %s230, 4
      %s232 = scalar_lea.vmem %s0, %s231
      %p233 = scmp.lt.s32.totalorder %s17, 1
      %s234 = scalar_select %p233, %s17, 1
      %s235 = smul.addr %s234, 2
      %s236 = smul.addr %s235, 8
      %s237 = scalar_lea.vmem %s3, %s236
      %p238 = scmp.lt.s32.totalorder %s17, 1
      %s239 = scalar_select %p238, %s17, 1
      %s240 = smul.addr %s239, 8
      %s241 = scalar_lea.vmem %s4, %s240
      %p242 = scmp.lt.s32.totalorder %s17, 1
      %s243 = scalar_select %p242, %s17, 1
      %s244 = smul.addr %s243, 8
      %s245 = scalar_lea.vmem %s5, %s244
      %v247 = vld [vmem:[%s1] sm:$0xf]
      %v248 = vld [vmem:[%s232] sm:$0xff]
      %v249 = vld [vmem:[%s232 + $0xc] sm:$0xff]
      %s250 = scalar_lea.vmem %s1, 4
      %v251 = vld [vmem:[%s250] sm:$0xf]
      %v252 = vld [vmem:[%s232] sm:$0xff]
      %v253 = vld [vmem:[%s232 + $0x8] sm:$0xf]
      %v254 = vld [vmem:[%s232 + $0xc] sm:$0xff]
      %v255 = vld [vmem:[%s232 + $0x14] sm:$0xf]
      %v260 = vunpack.c.l.b16 %v252
      %v261 = vunpack.c.h.b16 %v252
      %v262 = vunpack.c.l.b16 %v253
      %v263 = vunpack.c.l.b16 %v254
      %v264 = vunpack.c.h.b16 %v254
      %v265 = vunpack.c.l.b16 %v255
      %v266 = vpack.c.b16 %v263, %v260
      %v267 = vpack.c.b16 %v264, %v261
      %v268 = vpack.c.b16 %v265, %v262
      %269 = vrot.lane.b32.xlu0 %v266, 127
      %v270 = vpop.permute.xlu0 %269
      %271 = vrot.lane.b32.xlu0 %v267, 127
      %v272 = vpop.permute.xlu0 %271
      %273 = vrot.lane.b32.xlu0 %v268, 127
      %v274 = vpop.permute.xlu0 %273
      %vm275 = vcmask 1039360
      %v276 = vsel %vm275, %v270, %v272
      %v277 = vsel %vm275, %v272, %v274
      %vm280 = vcmask 130048
      %v282 = vsel %vm280, %v251, 0
      %284 = vmatprep.subr.bf16.mxu0 %v277
      %285 = vmatpush1.bf16.msra.mxu0 %v276
      %286 = vmatprep.subr.bf16.mxu0 0
      %287 = vmatpush1.bf16.msra.mxu0 0
      %288 = vmatprep.subr.bf16.mxu0 0
      %289 = vmatpush1.bf16.msra.mxu0 0
      %290 = vmatprep.subr.bf16.mxu0 0
      %291 = vmatpush1.bf16.msra.mxu0 0
      %292 = vmatprep.subr.bf16.mxu0 0
      %293 = vmatpush1.bf16.msra.mxu0 0
      %294 = vmatprep.subr.bf16.mxu0 0
      %295 = vmatpush1.bf16.msra.mxu0 0
      %296 = vmatprep.subr.bf16.mxu0 0
      %297 = vmatpush1.bf16.msra.mxu0 0
      %298 = vmatprep.subr.bf16.mxu0 0
      %299 = vmatpush1.bf16.msra.mxu0 0
      %300 = vmatprep.subr.bf16.mxu0 0
      %301 = vmatpush1.bf16.msra.mxu0 0
      %302 = vmatprep.subr.bf16.mxu0 0
      %303 = vmatpush1.bf16.msra.mxu0 0
      %304 = vmatprep.subr.bf16.mxu0 0
      %305 = vmatpush1.bf16.msra.mxu0 0
      %306 = vmatprep.subr.bf16.mxu0 0
      %307 = vmatpush1.bf16.msra.mxu0 0
      %308 = vmatprep.subr.bf16.mxu0 0
      %309 = vmatpush1.bf16.msra.mxu0 0
      %310 = vmatprep.subr.bf16.mxu0 0
      %311 = vmatpush1.bf16.msra.mxu0 0
      %312 = vmatprep.subr.bf16.mxu0 0
      %313 = vmatpush1.bf16.msra.mxu0 0
      %314 = vmatprep.subr.bf16.mxu0 0
      %315 = vmatpush1.bf16.msra.mxu0 0
      %316 = vmatprep.mubr.bf16.mxu0 0
      %317 = vmatmul.mubr.bf16.gmra.mrb[0].mxu0 %v282
      %v318 = vpop.f32.mrb[0].mxu0
      %v319 = vadd.f32 0.0, %v318
      %v320 = vpop.f32.mrb[0].mxu0
      %v321 = vadd.f32 0.0, %v320
      %v322 = vpop.f32.mrb[0].mxu0
      %v323 = vpop.f32.mrb[0].mxu0
      %324 = vdwg.mxu0
      %v327 = vunpack.c.l.b16 %v248
      %v328 = vunpack.c.h.b16 %v248
      %v329 = vunpack.c.l.b16 %v249
      %v330 = vunpack.c.h.b16 %v249
      %v331 = vpack.c.b16 %v329, %v327
      %v332 = vpack.c.b16 %v330, %v328
      %v336 = vsel %vm280, %v247, 0
      %338 = vmatprep.subr.bf16.mxu0 %v332
      %339 = vmatpush1.bf16.msra.mxu0 %v331
      %340 = vmatprep.subr.bf16.mxu0 0
      %341 = vmatpush1.bf16.msra.mxu0 0
      %342 = vmatprep.subr.bf16.mxu0 0
      %343 = vmatpush1.bf16.msra.mxu0 0
      %344 = vmatprep.subr.bf16.mxu0 0
      %345 = vmatpush1.bf16.msra.mxu0 0
      %346 = vmatprep.subr.bf16.mxu0 0
      %347 = vmatpush1.bf16.msra.mxu0 0
      %348 = vmatprep.subr.bf16.mxu0 0
      %349 = vmatpush1.bf16.msra.mxu0 0
      %350 = vmatprep.subr.bf16.mxu0 0
      %351 = vmatpush1.bf16.msra.mxu0 0
      %352 = vmatprep.subr.bf16.mxu0 0
      %353 = vmatpush1.bf16.msra.mxu0 0
      %354 = vmatprep.subr.bf16.mxu0 0
      %355 = vmatpush1.bf16.msra.mxu0 0
      %356 = vmatprep.subr.bf16.mxu0 0
      %357 = vmatpush1.bf16.msra.mxu0 0
      %358 = vmatprep.subr.bf16.mxu0 0
      %359 = vmatpush1.bf16.msra.mxu0 0
      %360 = vmatprep.subr.bf16.mxu0 0
      %361 = vmatpush1.bf16.msra.mxu0 0
      %362 = vmatprep.subr.bf16.mxu0 0
      %363 = vmatpush1.bf16.msra.mxu0 0
      %364 = vmatprep.subr.bf16.mxu0 0
      %365 = vmatpush1.bf16.msra.mxu0 0
      %366 = vmatprep.subr.bf16.mxu0 0
      %367 = vmatpush1.bf16.msra.mxu0 0
      %368 = vmatprep.subr.bf16.mxu0 0
      %369 = vmatpush1.bf16.msra.mxu0 0
      %370 = vmatprep.mubr.bf16.mxu0 0
      %371 = vmatmul.mubr.bf16.gmra.mrb[0].mxu0 %v336
      %v372 = vpop.f32.mrb[0].mxu0
      %v373 = vadd.f32 %v319, %v372
      %v374 = vpop.f32.mrb[0].mxu0
      %v375 = vadd.f32 %v321, %v374
      %v376 = vpop.f32.mrb[0].mxu0
      %v377 = vpop.f32.mrb[0].mxu0
      %378 = vdwg.mxu0
      %s379 = scalar_lea.vmem %s1, 8
      %v380 = vld [vmem:[%s379] sm:$0xf]
      %381 = vrot.lane.b32.xlu0 %v266, 126
      %v382 = vpop.permute.xlu0 %381
      %383 = vrot.lane.b32.xlu0 %v267, 126
      %v384 = vpop.permute.xlu0 %383
      %385 = vrot.lane.b32.xlu0 %v268, 126
      %v386 = vpop.permute.xlu0 %385
      %vm387 = vcmask 1031168
      %v388 = vsel %vm387, %v382, %v384
      %v389 = vsel %vm387, %v384, %v386
      %v393 = vsel %vm280, %v380, 0
      %395 = vmatprep.subr.bf16.mxu0 %v389
      %396 = vmatpush1.bf16.msra.mxu0 %v388
      %397 = vmatprep.subr.bf16.mxu0 0
      %398 = vmatpush1.bf16.msra.mxu0 0
      %399 = vmatprep.subr.bf16.mxu0 0
      %400 = vmatpush1.bf16.msra.mxu0 0
      %401 = vmatprep.subr.bf16.mxu0 0
      %402 = vmatpush1.bf16.msra.mxu0 0
      %403 = vmatprep.subr.bf16.mxu0 0
      %404 = vmatpush1.bf16.msra.mxu0 0
      %405 = vmatprep.subr.bf16.mxu0 0
      %406 = vmatpush1.bf16.msra.mxu0 0
      %407 = vmatprep.subr.bf16.mxu0 0
      %408 = vmatpush1.bf16.msra.mxu0 0
      %409 = vmatprep.subr.bf16.mxu0 0
      %410 = vmatpush1.bf16.msra.mxu0 0
      %411 = vmatprep.subr.bf16.mxu0 0
      %412 = vmatpush1.bf16.msra.mxu0 0
      %413 = vmatprep.subr.bf16.mxu0 0
      %414 = vmatpush1.bf16.msra.mxu0 0
      %415 = vmatprep.subr.bf16.mxu0 0
      %416 = vmatpush1.bf16.msra.mxu0 0
      %417 = vmatprep.subr.bf16.mxu0 0
      %418 = vmatpush1.bf16.msra.mxu0 0
      %419 = vmatprep.subr.bf16.mxu0 0
      %420 = vmatpush1.bf16.msra.mxu0 0
      %421 = vmatprep.subr.bf16.mxu0 0
      %422 = vmatpush1.bf16.msra.mxu0 0
      %423 = vmatprep.subr.bf16.mxu0 0
      %424 = vmatpush1.bf16.msra.mxu0 0
      %425 = vmatprep.subr.bf16.mxu0 0
      %426 = vmatpush1.bf16.msra.mxu0 0
      %427 = vmatprep.mubr.bf16.mxu0 0
      %428 = vmatmul.mubr.bf16.gmra.mrb[0].mxu0 %v393
      %v429 = vpop.f32.mrb[0].mxu0
      %v430 = vadd.f32 0.0, %v429
      %v431 = vpop.f32.mrb[0].mxu0
      %v432 = vadd.f32 0.0, %v431
      %v433 = vpop.f32.mrb[0].mxu0
      %v434 = vpop.f32.mrb[0].mxu0
      %435 = vdwg.mxu0
      %v436 = vadd.f32 %v373, %v430
      %v437 = vadd.f32 %v375, %v432
      %s438 = scalar_lea.vmem %s1, 12
      %v439 = vld [vmem:[%s438] sm:$0xf]
      %440 = vrot.lane.b32.xlu0 %v266, 112
      %v441 = vpop.permute.xlu0 %440
      %442 = vrot.lane.b32.xlu0 %v267, 112
      %v443 = vpop.permute.xlu0 %442
      %444 = vrot.lane.b32.xlu0 %v268, 112
      %v445 = vpop.permute.xlu0 %444
      %vm446 = vcmask 916480
      %v447 = vsel %vm446, %v441, %v443
      %v448 = vsel %vm446, %v443, %v445
      %v452 = vsel %vm280, %v439, 0
      %454 = vmatprep.subr.bf16.mxu0 %v448
      %455 = vmatpush1.bf16.msra.mxu0 %v447
      %456 = vmatprep.subr.bf16.mxu0 0
      %457 = vmatpush1.bf16.msra.mxu0 0
      %458 = vmatprep.subr.bf16.mxu0 0
      %459 = vmatpush1.bf16.msra.mxu0 0
      %460 = vmatprep.subr.bf16.mxu0 0
      %461 = vmatpush1.bf16.msra.mxu0 0
      %462 = vmatprep.subr.bf16.mxu0 0
      %463 = vmatpush1.bf16.msra.mxu0 0
      %464 = vmatprep.subr.bf16.mxu0 0
      %465 = vmatpush1.bf16.msra.mxu0 0
      %466 = vmatprep.subr.bf16.mxu0 0
      %467 = vmatpush1.bf16.msra.mxu0 0
      %468 = vmatprep.subr.bf16.mxu0 0
      %469 = vmatpush1.bf16.msra.mxu0 0
      %470 = vmatprep.subr.bf16.mxu0 0
      %471 = vmatpush1.bf16.msra.mxu0 0
      %472 = vmatprep.subr.bf16.mxu0 0
      %473 = vmatpush1.bf16.msra.mxu0 0
      %474 = vmatprep.subr.bf16.mxu0 0
      %475 = vmatpush1.bf16.msra.mxu0 0
      %476 = vmatprep.subr.bf16.mxu0 0
      %477 = vmatpush1.bf16.msra.mxu0 0
      %478 = vmatprep.subr.bf16.mxu0 0
      %479 = vmatpush1.bf16.msra.mxu0 0
      %480 = vmatprep.subr.bf16.mxu0 0
      %481 = vmatpush1.bf16.msra.mxu0 0
      %482 = vmatprep.subr.bf16.mxu0 0
      %483 = vmatpush1.bf16.msra.mxu0 0
      %484 = vmatprep.subr.bf16.mxu0 0
      %485 = vmatpush1.bf16.msra.mxu0 0
      %486 = vmatprep.mubr.bf16.mxu0 0
      %487 = vmatmul.mubr.bf16.gmra.mrb[0].mxu0 %v452
      %v488 = vpop.f32.mrb[0].mxu0
      %v489 = vadd.f32 0.0, %v488
      %v490 = vpop.f32.mrb[0].mxu0
      %v491 = vadd.f32 0.0, %v490
      %v492 = vpop.f32.mrb[0].mxu0
      %v493 = vpop.f32.mrb[0].mxu0
      %494 = vdwg.mxu0
      %v495 = vadd.f32 %v436, %v489
      %v496 = vadd.f32 %v437, %v491
      %s497 = scalar_lea.vmem %s1, 16
      %v498 = vld [vmem:[%s497] sm:$0xf]
      %499 = vrot.lane.b32.xlu0 %v266, 111
      %v500 = vpop.permute.xlu0 %499
      %501 = vrot.lane.b32.xlu0 %v267, 111
      %v502 = vpop.permute.xlu0 %501
      %503 = vrot.lane.b32.xlu0 %v268, 111
      %v504 = vpop.permute.xlu0 %503
      %vm505 = vcmask 908288
      %v506 = vsel %vm505, %v500, %v502
      %v507 = vsel %vm505, %v502, %v504
      %v511 = vsel %vm280, %v498, 0
      %513 = vmatprep.subr.bf16.mxu0 %v507
      %514 = vmatpush1.bf16.msra.mxu0 %v506
      %515 = vmatprep.subr.bf16.mxu0 0
      %516 = vmatpush1.bf16.msra.mxu0 0
      %517 = vmatprep.subr.bf16.mxu0 0
      %518 = vmatpush1.bf16.msra.mxu0 0
      %519 = vmatprep.subr.bf16.mxu0 0
      %520 = vmatpush1.bf16.msra.mxu0 0
      %521 = vmatprep.subr.bf16.mxu0 0
      %522 = vmatpush1.bf16.msra.mxu0 0
      %523 = vmatprep.subr.bf16.mxu0 0
      %524 = vmatpush1.bf16.msra.mxu0 0
      %525 = vmatprep.subr.bf16.mxu0 0
      %526 = vmatpush1.bf16.msra.mxu0 0
      %527 = vmatprep.subr.bf16.mxu0 0
      %528 = vmatpush1.bf16.msra.mxu0 0
      %529 = vmatprep.subr.bf16.mxu0 0
      %530 = vmatpush1.bf16.msra.mxu0 0
      %531 = vmatprep.subr.bf16.mxu0 0
      %532 = vmatpush1.bf16.msra.mxu0 0
      %533 = vmatprep.subr.bf16.mxu0 0
      %534 = vmatpush1.bf16.msra.mxu0 0
      %535 = vmatprep.subr.bf16.mxu0 0
      %536 = vmatpush1.bf16.msra.mxu0 0
      %537 = vmatprep.subr.bf16.mxu0 0
      %538 = vmatpush1.bf16.msra.mxu0 0
      %539 = vmatprep.subr.bf16.mxu0 0
      %540 = vmatpush1.bf16.msra.mxu0 0
      %541 = vmatprep.subr.bf16.mxu0 0
      %542 = vmatpush1.bf16.msra.mxu0 0
      %543 = vmatprep.subr.bf16.mxu0 0
      %544 = vmatpush1.bf16.msra.mxu0 0
      %545 = vmatprep.mubr.bf16.mxu0 0
      %546 = vmatmul.mubr.bf16.gmra.mrb[0].mxu0 %v511
      %v547 = vpop.f32.mrb[0].mxu0
      %v548 = vadd.f32 0.0, %v547
      %v549 = vpop.f32.mrb[0].mxu0
      %v550 = vadd.f32 0.0, %v549
      %v551 = vpop.f32.mrb[0].mxu0
      %v552 = vpop.f32.mrb[0].mxu0
      %553 = vdwg.mxu0
      %v554 = vadd.f32 %v495, %v548
      %v555 = vadd.f32 %v496, %v550
      %s556 = scalar_lea.vmem %s1, 20
      %v557 = vld [vmem:[%s556] sm:$0xf]
      %558 = vrot.lane.b32.xlu0 %v266, 110
      %v559 = vpop.permute.xlu0 %558
      %560 = vrot.lane.b32.xlu0 %v267, 110
      %v561 = vpop.permute.xlu0 %560
      %562 = vrot.lane.b32.xlu0 %v268, 110
      %v563 = vpop.permute.xlu0 %562
      %vm564 = vcmask 900096
      %v565 = vsel %vm564, %v559, %v561
      %v566 = vsel %vm564, %v561, %v563
      %v570 = vsel %vm280, %v557, 0
      %572 = vmatprep.subr.bf16.mxu0 %v566
      %573 = vmatpush1.bf16.msra.mxu0 %v565
      %574 = vmatprep.subr.bf16.mxu0 0
      %575 = vmatpush1.bf16.msra.mxu0 0
      %576 = vmatprep.subr.bf16.mxu0 0
      %577 = vmatpush1.bf16.msra.mxu0 0
      %578 = vmatprep.subr.bf16.mxu0 0
      %579 = vmatpush1.bf16.msra.mxu0 0
      %580 = vmatprep.subr.bf16.mxu0 0
      %581 = vmatpush1.bf16.msra.mxu0 0
      %582 = vmatprep.subr.bf16.mxu0 0
      %583 = vmatpush1.bf16.msra.mxu0 0
      %584 = vmatprep.subr.bf16.mxu0 0
      %585 = vmatpush1.bf16.msra.mxu0 0
      %586 = vmatprep.subr.bf16.mxu0 0
      %587 = vmatpush1.bf16.msra.mxu0 0
      %588 = vmatprep.subr.bf16.mxu0 0
      %589 = vmatpush1.bf16.msra.mxu0 0
      %590 = vmatprep.subr.bf16.mxu0 0
      %591 = vmatpush1.bf16.msra.mxu0 0
      %592 = vmatprep.subr.bf16.mxu0 0
      %593 = vmatpush1.bf16.msra.mxu0 0
      %594 = vmatprep.subr.bf16.mxu0 0
      %595 = vmatpush1.bf16.msra.mxu0 0
      %596 = vmatprep.subr.bf16.mxu0 0
      %597 = vmatpush1.bf16.msra.mxu0 0
      %598 = vmatprep.subr.bf16.mxu0 0
      %599 = vmatpush1.bf16.msra.mxu0 0
      %600 = vmatprep.subr.bf16.mxu0 0
      %601 = vmatpush1.bf16.msra.mxu0 0
      %602 = vmatprep.subr.bf16.mxu0 0
      %603 = vmatpush1.bf16.msra.mxu0 0
      %604 = vmatprep.mubr.bf16.mxu0 0
      %605 = vmatmul.mubr.bf16.gmra.mrb[0].mxu0 %v570
      %v606 = vpop.f32.mrb[0].mxu0
      %v607 = vadd.f32 0.0, %v606
      %v608 = vpop.f32.mrb[0].mxu0
      %v609 = vadd.f32 0.0, %v608
      %v610 = vpop.f32.mrb[0].mxu0
      %v611 = vpop.f32.mrb[0].mxu0
      %612 = vdwg.mxu0
      %v613 = vadd.f32 %v554, %v607
      %v614 = vadd.f32 %v555, %v609
      %s615 = scalar_lea.vmem %s1, 24
      %v616 = vld [vmem:[%s615] sm:$0xf]
      %617 = vrot.lane.b32.xlu0 %v266, 96
      %v618 = vpop.permute.xlu0 %617
      %619 = vrot.lane.b32.xlu0 %v267, 96
      %v620 = vpop.permute.xlu0 %619
      %621 = vrot.lane.b32.xlu0 %v268, 96
      %v622 = vpop.permute.xlu0 %621
      %vm623 = vcmask 785408
      %v624 = vsel %vm623, %v618, %v620
      %v625 = vsel %vm623, %v620, %v622
      %v629 = vsel %vm280, %v616, 0
      %631 = vmatprep.subr.bf16.mxu0 %v625
      %632 = vmatpush1.bf16.msra.mxu0 %v624
      %633 = vmatprep.subr.bf16.mxu0 0
      %634 = vmatpush1.bf16.msra.mxu0 0
      %635 = vmatprep.subr.bf16.mxu0 0
      %636 = vmatpush1.bf16.msra.mxu0 0
      %637 = vmatprep.subr.bf16.mxu0 0
      %638 = vmatpush1.bf16.msra.mxu0 0
      %639 = vmatprep.subr.bf16.mxu0 0
      %640 = vmatpush1.bf16.msra.mxu0 0
      %641 = vmatprep.subr.bf16.mxu0 0
      %642 = vmatpush1.bf16.msra.mxu0 0
      %643 = vmatprep.subr.bf16.mxu0 0
      %644 = vmatpush1.bf16.msra.mxu0 0
      %645 = vmatprep.subr.bf16.mxu0 0
      %646 = vmatpush1.bf16.msra.mxu0 0
      %647 = vmatprep.subr.bf16.mxu0 0
      %648 = vmatpush1.bf16.msra.mxu0 0
      %649 = vmatprep.subr.bf16.mxu0 0
      %650 = vmatpush1.bf16.msra.mxu0 0
      %651 = vmatprep.subr.bf16.mxu0 0
      %652 = vmatpush1.bf16.msra.mxu0 0
      %653 = vmatprep.subr.bf16.mxu0 0
      %654 = vmatpush1.bf16.msra.mxu0 0
      %655 = vmatprep.subr.bf16.mxu0 0
      %656 = vmatpush1.bf16.msra.mxu0 0
      %657 = vmatprep.subr.bf16.mxu0 0
      %658 = vmatpush1.bf16.msra.mxu0 0
      %659 = vmatprep.subr.bf16.mxu0 0
      %660 = vmatpush1.bf16.msra.mxu0 0
      %661 = vmatprep.subr.bf16.mxu0 0
      %662 = vmatpush1.bf16.msra.mxu0 0
      %663 = vmatprep.mubr.bf16.mxu0 0
      %664 = vmatmul.mubr.bf16.gmra.mrb[0].mxu0 %v629
      %v665 = vpop.f32.mrb[0].mxu0
      %v666 = vadd.f32 0.0, %v665
      %v667 = vpop.f32.mrb[0].mxu0
      %v668 = vadd.f32 0.0, %v667
      %v669 = vpop.f32.mrb[0].mxu0
      %v670 = vpop.f32.mrb[0].mxu0
      %671 = vdwg.mxu0
      %v672 = vadd.f32 %v613, %v666
      %v673 = vadd.f32 %v614, %v668
      %s674 = scalar_lea.vmem %s1, 28
      %v675 = vld [vmem:[%s674] sm:$0xf]
      %676 = vrot.lane.b32.xlu0 %v266, 95
      %v677 = vpop.permute.xlu0 %676
      %678 = vrot.lane.b32.xlu0 %v267, 95
      %v679 = vpop.permute.xlu0 %678
      %680 = vrot.lane.b32.xlu0 %v268, 95
      %v681 = vpop.permute.xlu0 %680
      %vm682 = vcmask 777216
      %v683 = vsel %vm682, %v677, %v679
      %v684 = vsel %vm682, %v679, %v681
      %v688 = vsel %vm280, %v675, 0
      %690 = vmatprep.subr.bf16.mxu0 %v684
      %691 = vmatpush1.bf16.msra.mxu0 %v683
      %692 = vmatprep.subr.bf16.mxu0 0
      %693 = vmatpush1.bf16.msra.mxu0 0
      %694 = vmatprep.subr.bf16.mxu0 0
      %695 = vmatpush1.bf16.msra.mxu0 0
      %696 = vmatprep.subr.bf16.mxu0 0
      %697 = vmatpush1.bf16.msra.mxu0 0
      %698 = vmatprep.subr.bf16.mxu0 0
      %699 = vmatpush1.bf16.msra.mxu0 0
      %700 = vmatprep.subr.bf16.mxu0 0
      %701 = vmatpush1.bf16.msra.mxu0 0
      %702 = vmatprep.subr.bf16.mxu0 0
      %703 = vmatpush1.bf16.msra.mxu0 0
      %704 = vmatprep.subr.bf16.mxu0 0
      %705 = vmatpush1.bf16.msra.mxu0 0
      %706 = vmatprep.subr.bf16.mxu0 0
      %707 = vmatpush1.bf16.msra.mxu0 0
      %708 = vmatprep.subr.bf16.mxu0 0
      %709 = vmatpush1.bf16.msra.mxu0 0
      %710 = vmatprep.subr.bf16.mxu0 0
      %711 = vmatpush1.bf16.msra.mxu0 0
      %712 = vmatprep.subr.bf16.mxu0 0
      %713 = vmatpush1.bf16.msra.mxu0 0
      %714 = vmatprep.subr.bf16.mxu0 0
      %715 = vmatpush1.bf16.msra.mxu0 0
      %716 = vmatprep.subr.bf16.mxu0 0
      %717 = vmatpush1.bf16.msra.mxu0 0
      %718 = vmatprep.subr.bf16.mxu0 0
      %719 = vmatpush1.bf16.msra.mxu0 0
      %720 = vmatprep.subr.bf16.mxu0 0
      %721 = vmatpush1.bf16.msra.mxu0 0
      %722 = vmatprep.mubr.bf16.mxu0 0
      %723 = vmatmul.mubr.bf16.gmra.mrb[0].mxu0 %v688
      %v724 = vpop.f32.mrb[0].mxu0
      %v725 = vadd.f32 0.0, %v724
      %v726 = vpop.f32.mrb[0].mxu0
      %v727 = vadd.f32 0.0, %v726
      %v728 = vpop.f32.mrb[0].mxu0
      %v729 = vpop.f32.mrb[0].mxu0
      %730 = vdwg.mxu0
      %v731 = vadd.f32 %v672, %v725
      %v732 = vadd.f32 %v673, %v727
      %s733 = scalar_lea.vmem %s1, 32
      %v734 = vld [vmem:[%s733] sm:$0xf]
      %735 = vrot.lane.b32.xlu0 %v266, 94
      %v736 = vpop.permute.xlu0 %735
      %737 = vrot.lane.b32.xlu0 %v267, 94
      %v738 = vpop.permute.xlu0 %737
      %739 = vrot.lane.b32.xlu0 %v268, 94
      %v740 = vpop.permute.xlu0 %739
      %vm741 = vcmask 769024
      %v742 = vsel %vm741, %v736, %v738
      %v743 = vsel %vm741, %v738, %v740
      %v747 = vsel %vm280, %v734, 0
      %749 = vmatprep.subr.bf16.mxu0 %v743
      %750 = vmatpush1.bf16.msra.mxu0 %v742
      %751 = vmatprep.subr.bf16.mxu0 0
      %752 = vmatpush1.bf16.msra.mxu0 0
      %753 = vmatprep.subr.bf16.mxu0 0
      %754 = vmatpush1.bf16.msra.mxu0 0
      %755 = vmatprep.subr.bf16.mxu0 0
      %756 = vmatpush1.bf16.msra.mxu0 0
      %757 = vmatprep.subr.bf16.mxu0 0
      %758 = vmatpush1.bf16.msra.mxu0 0
      %759 = vmatprep.subr.bf16.mxu0 0
      %760 = vmatpush1.bf16.msra.mxu0 0
      %761 = vmatprep.subr.bf16.mxu0 0
      %762 = vmatpush1.bf16.msra.mxu0 0
      %763 = vmatprep.subr.bf16.mxu0 0
      %764 = vmatpush1.bf16.msra.mxu0 0
      %765 = vmatprep.subr.bf16.mxu0 0
      %766 = vmatpush1.bf16.msra.mxu0 0
      %767 = vmatprep.subr.bf16.mxu0 0
      %768 = vmatpush1.bf16.msra.mxu0 0
      %769 = vmatprep.subr.bf16.mxu0 0
      %770 = vmatpush1.bf16.msra.mxu0 0
      %771 = vmatprep.subr.bf16.mxu0 0
      %772 = vmatpush1.bf16.msra.mxu0 0
      %773 = vmatprep.subr.bf16.mxu0 0
      %774 = vmatpush1.bf16.msra.mxu0 0
      %775 = vmatprep.subr.bf16.mxu0 0
      %776 = vmatpush1.bf16.msra.mxu0 0
      %777 = vmatprep.subr.bf16.mxu0 0
      %778 = vmatpush1.bf16.msra.mxu0 0
      %779 = vmatprep.subr.bf16.mxu0 0
      %780 = vmatpush1.bf16.msra.mxu0 0
      %781 = vmatprep.mubr.bf16.mxu0 0
      %782 = vmatmul.mubr.bf16.gmra.mrb[0].mxu0 %v747
      %v783 = vpop.f32.mrb[0].mxu0
      %v784 = vadd.f32 0.0, %v783
      %v785 = vpop.f32.mrb[0].mxu0
      %v786 = vadd.f32 0.0, %v785
      %v787 = vpop.f32.mrb[0].mxu0
      %v788 = vpop.f32.mrb[0].mxu0
      %789 = vdwg.mxu0
      %v790 = vadd.f32 %v731, %v784
      %v791 = vadd.f32 %v732, %v786
      %v792 = vld [vmem:[%s2] sm:$0x3]
      %793 = vst [vmem:[%s237] sm:$0xff] %v790
      %794 = vst [vmem:[%s237 + $0x8] sm:$0xff] %v791
      %v796 = vlaneseq
      %v797 = vshrl.u32 %v796, 7
      %v798 = vsub.s32 0, %v797
      %v799 = vrot.slane %v792, %v798
      %v800 = vlaneseq
      %v801 = vshrl.u32 %v800, 7
      %v802 = vsub.s32 1, %v801
      %v803 = vrot.slane %v792, %v802
      %v806 = vmul.f32 %v790, %v799
      %v807 = vmul.f32 %v791, %v803
      %v808 = vadd.f32 %v806, %v807
      %809 = vadd.xlane.f32.xlu0 %v808
      %v810 = vpop.xlane.xlu0 %809
      %vm811 = vcmask 7168
      %812 = vst.msk [vmem:[%s241] sm:$0xff] %vm811, %v810
      %v813 = vmul.f32 %v790, %v790
      %v814 = vmul.f32 %v791, %v791
      %v815 = vmul.f32 %v813, %v799
      %v816 = vmul.f32 %v814, %v803
      %v817 = vadd.f32 %v815, %v816
      %818 = vadd.xlane.f32.xlu0 %v817
      %v819 = vpop.xlane.xlu0 %818
      %820 = vst.msk [vmem:[%s245] sm:$0xff] %vm811, %v819
      %p821 = scmp.lt.s32.totalorder %s17, 1
      %s822 = scalar_select %p821, %s17, 1
      %s823 = smul.addr %s822, 2
      %s824 = smul.addr %s823, 8
      %s825 = scalar_lea.vmem %s3, %s824
      %p826 = scmp.lt.s32.totalorder %s17, 1
      %s827 = scalar_select %p826, %s17, 1
      %s828 = smul.addr %s827, 8
      %s829 = scalar_lea.vmem %s4, %s828
      %p830 = scmp.lt.s32.totalorder %s17, 1
      %s831 = scalar_select %p830, %s17, 1
      %s832 = smul.addr %s831, 8
      %s833 = scalar_lea.vmem %s5, %s832
      // Predicated region
      $region33: #{generator_forward.13} parent=31 // pred_check
        %p834 = pneg %p103
      $region34: #{generator_forward.13} parent=31 // pred_check_branch
        %836 = sbr.rel (%p834) target = $region36
      $region35: #{generator_forward.13} parent=31 // pred_region
        _
      $region36: #{generator_forward.13} parent=31 // pred_fallthru
        _
      // Predicated region
      $region37: #{generator_forward.13} parent=31 // pred_check
        %p837 = pneg %p129
      $region38: #{generator_forward.13} parent=31 // pred_check_branch
        %839 = sbr.rel (%p837) target = $region40
      $region39: #{generator_forward.13} parent=31 // pred_region
        _
      $region40: #{generator_forward.13} parent=31 // pred_fallthru
        _
      // Predicated region
      $region41: #{generator_forward.13} parent=31 // pred_check
        %p840 = pneg %p155
      $region42: #{generator_forward.13} parent=31 // pred_check_branch
        %842 = sbr.rel (%p840) target = $region44
      $region43: #{generator_forward.13} parent=31 // pred_region
        _
      $region44: #{generator_forward.13} parent=31 // pred_fallthru
        _
    $region32: #{generator_forward.13} parent=5 // pred_fallthru
      _
    %p843 = scmp.le.s32.totalorder 2, %s12
    // Predicated region
    $region45: #{generator_forward.13} parent=5 // pred_check
      %p844 = pneg %p843
    $region46: #{generator_forward.13} parent=5 // pred_check_branch
      %846 = sbr.rel (%p844) target = $region48
    $region47: #{generator_forward.13} parent=5 // pred_region
      %s847 = ssub.s32 %s12, 2
      // Predicated region
      $region49: #{generator_forward.13} parent=47 // pred_check
        %p848 = pneg %p109
      $region50: #{generator_forward.13} parent=47 // pred_check_branch
        %850 = sbr.rel (%p848) target = $region52
      $region51: #{generator_forward.13} parent=47 // pred_region
        %p851 = scmp.lt.s32.totalorder %s18, 1
        %s852 = scalar_select %p851, %s18, 1
        %s853 = smul.addr %s852, 2
        %s854 = smul.addr %s853, 8
        %s855 = scalar_lea.vmem %s3, %s854
      $region52: #{generator_forward.13} parent=47 // pred_fallthru
        _
      // Predicated region
      $region53: #{generator_forward.13} parent=47 // pred_check
        %p856 = pneg %p135
      $region54: #{generator_forward.13} parent=47 // pred_check_branch
        %858 = sbr.rel (%p856) target = $region56
      $region55: #{generator_forward.13} parent=47 // pred_region
        %p859 = scmp.lt.s32.totalorder %s18, 1
        %s860 = scalar_select %p859, %s18, 1
        %s861 = smul.addr %s860, 8
        %s862 = scalar_lea.vmem %s4, %s861
      $region56: #{generator_forward.13} parent=47 // pred_fallthru
        _
      // Predicated region
      $region57: #{generator_forward.13} parent=47 // pred_check
        %p863 = pneg %p161
      $region58: #{generator_forward.13} parent=47 // pred_check_branch
        %865 = sbr.rel (%p863) target = $region60
      $region59: #{generator_forward.13} parent=47 // pred_region
        %p866 = scmp.lt.s32.totalorder %s18, 1
        %s867 = scalar_select %p866, %s18, 1
        %s868 = smul.addr %s867, 8
        %s869 = scalar_lea.vmem %s5, %s868
      $region60: #{generator_forward.13} parent=47 // pred_fallthru
        _
    $region48: #{generator_forward.13} parent=5 // pred_fallthru
      _
  $region6: #{generator_forward.13} parent=0 // loop_footer
    %s16 = sadd.s32 1, %s12
  $region7: #{generator_forward.13} parent=0 // loop_footer_branch
    %11 = sbr.rel target = $region3
  $region8: #{generator_forward.13} parent=0 // loop_exit
    _

// kernel: generator_forward.15
$region0: #{generator_forward.15}
  #allocation0 [shape = 'u32[]', space=smem, size = 0x4, offset = 0x4, fixed_abs, tag = 'smem constant byte address 0x4 - core index']
  #allocation1 [shape = 'u32[144,128]{1,0:T(1,128)}', space=vmem, size = 0x12000, scoped, tag = 'internal scratch']
  %s0 = inlined_call_operand.vmem [shape: bf16[2,8,1024], index: 0, kind: input, shape index: {}]
  %s1 = inlined_call_operand.vmem [shape: bf16[9,8,8], index: 1, kind: input, shape index: {}]
  %s2 = inlined_call_operand.vmem [shape: f32[8,1], index: 2, kind: input, shape index: {}]
  %s3 = inlined_call_operand.vmem [shape: f32[2,8,896], index: 3, kind: output, shape index: {}]
  %s4 = sld [smem:[#allocation0]]
  $region45: #{generator_forward.15} parent=0
    _
  %s6 = ssub.s32 1, %s4
  %s7 = scalar_select 0, %s6, %s4
  loop: start=0, step=1, limit=4
  $region2: #{generator_forward.15} parent=0 // loop_pre_header
    _
  $region3: #{generator_forward.15} parent=0 // loop_header
    %s9 = sphi 0, %s13
    %p10 = scmp.ge.s32.totalorder %s9, 4
    %s19 = sphi 0, %s21
    %s22 = sphi 0, %s19
    %s23 = sphi 0, %s22
    %s39 = sphi 0, %s23
    %s43 = sphi 0, %s43
    %s45 = sphi 0, %s43
    %s46 = sphi 0, %s45
    %s60 = sphi 0, %s46
    %s64 = sphi 0, %s64
    %s66 = sphi 0, %s64
    %s67 = sphi 0, %s66
    %s81 = sphi 0, %s67
    %s87 = sphi 0, %s89
    %s90 = sphi 0, %s87
    %s91 = sphi 0, %s90
    %s107 = sphi 0, %s91
  $region4: #{generator_forward.15} parent=0 // loop_header_branch
    %12 = sbr.rel (%p10) target = $region8
  $region5: #{generator_forward.15} parent=0 // loop_body
    %s14 = ssub.s32 %s9, 1
    %s15 = ssub.s32 %s9, 2
    %s16 = sadd.s32 %s9, 1
    %s17 = ssub.s32 %s9, %s16
    %p18 = scmp.eq.s32.totalorder %s17, 0
    %s20 = sadd.s32 %s19, 1
    %s21 = scalar_select %p18, %s19, %s20
    %p24 = pneg %p18
    %p25 = scmp.eq.s32.totalorder %s9, 1
    %p26 = por %p24, %p25
    %p27 = scmp.ne.s32.totalorder %s19, %s22
    %p28 = scmp.eq.s32.totalorder %s9, 0
    %p29 = por %p27, %p28
    %p30 = scmp.ne.s32.totalorder %s19, %s22
    %p31 = scmp.eq.s32.totalorder %s14, 1
    %p32 = por %p30, %p31
    %p33 = scmp.ne.s32.totalorder %s22, %s23
    %p34 = scmp.eq.s32.totalorder %s14, 0
    %p35 = por %p33, %p34
    %p36 = scmp.ne.s32.totalorder %s22, %s23
    %p37 = scmp.eq.s32.totalorder %s15, 1
    %p38 = por %p36, %p37
    %p40 = scmp.ne.s32.totalorder %s23, %s39
    %p41 = scmp.eq.s32.totalorder %s15, 0
    %p42 = por %p40, %p41
    %s44 = sadd.s32 %s43, 1
    %p47 = scmp.eq.s32.totalorder %s9, 1
    %p48 = scmp.ne.s32.totalorder %s43, %s45
    %p49 = scmp.eq.s32.totalorder %s9, 0
    %p50 = por %p48, %p49
    %p51 = scmp.ne.s32.totalorder %s43, %s45
    %p52 = scmp.eq.s32.totalorder %s14, 1
    %p53 = por %p51, %p52
    %p54 = scmp.ne.s32.totalorder %s45, %s46
    %p55 = scmp.eq.s32.totalorder %s14, 0
    %p56 = por %p54, %p55
    %p57 = scmp.ne.s32.totalorder %s45, %s46
    %p58 = scmp.eq.s32.totalorder %s15, 1
    %p59 = por %p57, %p58
    %p61 = scmp.ne.s32.totalorder %s46, %s60
    %p62 = scmp.eq.s32.totalorder %s15, 0
    %p63 = por %p61, %p62
    %s65 = sadd.s32 %s64, 1
    %p68 = scmp.eq.s32.totalorder %s9, 1
    %p69 = scmp.ne.s32.totalorder %s64, %s66
    %p70 = scmp.eq.s32.totalorder %s9, 0
    %p71 = por %p69, %p70
    %p72 = scmp.ne.s32.totalorder %s64, %s66
    %p73 = scmp.eq.s32.totalorder %s14, 1
    %p74 = por %p72, %p73
    %p75 = scmp.ne.s32.totalorder %s66, %s67
    %p76 = scmp.eq.s32.totalorder %s14, 0
    %p77 = por %p75, %p76
    %p78 = scmp.ne.s32.totalorder %s66, %s67
    %p79 = scmp.eq.s32.totalorder %s15, 1
    %p80 = por %p78, %p79
    %p82 = scmp.ne.s32.totalorder %s67, %s81
    %p83 = scmp.eq.s32.totalorder %s15, 0
    %p84 = por %p82, %p83
    %s85 = ssub.s32 %s9, %s16
    %p86 = scmp.eq.s32.totalorder %s85, 0
    %s88 = sadd.s32 %s87, 1
    %s89 = scalar_select %p86, %s87, %s88
    %p92 = pneg %p86
    %p93 = scmp.eq.s32.totalorder %s9, 1
    %p94 = por %p92, %p93
    %p95 = scmp.ne.s32.totalorder %s87, %s90
    %p96 = scmp.eq.s32.totalorder %s9, 0
    %p97 = por %p95, %p96
    %p98 = scmp.ne.s32.totalorder %s87, %s90
    %p99 = scmp.eq.s32.totalorder %s14, 1
    %p100 = por %p98, %p99
    %p101 = scmp.ne.s32.totalorder %s90, %s91
    %p102 = scmp.eq.s32.totalorder %s14, 0
    %p103 = por %p101, %p102
    %p104 = scmp.ne.s32.totalorder %s90, %s91
    %p105 = scmp.eq.s32.totalorder %s15, 1
    %p106 = por %p104, %p105
    %p108 = scmp.ne.s32.totalorder %s91, %s107
    %p109 = scmp.eq.s32.totalorder %s15, 0
    %p110 = por %p108, %p109
    %p111 = scmp.le.s32.totalorder 1, %s9
    %p112 = scmp.lt.s32.totalorder %s9, 3
    %p113 = pnand %p111, %p112
    %p114 = pneg %p113
    // Predicated region
    $region9: #{generator_forward.15} parent=5 // pred_check
      _
    $region10: #{generator_forward.15} parent=5 // pred_check_branch
      %116 = sbr.rel (%p113) target = $region12
    $region11: #{generator_forward.15} parent=5 // pred_region
      %s117 = ssub.s32 %s9, 1
      // Predicated region
      $region13: #{generator_forward.15} parent=11 // pred_check
        %p118 = pneg %p56
      $region14: #{generator_forward.15} parent=11 // pred_check_branch
        %120 = sbr.rel (%p118) target = $region16
      $region15: #{generator_forward.15} parent=11 // pred_region
        _
      $region16: #{generator_forward.15} parent=11 // pred_fallthru
        _
      // Predicated region
      $region17: #{generator_forward.15} parent=11 // pred_check
        %p121 = pneg %p77
      $region18: #{generator_forward.15} parent=11 // pred_check_branch
        %123 = sbr.rel (%p121) target = $region20
      $region19: #{generator_forward.15} parent=11 // pred_region
        _
      $region20: #{generator_forward.15} parent=11 // pred_fallthru
        _
    $region12: #{generator_forward.15} parent=5 // pred_fallthru
      _
    %p124 = scmp.lt.s32.totalorder %s9, 2
    // Predicated region
    $region21: #{generator_forward.15} parent=5 // pred_check
      %p125 = pneg %p124
    $region22: #{generator_forward.15} parent=5 // pred_check_branch
      %127 = sbr.rel (%p125) target = $region24
    $region23: #{generator_forward.15} parent=5 // pred_region
      // Predicated region
      $region25: #{generator_forward.15} parent=23 // pred_check
        %p128 = pneg %p29
      $region26: #{generator_forward.15} parent=23 // pred_check_branch
        %130 = sbr.rel (%p128) target = $region28
      $region27: #{generator_forward.15} parent=23 // pred_region
        %p131 = scmp.lt.s32.totalorder %s9, 1
        %s132 = scalar_select %p131, %s9, 1
        %s133 = smul.addr %s132, 8
        %s134 = smul.addr %s133, 4
        %s135 = scalar_lea.vmem %s0, %s134
      $region28: #{generator_forward.15} parent=23 // pred_fallthru
        _
    $region24: #{generator_forward.15} parent=5 // pred_fallthru
      _
    %p136 = scmp.le.s32.totalorder 1, %s9
    %p137 = scmp.lt.s32.totalorder %s9, 3
    %p138 = pnand %p136, %p137
    %p139 = pneg %p138
    // Predicated region
    $region29: #{generator_forward.15} parent=5 // pred_check
      _
    $region30: #{generator_forward.15} parent=5 // pred_check_branch
      %141 = sbr.rel (%p138) target = $region32
    $region31: #{generator_forward.15} parent=5 // pred_region
      %s142 = ssub.s32 %s9, 1
      %p143 = scmp.lt.s32.totalorder %s14, 1
      %s144 = scalar_select %p143, %s14, 1
      %s145 = smul.addr %s144, 8
      %s146 = smul.addr %s145, 4
      %s147 = scalar_lea.vmem %s0, %s146
      %p148 = pneg %p35
      %p149 = pneg %p32
      %p150 = pneg %p56
      %p151 = pneg %p53
      %p152 = pneg %p77
      %p153 = pneg %p74
      %p154 = pneg %p103
      %p155 = pneg %p100
      %p156 = scmp.lt.s32.totalorder %s14, 1
      %s157 = scalar_select %p156, %s14, 1
      %s158 = smul.addr %s157, 7
      %s159 = smul.addr %s158, 8
      %s160 = scalar_lea.vmem %s3, %s159
      %p161 = scmp.lt.s32.totalorder %s14, 1
      %s162 = scalar_select %p161, %s14, 1
      %s163 = smul.addr %s162, 8
      %s164 = smul.addr %s163, 4
      %s165 = scalar_lea.vmem %s0, %s164
      %p166 = scmp.lt.s32.totalorder %s14, 1
      %s167 = scalar_select %p166, %s14, 1
      %s168 = smul.addr %s167, 7
      %s169 = smul.addr %s168, 8
      %s170 = scalar_lea.vmem %s3, %s169
      %v172 = vld [vmem:[%s1] sm:$0xf]
      %v173 = vld [vmem:[%s165] sm:$0xff]
      %v174 = vld [vmem:[%s165 + $0x8] sm:$0xff]
      %v175 = vld [vmem:[%s165 + $0x10] sm:$0xff]
      %v176 = vld [vmem:[%s165 + $0x18] sm:$0xf]
      %s177 = scalar_lea.vmem %s1, 4
      %v178 = vld [vmem:[%s177] sm:$0xf]
      %v179 = vld [vmem:[%s165] sm:$0xff]
      %v180 = vld [vmem:[%s165 + $0x8] sm:$0xff]
      %v181 = vld [vmem:[%s165 + $0x10] sm:$0xff]
      %v182 = vld [vmem:[%s165 + $0x18] sm:$0xff]
      %v187 = vunpack.c.l.b16 %v179
      %v188 = vunpack.c.h.b16 %v179
      %v189 = vunpack.c.l.b16 %v180
      %v190 = vunpack.c.h.b16 %v180
      %v191 = vunpack.c.l.b16 %v181
      %v192 = vunpack.c.h.b16 %v181
      %v193 = vunpack.c.l.b16 %v182
      %v194 = vunpack.c.h.b16 %v182
      %v195 = vpack.c.b16 %v187, %v187
      %v196 = vpack.c.b16 %v188, %v188
      %v197 = vpack.c.b16 %v189, %v189
      %v198 = vpack.c.b16 %v190, %v190
      %v199 = vpack.c.b16 %v191, %v191
      %v200 = vpack.c.b16 %v192, %v192
      %v201 = vpack.c.b16 %v193, %v193
      %v202 = vpack.c.b16 %v194, %v194
      %203 = vrot.lane.b32.xlu0 %v195, 127
      %v204 = vpop.permute.xlu0 %203
      %205 = vrot.lane.b32.xlu0 %v196, 127
      %v206 = vpop.permute.xlu0 %205
      %207 = vrot.lane.b32.xlu0 %v197, 127
      %v208 = vpop.permute.xlu0 %207
      %209 = vrot.lane.b32.xlu0 %v198, 127
      %v210 = vpop.permute.xlu0 %209
      %211 = vrot.lane.b32.xlu0 %v199, 127
      %v212 = vpop.permute.xlu0 %211
      %213 = vrot.lane.b32.xlu0 %v200, 127
      %v214 = vpop.permute.xlu0 %213
      %215 = vrot.lane.b32.xlu0 %v201, 127
      %v216 = vpop.permute.xlu0 %215
      %217 = vrot.lane.b32.xlu0 %v202, 127
      %v218 = vpop.permute.xlu0 %217
      %vm219 = vcmask 1039360
      %v220 = vsel %vm219, %v204, %v206
      %v221 = vsel %vm219, %v206, %v208
      %v222 = vsel %vm219, %v208, %v210
      %v223 = vsel %vm219, %v210, %v212
      %v224 = vsel %vm219, %v212, %v214
      %v225 = vsel %vm219, %v214, %v216
      %v226 = vsel %vm219, %v216, %v218
      %vm227 = vcmask 64512
      %v229 = vsel %vm227, %v178, 0
      %vm231 = vcmask 1043456
      %v233 = vsel %vm231, %v220, 0
      %v236 = vsel %vm231, %v221, 0
      %v239 = vsel %vm231, %v222, 0
      %v242 = vsel %vm231, %v223, 0
      %v245 = vsel %vm231, %v224, 0
      %v248 = vsel %vm231, %v225, 0
      %v251 = vsel %vm231, %v226, 0
      %253 = vmatprep.subr.bf16.mxu0 %v236
      %254 = vmatpush1.bf16.msra.mxu0 %v233
      %255 = vmatprep.subr.bf16.mxu0 0
      %256 = vmatpush1.bf16.msra.mxu0 0
      %257 = vmatprep.subr.bf16.mxu0 0
      %258 = vmatpush1.bf16.msra.mxu0 0
      %259 = vmatprep.subr.bf16.mxu0 0
      %260 = vmatpush1.bf16.msra.mxu0 0
      %261 = vmatprep.subr.bf16.mxu0 0
      %262 = vmatpush1.bf16.msra.mxu0 0
      %263 = vmatprep.subr.bf16.mxu0 0
      %264 = vmatpush1.bf16.msra.mxu0 0
      %265 = vmatprep.subr.bf16.mxu0 0
      %266 = vmatpush1.bf16.msra.mxu0 0
      %267 = vmatprep.subr.bf16.mxu0 0
      %268 = vmatpush1.bf16.msra.mxu0 0
      %269 = vmatprep.subr.bf16.mxu0 0
      %270 = vmatpush1.bf16.msra.mxu0 0
      %271 = vmatprep.subr.bf16.mxu0 0
      %272 = vmatpush1.bf16.msra.mxu0 0
      %273 = vmatprep.subr.bf16.mxu0 0
      %274 = vmatpush1.bf16.msra.mxu0 0
      %275 = vmatprep.subr.bf16.mxu0 0
      %276 = vmatpush1.bf16.msra.mxu0 0
      %277 = vmatprep.subr.bf16.mxu0 0
      %278 = vmatpush1.bf16.msra.mxu0 0
      %279 = vmatprep.subr.bf16.mxu0 0
      %280 = vmatpush1.bf16.msra.mxu0 0
      %281 = vmatprep.subr.bf16.mxu0 0
      %282 = vmatpush1.bf16.msra.mxu0 0
      %283 = vmatprep.subr.bf16.mxu0 0
      %284 = vmatpush1.bf16.msra.mxu0 0
      %285 = vmatprep.mubr.bf16.mxu0 0
      %286 = vmatmul.mubr.bf16.gmra.mrb[0].mxu0 %v229
      %v287 = vpop.f32.mrb[0].mxu0
      %v288 = vadd.f32 0.0, %v287
      %v289 = vpop.f32.mrb[0].mxu0
      %v290 = vadd.f32 0.0, %v289
      %v291 = vpop.f32.mrb[0].mxu0
      %v292 = vpop.f32.mrb[0].mxu0
      %293 = vdwg.mxu0
      %294 = vmatprep.subr.bf16.mxu0 %v242
      %295 = vmatpush1.bf16.msra.mxu0 %v239
      %296 = vmatprep.subr.bf16.mxu0 0
      %297 = vmatpush1.bf16.msra.mxu0 0
      %298 = vmatprep.subr.bf16.mxu0 0
      %299 = vmatpush1.bf16.msra.mxu0 0
      %300 = vmatprep.subr.bf16.mxu0 0
      %301 = vmatpush1.bf16.msra.mxu0 0
      %302 = vmatprep.subr.bf16.mxu0 0
      %303 = vmatpush1.bf16.msra.mxu0 0
      %304 = vmatprep.subr.bf16.mxu0 0
      %305 = vmatpush1.bf16.msra.mxu0 0
      %306 = vmatprep.subr.bf16.mxu0 0
      %307 = vmatpush1.bf16.msra.mxu0 0
      %308 = vmatprep.subr.bf16.mxu0 0
      %309 = vmatpush1.bf16.msra.mxu0 0
      %310 = vmatprep.subr.bf16.mxu0 0
      %311 = vmatpush1.bf16.msra.mxu0 0
      %312 = vmatprep.subr.bf16.mxu0 0
      %313 = vmatpush1.bf16.msra.mxu0 0
      %314 = vmatprep.subr.bf16.mxu0 0
      %315 = vmatpush1.bf16.msra.mxu0 0
      %316 = vmatprep.subr.bf16.mxu0 0
      %317 = vmatpush1.bf16.msra.mxu0 0
      %318 = vmatprep.subr.bf16.mxu0 0
      %319 = vmatpush1.bf16.msra.mxu0 0
      %320 = vmatprep.subr.bf16.mxu0 0
      %321 = vmatpush1.bf16.msra.mxu0 0
      %322 = vmatprep.subr.bf16.mxu0 0
      %323 = vmatpush1.bf16.msra.mxu0 0
      %324 = vmatprep.subr.bf16.mxu0 0
      %325 = vmatpush1.bf16.msra.mxu0 0
      %326 = vmatprep.mubr.bf16.mxu0 0
      %327 = vmatmul.mubr.bf16.gmra.mrb[0].mxu0 %v229
      %v328 = vpop.f32.mrb[0].mxu0
      %v329 = vadd.f32 0.0, %v328
      %v330 = vpop.f32.mrb[0].mxu0
      %v331 = vadd.f32 0.0, %v330
      %v332 = vpop.f32.mrb[0].mxu0
      %v333 = vpop.f32.mrb[0].mxu0
      %334 = vdwg.mxu0
      %335 = vmatprep.subr.bf16.mxu0 %v248
      %336 = vmatpush1.bf16.msra.mxu0 %v245
      %337 = vmatprep.subr.bf16.mxu0 0
      %338 = vmatpush1.bf16.msra.mxu0 0
      %339 = vmatprep.subr.bf16.mxu0 0
      %340 = vmatpush1.bf16.msra.mxu0 0
      %341 = vmatprep.subr.bf16.mxu0 0
      %342 = vmatpush1.bf16.msra.mxu0 0
      %343 = vmatprep.subr.bf16.mxu0 0
      %344 = vmatpush1.bf16.msra.mxu0 0
      %345 = vmatprep.subr.bf16.mxu0 0
      %346 = vmatpush1.bf16.msra.mxu0 0
      %347 = vmatprep.subr.bf16.mxu0 0
      %348 = vmatpush1.bf16.msra.mxu0 0
      %349 = vmatprep.subr.bf16.mxu0 0
      %350 = vmatpush1.bf16.msra.mxu0 0
      %351 = vmatprep.subr.bf16.mxu0 0
      %352 = vmatpush1.bf16.msra.mxu0 0
      %353 = vmatprep.subr.bf16.mxu0 0
      %354 = vmatpush1.bf16.msra.mxu0 0
      %355 = vmatprep.subr.bf16.mxu0 0
      %356 = vmatpush1.bf16.msra.mxu0 0
      %357 = vmatprep.subr.bf16.mxu0 0
      %358 = vmatpush1.bf16.msra.mxu0 0
      %359 = vmatprep.subr.bf16.mxu0 0
      %360 = vmatpush1.bf16.msra.mxu0 0
      %361 = vmatprep.subr.bf16.mxu0 0
      %362 = vmatpush1.bf16.msra.mxu0 0
      %363 = vmatprep.subr.bf16.mxu0 0
      %364 = vmatpush1.bf16.msra.mxu0 0
      %365 = vmatprep.subr.bf16.mxu0 0
      %366 = vmatpush1.bf16.msra.mxu0 0
      %367 = vmatprep.mubr.bf16.mxu0 0
      %368 = vmatmul.mubr.bf16.gmra.mrb[0].mxu0 %v229
      %v369 = vpop.f32.mrb[0].mxu0
      %v370 = vadd.f32 0.0, %v369
      %v371 = vpop.f32.mrb[0].mxu0
      %v372 = vadd.f32 0.0, %v371
      %v373 = vpop.f32.mrb[0].mxu0
      %v374 = vpop.f32.mrb[0].mxu0
      %375 = vdwg.mxu0
      %376 = vmatprep.subr.bf16.mxu0 0
      %377 = vmatpush1.bf16.msra.mxu0 %v251
      %378 = vmatprep.subr.bf16.mxu0 0
      %379 = vmatpush1.bf16.msra.mxu0 0
      %380 = vmatprep.subr.bf16.mxu0 0
      %381 = vmatpush1.bf16.msra.mxu0 0
      %382 = vmatprep.subr.bf16.mxu0 0
      %383 = vmatpush1.bf16.msra.mxu0 0
      %384 = vmatprep.subr.bf16.mxu0 0
      %385 = vmatpush1.bf16.msra.mxu0 0
      %386 = vmatprep.subr.bf16.mxu0 0
      %387 = vmatpush1.bf16.msra.mxu0 0
      %388 = vmatprep.subr.bf16.mxu0 0
      %389 = vmatpush1.bf16.msra.mxu0 0
      %390 = vmatprep.subr.bf16.mxu0 0
      %391 = vmatpush1.bf16.msra.mxu0 0
      %392 = vmatprep.subr.bf16.mxu0 0
      %393 = vmatpush1.bf16.msra.mxu0 0
      %394 = vmatprep.subr.bf16.mxu0 0
      %395 = vmatpush1.bf16.msra.mxu0 0
      %396 = vmatprep.subr.bf16.mxu0 0
      %397 = vmatpush1.bf16.msra.mxu0 0
      %398 = vmatprep.subr.bf16.mxu0 0
      %399 = vmatpush1.bf16.msra.mxu0 0
      %400 = vmatprep.subr.bf16.mxu0 0
      %401 = vmatpush1.bf16.msra.mxu0 0
      %402 = vmatprep.subr.bf16.mxu0 0
      %403 = vmatpush1.bf16.msra.mxu0 0
      %404 = vmatprep.subr.bf16.mxu0 0
      %405 = vmatpush1.bf16.msra.mxu0 0
      %406 = vmatprep.subr.bf16.mxu0 0
      %407 = vmatpush1.bf16.msra.mxu0 0
      %408 = vmatprep.mubr.bf16.mxu0 0
      %409 = vmatmul.mubr.bf16.gmra.mrb[0].mxu0 %v229
      %v410 = vpop.f32.mrb[0].mxu0
      %v411 = vadd.f32 0.0, %v410
      %v412 = vpop.f32.mrb[0].mxu0
      %v413 = vpop.f32.mrb[0].mxu0
      %v414 = vpop.f32.mrb[0].mxu0
      %415 = vdwg.mxu0
      %v420 = vunpack.c.l.b16 %v173
      %v421 = vunpack.c.h.b16 %v173
      %v422 = vunpack.c.l.b16 %v174
      %v423 = vunpack.c.h.b16 %v174
      %v424 = vunpack.c.l.b16 %v175
      %v425 = vunpack.c.h.b16 %v175
      %v426 = vunpack.c.l.b16 %v176
      %v427 = vpack.c.b16 %v420, %v420
      %v428 = vpack.c.b16 %v421, %v421
      %v429 = vpack.c.b16 %v422, %v422
      %v430 = vpack.c.b16 %v423, %v423
      %v431 = vpack.c.b16 %v424, %v424
      %v432 = vpack.c.b16 %v425, %v425
      %v433 = vpack.c.b16 %v426, %v426
      %v435 = vsel %vm227, %v172, 0
      %v438 = vsel %vm231, %v427, 0
      %v441 = vsel %vm231, %v428, 0
      %v444 = vsel %vm231, %v429, 0
      %v447 = vsel %vm231, %v430, 0
      %v450 = vsel %vm231, %v431, 0
      %v453 = vsel %vm231, %v432, 0
      %v456 = vsel %vm231, %v433, 0
      %458 = vmatprep.subr.bf16.mxu0 %v441
      %459 = vmatpush1.bf16.msra.mxu0 %v438
      %460 = vmatprep.subr.bf16.mxu0 0
      %461 = vmatpush1.bf16.msra.mxu0 0
      %462 = vmatprep.subr.bf16.mxu0 0
      %463 = vmatpush1.bf16.msra.mxu0 0
      %464 = vmatprep.subr.bf16.mxu0 0
      %465 = vmatpush1.bf16.msra.mxu0 0
      %466 = vmatprep.subr.bf16.mxu0 0
      %467 = vmatpush1.bf16.msra.mxu0 0
      %468 = vmatprep.subr.bf16.mxu0 0
      %469 = vmatpush1.bf16.msra.mxu0 0
      %470 = vmatprep.subr.bf16.mxu0 0
      %471 = vmatpush1.bf16.msra.mxu0 0
      %472 = vmatprep.subr.bf16.mxu0 0
      %473 = vmatpush1.bf16.msra.mxu0 0
      %474 = vmatprep.subr.bf16.mxu0 0
      %475 = vmatpush1.bf16.msra.mxu0 0
      %476 = vmatprep.subr.bf16.mxu0 0
      %477 = vmatpush1.bf16.msra.mxu0 0
      %478 = vmatprep.subr.bf16.mxu0 0
      %479 = vmatpush1.bf16.msra.mxu0 0
      %480 = vmatprep.subr.bf16.mxu0 0
      %481 = vmatpush1.bf16.msra.mxu0 0
      %482 = vmatprep.subr.bf16.mxu0 0
      %483 = vmatpush1.bf16.msra.mxu0 0
      %484 = vmatprep.subr.bf16.mxu0 0
      %485 = vmatpush1.bf16.msra.mxu0 0
      %486 = vmatprep.subr.bf16.mxu0 0
      %487 = vmatpush1.bf16.msra.mxu0 0
      %488 = vmatprep.subr.bf16.mxu0 0
      %489 = vmatpush1.bf16.msra.mxu0 0
      %490 = vmatprep.mubr.bf16.mxu0 0
      %491 = vmatmul.mubr.bf16.gmra.mrb[0].mxu0 %v435
      %v492 = vpop.f32.mrb[0].mxu0
      %v493 = vadd.f32 %v288, %v492
      %v494 = vpop.f32.mrb[0].mxu0
      %v495 = vadd.f32 %v290, %v494
      %v496 = vpop.f32.mrb[0].mxu0
      %v497 = vpop.f32.mrb[0].mxu0
      %498 = vdwg.mxu0
      %499 = vmatprep.subr.bf16.mxu0 %v447
      %500 = vmatpush1.bf16.msra.mxu0 %v444
      %501 = vmatprep.subr.bf16.mxu0 0
      %502 = vmatpush1.bf16.msra.mxu0 0
      %503 = vmatprep.subr.bf16.mxu0 0
      %504 = vmatpush1.bf16.msra.mxu0 0
      %505 = vmatprep.subr.bf16.mxu0 0
      %506 = vmatpush1.bf16.msra.mxu0 0
      %507 = vmatprep.subr.bf16.mxu0 0
      %508 = vmatpush1.bf16.msra.mxu0 0
      %509 = vmatprep.subr.bf16.mxu0 0
      %510 = vmatpush1.bf16.msra.mxu0 0
      %511 = vmatprep.subr.bf16.mxu0 0
      %512 = vmatpush1.bf16.msra.mxu0 0
      %513 = vmatprep.subr.bf16.mxu0 0
      %514 = vmatpush1.bf16.msra.mxu0 0
      %515 = vmatprep.subr.bf16.mxu0 0
      %516 = vmatpush1.bf16.msra.mxu0 0
      %517 = vmatprep.subr.bf16.mxu0 0
      %518 = vmatpush1.bf16.msra.mxu0 0
      %519 = vmatprep.subr.bf16.mxu0 0
      %520 = vmatpush1.bf16.msra.mxu0 0
      %521 = vmatprep.subr.bf16.mxu0 0
      %522 = vmatpush1.bf16.msra.mxu0 0
      %523 = vmatprep.subr.bf16.mxu0 0
      %524 = vmatpush1.bf16.msra.mxu0 0
      %525 = vmatprep.subr.bf16.mxu0 0
      %526 = vmatpush1.bf16.msra.mxu0 0
      %527 = vmatprep.subr.bf16.mxu0 0
      %528 = vmatpush1.bf16.msra.mxu0 0
      %529 = vmatprep.subr.bf16.mxu0 0
      %530 = vmatpush1.bf16.msra.mxu0 0
      %531 = vmatprep.mubr.bf16.mxu0 0
      %532 = vmatmul.mubr.bf16.gmra.mrb[0].mxu0 %v435
      %v533 = vpop.f32.mrb[0].mxu0
      %v534 = vadd.f32 %v329, %v533
      %v535 = vpop.f32.mrb[0].mxu0
      %v536 = vadd.f32 %v331, %v535
      %v537 = vpop.f32.mrb[0].mxu0
      %v538 = vpop.f32.mrb[0].mxu0
      %539 = vdwg.mxu0
      %540 = vmatprep.subr.bf16.mxu0 %v453
      %541 = vmatpush1.bf16.msra.mxu0 %v450
      %542 = vmatprep.subr.bf16.mxu0 0
      %543 = vmatpush1.bf16.msra.mxu0 0
      %544 = vmatprep.subr.bf16.mxu0 0
      %545 = vmatpush1.bf16.msra.mxu0 0
      %546 = vmatprep.subr.bf16.mxu0 0
      %547 = vmatpush1.bf16.msra.mxu0 0
      %548 = vmatprep.subr.bf16.mxu0 0
      %549 = vmatpush1.bf16.msra.mxu0 0
      %550 = vmatprep.subr.bf16.mxu0 0
      %551 = vmatpush1.bf16.msra.mxu0 0
      %552 = vmatprep.subr.bf16.mxu0 0
      %553 = vmatpush1.bf16.msra.mxu0 0
      %554 = vmatprep.subr.bf16.mxu0 0
      %555 = vmatpush1.bf16.msra.mxu0 0
      %556 = vmatprep.subr.bf16.mxu0 0
      %557 = vmatpush1.bf16.msra.mxu0 0
      %558 = vmatprep.subr.bf16.mxu0 0
      %559 = vmatpush1.bf16.msra.mxu0 0
      %560 = vmatprep.subr.bf16.mxu0 0
      %561 = vmatpush1.bf16.msra.mxu0 0
      %562 = vmatprep.subr.bf16.mxu0 0
      %563 = vmatpush1.bf16.msra.mxu0 0
      %564 = vmatprep.subr.bf16.mxu0 0
      %565 = vmatpush1.bf16.msra.mxu0 0
      %566 = vmatprep.subr.bf16.mxu0 0
      %567 = vmatpush1.bf16.msra.mxu0 0
      %568 = vmatprep.subr.bf16.mxu0 0
      %569 = vmatpush1.bf16.msra.mxu0 0
      %570 = vmatprep.subr.bf16.mxu0 0
      %571 = vmatpush1.bf16.msra.mxu0 0
      %572 = vmatprep.mubr.bf16.mxu0 0
      %573 = vmatmul.mubr.bf16.gmra.mrb[0].mxu0 %v435
      %v574 = vpop.f32.mrb[0].mxu0
      %v575 = vadd.f32 %v370, %v574
      %v576 = vpop.f32.mrb[0].mxu0
      %v577 = vadd.f32 %v372, %v576
      %v578 = vpop.f32.mrb[0].mxu0
      %v579 = vpop.f32.mrb[0].mxu0
      %580 = vdwg.mxu0
      %581 = vmatprep.subr.bf16.mxu0 0
      %582 = vmatpush1.bf16.msra.mxu0 %v456
      %583 = vmatprep.subr.bf16.mxu0 0
      %584 = vmatpush1.bf16.msra.mxu0 0
      %585 = vmatprep.subr.bf16.mxu0 0
      %586 = vmatpush1.bf16.msra.mxu0 0
      %587 = vmatprep.subr.bf16.mxu0 0
      %588 = vmatpush1.bf16.msra.mxu0 0
      %589 = vmatprep.subr.bf16.mxu0 0
      %590 = vmatpush1.bf16.msra.mxu0 0
      %591 = vmatprep.subr.bf16.mxu0 0
      %592 = vmatpush1.bf16.msra.mxu0 0
      %593 = vmatprep.subr.bf16.mxu0 0
      %594 = vmatpush1.bf16.msra.mxu0 0
      %595 = vmatprep.subr.bf16.mxu0 0
      %596 = vmatpush1.bf16.msra.mxu0 0
      %597 = vmatprep.subr.bf16.mxu0 0
      %598 = vmatpush1.bf16.msra.mxu0 0
      %599 = vmatprep.subr.bf16.mxu0 0
      %600 = vmatpush1.bf16.msra.mxu0 0
      %601 = vmatprep.subr.bf16.mxu0 0
      %602 = vmatpush1.bf16.msra.mxu0 0
      %603 = vmatprep.subr.bf16.mxu0 0
      %604 = vmatpush1.bf16.msra.mxu0 0
      %605 = vmatprep.subr.bf16.mxu0 0
      %606 = vmatpush1.bf16.msra.mxu0 0
      %607 = vmatprep.subr.bf16.mxu0 0
      %608 = vmatpush1.bf16.msra.mxu0 0
      %609 = vmatprep.subr.bf16.mxu0 0
      %610 = vmatpush1.bf16.msra.mxu0 0
      %611 = vmatprep.subr.bf16.mxu0 0
      %612 = vmatpush1.bf16.msra.mxu0 0
      %613 = vmatprep.mubr.bf16.mxu0 0
      %614 = vmatmul.mubr.bf16.gmra.mrb[0].mxu0 %v435
      %v615 = vpop.f32.mrb[0].mxu0
      %v616 = vadd.f32 %v411, %v615
      %v617 = vpop.f32.mrb[0].mxu0
      %v618 = vpop.f32.mrb[0].mxu0
      %v619 = vpop.f32.mrb[0].mxu0
      %620 = vdwg.mxu0
      %s621 = scalar_lea.vmem %s1, 8
      %v622 = vld [vmem:[%s621] sm:$0xf]
      %623 = vrot.lane.b32.xlu0 %v195, 126
      %v624 = vpop.permute.xlu0 %623
      %625 = vrot.lane.b32.xlu0 %v196, 126
      %v626 = vpop.permute.xlu0 %625
      %627 = vrot.lane.b32.xlu0 %v197, 126
      %v628 = vpop.permute.xlu0 %627
      %629 = vrot.lane.b32.xlu0 %v198, 126
      %v630 = vpop.permute.xlu0 %629
      %631 = vrot.lane.b32.xlu0 %v199, 126
      %v632 = vpop.permute.xlu0 %631
      %633 = vrot.lane.b32.xlu0 %v200, 126
      %v634 = vpop.permute.xlu0 %633
      %635 = vrot.lane.b32.xlu0 %v201, 126
      %v636 = vpop.permute.xlu0 %635
      %637 = vrot.lane.b32.xlu0 %v202, 126
      %v638 = vpop.permute.xlu0 %637
      %vm639 = vcmask 1031168
      %v640 = vsel %vm639, %v624, %v626
      %v641 = vsel %vm639, %v626, %v628
      %v642 = vsel %vm639, %v628, %v630
      %v643 = vsel %vm639, %v630, %v632
      %v644 = vsel %vm639, %v632, %v634
      %v645 = vsel %vm639, %v634, %v636
      %v646 = vsel %vm639, %v636, %v638
      %v648 = vsel %vm227, %v622, 0
      %v651 = vsel %vm231, %v640, 0
      %v654 = vsel %vm231, %v641, 0
      %v657 = vsel %vm231, %v642, 0
      %v660 = vsel %vm231, %v643, 0
      %v663 = vsel %vm231, %v644, 0
      %v666 = vsel %vm231, %v645, 0
      %v669 = vsel %vm231, %v646, 0
      %671 = vmatprep.subr.bf16.mxu0 %v654
      %672 = vmatpush1.bf16.msra.mxu0 %v651
      %673 = vmatprep.subr.bf16.mxu0 0
      %674 = vmatpush1.bf16.msra.mxu0 0
      %675 = vmatprep.subr.bf16.mxu0 0
      %676 = vmatpush1.bf16.msra.mxu0 0
      %677 = vmatprep.subr.bf16.mxu0 0
      %678 = vmatpush1.bf16.msra.mxu0 0
      %679 = vmatprep.subr.bf16.mxu0 0
      %680 = vmatpush1.bf16.msra.mxu0 0
      %681 = vmatprep.subr.bf16.mxu0 0
      %682 = vmatpush1.bf16.msra.mxu0 0
      %683 = vmatprep.subr.bf16.mxu0 0
      %684 = vmatpush1.bf16.msra.mxu0 0
      %685 = vmatprep.subr.bf16.mxu0 0
      %686 = vmatpush1.bf16.msra.mxu0 0
      %687 = vmatprep.subr.bf16.mxu0 0
      %688 = vmatpush1.bf16.msra.mxu0 0
      %689 = vmatprep.subr.bf16.mxu0 0
      %690 = vmatpush1.bf16.msra.mxu0 0
      %691 = vmatprep.subr.bf16.mxu0 0
      %692 = vmatpush1.bf16.msra.mxu0 0
      %693 = vmatprep.subr.bf16.mxu0 0
      %694 = vmatpush1.bf16.msra.mxu0 0
      %695 = vmatprep.subr.bf16.mxu0 0
      %696 = vmatpush1.bf16.msra.mxu0 0
      %697 = vmatprep.subr.bf16.mxu0 0
      %698 = vmatpush1.bf16.msra.mxu0 0
      %699 = vmatprep.subr.bf16.mxu0 0
      %700 = vmatpush1.bf16.msra.mxu0 0
      %701 = vmatprep.subr.bf16.mxu0 0
      %702 = vmatpush1.bf16.msra.mxu0 0
      %703 = vmatprep.mubr.bf16.mxu0 0
      %704 = vmatmul.mubr.bf16.gmra.mrb[0].mxu0 %v648
      %v705 = vpop.f32.mrb[0].mxu0
      %v706 = vadd.f32 0.0, %v705
      %v707 = vpop.f32.mrb[0].mxu0
      %v708 = vadd.f32 0.0, %v707
      %v709 = vpop.f32.mrb[0].mxu0
      %v710 = vpop.f32.mrb[0].mxu0
      %711 = vdwg.mxu0
      %712 = vmatprep.subr.bf16.mxu0 %v660
      %713 = vmatpush1.bf16.msra.mxu0 %v657
      %714 = vmatprep.subr.bf16.mxu0 0
      %715 = vmatpush1.bf16.msra.mxu0 0
      %716 = vmatprep.subr.bf16.mxu0 0
      %717 = vmatpush1.bf16.msra.mxu0 0
      %718 = vmatprep.subr.bf16.mxu0 0
      %719 = vmatpush1.bf16.msra.mxu0 0
      %720 = vmatprep.subr.bf16.mxu0 0
      %721 = vmatpush1.bf16.msra.mxu0 0
      %722 = vmatprep.subr.bf16.mxu0 0
      %723 = vmatpush1.bf16.msra.mxu0 0
      %724 = vmatprep.subr.bf16.mxu0 0
      %725 = vmatpush1.bf16.msra.mxu0 0
      %726 = vmatprep.subr.bf16.mxu0 0
      %727 = vmatpush1.bf16.msra.mxu0 0
      %728 = vmatprep.subr.bf16.mxu0 0
      %729 = vmatpush1.bf16.msra.mxu0 0
      %730 = vmatprep.subr.bf16.mxu0 0
      %731 = vmatpush1.bf16.msra.mxu0 0
      %732 = vmatprep.subr.bf16.mxu0 0
      %733 = vmatpush1.bf16.msra.mxu0 0
      %734 = vmatprep.subr.bf16.mxu0 0
      %735 = vmatpush1.bf16.msra.mxu0 0
      %736 = vmatprep.subr.bf16.mxu0 0
      %737 = vmatpush1.bf16.msra.mxu0 0
      %738 = vmatprep.subr.bf16.mxu0 0
      %739 = vmatpush1.bf16.msra.mxu0 0
      %740 = vmatprep.subr.bf16.mxu0 0
      %741 = vmatpush1.bf16.msra.mxu0 0
      %742 = vmatprep.subr.bf16.mxu0 0
      %743 = vmatpush1.bf16.msra.mxu0 0
      %744 = vmatprep.mubr.bf16.mxu0 0
      %745 = vmatmul.mubr.bf16.gmra.mrb[0].mxu0 %v648
      %v746 = vpop.f32.mrb[0].mxu0
      %v747 = vadd.f32 0.0, %v746
      %v748 = vpop.f32.mrb[0].mxu0
      %v749 = vadd.f32 0.0, %v748
      %v750 = vpop.f32.mrb[0].mxu0
      %v751 = vpop.f32.mrb[0].mxu0
      %752 = vdwg.mxu0
      %753 = vmatprep.subr.bf16.mxu0 %v666
      %754 = vmatpush1.bf16.msra.mxu0 %v663
      %755 = vmatprep.subr.bf16.mxu0 0
      %756 = vmatpush1.bf16.msra.mxu0 0
      %757 = vmatprep.subr.bf16.mxu0 0
      %758 = vmatpush1.bf16.msra.mxu0 0
      %759 = vmatprep.subr.bf16.mxu0 0
      %760 = vmatpush1.bf16.msra.mxu0 0
      %761 = vmatprep.subr.bf16.mxu0 0
      %762 = vmatpush1.bf16.msra.mxu0 0
      %763 = vmatprep.subr.bf16.mxu0 0
      %764 = vmatpush1.bf16.msra.mxu0 0
      %765 = vmatprep.subr.bf16.mxu0 0
      %766 = vmatpush1.bf16.msra.mxu0 0
      %767 = vmatprep.subr.bf16.mxu0 0
      %768 = vmatpush1.bf16.msra.mxu0 0
      %769 = vmatprep.subr.bf16.mxu0 0
      %770 = vmatpush1.bf16.msra.mxu0 0
      %771 = vmatprep.subr.bf16.mxu0 0
      %772 = vmatpush1.bf16.msra.mxu0 0
      %773 = vmatprep.subr.bf16.mxu0 0
      %774 = vmatpush1.bf16.msra.mxu0 0
      %775 = vmatprep.subr.bf16.mxu0 0
      %776 = vmatpush1.bf16.msra.mxu0 0
      %777 = vmatprep.subr.bf16.mxu0 0
      %778 = vmatpush1.bf16.msra.mxu0 0
      %779 = vmatprep.subr.bf16.mxu0 0
      %780 = vmatpush1.bf16.msra.mxu0 0
      %781 = vmatprep.subr.bf16.mxu0 0
      %782 = vmatpush1.bf16.msra.mxu0 0
      %783 = vmatprep.subr.bf16.mxu0 0
      %784 = vmatpush1.bf16.msra.mxu0 0
      %785 = vmatprep.mubr.bf16.mxu0 0
      %786 = vmatmul.mubr.bf16.gmra.mrb[0].mxu0 %v648
      %v787 = vpop.f32.mrb[0].mxu0
      %v788 = vadd.f32 0.0, %v787
      %v789 = vpop.f32.mrb[0].mxu0
      %v790 = vadd.f32 0.0, %v789
      %v791 = vpop.f32.mrb[0].mxu0
      %v792 = vpop.f32.mrb[0].mxu0
      %793 = vdwg.mxu0
      %794 = vmatprep.subr.bf16.mxu0 0
      %795 = vmatpush1.bf16.msra.mxu0 %v669
      %796 = vmatprep.subr.bf16.mxu0 0
      %797 = vmatpush1.bf16.msra.mxu0 0
      %798 = vmatprep.subr.bf16.mxu0 0
      %799 = vmatpush1.bf16.msra.mxu0 0
      %800 = vmatprep.subr.bf16.mxu0 0
      %801 = vmatpush1.bf16.msra.mxu0 0
      %802 = vmatprep.subr.bf16.mxu0 0
      %803 = vmatpush1.bf16.msra.mxu0 0
      %804 = vmatprep.subr.bf16.mxu0 0
      %805 = vmatpush1.bf16.msra.mxu0 0
      %806 = vmatprep.subr.bf16.mxu0 0
      %807 = vmatpush1.bf16.msra.mxu0 0
      %808 = vmatprep.subr.bf16.mxu0 0
      %809 = vmatpush1.bf16.msra.mxu0 0
      %810 = vmatprep.subr.bf16.mxu0 0
      %811 = vmatpush1.bf16.msra.mxu0 0
      %812 = vmatprep.subr.bf16.mxu0 0
      %813 = vmatpush1.bf16.msra.mxu0 0
      %814 = vmatprep.subr.bf16.mxu0 0
      %815 = vmatpush1.bf16.msra.mxu0 0
      %816 = vmatprep.subr.bf16.mxu0 0
      %817 = vmatpush1.bf16.msra.mxu0 0
      %818 = vmatprep.subr.bf16.mxu0 0
      %819 = vmatpush1.bf16.msra.mxu0 0
      %820 = vmatprep.subr.bf16.mxu0 0
      %821 = vmatpush1.bf16.msra.mxu0 0
      %822 = vmatprep.subr.bf16.mxu0 0
      %823 = vmatpush1.bf16.msra.mxu0 0
      %824 = vmatprep.subr.bf16.mxu0 0
      %825 = vmatpush1.bf16.msra.mxu0 0
      %826 = vmatprep.mubr.bf16.mxu0 0
      %827 = vmatmul.mubr.bf16.gmra.mrb[0].mxu0 %v648
      %v828 = vpop.f32.mrb[0].mxu0
      %v829 = vadd.f32 0.0, %v828
      %v830 = vpop.f32.mrb[0].mxu0
      %v831 = vpop.f32.mrb[0].mxu0
      %v832 = vpop.f32.mrb[0].mxu0
      %833 = vdwg.mxu0
      %v834 = vadd.f32 %v493, %v706
      %v835 = vadd.f32 %v495, %v708
      %v836 = vadd.f32 %v534, %v747
      %v837 = vadd.f32 %v536, %v749
      %v838 = vadd.f32 %v575, %v788
      %v839 = vadd.f32 %v577, %v790
      %v840 = vadd.f32 %v616, %v829
      %s841 = scalar_lea.vmem %s1, 12
      %v842 = vld [vmem:[%s841] sm:$0xf]
      %843 = vrot.lane.b32.xlu0 %v195, 98
      %v844 = vpop.permute.xlu0 %843
      %845 = vrot.lane.b32.xlu0 %v196, 98
      %v846 = vpop.permute.xlu0 %845
      %847 = vrot.lane.b32.xlu0 %v197, 98
      %v848 = vpop.permute.xlu0 %847
      %849 = vrot.lane.b32.xlu0 %v198, 98
      %v850 = vpop.permute.xlu0 %849
      %851 = vrot.lane.b32.xlu0 %v199, 98
      %v852 = vpop.permute.xlu0 %851
      %853 = vrot.lane.b32.xlu0 %v200, 98
      %v854 = vpop.permute.xlu0 %853
      %855 = vrot.lane.b32.xlu0 %v201, 98
      %v856 = vpop.permute.xlu0 %855
      %857 = vrot.lane.b32.xlu0 %v202, 98
      %v858 = vpop.permute.xlu0 %857
      %vm859 = vcmask 801792
      %v860 = vsel %vm859, %v844, %v846
      %v861 = vsel %vm859, %v846, %v848
      %v862 = vsel %vm859, %v848, %v850
      %v863 = vsel %vm859, %v850, %v852
      %v864 = vsel %vm859, %v852, %v854
      %v865 = vsel %vm859, %v854, %v856
      %v866 = vsel %vm859, %v856, %v858
      %v868 = vsel %vm227, %v842, 0
      %v871 = vsel %vm231, %v860, 0
      %v874 = vsel %vm231, %v861, 0
      %v877 = vsel %vm231, %v862, 0
      %v880 = vsel %vm231, %v863, 0
      %v883 = vsel %vm231, %v864, 0
      %v886 = vsel %vm231, %v865, 0
      %v889 = vsel %vm231, %v866, 0
      %891 = vmatprep.subr.bf16.mxu0 %v874
      %892 = vmatpush1.bf16.msra.mxu0 %v871
      %893 = vmatprep.subr.bf16.mxu0 0
      %894 = vmatpush1.bf16.msra.mxu0 0
      %895 = vmatprep.subr.bf16.mxu0 0
      %896 = vmatpush1.bf16.msra.mxu0 0
      %897 = vmatprep.subr.bf16.mxu0 0
      %898 = vmatpush1.bf16.msra.mxu0 0
      %899 = vmatprep.subr.bf16.mxu0 0
      %900 = vmatpush1.bf16.msra.mxu0 0
      %901 = vmatprep.subr.bf16.mxu0 0
      %902 = vmatpush1.bf16.msra.mxu0 0
      %903 = vmatprep.subr.bf16.mxu0 0
      %904 = vmatpush1.bf16.msra.mxu0 0
      %905 = vmatprep.subr.bf16.mxu0 0
      %906 = vmatpush1.bf16.msra.mxu0 0
      %907 = vmatprep.subr.bf16.mxu0 0
      %908 = vmatpush1.bf16.msra.mxu0 0
      %909 = vmatprep.subr.bf16.mxu0 0
      %910 = vmatpush1.bf16.msra.mxu0 0
      %911 = vmatprep.subr.bf16.mxu0 0
      %912 = vmatpush1.bf16.msra.mxu0 0
      %913 = vmatprep.subr.bf16.mxu0 0
      %914 = vmatpush1.bf16.msra.mxu0 0
      %915 = vmatprep.subr.bf16.mxu0 0
      %916 = vmatpush1.bf16.msra.mxu0 0
      %917 = vmatprep.subr.bf16.mxu0 0
      %918 = vmatpush1.bf16.msra.mxu0 0
      %919 = vmatprep.subr.bf16.mxu0 0
      %920 = vmatpush1.bf16.msra.mxu0 0
      %921 = vmatprep.subr.bf16.mxu0 0
      %922 = vmatpush1.bf16.msra.mxu0 0
      %923 = vmatprep.mubr.bf16.mxu0 0
      %924 = vmatmul.mubr.bf16.gmra.mrb[0].mxu0 %v868
      %v925 = vpop.f32.mrb[0].mxu0
      %v926 = vadd.f32 0.0, %v925
      %v927 = vpop.f32.mrb[0].mxu0
      %v928 = vadd.f32 0.0, %v927
      %v929 = vpop.f32.mrb[0].mxu0
      %v930 = vpop.f32.mrb[0].mxu0
      %931 = vdwg.mxu0
      %932 = vmatprep.subr.bf16.mxu0 %v880
      %933 = vmatpush1.bf16.msra.mxu0 %v877
      %934 = vmatprep.subr.bf16.mxu0 0
      %935 = vmatpush1.bf16.msra.mxu0 0
      %936 = vmatprep.subr.bf16.mxu0 0
      %937 = vmatpush1.bf16.msra.mxu0 0
      %938 = vmatprep.subr.bf16.mxu0 0
      %939 = vmatpush1.bf16.msra.mxu0 0
      %940 = vmatprep.subr.bf16.mxu0 0
      %941 = vmatpush1.bf16.msra.mxu0 0
      %942 = vmatprep.subr.bf16.mxu0 0
      %943 = vmatpush1.bf16.msra.mxu0 0
      %944 = vmatprep.subr.bf16.mxu0 0
      %945 = vmatpush1.bf16.msra.mxu0 0
      %946 = vmatprep.subr.bf16.mxu0 0
      %947 = vmatpush1.bf16.msra.mxu0 0
      %948 = vmatprep.subr.bf16.mxu0 0
      %949 = vmatpush1.bf16.msra.mxu0 0
      %950 = vmatprep.subr.bf16.mxu0 0
      %951 = vmatpush1.bf16.msra.mxu0 0
      %952 = vmatprep.subr.bf16.mxu0 0
      %953 = vmatpush1.bf16.msra.mxu0 0
      %954 = vmatprep.subr.bf16.mxu0 0
      %955 = vmatpush1.bf16.msra.mxu0 0
      %956 = vmatprep.subr.bf16.mxu0 0
      %957 = vmatpush1.bf16.msra.mxu0 0
      %958 = vmatprep.subr.bf16.mxu0 0
      %959 = vmatpush1.bf16.msra.mxu0 0
      %960 = vmatprep.subr.bf16.mxu0 0
      %961 = vmatpush1.bf16.msra.mxu0 0
      %962 = vmatprep.subr.bf16.mxu0 0
      %963 = vmatpush1.bf16.msra.mxu0 0
      %964 = vmatprep.mubr.bf16.mxu0 0
      %965 = vmatmul.mubr.bf16.gmra.mrb[0].mxu0 %v868
      %v966 = vpop.f32.mrb[0].mxu0
      %v967 = vadd.f32 0.0, %v966
      %v968 = vpop.f32.mrb[0].mxu0
      %v969 = vadd.f32 0.0, %v968
      %v970 = vpop.f32.mrb[0].mxu0
      %v971 = vpop.f32.mrb[0].mxu0
      %972 = vdwg.mxu0
      %973 = vmatprep.subr.bf16.mxu0 %v886
      %974 = vmatpush1.bf16.msra.mxu0 %v883
      %975 = vmatprep.subr.bf16.mxu0 0
      %976 = vmatpush1.bf16.msra.mxu0 0
      %977 = vmatprep.subr.bf16.mxu0 0
      %978 = vmatpush1.bf16.msra.mxu0 0
      %979 = vmatprep.subr.bf16.mxu0 0
      %980 = vmatpush1.bf16.msra.mxu0 0
      %981 = vmatprep.subr.bf16.mxu0 0
      %982 = vmatpush1.bf16.msra.mxu0 0
      %983 = vmatprep.subr.bf16.mxu0 0
      %984 = vmatpush1.bf16.msra.mxu0 0
      %985 = vmatprep.subr.bf16.mxu0 0
      %986 = vmatpush1.bf16.msra.mxu0 0
      %987 = vmatprep.subr.bf16.mxu0 0
      %988 = vmatpush1.bf16.msra.mxu0 0
      %989 = vmatprep.subr.bf16.mxu0 0
      %990 = vmatpush1.bf16.msra.mxu0 0
      %991 = vmatprep.subr.bf16.mxu0 0
      %992 = vmatpush1.bf16.msra.mxu0 0
      %993 = vmatprep.subr.bf16.mxu0 0
      %994 = vmatpush1.bf16.msra.mxu0 0
      %995 = vmatprep.subr.bf16.mxu0 0
      %996 = vmatpush1.bf16.msra.mxu0 0
      %997 = vmatprep.subr.bf16.mxu0 0
      %998 = vmatpush1.bf16.msra.mxu0 0
      %999 = vmatprep.subr.bf16.mxu0 0
      %1000 = vmatpush1.bf16.msra.mxu0 0
      %1001 = vmatprep.subr.bf16.mxu0 0
      %1002 = vmatpush1.bf16.msra.mxu0 0
      %1003 = vmatprep.subr.bf16.mxu0 0
      %1004 = vmatpush1.bf16.msra.mxu0 0
      %1005 = vmatprep.mubr.bf16.mxu0 0
      %1006 = vmatmul.mubr.bf16.gmra.mrb[0].mxu0 %v868
      %v1007 = vpop.f32.mrb[0].mxu0
      %v1008 = vadd.f32 0.0, %v1007
      %v1009 = vpop.f32.mrb[0].mxu0
      %v1010 = vadd.f32 0.0, %v1009
      %v1011 = vpop.f32.mrb[0].mxu0
      %v1012 = vpop.f32.mrb[0].mxu0
      %1013 = vdwg.mxu0
      %1014 = vmatprep.subr.bf16.mxu0 0
      %1015 = vmatpush1.bf16.msra.mxu0 %v889
      %1016 = vmatprep.subr.bf16.mxu0 0
      %1017 = vmatpush1.bf16.msra.mxu0 0
      %1018 = vmatprep.subr.bf16.mxu0 0
      %1019 = vmatpush1.bf16.msra.mxu0 0
      %1020 = vmatprep.subr.bf16.mxu0 0
      %1021 = vmatpush1.bf16.msra.mxu0 0
      %1022 = vmatprep.subr.bf16.mxu0 0
      %1023 = vmatpush1.bf16.msra.mxu0 0
      %1024 = vmatprep.subr.bf16.mxu0 0
      %1025 = vmatpush1.bf16.msra.mxu0 0
      %1026 = vmatprep.subr.bf16.mxu0 0
      %1027 = vmatpush1.bf16.msra.mxu0 0
      %1028 = vmatprep.subr.bf16.mxu0 0
      %1029 = vmatpush1.bf16.msra.mxu0 0
      %1030 = vmatprep.subr.bf16.mxu0 0
      %1031 = vmatpush1.bf16.msra.mxu0 0
      %1032 = vmatprep.subr.bf16.mxu0 0
      %1033 = vmatpush1.bf16.msra.mxu0 0
      %1034 = vmatprep.subr.bf16.mxu0 0
      %1035 = vmatpush1.bf16.msra.mxu0 0
      %1036 = vmatprep.subr.bf16.mxu0 0
      %1037 = vmatpush1.bf16.msra.mxu0 0
      %1038 = vmatprep.subr.bf16.mxu0 0
      %1039 = vmatpush1.bf16.msra.mxu0 0
      %1040 = vmatprep.subr.bf16.mxu0 0
      %1041 = vmatpush1.bf16.msra.mxu0 0
      %1042 = vmatprep.subr.bf16.mxu0 0
      %1043 = vmatpush1.bf16.msra.mxu0 0
      %1044 = vmatprep.subr.bf16.mxu0 0
      %1045 = vmatpush1.bf16.msra.mxu0 0
      %1046 = vmatprep.mubr.bf16.mxu0 0
      %1047 = vmatmul.mubr.bf16.gmra.mrb[0].mxu0 %v868
      %v1048 = vpop.f32.mrb[0].mxu0
      %v1049 = vadd.f32 0.0, %v1048
      %v1050 = vpop.f32.mrb[0].mxu0
      %v1051 = vpop.f32.mrb[0].mxu0
      %v1052 = vpop.f32.mrb[0].mxu0
      %1053 = vdwg.mxu0
      %v1054 = vadd.f32 %v834, %v926
      %v1055 = vadd.f32 %v835, %v928
      %v1056 = vadd.f32 %v836, %v967
      %v1057 = vadd.f32 %v837, %v969
      %v1058 = vadd.f32 %v838, %v1008
      %v1059 = vadd.f32 %v839, %v1010
      %v1060 = vadd.f32 %v840, %v1049
      %s1061 = scalar_lea.vmem %s1, 16
      %v1062 = vld [vmem:[%s1061] sm:$0xf]
      %1063 = vrot.lane.b32.xlu0 %v195, 97
      %v1064 = vpop.permute.xlu0 %1063
      %1065 = vrot.lane.b32.xlu0 %v196, 97
      %v1066 = vpop.permute.xlu0 %1065
      %1067 = vrot.lane.b32.xlu0 %v197, 97
      %v1068 = vpop.permute.xlu0 %1067
      %1069 = vrot.lane.b32.xlu0 %v198, 97
      %v1070 = vpop.permute.xlu0 %1069
      %1071 = vrot.lane.b32.xlu0 %v199, 97
      %v1072 = vpop.permute.xlu0 %1071
      %1073 = vrot.lane.b32.xlu0 %v200, 97
      %v1074 = vpop.permute.xlu0 %1073
      %1075 = vrot.lane.b32.xlu0 %v201, 97
      %v1076 = vpop.permute.xlu0 %1075
      %1077 = vrot.lane.b32.xlu0 %v202, 97
      %v1078 = vpop.permute.xlu0 %1077
      %vm1079 = vcmask 793600
      %v1080 = vsel %vm1079, %v1064, %v1066
      %v1081 = vsel %vm1079, %v1066, %v1068
      %v1082 = vsel %vm1079, %v1068, %v1070
      %v1083 = vsel %vm1079, %v1070, %v1072
      %v1084 = vsel %vm1079, %v1072, %v1074
      %v1085 = vsel %vm1079, %v1074, %v1076
      %v1086 = vsel %vm1079, %v1076, %v1078
      %v1088 = vsel %vm227, %v1062, 0
      %v1091 = vsel %vm231, %v1080, 0
      %v1094 = vsel %vm231, %v1081, 0
      %v1097 = vsel %vm231, %v1082, 0
      %v1100 = vsel %vm231, %v1083, 0
      %v1103 = vsel %vm231, %v1084, 0
      %v1106 = vsel %vm231, %v1085, 0
      %v1109 = vsel %vm231, %v1086, 0
      %1111 = vmatprep.subr.bf16.mxu0 %v1094
      %1112 = vmatpush1.bf16.msra.mxu0 %v1091
      %1113 = vmatprep.subr.bf16.mxu0 0
      %1114 = vmatpush1.bf16.msra.mxu0 0
      %1115 = vmatprep.subr.bf16.mxu0 0
      %1116 = vmatpush1.bf16.msra.mxu0 0
      %1117 = vmatprep.subr.bf16.mxu0 0
      %1118 = vmatpush1.bf16.msra.mxu0 0
      %1119 = vmatprep.subr.bf16.mxu0 0
      %1120 = vmatpush1.bf16.msra.mxu0 0
      %1121 = vmatprep.subr.bf16.mxu0 0
      %1122 = vmatpush1.bf16.msra.mxu0 0
      %1123 = vmatprep.subr.bf16.mxu0 0
      %1124 = vmatpush1.bf16.msra.mxu0 0
      %1125 = vmatprep.subr.bf16.mxu0 0
      %1126 = vmatpush1.bf16.msra.mxu0 0
      %1127 = vmatprep.subr.bf16.mxu0 0
      %1128 = vmatpush1.bf16.msra.mxu0 0
      %1129 = vmatprep.subr.bf16.mxu0 0
      %1130 = vmatpush1.bf16.msra.mxu0 0
      %1131 = vmatprep.subr.bf16.mxu0 0
      %1132 = vmatpush1.bf16.msra.mxu0 0
      %1133 = vmatprep.subr.bf16.mxu0 0
      %1134 = vmatpush1.bf16.msra.mxu0 0
      %1135 = vmatprep.subr.bf16.mxu0 0
      %1136 = vmatpush1.bf16.msra.mxu0 0
      %1137 = vmatprep.subr.bf16.mxu0 0
      %1138 = vmatpush1.bf16.msra.mxu0 0
      %1139 = vmatprep.subr.bf16.mxu0 0
      %1140 = vmatpush1.bf16.msra.mxu0 0
      %1141 = vmatprep.subr.bf16.mxu0 0
      %1142 = vmatpush1.bf16.msra.mxu0 0
      %1143 = vmatprep.mubr.bf16.mxu0 0
      %1144 = vmatmul.mubr.bf16.gmra.mrb[0].mxu0 %v1088
      %v1145 = vpop.f32.mrb[0].mxu0
      %v1146 = vadd.f32 0.0, %v1145
      %v1147 = vpop.f32.mrb[0].mxu0
      %v1148 = vadd.f32 0.0, %v1147
      %v1149 = vpop.f32.mrb[0].mxu0
      %v1150 = vpop.f32.mrb[0].mxu0
      %1151 = vdwg.mxu0
      %1152 = vmatprep.subr.bf16.mxu0 %v1100
      %1153 = vmatpush1.bf16.msra.mxu0 %v1097
      %1154 = vmatprep.subr.bf16.mxu0 0
      %1155 = vmatpush1.bf16.msra.mxu0 0
      %1156 = vmatprep.subr.bf16.mxu0 0
      %1157 = vmatpush1.bf16.msra.mxu0 0
      %1158 = vmatprep.subr.bf16.mxu0 0
      %1159 = vmatpush1.bf16.msra.mxu0 0
      %1160 = vmatprep.subr.bf16.mxu0 0
      %1161 = vmatpush1.bf16.msra.mxu0 0
      %1162 = vmatprep.subr.bf16.mxu0 0
      %1163 = vmatpush1.bf16.msra.mxu0 0
      %1164 = vmatprep.subr.bf16.mxu0 0
      %1165 = vmatpush1.bf16.msra.mxu0 0
      %1166 = vmatprep.subr.bf16.mxu0 0
      %1167 = vmatpush1.bf16.msra.mxu0 0
      %1168 = vmatprep.subr.bf16.mxu0 0
      %1169 = vmatpush1.bf16.msra.mxu0 0
      %1170 = vmatprep.subr.bf16.mxu0 0
      %1171 = vmatpush1.bf16.msra.mxu0 0
      %1172 = vmatprep.subr.bf16.mxu0 0
      %1173 = vmatpush1.bf16.msra.mxu0 0
      %1174 = vmatprep.subr.bf16.mxu0 0
      %1175 = vmatpush1.bf16.msra.mxu0 0
      %1176 = vmatprep.subr.bf16.mxu0 0
      %1177 = vmatpush1.bf16.msra.mxu0 0
      %1178 = vmatprep.subr.bf16.mxu0 0
      %1179 = vmatpush1.bf16.msra.mxu0 0
      %1180 = vmatprep.subr.bf16.mxu0 0
      %1181 = vmatpush1.bf16.msra.mxu0 0
      %1182 = vmatprep.subr.bf16.mxu0 0
      %1183 = vmatpush1.bf16.msra.mxu0 0
      %1184 = vmatprep.mubr.bf16.mxu0 0
      %1185 = vmatmul.mubr.bf16.gmra.mrb[0].mxu0 %v1088
      %v1186 = vpop.f32.mrb[0].mxu0
      %v1187 = vadd.f32 0.0, %v1186
      %v1188 = vpop.f32.mrb[0].mxu0
      %v1189 = vadd.f32 0.0, %v1188
      %v1190 = vpop.f32.mrb[0].mxu0
      %v1191 = vpop.f32.mrb[0].mxu0
      %1192 = vdwg.mxu0
      %1193 = vmatprep.subr.bf16.mxu0 %v1106
      %1194 = vmatpush1.bf16.msra.mxu0 %v1103
      %1195 = vmatprep.subr.bf16.mxu0 0
      %1196 = vmatpush1.bf16.msra.mxu0 0
      %1197 = vmatprep.subr.bf16.mxu0 0
      %1198 = vmatpush1.bf16.msra.mxu0 0
      %1199 = vmatprep.subr.bf16.mxu0 0
      %1200 = vmatpush1.bf16.msra.mxu0 0
      %1201 = vmatprep.subr.bf16.mxu0 0
      %1202 = vmatpush1.bf16.msra.mxu0 0
      %1203 = vmatprep.subr.bf16.mxu0 0
      %1204 = vmatpush1.bf16.msra.mxu0 0
      %1205 = vmatprep.subr.bf16.mxu0 0
      %1206 = vmatpush1.bf16.msra.mxu0 0
      %1207 = vmatprep.subr.bf16.mxu0 0
      %1208 = vmatpush1.bf16.msra.mxu0 0
      %1209 = vmatprep.subr.bf16.mxu0 0
      %1210 = vmatpush1.bf16.msra.mxu0 0
      %1211 = vmatprep.subr.bf16.mxu0 0
      %1212 = vmatpush1.bf16.msra.mxu0 0
      %1213 = vmatprep.subr.bf16.mxu0 0
      %1214 = vmatpush1.bf16.msra.mxu0 0
      %1215 = vmatprep.subr.bf16.mxu0 0
      %1216 = vmatpush1.bf16.msra.mxu0 0
      %1217 = vmatprep.subr.bf16.mxu0 0
      %1218 = vmatpush1.bf16.msra.mxu0 0
      %1219 = vmatprep.subr.bf16.mxu0 0
      %1220 = vmatpush1.bf16.msra.mxu0 0
      %1221 = vmatprep.subr.bf16.mxu0 0
      %1222 = vmatpush1.bf16.msra.mxu0 0
      %1223 = vmatprep.subr.bf16.mxu0 0
      %1224 = vmatpush1.bf16.msra.mxu0 0
      %1225 = vmatprep.mubr.bf16.mxu0 0
      %1226 = vmatmul.mubr.bf16.gmra.mrb[0].mxu0 %v1088
      %v1227 = vpop.f32.mrb[0].mxu0
      %v1228 = vadd.f32 0.0, %v1227
      %v1229 = vpop.f32.mrb[0].mxu0
      %v1230 = vadd.f32 0.0, %v1229
      %v1231 = vpop.f32.mrb[0].mxu0
      %v1232 = vpop.f32.mrb[0].mxu0
      %1233 = vdwg.mxu0
      %1234 = vmatprep.subr.bf16.mxu0 0
      %1235 = vmatpush1.bf16.msra.mxu0 %v1109
      %1236 = vmatprep.subr.bf16.mxu0 0
      %1237 = vmatpush1.bf16.msra.mxu0 0
      %1238 = vmatprep.subr.bf16.mxu0 0
      %1239 = vmatpush1.bf16.msra.mxu0 0
      %1240 = vmatprep.subr.bf16.mxu0 0
      %1241 = vmatpush1.bf16.msra.mxu0 0
      %1242 = vmatprep.subr.bf16.mxu0 0
      %1243 = vmatpush1.bf16.msra.mxu0 0
      %1244 = vmatprep.subr.bf16.mxu0 0
      %1245 = vmatpush1.bf16.msra.mxu0 0
      %1246 = vmatprep.subr.bf16.mxu0 0
      %1247 = vmatpush1.bf16.msra.mxu0 0
      %1248 = vmatprep.subr.bf16.mxu0 0
      %1249 = vmatpush1.bf16.msra.mxu0 0
      %1250 = vmatprep.subr.bf16.mxu0 0
      %1251 = vmatpush1.bf16.msra.mxu0 0
      %1252 = vmatprep.subr.bf16.mxu0 0
      %1253 = vmatpush1.bf16.msra.mxu0 0
      %1254 = vmatprep.subr.bf16.mxu0 0
      %1255 = vmatpush1.bf16.msra.mxu0 0
      %1256 = vmatprep.subr.bf16.mxu0 0
      %1257 = vmatpush1.bf16.msra.mxu0 0
      %1258 = vmatprep.subr.bf16.mxu0 0
      %1259 = vmatpush1.bf16.msra.mxu0 0
      %1260 = vmatprep.subr.bf16.mxu0 0
      %1261 = vmatpush1.bf16.msra.mxu0 0
      %1262 = vmatprep.subr.bf16.mxu0 0
      %1263 = vmatpush1.bf16.msra.mxu0 0
      %1264 = vmatprep.subr.bf16.mxu0 0
      %1265 = vmatpush1.bf16.msra.mxu0 0
      %1266 = vmatprep.mubr.bf16.mxu0 0
      %1267 = vmatmul.mubr.bf16.gmra.mrb[0].mxu0 %v1088
      %v1268 = vpop.f32.mrb[0].mxu0
      %v1269 = vadd.f32 0.0, %v1268
      %v1270 = vpop.f32.mrb[0].mxu0
      %v1271 = vpop.f32.mrb[0].mxu0
      %v1272 = vpop.f32.mrb[0].mxu0
      %1273 = vdwg.mxu0
      %v1274 = vadd.f32 %v1054, %v1146
      %v1275 = vadd.f32 %v1055, %v1148
      %v1276 = vadd.f32 %v1056, %v1187
      %v1277 = vadd.f32 %v1057, %v1189
      %v1278 = vadd.f32 %v1058, %v1228
      %v1279 = vadd.f32 %v1059, %v1230
      %v1280 = vadd.f32 %v1060, %v1269
      %s1281 = scalar_lea.vmem %s1, 20
      %v1282 = vld [vmem:[%s1281] sm:$0xf]
      %1283 = vrot.lane.b32.xlu0 %v195, 96
      %v1284 = vpop.permute.xlu0 %1283
      %1285 = vrot.lane.b32.xlu0 %v196, 96
      %v1286 = vpop.permute.xlu0 %1285
      %1287 = vrot.lane.b32.xlu0 %v197, 96
      %v1288 = vpop.permute.xlu0 %1287
      %1289 = vrot.lane.b32.xlu0 %v198, 96
      %v1290 = vpop.permute.xlu0 %1289
      %1291 = vrot.lane.b32.xlu0 %v199, 96
      %v1292 = vpop.permute.xlu0 %1291
      %1293 = vrot.lane.b32.xlu0 %v200, 96
      %v1294 = vpop.permute.xlu0 %1293
      %1295 = vrot.lane.b32.xlu0 %v201, 96
      %v1296 = vpop.permute.xlu0 %1295
      %1297 = vrot.lane.b32.xlu0 %v202, 96
      %v1298 = vpop.permute.xlu0 %1297
      %vm1299 = vcmask 785408
      %v1300 = vsel %vm1299, %v1284, %v1286
      %v1301 = vsel %vm1299, %v1286, %v1288
      %v1302 = vsel %vm1299, %v1288, %v1290
      %v1303 = vsel %vm1299, %v1290, %v1292
      %v1304 = vsel %vm1299, %v1292, %v1294
      %v1305 = vsel %vm1299, %v1294, %v1296
      %v1306 = vsel %vm1299, %v1296, %v1298
      %v1308 = vsel %vm227, %v1282, 0
      %v1311 = vsel %vm231, %v1300, 0
      %v1314 = vsel %vm231, %v1301, 0
      %v1317 = vsel %vm231, %v1302, 0
      %v1320 = vsel %vm231, %v1303, 0
      %v1323 = vsel %vm231, %v1304, 0
      %v1326 = vsel %vm231, %v1305, 0
      %v1329 = vsel %vm231, %v1306, 0
      %1331 = vmatprep.subr.bf16.mxu0 %v1314
      %1332 = vmatpush1.bf16.msra.mxu0 %v1311
      %1333 = vmatprep.subr.bf16.mxu0 0
      %1334 = vmatpush1.bf16.msra.mxu0 0
      %1335 = vmatprep.subr.bf16.mxu0 0
      %1336 = vmatpush1.bf16.msra.mxu0 0
      %1337 = vmatprep.subr.bf16.mxu0 0
      %1338 = vmatpush1.bf16.msra.mxu0 0
      %1339 = vmatprep.subr.bf16.mxu0 0
      %1340 = vmatpush1.bf16.msra.mxu0 0
      %1341 = vmatprep.subr.bf16.mxu0 0
      %1342 = vmatpush1.bf16.msra.mxu0 0
      %1343 = vmatprep.subr.bf16.mxu0 0
      %1344 = vmatpush1.bf16.msra.mxu0 0
      %1345 = vmatprep.subr.bf16.mxu0 0
      %1346 = vmatpush1.bf16.msra.mxu0 0
      %1347 = vmatprep.subr.bf16.mxu0 0
      %1348 = vmatpush1.bf16.msra.mxu0 0
      %1349 = vmatprep.subr.bf16.mxu0 0
      %1350 = vmatpush1.bf16.msra.mxu0 0
      %1351 = vmatprep.subr.bf16.mxu0 0
      %1352 = vmatpush1.bf16.msra.mxu0 0
      %1353 = vmatprep.subr.bf16.mxu0 0
      %1354 = vmatpush1.bf16.msra.mxu0 0
      %1355 = vmatprep.subr.bf16.mxu0 0
      %1356 = vmatpush1.bf16.msra.mxu0 0
      %1357 = vmatprep.subr.bf16.mxu0 0
      %1358 = vmatpush1.bf16.msra.mxu0 0
      %1359 = vmatprep.subr.bf16.mxu0 0
      %1360 = vmatpush1.bf16.msra.mxu0 0
      %1361 = vmatprep.subr.bf16.mxu0 0
      %1362 = vmatpush1.bf16.msra.mxu0 0
      %1363 = vmatprep.mubr.bf16.mxu0 0
      %1364 = vmatmul.mubr.bf16.gmra.mrb[0].mxu0 %v1308
      %v1365 = vpop.f32.mrb[0].mxu0
      %v1366 = vadd.f32 0.0, %v1365
      %v1367 = vpop.f32.mrb[0].mxu0
      %v1368 = vadd.f32 0.0, %v1367
      %v1369 = vpop.f32.mrb[0].mxu0
      %v1370 = vpop.f32.mrb[0].mxu0
      %1371 = vdwg.mxu0
      %1372 = vmatprep.subr.bf16.mxu0 %v1320
      %1373 = vmatpush1.bf16.msra.mxu0 %v1317
      %1374 = vmatprep.subr.bf16.mxu0 0
      %1375 = vmatpush1.bf16.msra.mxu0 0
      %1376 = vmatprep.subr.bf16.mxu0 0
      %1377 = vmatpush1.bf16.msra.mxu0 0
      %1378 = vmatprep.subr.bf16.mxu0 0
      %1379 = vmatpush1.bf16.msra.mxu0 0
      %1380 = vmatprep.subr.bf16.mxu0 0
      %1381 = vmatpush1.bf16.msra.mxu0 0
      %1382 = vmatprep.subr.bf16.mxu0 0
      %1383 = vmatpush1.bf16.msra.mxu0 0
      %1384 = vmatprep.subr.bf16.mxu0 0
      %1385 = vmatpush1.bf16.msra.mxu0 0
      %1386 = vmatprep.subr.bf16.mxu0 0
      %1387 = vmatpush1.bf16.msra.mxu0 0
      %1388 = vmatprep.subr.bf16.mxu0 0
      %1389 = vmatpush1.bf16.msra.mxu0 0
      %1390 = vmatprep.subr.bf16.mxu0 0
      %1391 = vmatpush1.bf16.msra.mxu0 0
      %1392 = vmatprep.subr.bf16.mxu0 0
      %1393 = vmatpush1.bf16.msra.mxu0 0
      %1394 = vmatprep.subr.bf16.mxu0 0
      %1395 = vmatpush1.bf16.msra.mxu0 0
      %1396 = vmatprep.subr.bf16.mxu0 0
      %1397 = vmatpush1.bf16.msra.mxu0 0
      %1398 = vmatprep.subr.bf16.mxu0 0
      %1399 = vmatpush1.bf16.msra.mxu0 0
      %1400 = vmatprep.subr.bf16.mxu0 0
      %1401 = vmatpush1.bf16.msra.mxu0 0
      %1402 = vmatprep.subr.bf16.mxu0 0
      %1403 = vmatpush1.bf16.msra.mxu0 0
      %1404 = vmatprep.mubr.bf16.mxu0 0
      %1405 = vmatmul.mubr.bf16.gmra.mrb[0].mxu0 %v1308
      %v1406 = vpop.f32.mrb[0].mxu0
      %v1407 = vadd.f32 0.0, %v1406
      %v1408 = vpop.f32.mrb[0].mxu0
      %v1409 = vadd.f32 0.0, %v1408
      %v1410 = vpop.f32.mrb[0].mxu0
      %v1411 = vpop.f32.mrb[0].mxu0
      %1412 = vdwg.mxu0
      %1413 = vmatprep.subr.bf16.mxu0 %v1326
      %1414 = vmatpush1.bf16.msra.mxu0 %v1323
      %1415 = vmatprep.subr.bf16.mxu0 0
      %1416 = vmatpush1.bf16.msra.mxu0 0
      %1417 = vmatprep.subr.bf16.mxu0 0
      %1418 = vmatpush1.bf16.msra.mxu0 0
      %1419 = vmatprep.subr.bf16.mxu0 0
      %1420 = vmatpush1.bf16.msra.mxu0 0
      %1421 = vmatprep.subr.bf16.mxu0 0
      %1422 = vmatpush1.bf16.msra.mxu0 0
      %1423 = vmatprep.subr.bf16.mxu0 0
      %1424 = vmatpush1.bf16.msra.mxu0 0
      %1425 = vmatprep.subr.bf16.mxu0 0
      %1426 = vmatpush1.bf16.msra.mxu0 0
      %1427 = vmatprep.subr.bf16.mxu0 0
      %1428 = vmatpush1.bf16.msra.mxu0 0
      %1429 = vmatprep.subr.bf16.mxu0 0
      %1430 = vmatpush1.bf16.msra.mxu0 0
      %1431 = vmatprep.subr.bf16.mxu0 0
      %1432 = vmatpush1.bf16.msra.mxu0 0
      %1433 = vmatprep.subr.bf16.mxu0 0
      %1434 = vmatpush1.bf16.msra.mxu0 0
      %1435 = vmatprep.subr.bf16.mxu0 0
      %1436 = vmatpush1.bf16.msra.mxu0 0
      %1437 = vmatprep.subr.bf16.mxu0 0
      %1438 = vmatpush1.bf16.msra.mxu0 0
      %1439 = vmatprep.subr.bf16.mxu0 0
      %1440 = vmatpush1.bf16.msra.mxu0 0
      %1441 = vmatprep.subr.bf16.mxu0 0
      %1442 = vmatpush1.bf16.msra.mxu0 0
      %1443 = vmatprep.subr.bf16.mxu0 0
      %1444 = vmatpush1.bf16.msra.mxu0 0
      %1445 = vmatprep.mubr.bf16.mxu0 0
      %1446 = vmatmul.mubr.bf16.gmra.mrb[0].mxu0 %v1308
      %v1447 = vpop.f32.mrb[0].mxu0
      %v1448 = vadd.f32 0.0, %v1447
      %v1449 = vpop.f32.mrb[0].mxu0
      %v1450 = vadd.f32 0.0, %v1449
      %v1451 = vpop.f32.mrb[0].mxu0
      %v1452 = vpop.f32.mrb[0].mxu0
      %1453 = vdwg.mxu0
      %1454 = vmatprep.subr.bf16.mxu0 0
      %1455 = vmatpush1.bf16.msra.mxu0 %v1329
      %1456 = vmatprep.subr.bf16.mxu0 0
      %1457 = vmatpush1.bf16.msra.mxu0 0
      %1458 = vmatprep.subr.bf16.mxu0 0
      %1459 = vmatpush1.bf16.msra.mxu0 0
      %1460 = vmatprep.subr.bf16.mxu0 0
      %1461 = vmatpush1.bf16.msra.mxu0 0
      %1462 = vmatprep.subr.bf16.mxu0 0
      %1463 = vmatpush1.bf16.msra.mxu0 0
      %1464 = vmatprep.subr.bf16.mxu0 0
      %1465 = vmatpush1.bf16.msra.mxu0 0
      %1466 = vmatprep.subr.bf16.mxu0 0
      %1467 = vmatpush1.bf16.msra.mxu0 0
      %1468 = vmatprep.subr.bf16.mxu0 0
      %1469 = vmatpush1.bf16.msra.mxu0 0
      %1470 = vmatprep.subr.bf16.mxu0 0
      %1471 = vmatpush1.bf16.msra.mxu0 0
      %1472 = vmatprep.subr.bf16.mxu0 0
      %1473 = vmatpush1.bf16.msra.mxu0 0
      %1474 = vmatprep.subr.bf16.mxu0 0
      %1475 = vmatpush1.bf16.msra.mxu0 0
      %1476 = vmatprep.subr.bf16.mxu0 0
      %1477 = vmatpush1.bf16.msra.mxu0 0
      %1478 = vmatprep.subr.bf16.mxu0 0
      %1479 = vmatpush1.bf16.msra.mxu0 0
      %1480 = vmatprep.subr.bf16.mxu0 0
      %1481 = vmatpush1.bf16.msra.mxu0 0
      %1482 = vmatprep.subr.bf16.mxu0 0
      %1483 = vmatpush1.bf16.msra.mxu0 0
      %1484 = vmatprep.subr.bf16.mxu0 0
      %1485 = vmatpush1.bf16.msra.mxu0 0
      %1486 = vmatprep.mubr.bf16.mxu0 0
      %1487 = vmatmul.mubr.bf16.gmra.mrb[0].mxu0 %v1308
      %v1488 = vpop.f32.mrb[0].mxu0
      %v1489 = vadd.f32 0.0, %v1488
      %v1490 = vpop.f32.mrb[0].mxu0
      %v1491 = vpop.f32.mrb[0].mxu0
      %v1492 = vpop.f32.mrb[0].mxu0
      %1493 = vdwg.mxu0
      %v1494 = vadd.f32 %v1274, %v1366
      %v1495 = vadd.f32 %v1275, %v1368
      %v1496 = vadd.f32 %v1276, %v1407
      %v1497 = vadd.f32 %v1277, %v1409
      %v1498 = vadd.f32 %v1278, %v1448
      %v1499 = vadd.f32 %v1279, %v1450
      %v1500 = vadd.f32 %v1280, %v1489
      %s1501 = scalar_lea.vmem %s1, 24
      %v1502 = vld [vmem:[%s1501] sm:$0xf]
      %1503 = vrot.lane.b32.xlu0 %v195, 68
      %v1504 = vpop.permute.xlu0 %1503
      %1505 = vrot.lane.b32.xlu0 %v196, 68
      %v1506 = vpop.permute.xlu0 %1505
      %1507 = vrot.lane.b32.xlu0 %v197, 68
      %v1508 = vpop.permute.xlu0 %1507
      %1509 = vrot.lane.b32.xlu0 %v198, 68
      %v1510 = vpop.permute.xlu0 %1509
      %1511 = vrot.lane.b32.xlu0 %v199, 68
      %v1512 = vpop.permute.xlu0 %1511
      %1513 = vrot.lane.b32.xlu0 %v200, 68
      %v1514 = vpop.permute.xlu0 %1513
      %1515 = vrot.lane.b32.xlu0 %v201, 68
      %v1516 = vpop.permute.xlu0 %1515
      %1517 = vrot.lane.b32.xlu0 %v202, 68
      %v1518 = vpop.permute.xlu0 %1517
      %vm1519 = vcmask 556032
      %v1520 = vsel %vm1519, %v1504, %v1506
      %v1521 = vsel %vm1519, %v1506, %v1508
      %v1522 = vsel %vm1519, %v1508, %v1510
      %v1523 = vsel %vm1519, %v1510, %v1512
      %v1524 = vsel %vm1519, %v1512, %v1514
      %v1525 = vsel %vm1519, %v1514, %v1516
      %v1526 = vsel %vm1519, %v1516, %v1518
      %v1528 = vsel %vm227, %v1502, 0
      %v1531 = vsel %vm231, %v1520, 0
      %v1534 = vsel %vm231, %v1521, 0
      %v1537 = vsel %vm231, %v1522, 0
      %v1540 = vsel %vm231, %v1523, 0
      %v1543 = vsel %vm231, %v1524, 0
      %v1546 = vsel %vm231, %v1525, 0
      %v1549 = vsel %vm231, %v1526, 0
      %1551 = vmatprep.subr.bf16.mxu0 %v1534
      %1552 = vmatpush1.bf16.msra.mxu0 %v1531
      %1553 = vmatprep.subr.bf16.mxu0 0
      %1554 = vmatpush1.bf16.msra.mxu0 0
      %1555 = vmatprep.subr.bf16.mxu0 0
      %1556 = vmatpush1.bf16.msra.mxu0 0
      %1557 = vmatprep.subr.bf16.mxu0 0
      %1558 = vmatpush1.bf16.msra.mxu0 0
      %1559 = vmatprep.subr.bf16.mxu0 0
      %1560 = vmatpush1.bf16.msra.mxu0 0
      %1561 = vmatprep.subr.bf16.mxu0 0
      %1562 = vmatpush1.bf16.msra.mxu0 0
      %1563 = vmatprep.subr.bf16.mxu0 0
      %1564 = vmatpush1.bf16.msra.mxu0 0
      %1565 = vmatprep.subr.bf16.mxu0 0
      %1566 = vmatpush1.bf16.msra.mxu0 0
      %1567 = vmatprep.subr.bf16.mxu0 0
      %1568 = vmatpush1.bf16.msra.mxu0 0
      %1569 = vmatprep.subr.bf16.mxu0 0
      %1570 = vmatpush1.bf16.msra.mxu0 0
      %1571 = vmatprep.subr.bf16.mxu0 0
      %1572 = vmatpush1.bf16.msra.mxu0 0
      %1573 = vmatprep.subr.bf16.mxu0 0
      %1574 = vmatpush1.bf16.msra.mxu0 0
      %1575 = vmatprep.subr.bf16.mxu0 0
      %1576 = vmatpush1.bf16.msra.mxu0 0
      %1577 = vmatprep.subr.bf16.mxu0 0
      %1578 = vmatpush1.bf16.msra.mxu0 0
      %1579 = vmatprep.subr.bf16.mxu0 0
      %1580 = vmatpush1.bf16.msra.mxu0 0
      %1581 = vmatprep.subr.bf16.mxu0 0
      %1582 = vmatpush1.bf16.msra.mxu0 0
      %1583 = vmatprep.mubr.bf16.mxu0 0
      %1584 = vmatmul.mubr.bf16.gmra.mrb[0].mxu0 %v1528
      %v1585 = vpop.f32.mrb[0].mxu0
      %v1586 = vadd.f32 0.0, %v1585
      %v1587 = vpop.f32.mrb[0].mxu0
      %v1588 = vadd.f32 0.0, %v1587
      %v1589 = vpop.f32.mrb[0].mxu0
      %v1590 = vpop.f32.mrb[0].mxu0
      %1591 = vdwg.mxu0
      %1592 = vmatprep.subr.bf16.mxu0 %v1540
      %1593 = vmatpush1.bf16.msra.mxu0 %v1537
      %1594 = vmatprep.subr.bf16.mxu0 0
      %1595 = vmatpush1.bf16.msra.mxu0 0
      %1596 = vmatprep.subr.bf16.mxu0 0
      %1597 = vmatpush1.bf16.msra.mxu0 0
      %1598 = vmatprep.subr.bf16.mxu0 0
      %1599 = vmatpush1.bf16.msra.mxu0 0
      %1600 = vmatprep.subr.bf16.mxu0 0
      %1601 = vmatpush1.bf16.msra.mxu0 0
      %1602 = vmatprep.subr.bf16.mxu0 0
      %1603 = vmatpush1.bf16.msra.mxu0 0
      %1604 = vmatprep.subr.bf16.mxu0 0
      %1605 = vmatpush1.bf16.msra.mxu0 0
      %1606 = vmatprep.subr.bf16.mxu0 0
      %1607 = vmatpush1.bf16.msra.mxu0 0
      %1608 = vmatprep.subr.bf16.mxu0 0
      %1609 = vmatpush1.bf16.msra.mxu0 0
      %1610 = vmatprep.subr.bf16.mxu0 0
      %1611 = vmatpush1.bf16.msra.mxu0 0
      %1612 = vmatprep.subr.bf16.mxu0 0
      %1613 = vmatpush1.bf16.msra.mxu0 0
      %1614 = vmatprep.subr.bf16.mxu0 0
      %1615 = vmatpush1.bf16.msra.mxu0 0
      %1616 = vmatprep.subr.bf16.mxu0 0
      %1617 = vmatpush1.bf16.msra.mxu0 0
      %1618 = vmatprep.subr.bf16.mxu0 0
      %1619 = vmatpush1.bf16.msra.mxu0 0
      %1620 = vmatprep.subr.bf16.mxu0 0
      %1621 = vmatpush1.bf16.msra.mxu0 0
      %1622 = vmatprep.subr.bf16.mxu0 0
      %1623 = vmatpush1.bf16.msra.mxu0 0
      %1624 = vmatprep.mubr.bf16.mxu0 0
      %1625 = vmatmul.mubr.bf16.gmra.mrb[0].mxu0 %v1528
      %v1626 = vpop.f32.mrb[0].mxu0
      %v1627 = vadd.f32 0.0, %v1626
      %v1628 = vpop.f32.mrb[0].mxu0
      %v1629 = vadd.f32 0.0, %v1628
      %v1630 = vpop.f32.mrb[0].mxu0
      %v1631 = vpop.f32.mrb[0].mxu0
      %1632 = vdwg.mxu0
      %1633 = vmatprep.subr.bf16.mxu0 %v1546
      %1634 = vmatpush1.bf16.msra.mxu0 %v1543
      %1635 = vmatprep.subr.bf16.mxu0 0
      %1636 = vmatpush1.bf16.msra.mxu0 0
      %1637 = vmatprep.subr.bf16.mxu0 0
      %1638 = vmatpush1.bf16.msra.mxu0 0
      %1639 = vmatprep.subr.bf16.mxu0 0
      %1640 = vmatpush1.bf16.msra.mxu0 0
      %1641 = vmatprep.subr.bf16.mxu0 0
      %1642 = vmatpush1.bf16.msra.mxu0 0
      %1643 = vmatprep.subr.bf16.mxu0 0
      %1644 = vmatpush1.bf16.msra.mxu0 0
      %1645 = vmatprep.subr.bf16.mxu0 0
      %1646 = vmatpush1.bf16.msra.mxu0 0
      %1647 = vmatprep.subr.bf16.mxu0 0
      %1648 = vmatpush1.bf16.msra.mxu0 0
      %1649 = vmatprep.subr.bf16.mxu0 0
      %1650 = vmatpush1.bf16.msra.mxu0 0
      %1651 = vmatprep.subr.bf16.mxu0 0
      %1652 = vmatpush1.bf16.msra.mxu0 0
      %1653 = vmatprep.subr.bf16.mxu0 0
      %1654 = vmatpush1.bf16.msra.mxu0 0
      %1655 = vmatprep.subr.bf16.mxu0 0
      %1656 = vmatpush1.bf16.msra.mxu0 0
      %1657 = vmatprep.subr.bf16.mxu0 0
      %1658 = vmatpush1.bf16.msra.mxu0 0
      %1659 = vmatprep.subr.bf16.mxu0 0
      %1660 = vmatpush1.bf16.msra.mxu0 0
      %1661 = vmatprep.subr.bf16.mxu0 0
      %1662 = vmatpush1.bf16.msra.mxu0 0
      %1663 = vmatprep.subr.bf16.mxu0 0
      %1664 = vmatpush1.bf16.msra.mxu0 0
      %1665 = vmatprep.mubr.bf16.mxu0 0
      %1666 = vmatmul.mubr.bf16.gmra.mrb[0].mxu0 %v1528
      %v1667 = vpop.f32.mrb[0].mxu0
      %v1668 = vadd.f32 0.0, %v1667
      %v1669 = vpop.f32.mrb[0].mxu0
      %v1670 = vadd.f32 0.0, %v1669
      %v1671 = vpop.f32.mrb[0].mxu0
      %v1672 = vpop.f32.mrb[0].mxu0
      %1673 = vdwg.mxu0
      %1674 = vmatprep.subr.bf16.mxu0 0
      %1675 = vmatpush1.bf16.msra.mxu0 %v1549
      %1676 = vmatprep.subr.bf16.mxu0 0
      %1677 = vmatpush1.bf16.msra.mxu0 0
      %1678 = vmatprep.subr.bf16.mxu0 0
      %1679 = vmatpush1.bf16.msra.mxu0 0
      %1680 = vmatprep.subr.bf16.mxu0 0
      %1681 = vmatpush1.bf16.msra.mxu0 0
      %1682 = vmatprep.subr.bf16.mxu0 0
      %1683 = vmatpush1.bf16.msra.mxu0 0
      %1684 = vmatprep.subr.bf16.mxu0 0
      %1685 = vmatpush1.bf16.msra.mxu0 0
      %1686 = vmatprep.subr.bf16.mxu0 0
      %1687 = vmatpush1.bf16.msra.mxu0 0
      %1688 = vmatprep.subr.bf16.mxu0 0
      %1689 = vmatpush1.bf16.msra.mxu0 0
      %1690 = vmatprep.subr.bf16.mxu0 0
      %1691 = vmatpush1.bf16.msra.mxu0 0
      %1692 = vmatprep.subr.bf16.mxu0 0
      %1693 = vmatpush1.bf16.msra.mxu0 0
      %1694 = vmatprep.subr.bf16.mxu0 0
      %1695 = vmatpush1.bf16.msra.mxu0 0
      %1696 = vmatprep.subr.bf16.mxu0 0
      %1697 = vmatpush1.bf16.msra.mxu0 0
      %1698 = vmatprep.subr.bf16.mxu0 0
      %1699 = vmatpush1.bf16.msra.mxu0 0
      %1700 = vmatprep.subr.bf16.mxu0 0
      %1701 = vmatpush1.bf16.msra.mxu0 0
      %1702 = vmatprep.subr.bf16.mxu0 0
      %1703 = vmatpush1.bf16.msra.mxu0 0
      %1704 = vmatprep.subr.bf16.mxu0 0
      %1705 = vmatpush1.bf16.msra.mxu0 0
      %1706 = vmatprep.mubr.bf16.mxu0 0
      %1707 = vmatmul.mubr.bf16.gmra.mrb[0].mxu0 %v1528
      %v1708 = vpop.f32.mrb[0].mxu0
      %v1709 = vadd.f32 0.0, %v1708
      %v1710 = vpop.f32.mrb[0].mxu0
      %v1711 = vpop.f32.mrb[0].mxu0
      %v1712 = vpop.f32.mrb[0].mxu0
      %1713 = vdwg.mxu0
      %v1714 = vadd.f32 %v1494, %v1586
      %v1715 = vadd.f32 %v1495, %v1588
      %v1716 = vadd.f32 %v1496, %v1627
      %v1717 = vadd.f32 %v1497, %v1629
      %v1718 = vadd.f32 %v1498, %v1668
      %v1719 = vadd.f32 %v1499, %v1670
      %v1720 = vadd.f32 %v1500, %v1709
      %s1721 = scalar_lea.vmem %s1, 28
      %v1722 = vld [vmem:[%s1721] sm:$0xf]
      %1723 = vrot.lane.b32.xlu0 %v195, 67
      %v1724 = vpop.permute.xlu0 %1723
      %1725 = vrot.lane.b32.xlu0 %v196, 67
      %v1726 = vpop.permute.xlu0 %1725
      %1727 = vrot.lane.b32.xlu0 %v197, 67
      %v1728 = vpop.permute.xlu0 %1727
      %1729 = vrot.lane.b32.xlu0 %v198, 67
      %v1730 = vpop.permute.xlu0 %1729
      %1731 = vrot.lane.b32.xlu0 %v199, 67
      %v1732 = vpop.permute.xlu0 %1731
      %1733 = vrot.lane.b32.xlu0 %v200, 67
      %v1734 = vpop.permute.xlu0 %1733
      %1735 = vrot.lane.b32.xlu0 %v201, 67
      %v1736 = vpop.permute.xlu0 %1735
      %1737 = vrot.lane.b32.xlu0 %v202, 67
      %v1738 = vpop.permute.xlu0 %1737
      %vm1739 = vcmask 547840
      %v1740 = vsel %vm1739, %v1724, %v1726
      %v1741 = vsel %vm1739, %v1726, %v1728
      %v1742 = vsel %vm1739, %v1728, %v1730
      %v1743 = vsel %vm1739, %v1730, %v1732
      %v1744 = vsel %vm1739, %v1732, %v1734
      %v1745 = vsel %vm1739, %v1734, %v1736
      %v1746 = vsel %vm1739, %v1736, %v1738
      %v1748 = vsel %vm227, %v1722, 0
      %v1751 = vsel %vm231, %v1740, 0
      %v1754 = vsel %vm231, %v1741, 0
      %v1757 = vsel %vm231, %v1742, 0
      %v1760 = vsel %vm231, %v1743, 0
      %v1763 = vsel %vm231, %v1744, 0
      %v1766 = vsel %vm231, %v1745, 0
      %v1769 = vsel %vm231, %v1746, 0
      %1771 = vmatprep.subr.bf16.mxu0 %v1754
      %1772 = vmatpush1.bf16.msra.mxu0 %v1751
      %1773 = vmatprep.subr.bf16.mxu0 0
      %1774 = vmatpush1.bf16.msra.mxu0 0
      %1775 = vmatprep.subr.bf16.mxu0 0
      %1776 = vmatpush1.bf16.msra.mxu0 0
      %1777 = vmatprep.subr.bf16.mxu0 0
      %1778 = vmatpush1.bf16.msra.mxu0 0
      %1779 = vmatprep.subr.bf16.mxu0 0
      %1780 = vmatpush1.bf16.msra.mxu0 0
      %1781 = vmatprep.subr.bf16.mxu0 0
      %1782 = vmatpush1.bf16.msra.mxu0 0
      %1783 = vmatprep.subr.bf16.mxu0 0
      %1784 = vmatpush1.bf16.msra.mxu0 0
      %1785 = vmatprep.subr.bf16.mxu0 0
      %1786 = vmatpush1.bf16.msra.mxu0 0
      %1787 = vmatprep.subr.bf16.mxu0 0
      %1788 = vmatpush1.bf16.msra.mxu0 0
      %1789 = vmatprep.subr.bf16.mxu0 0
      %1790 = vmatpush1.bf16.msra.mxu0 0
      %1791 = vmatprep.subr.bf16.mxu0 0
      %1792 = vmatpush1.bf16.msra.mxu0 0
      %1793 = vmatprep.subr.bf16.mxu0 0
      %1794 = vmatpush1.bf16.msra.mxu0 0
      %1795 = vmatprep.subr.bf16.mxu0 0
      %1796 = vmatpush1.bf16.msra.mxu0 0
      %1797 = vmatprep.subr.bf16.mxu0 0
      %1798 = vmatpush1.bf16.msra.mxu0 0
      %1799 = vmatprep.subr.bf16.mxu0 0
      %1800 = vmatpush1.bf16.msra.mxu0 0
      %1801 = vmatprep.subr.bf16.mxu0 0
      %1802 = vmatpush1.bf16.msra.mxu0 0
      %1803 = vmatprep.mubr.bf16.mxu0 0
      %1804 = vmatmul.mubr.bf16.gmra.mrb[0].mxu0 %v1748
      %v1805 = vpop.f32.mrb[0].mxu0
      %v1806 = vadd.f32 0.0, %v1805
      %v1807 = vpop.f32.mrb[0].mxu0
      %v1808 = vadd.f32 0.0, %v1807
      %v1809 = vpop.f32.mrb[0].mxu0
      %v1810 = vpop.f32.mrb[0].mxu0
      %1811 = vdwg.mxu0
      %1812 = vmatprep.subr.bf16.mxu0 %v1760
      %1813 = vmatpush1.bf16.msra.mxu0 %v1757
      %1814 = vmatprep.subr.bf16.mxu0 0
      %1815 = vmatpush1.bf16.msra.mxu0 0
      %1816 = vmatprep.subr.bf16.mxu0 0
      %1817 = vmatpush1.bf16.msra.mxu0 0
      %1818 = vmatprep.subr.bf16.mxu0 0
      %1819 = vmatpush1.bf16.msra.mxu0 0
      %1820 = vmatprep.subr.bf16.mxu0 0
      %1821 = vmatpush1.bf16.msra.mxu0 0
      %1822 = vmatprep.subr.bf16.mxu0 0
      %1823 = vmatpush1.bf16.msra.mxu0 0
      %1824 = vmatprep.subr.bf16.mxu0 0
      %1825 = vmatpush1.bf16.msra.mxu0 0
      %1826 = vmatprep.subr.bf16.mxu0 0
      %1827 = vmatpush1.bf16.msra.mxu0 0
      %1828 = vmatprep.subr.bf16.mxu0 0
      %1829 = vmatpush1.bf16.msra.mxu0 0
      %1830 = vmatprep.subr.bf16.mxu0 0
      %1831 = vmatpush1.bf16.msra.mxu0 0
      %1832 = vmatprep.subr.bf16.mxu0 0
      %1833 = vmatpush1.bf16.msra.mxu0 0
      %1834 = vmatprep.subr.bf16.mxu0 0
      %1835 = vmatpush1.bf16.msra.mxu0 0
      %1836 = vmatprep.subr.bf16.mxu0 0
      %1837 = vmatpush1.bf16.msra.mxu0 0
      %1838 = vmatprep.subr.bf16.mxu0 0
      %1839 = vmatpush1.bf16.msra.mxu0 0
      %1840 = vmatprep.subr.bf16.mxu0 0
      %1841 = vmatpush1.bf16.msra.mxu0 0
      %1842 = vmatprep.subr.bf16.mxu0 0
      %1843 = vmatpush1.bf16.msra.mxu0 0
      %1844 = vmatprep.mubr.bf16.mxu0 0
      %1845 = vmatmul.mubr.bf16.gmra.mrb[0].mxu0 %v1748
      %v1846 = vpop.f32.mrb[0].mxu0
      %v1847 = vadd.f32 0.0, %v1846
      %v1848 = vpop.f32.mrb[0].mxu0
      %v1849 = vadd.f32 0.0, %v1848
      %v1850 = vpop.f32.mrb[0].mxu0
      %v1851 = vpop.f32.mrb[0].mxu0
      %1852 = vdwg.mxu0
      %1853 = vmatprep.subr.bf16.mxu0 %v1766
      %1854 = vmatpush1.bf16.msra.mxu0 %v1763
      %1855 = vmatprep.subr.bf16.mxu0 0
      %1856 = vmatpush1.bf16.msra.mxu0 0
      %1857 = vmatprep.subr.bf16.mxu0 0
      %1858 = vmatpush1.bf16.msra.mxu0 0
      %1859 = vmatprep.subr.bf16.mxu0 0
      %1860 = vmatpush1.bf16.msra.mxu0 0
      %1861 = vmatprep.subr.bf16.mxu0 0
      %1862 = vmatpush1.bf16.msra.mxu0 0
      %1863 = vmatprep.subr.bf16.mxu0 0
      %1864 = vmatpush1.bf16.msra.mxu0 0
      %1865 = vmatprep.subr.bf16.mxu0 0
      %1866 = vmatpush1.bf16.msra.mxu0 0
      %1867 = vmatprep.subr.bf16.mxu0 0
      %1868 = vmatpush1.bf16.msra.mxu0 0
      %1869 = vmatprep.subr.bf16.mxu0 0
      %1870 = vmatpush1.bf16.msra.mxu0 0
      %1871 = vmatprep.subr.bf16.mxu0 0
      %1872 = vmatpush1.bf16.msra.mxu0 0
      %1873 = vmatprep.subr.bf16.mxu0 0
      %1874 = vmatpush1.bf16.msra.mxu0 0
      %1875 = vmatprep.subr.bf16.mxu0 0
      %1876 = vmatpush1.bf16.msra.mxu0 0
      %1877 = vmatprep.subr.bf16.mxu0 0
      %1878 = vmatpush1.bf16.msra.mxu0 0
      %1879 = vmatprep.subr.bf16.mxu0 0
      %1880 = vmatpush1.bf16.msra.mxu0 0
      %1881 = vmatprep.subr.bf16.mxu0 0
      %1882 = vmatpush1.bf16.msra.mxu0 0
      %1883 = vmatprep.subr.bf16.mxu0 0
      %1884 = vmatpush1.bf16.msra.mxu0 0
      %1885 = vmatprep.mubr.bf16.mxu0 0
      %1886 = vmatmul.mubr.bf16.gmra.mrb[0].mxu0 %v1748
      %v1887 = vpop.f32.mrb[0].mxu0
      %v1888 = vadd.f32 0.0, %v1887
      %v1889 = vpop.f32.mrb[0].mxu0
      %v1890 = vadd.f32 0.0, %v1889
      %v1891 = vpop.f32.mrb[0].mxu0
      %v1892 = vpop.f32.mrb[0].mxu0
      %1893 = vdwg.mxu0
      %1894 = vmatprep.subr.bf16.mxu0 0
      %1895 = vmatpush1.bf16.msra.mxu0 %v1769
      %1896 = vmatprep.subr.bf16.mxu0 0
      %1897 = vmatpush1.bf16.msra.mxu0 0
      %1898 = vmatprep.subr.bf16.mxu0 0
      %1899 = vmatpush1.bf16.msra.mxu0 0
      %1900 = vmatprep.subr.bf16.mxu0 0
      %1901 = vmatpush1.bf16.msra.mxu0 0
      %1902 = vmatprep.subr.bf16.mxu0 0
      %1903 = vmatpush1.bf16.msra.mxu0 0
      %1904 = vmatprep.subr.bf16.mxu0 0
      %1905 = vmatpush1.bf16.msra.mxu0 0
      %1906 = vmatprep.subr.bf16.mxu0 0
      %1907 = vmatpush1.bf16.msra.mxu0 0
      %1908 = vmatprep.subr.bf16.mxu0 0
      %1909 = vmatpush1.bf16.msra.mxu0 0
      %1910 = vmatprep.subr.bf16.mxu0 0
      %1911 = vmatpush1.bf16.msra.mxu0 0
      %1912 = vmatprep.subr.bf16.mxu0 0
      %1913 = vmatpush1.bf16.msra.mxu0 0
      %1914 = vmatprep.subr.bf16.mxu0 0
      %1915 = vmatpush1.bf16.msra.mxu0 0
      %1916 = vmatprep.subr.bf16.mxu0 0
      %1917 = vmatpush1.bf16.msra.mxu0 0
      %1918 = vmatprep.subr.bf16.mxu0 0
      %1919 = vmatpush1.bf16.msra.mxu0 0
      %1920 = vmatprep.subr.bf16.mxu0 0
      %1921 = vmatpush1.bf16.msra.mxu0 0
      %1922 = vmatprep.subr.bf16.mxu0 0
      %1923 = vmatpush1.bf16.msra.mxu0 0
      %1924 = vmatprep.subr.bf16.mxu0 0
      %1925 = vmatpush1.bf16.msra.mxu0 0
      %1926 = vmatprep.mubr.bf16.mxu0 0
      %1927 = vmatmul.mubr.bf16.gmra.mrb[0].mxu0 %v1748
      %v1928 = vpop.f32.mrb[0].mxu0
      %v1929 = vadd.f32 0.0, %v1928
      %v1930 = vpop.f32.mrb[0].mxu0
      %v1931 = vpop.f32.mrb[0].mxu0
      %v1932 = vpop.f32.mrb[0].mxu0
      %1933 = vdwg.mxu0
      %v1934 = vadd.f32 %v1714, %v1806
      %v1935 = vadd.f32 %v1715, %v1808
      %v1936 = vadd.f32 %v1716, %v1847
      %v1937 = vadd.f32 %v1717, %v1849
      %v1938 = vadd.f32 %v1718, %v1888
      %v1939 = vadd.f32 %v1719, %v1890
      %v1940 = vadd.f32 %v1720, %v1929
      %s1941 = scalar_lea.vmem %s1, 32
      %v1942 = vld [vmem:[%s1941] sm:$0xf]
      %1943 = vrot.lane.b32.xlu0 %v195, 66
      %v1944 = vpop.permute.xlu0 %1943
      %1945 = vrot.lane.b32.xlu0 %v196, 66
      %v1946 = vpop.permute.xlu0 %1945
      %1947 = vrot.lane.b32.xlu0 %v197, 66
      %v1948 = vpop.permute.xlu0 %1947
      %1949 = vrot.lane.b32.xlu0 %v198, 66
      %v1950 = vpop.permute.xlu0 %1949
      %1951 = vrot.lane.b32.xlu0 %v199, 66
      %v1952 = vpop.permute.xlu0 %1951
      %1953 = vrot.lane.b32.xlu0 %v200, 66
      %v1954 = vpop.permute.xlu0 %1953
      %1955 = vrot.lane.b32.xlu0 %v201, 66
      %v1956 = vpop.permute.xlu0 %1955
      %1957 = vrot.lane.b32.xlu0 %v202, 66
      %v1958 = vpop.permute.xlu0 %1957
      %vm1959 = vcmask 539648
      %v1960 = vsel %vm1959, %v1944, %v1946
      %v1961 = vsel %vm1959, %v1946, %v1948
      %v1962 = vsel %vm1959, %v1948, %v1950
      %v1963 = vsel %vm1959, %v1950, %v1952
      %v1964 = vsel %vm1959, %v1952, %v1954
      %v1965 = vsel %vm1959, %v1954, %v1956
      %v1966 = vsel %vm1959, %v1956, %v1958
      %v1968 = vsel %vm227, %v1942, 0
      %v1971 = vsel %vm231, %v1960, 0
      %v1974 = vsel %vm231, %v1961, 0
      %v1977 = vsel %vm231, %v1962, 0
      %v1980 = vsel %vm231, %v1963, 0
      %v1983 = vsel %vm231, %v1964, 0
      %v1986 = vsel %vm231, %v1965, 0
      %v1989 = vsel %vm231, %v1966, 0
      %1991 = vmatprep.subr.bf16.mxu0 %v1974
      %1992 = vmatpush1.bf16.msra.mxu0 %v1971
      %1993 = vmatprep.subr.bf16.mxu0 0
      %1994 = vmatpush1.bf16.msra.mxu0 0
      %1995 = vmatprep.subr.bf16.mxu0 0
      %1996 = vmatpush1.bf16.msra.mxu0 0
      %1997 = vmatprep.subr.bf16.mxu0 0
      %1998 = vmatpush1.bf16.msra.mxu0 0
      %1999 = vmatprep.subr.bf16.mxu0 0
      %2000 = vmatpush1.bf16.msra.mxu0 0
      %2001 = vmatprep.subr.bf16.mxu0 0
      %2002 = vmatpush1.bf16.msra.mxu0 0
      %2003 = vmatprep.subr.bf16.mxu0 0
      %2004 = vmatpush1.bf16.msra.mxu0 0
      %2005 = vmatprep.subr.bf16.mxu0 0
      %2006 = vmatpush1.bf16.msra.mxu0 0
      %2007 = vmatprep.subr.bf16.mxu0 0
      %2008 = vmatpush1.bf16.msra.mxu0 0
      %2009 = vmatprep.subr.bf16.mxu0 0
      %2010 = vmatpush1.bf16.msra.mxu0 0
      %2011 = vmatprep.subr.bf16.mxu0 0
      %2012 = vmatpush1.bf16.msra.mxu0 0
      %2013 = vmatprep.subr.bf16.mxu0 0
      %2014 = vmatpush1.bf16.msra.mxu0 0
      %2015 = vmatprep.subr.bf16.mxu0 0
      %2016 = vmatpush1.bf16.msra.mxu0 0
      %2017 = vmatprep.subr.bf16.mxu0 0
      %2018 = vmatpush1.bf16.msra.mxu0 0
      %2019 = vmatprep.subr.bf16.mxu0 0
      %2020 = vmatpush1.bf16.msra.mxu0 0
      %2021 = vmatprep.subr.bf16.mxu0 0
      %2022 = vmatpush1.bf16.msra.mxu0 0
      %2023 = vmatprep.mubr.bf16.mxu0 0
      %2024 = vmatmul.mubr.bf16.gmra.mrb[0].mxu0 %v1968
      %v2025 = vpop.f32.mrb[0].mxu0
      %v2026 = vadd.f32 0.0, %v2025
      %v2027 = vpop.f32.mrb[0].mxu0
      %v2028 = vadd.f32 0.0, %v2027
      %v2029 = vpop.f32.mrb[0].mxu0
      %v2030 = vpop.f32.mrb[0].mxu0
      %2031 = vdwg.mxu0
      %2032 = vmatprep.subr.bf16.mxu0 %v1980
      %2033 = vmatpush1.bf16.msra.mxu0 %v1977
      %2034 = vmatprep.subr.bf16.mxu0 0
      %2035 = vmatpush1.bf16.msra.mxu0 0
      %2036 = vmatprep.subr.bf16.mxu0 0
      %2037 = vmatpush1.bf16.msra.mxu0 0
      %2038 = vmatprep.subr.bf16.mxu0 0
      %2039 = vmatpush1.bf16.msra.mxu0 0
      %2040 = vmatprep.subr.bf16.mxu0 0
      %2041 = vmatpush1.bf16.msra.mxu0 0
      %2042 = vmatprep.subr.bf16.mxu0 0
      %2043 = vmatpush1.bf16.msra.mxu0 0
      %2044 = vmatprep.subr.bf16.mxu0 0
      %2045 = vmatpush1.bf16.msra.mxu0 0
      %2046 = vmatprep.subr.bf16.mxu0 0
      %2047 = vmatpush1.bf16.msra.mxu0 0
      %2048 = vmatprep.subr.bf16.mxu0 0
      %2049 = vmatpush1.bf16.msra.mxu0 0
      %2050 = vmatprep.subr.bf16.mxu0 0
      %2051 = vmatpush1.bf16.msra.mxu0 0
      %2052 = vmatprep.subr.bf16.mxu0 0
      %2053 = vmatpush1.bf16.msra.mxu0 0
      %2054 = vmatprep.subr.bf16.mxu0 0
      %2055 = vmatpush1.bf16.msra.mxu0 0
      %2056 = vmatprep.subr.bf16.mxu0 0
      %2057 = vmatpush1.bf16.msra.mxu0 0
      %2058 = vmatprep.subr.bf16.mxu0 0
      %2059 = vmatpush1.bf16.msra.mxu0 0
      %2060 = vmatprep.subr.bf16.mxu0 0
      %2061 = vmatpush1.bf16.msra.mxu0 0
      %2062 = vmatprep.subr.bf16.mxu0 0
      %2063 = vmatpush1.bf16.msra.mxu0 0
      %2064 = vmatprep.mubr.bf16.mxu0 0
      %2065 = vmatmul.mubr.bf16.gmra.mrb[0].mxu0 %v1968
      %v2066 = vpop.f32.mrb[0].mxu0
      %v2067 = vadd.f32 0.0, %v2066
      %v2068 = vpop.f32.mrb[0].mxu0
      %v2069 = vadd.f32 0.0, %v2068
      %v2070 = vpop.f32.mrb[0].mxu0
      %v2071 = vpop.f32.mrb[0].mxu0
      %2072 = vdwg.mxu0
      %2073 = vmatprep.subr.bf16.mxu0 %v1986
      %2074 = vmatpush1.bf16.msra.mxu0 %v1983
      %2075 = vmatprep.subr.bf16.mxu0 0
      %2076 = vmatpush1.bf16.msra.mxu0 0
      %2077 = vmatprep.subr.bf16.mxu0 0
      %2078 = vmatpush1.bf16.msra.mxu0 0
      %2079 = vmatprep.subr.bf16.mxu0 0
      %2080 = vmatpush1.bf16.msra.mxu0 0
      %2081 = vmatprep.subr.bf16.mxu0 0
      %2082 = vmatpush1.bf16.msra.mxu0 0
      %2083 = vmatprep.subr.bf16.mxu0 0
      %2084 = vmatpush1.bf16.msra.mxu0 0
      %2085 = vmatprep.subr.bf16.mxu0 0
      %2086 = vmatpush1.bf16.msra.mxu0 0
      %2087 = vmatprep.subr.bf16.mxu0 0
      %2088 = vmatpush1.bf16.msra.mxu0 0
      %2089 = vmatprep.subr.bf16.mxu0 0
      %2090 = vmatpush1.bf16.msra.mxu0 0
      %2091 = vmatprep.subr.bf16.mxu0 0
      %2092 = vmatpush1.bf16.msra.mxu0 0
      %2093 = vmatprep.subr.bf16.mxu0 0
      %2094 = vmatpush1.bf16.msra.mxu0 0
      %2095 = vmatprep.subr.bf16.mxu0 0
      %2096 = vmatpush1.bf16.msra.mxu0 0
      %2097 = vmatprep.subr.bf16.mxu0 0
      %2098 = vmatpush1.bf16.msra.mxu0 0
      %2099 = vmatprep.subr.bf16.mxu0 0
      %2100 = vmatpush1.bf16.msra.mxu0 0
      %2101 = vmatprep.subr.bf16.mxu0 0
      %2102 = vmatpush1.bf16.msra.mxu0 0
      %2103 = vmatprep.subr.bf16.mxu0 0
      %2104 = vmatpush1.bf16.msra.mxu0 0
      %2105 = vmatprep.mubr.bf16.mxu0 0
      %2106 = vmatmul.mubr.bf16.gmra.mrb[0].mxu0 %v1968
      %v2107 = vpop.f32.mrb[0].mxu0
      %v2108 = vadd.f32 0.0, %v2107
      %v2109 = vpop.f32.mrb[0].mxu0
      %v2110 = vadd.f32 0.0, %v2109
      %v2111 = vpop.f32.mrb[0].mxu0
      %v2112 = vpop.f32.mrb[0].mxu0
      %2113 = vdwg.mxu0
      %2114 = vmatprep.subr.bf16.mxu0 0
      %2115 = vmatpush1.bf16.msra.mxu0 %v1989
      %2116 = vmatprep.subr.bf16.mxu0 0
      %2117 = vmatpush1.bf16.msra.mxu0 0
      %2118 = vmatprep.subr.bf16.mxu0 0
      %2119 = vmatpush1.bf16.msra.mxu0 0
      %2120 = vmatprep.subr.bf16.mxu0 0
      %2121 = vmatpush1.bf16.msra.mxu0 0
      %2122 = vmatprep.subr.bf16.mxu0 0
      %2123 = vmatpush1.bf16.msra.mxu0 0
      %2124 = vmatprep.subr.bf16.mxu0 0
      %2125 = vmatpush1.bf16.msra.mxu0 0
      %2126 = vmatprep.subr.bf16.mxu0 0
      %2127 = vmatpush1.bf16.msra.mxu0 0
      %2128 = vmatprep.subr.bf16.mxu0 0
      %2129 = vmatpush1.bf16.msra.mxu0 0
      %2130 = vmatprep.subr.bf16.mxu0 0
      %2131 = vmatpush1.bf16.msra.mxu0 0
      %2132 = vmatprep.subr.bf16.mxu0 0
      %2133 = vmatpush1.bf16.msra.mxu0 0
      %2134 = vmatprep.subr.bf16.mxu0 0
      %2135 = vmatpush1.bf16.msra.mxu0 0
      %2136 = vmatprep.subr.bf16.mxu0 0
      %2137 = vmatpush1.bf16.msra.mxu0 0
      %2138 = vmatprep.subr.bf16.mxu0 0
      %2139 = vmatpush1.bf16.msra.mxu0 0
      %2140 = vmatprep.subr.bf16.mxu0 0
      %2141 = vmatpush1.bf16.msra.mxu0 0
      %2142 = vmatprep.subr.bf16.mxu0 0
      %2143 = vmatpush1.bf16.msra.mxu0 0
      %2144 = vmatprep.subr.bf16.mxu0 0
      %2145 = vmatpush1.bf16.msra.mxu0 0
      %2146 = vmatprep.mubr.bf16.mxu0 0
      %2147 = vmatmul.mubr.bf16.gmra.mrb[0].mxu0 %v1968
      %v2148 = vpop.f32.mrb[0].mxu0
      %v2149 = vadd.f32 0.0, %v2148
      %v2150 = vpop.f32.mrb[0].mxu0
      %v2151 = vpop.f32.mrb[0].mxu0
      %v2152 = vpop.f32.mrb[0].mxu0
      %2153 = vdwg.mxu0
      %v2154 = vadd.f32 %v1934, %v2026
      %v2155 = vadd.f32 %v1935, %v2028
      %v2156 = vadd.f32 %v1936, %v2067
      %v2157 = vadd.f32 %v1937, %v2069
      %v2158 = vadd.f32 %v1938, %v2108
      %v2159 = vadd.f32 %v1939, %v2110
      %v2160 = vadd.f32 %v1940, %v2149
      %v2161 = vld [vmem:[%s2] sm:$0xff]
      %2163 = vset.pattern.permute.xlu0 0
      %2164 = vperm.xlu0 %2163, %v2161
      %v2165 = vpop.permute.xlu0 %2164
      %v2167 = vadd.f32 %v2154, %v2165
      %v2168 = vadd.f32 %v2155, %v2165
      %v2169 = vadd.f32 %v2156, %v2165
      %v2170 = vadd.f32 %v2157, %v2165
      %v2171 = vadd.f32 %v2158, %v2165
      %v2172 = vadd.f32 %v2159, %v2165
      %v2173 = vadd.f32 %v2160, %v2165
      %v2174 = vtanh.pop %v2167
      %v2175 = vtanh.pop %v2168
      %v2176 = vtanh.pop %v2169
      %v2177 = vtanh.pop %v2170
      %v2178 = vtanh.pop %v2171
      %v2179 = vtanh.pop %v2172
      %v2180 = vtanh.pop %v2173
      %2181 = vst [vmem:[%s170] sm:$0xff] %v2174
      %2182 = vst [vmem:[%s170 + $0x8] sm:$0xff] %v2175
      %2183 = vst [vmem:[%s170 + $0x10] sm:$0xff] %v2176
      %2184 = vst [vmem:[%s170 + $0x18] sm:$0xff] %v2177
      %2185 = vst [vmem:[%s170 + $0x20] sm:$0xff] %v2178
      %2186 = vst [vmem:[%s170 + $0x28] sm:$0xff] %v2179
      %2187 = vst [vmem:[%s170 + $0x30] sm:$0xff] %v2180
      %p2188 = scmp.lt.s32.totalorder %s14, 1
      %s2189 = scalar_select %p2188, %s14, 1
      %s2190 = smul.addr %s2189, 7
      %s2191 = smul.addr %s2190, 8
      %s2192 = scalar_lea.vmem %s3, %s2191
      // Predicated region
      $region33: #{generator_forward.15} parent=31 // pred_check
        %p2193 = pneg %p100
      $region34: #{generator_forward.15} parent=31 // pred_check_branch
        %2195 = sbr.rel (%p2193) target = $region36
      $region35: #{generator_forward.15} parent=31 // pred_region
        _
      $region36: #{generator_forward.15} parent=31 // pred_fallthru
        _
    $region32: #{generator_forward.15} parent=5 // pred_fallthru
      _
    %p2196 = scmp.le.s32.totalorder 2, %s9
    // Predicated region
    $region37: #{generator_forward.15} parent=5 // pred_check
      %p2197 = pneg %p2196
    $region38: #{generator_forward.15} parent=5 // pred_check_branch
      %2199 = sbr.rel (%p2197) target = $region40
    $region39: #{generator_forward.15} parent=5 // pred_region
      %s2200 = ssub.s32 %s9, 2
      // Predicated region
      $region41: #{generator_forward.15} parent=39 // pred_check
        %p2201 = pneg %p106
      $region42: #{generator_forward.15} parent=39 // pred_check_branch
        %2203 = sbr.rel (%p2201) target = $region44
      $region43: #{generator_forward.15} parent=39 // pred_region
        %p2204 = scmp.lt.s32.totalorder %s15, 1
        %s2205 = scalar_select %p2204, %s15, 1
        %s2206 = smul.addr %s2205, 7
        %s2207 = smul.addr %s2206, 8
        %s2208 = scalar_lea.vmem %s3, %s2207
      $region44: #{generator_forward.15} parent=39 // pred_fallthru
        _
    $region40: #{generator_forward.15} parent=5 // pred_fallthru
      _
  $region6: #{generator_forward.15} parent=0 // loop_footer
    %s13 = sadd.s32 1, %s9
  $region7: #{generator_forward.15} parent=0 // loop_footer_branch
    %8 = sbr.rel target = $region3
  $region8: #{generator_forward.15} parent=0 // loop_exit
    _

</llo_original>
